<compile_context>
chip_gen: v5e
topology: v5e:2x2
jax: 0.10.0
libtpu: 0.0.40
codegen_flags: <defaults>
</compile_context>

<pallas_src>
import functools

import jax
import jax.numpy as jnp
from jax.experimental import pallas as pl
from jax.experimental.pallas import tpu as pltpu

LN_EPS = 1e-5  # torch nn.LayerNorm default


# ----------------------------- in-kernel helpers -----------------------------

def _layernorm(x, g, b):
    mu = jnp.mean(x, axis=-1, keepdims=True)
    xc = x - mu
    var = jnp.mean(xc * xc, axis=-1, keepdims=True)
    return xc * jax.lax.rsqrt(var + LN_EPS) * g + b


def _gelu_tanh(x):
    # TODO(synk): torch F.gelu uses the exact erf form; tanh approximation used here
    # since erf has no guaranteed Mosaic lowering (difference ~1e-3).
    c = 0.7978845608028654  # sqrt(2/pi)
    return 0.5 * x * (1.0 + jnp.tanh(c * (x + 0.044715 * x * x * x)))


# ------------------------------ tokenizer kernel ------------------------------

def _tokenizer_kernel(patch_ref, w_ref, sel_ref, o_ref, *, wc):
    # patch_ref: (Hc*Wc, Kp) im2col patches of ONE image (Kp padded to 32)
    # w_ref    : (Kp, Cout) conv weight
    # sel_ref  : (3, Ho*Wo, Hc*Wc) one-hot selectors for dx in (-1, 0, +1) at stride-2 centers
    # o_ref    : (Ho*Wo, Cout) tokens for this image
    cout = w_ref.shape[1]

    # Conv (single MXU matmul) + ReLU, all in VMEM.
    conv = jnp.maximum(
        jnp.dot(patch_ref[...], w_ref[...], preferred_element_type=jnp.float32), 0.0)

    # Vertical 3-tap window max: shift by one full image row (tile-aligned slices).
    # Out-of-range rows contribute 0, which is safe because values are post-ReLU (>= 0)
    # and the window center is always in range.
    zeros = jnp.zeros((wc, cout), jnp.float32)
    down = jnp.concatenate([conv[wc:, :], zeros], axis=0)   # conv[y+1, x]
    up = jnp.concatenate([zeros, conv[:-wc, :]], axis=0)    # conv[y-1, x]
    vmax = jnp.maximum(conv, jnp.maximum(up, down))

    # Horizontal 3-tap window max + stride-2 center selection as three one-hot matmuls.
    out = jnp.dot(sel_ref[0], vmax, preferred_element_type=jnp.float32)
    out = jnp.maximum(out, jnp.dot(sel_ref[1], vmax, preferred_element_type=jnp.float32))
    out = jnp.maximum(out, jnp.dot(sel_ref[2], vmax, preferred_element_type=jnp.float32))
    o_ref[...] = out


def tokenizer_forward(x_nchw, w_mat, *, ksize=3, stride=1, pad=1,
                      pool_k=3, pool_s=2, pool_p=1):
    """Conv2d(k,s,p,no bias) + ReLU + MaxPool2d(3,2,1) + flatten -> (B*N, D) tokens."""
    B, Cin, H, W = x_nchw.shape
    Kp, Cout = w_mat.shape
    x = jnp.transpose(x_nchw, (0, 2, 3, 1))  # NHWC

    # im2col in the wrapper (cheap: 9*Cin columns << Cout), contraction padded to Kp.
    Hc = (H + 2 * pad - ksize) // stride + 1
    Wc = (W + 2 * pad - ksize) // stride + 1
    xp = jnp.pad(x, ((0, 0), (pad, pad), (pad, pad), (0, 0)))
    patches = jnp.stack(
        [xp[:, ky:ky + (Hc - 1) * stride + 1:stride,
             kx:kx + (Wc - 1) * stride + 1:stride, :]
         for ky in range(ksize) for kx in range(ksize)],
        axis=3)                                              # (B, Hc, Wc, K*K, Cin)
    patches = patches.reshape(B * Hc * Wc, ksize * ksize * Cin)
    patches = jnp.pad(patches, ((0, 0), (0, Kp - ksize * ksize * Cin)))

    # TODO(synk): pooling fusion below assumes the CCT defaults (3x3, stride 2, pad 1)
    # and an even conv output size; other pool configs would need a general kernel.
    assert pool_k == 3 and pool_s == 2 and pool_p == 1 and Hc % 2 == 0 and Wc % 2 == 0
    Ho = (Hc + 2 * pool_p - pool_k) // pool_s + 1
    Wo = (Wc + 2 * pool_p - pool_k) // pool_s + 1

    # One-hot selectors picking flat index (2*oy)*Wc + (2*ox + dx); invalid dx -> zero row.
    out_idx = jnp.arange(Ho * Wo)
    oy, ox = out_idx // Wo, out_idx % Wo
    sels = []
    for dx in (-1, 0, 1):
        col = pool_s * ox + dx
        valid = (col >= 0) & (col < Wc)
        src = pool_s * oy * Wc + jnp.clip(col, 0, Wc - 1)
        sel = (jnp.arange(Hc * Wc)[None, :] == src[:, None]) & valid[:, None]
        sels.append(sel.astype(jnp.float32))
    sel = jnp.stack(sels, axis=0)                            # (3, Ho*Wo, Hc*Wc)

    kernel = functools.partial(_tokenizer_kernel, wc=Wc)
    tok = pl.pallas_call(
        kernel,
        out_shape=jax.ShapeDtypeStruct((B * Ho * Wo, Cout), jnp.float32),
        grid=(B,),
        in_specs=[pl.BlockSpec((Hc * Wc, Kp), lambda b: (b, 0)),
                  pl.BlockSpec((Kp, Cout), lambda b: (0, 0)),
                  pl.BlockSpec((3, Ho * Wo, Hc * Wc), lambda b: (0, 0, 0))],
        out_specs=pl.BlockSpec((Ho * Wo, Cout), lambda b: (b, 0)),
        compiler_params=pltpu.CompilerParams(dimension_semantics=("parallel",)),
    )(patches, w_mat, sel)
    return tok, Ho * Wo


# --------------------- fused transformer stack + seq-pool ---------------------

def _encoder_stack_kernel(x_ref, pos_ref,
                          ln0g, ln0b, wqkv, wproj, bproj,
                          ln1g, ln1b, w1, b1, w2, b2,
                          lnfg, lnfb, wpool, bpool,
                          o_ref, xbuf, attn_scr,
                          *, num_heads, head_dim, batch, seq):
    D = num_heads * head_dim
    l = pl.program_id(0)

    @pl.when(l == 0)
    def _init():
        # Fold the learnable positional embedding into the first grid step.
        # Dropout is identity in eval mode.
        xbuf[...] = x_ref[...] + pos_ref[...]

    x = xbuf[...]                                            # (M, D) residual stream in VMEM

    # ---- pre_norm + fused QKV projection (bf16 MXU, f32 accumulate; q pre-scaled) ----
    xn = _layernorm(x, ln0g[0], ln0b[0])
    qkv = jnp.dot(xn.astype(jnp.bfloat16), wqkv[0],
                  preferred_element_type=jnp.float32)        # (M, 3D)

    # ---- multi-head self-attention (per-head projection accumulated, no concat) ----
    wproj_l = wproj[0]
    for b in range(batch):
        qkv_b = qkv[b * seq:(b + 1) * seq, :]
        acc = jnp.zeros((seq, D), jnp.float32)
        for h in range(num_heads):
            q = qkv_b[:, h * head_dim:(h + 1) * head_dim]
            k = qkv_b[:, D + h * head_dim:D + (h + 1) * head_dim]
            v = qkv_b[:, 2 * D + h * head_dim:2 * D + (h + 1) * head_dim]
            s = jax.lax.dot_general(q.astype(jnp.bfloat16), k.astype(jnp.bfloat16),
                                    (((1,), (1,)), ((), ())),
                                    preferred_element_type=jnp.float32)   # (N, N)
            s = s - jnp.max(s, axis=-1, keepdims=True)
            e = jnp.exp(s)
            p = e * pl.reciprocal(jnp.sum(e, axis=-1, keepdims=True), approx=True)
            ctx = jnp.dot(p.astype(jnp.bfloat16), v.astype(jnp.bfloat16),
                          preferred_element_type=jnp.float32)             # (N, hd)
            acc = acc + jnp.dot(ctx.astype(jnp.bfloat16),
                                wproj_l[h * head_dim:(h + 1) * head_dim, :],
                                preferred_element_type=jnp.float32)
        attn_scr[b * seq:(b + 1) * seq, :] = acc
    x1 = x + attn_scr[...] + bproj[0]                        # attention residual (+ proj bias once)

    # ---- norm1 + MLP.  Reference module: src = norm1(src); src = src + mlp(src),
    #      i.e. the MLP residual is taken from the *normalized* stream. ----
    xn1 = _layernorm(x1, ln1g[0], ln1b[0])
    h1 = jnp.dot(xn1.astype(jnp.bfloat16), w1[0], preferred_element_type=jnp.float32) + b1[0]
    h1 = _gelu_tanh(h1)
    h2 = jnp.dot(h1.astype(jnp.bfloat16), w2[0], preferred_element_type=jnp.float32) + b2[0]
    xbuf[...] = xn1 + h2

    # ---- final LayerNorm + sequence pooling fused into the last grid step ----
    @pl.when(l == pl.num_programs(0) - 1)
    def _finalize():
        xf = _layernorm(xbuf[...], lnfg[...], lnfb[...])
        for b in range(batch):
            xb = xf[b * seq:(b + 1) * seq, :]                # (N, D)
            logits = jax.lax.dot_general(wpool[...], xb, (((1,), (1,)), ((), ())),
                                         preferred_element_type=jnp.float32) + bpool[...]  # (1, N)
            logits = logits - jnp.max(logits, axis=-1, keepdims=True)
            e = jnp.exp(logits)
            w = e * pl.reciprocal(jnp.sum(e, axis=-1, keepdims=True), approx=True)
            o_ref[b:b + 1, :] = jnp.dot(w, xb, preferred_element_type=jnp.float32)


def encoder_stack(tokens2d, pos2d, layers, final_ln, pool, *, num_heads, batch, seq):
    M, D = tokens2d.shape
    L = layers["wqkv"].shape[0]
    head_dim = D // num_heads
    kernel = functools.partial(_encoder_stack_kernel, num_heads=num_heads,
                               head_dim=head_dim, batch=batch, seq=seq)

    def per_layer(shape):
        return pl.BlockSpec((1,) + tuple(shape[1:]),
                            lambda l: (l,) + (0,) * (len(shape) - 1))

    def shared(shape):
        return pl.BlockSpec(tuple(shape), lambda l: (0,) * len(shape))

    lnfg, lnfb = final_ln
    wpool, bpool = pool
    layer_keys = ("ln0g", "ln0b", "wqkv", "wproj", "bproj",
                  "ln1g", "ln1b", "w1", "b1", "w2", "b2")
    inputs = (tokens2d, pos2d) + tuple(layers[k] for k in layer_keys) \
        + (lnfg, lnfb, wpool, bpool)
    in_specs = [shared(tokens2d.shape), shared(pos2d.shape)] \
        + [per_layer(layers[k].shape) for k in layer_keys] \
        + [shared(lnfg.shape), shared(lnfb.shape), shared(wpool.shape), shared(bpool.shape)]

    # TODO(synk): for realistic CCT sequence lengths the attention inside this kernel
    # should be tiled flash-style to stay within v7x's VMEM; fine at N=64 here.
    return pl.pallas_call(
        kernel,
        out_shape=jax.ShapeDtypeStruct((batch, D), jnp.float32),
        grid=(L,),
        in_specs=in_specs,
        out_specs=pl.BlockSpec((batch, D), lambda l: (0, 0)),
        scratch_shapes=[pltpu.VMEM((M, D), jnp.float32),     # resident residual stream
                        pltpu.VMEM((M, D), jnp.float32)],    # attention output accumulator
        compiler_params=pltpu.CompilerParams(dimension_semantics=("arbitrary",)),
    )(*inputs)


# --------------------------------- parameters ---------------------------------

def init_params(key, *, cin, embed, num_heads, num_layers, mlp_ratio, seq_len, ksize):
    ff = int(embed * mlp_ratio)
    head_dim = embed // num_heads
    scale = head_dim ** -0.5
    k_conv, k_pos, k_pool, k_layers = jax.random.split(key, 4)

    def trunc(k, shape, std=0.02):
        return jax.random.truncated_normal(k, -2.0, 2.0, shape, jnp.float32) * std

    # Conv2d: kaiming normal (fan_in, relu gain); contraction padded to a multiple of 32.
    fan_in = cin * ksize * ksize
    w_conv = jax.random.normal(k_conv, (ksize, ksize, cin, embed), jnp.float32) \
        * jnp.sqrt(2.0 / fan_in)
    kdim = ksize * ksize * cin
    kp = ((kdim + 31) // 32) * 32
    w_mat = jnp.pad(w_conv.reshape(kdim, embed), ((0, kp - kdim), (0, 0)))

    pos_emb = trunc(k_pos, (seq_len, embed), std=0.2)

    acc = {k: [] for k in ("ln0g", "ln0b", "wqkv", "wproj", "bproj",
                           "ln1g", "ln1b", "w1", "b1", "w2", "b2")}
    for lk in jax.random.split(k_layers, num_layers):
        k0, k1, k2, k3 = jax.random.split(lk, 4)
        wqkv = trunc(k0, (3 * embed, embed)).T               # (D, 3D), torch Linear.T
        wqkv = wqkv.at[:, :embed].multiply(scale)            # fold attention scale into q
        acc["wqkv"].append(wqkv.astype(jnp.bfloat16))
        acc["wproj"].append(trunc(k1, (embed, embed)).T.astype(jnp.bfloat16))
        acc["bproj"].append(jnp.zeros((1, embed), jnp.float32))
        acc["w1"].append(trunc(k2, (ff, embed)).T.astype(jnp.bfloat16))
        acc["b1"].append(jnp.zeros((1, ff), jnp.float32))
        acc["w2"].append(trunc(k3, (embed, ff)).T.astype(jnp.bfloat16))
        acc["b2"].append(jnp.zeros((1, embed), jnp.float32))
        acc["ln0g"].append(jnp.ones((1, embed), jnp.float32))
        acc["ln0b"].append(jnp.zeros((1, embed), jnp.float32))
        acc["ln1g"].append(jnp.ones((1, embed), jnp.float32))
        acc["ln1b"].append(jnp.zeros((1, embed), jnp.float32))
    layers = {k: jnp.stack(v, axis=0) for k, v in acc.items()}

    final_ln = (jnp.ones((1, embed), jnp.float32), jnp.zeros((1, embed), jnp.float32))
    wpool = trunc(k_pool, (1, embed))                        # attention_pool Linear(D, 1)
    bpool = jnp.zeros((1, 1), jnp.float32)
    return dict(w_mat=w_mat, pos_emb=pos_emb, layers=layers,
                final_ln=final_ln, pool=(wpool, bpool))


# ----------------------------------- forward -----------------------------------

def cct_forward(x_nchw, params, *, num_heads):
    B = x_nchw.shape[0]
    tok2d, n_tok = tokenizer_forward(x_nchw, params["w_mat"])       # (B*N, D)
    assert n_tok == params["pos_emb"].shape[0]
    pos2d = jnp.tile(params["pos_emb"], (B, 1))                     # (B*N, D)
    return encoder_stack(tok2d, pos2d, params["layers"], params["final_ln"],
                         params["pool"], num_heads=num_heads, batch=B, seq=n_tok)


# ------------------------------------- main -------------------------------------

if __name__ == "__main__":
    # Small CCT config: img 16x16, conv k3/s1/p1 -> 16x16, maxpool 3/2/1 -> 8x8 tokens
    B, Cin, H, W = 2, 3, 16, 16
    embed, num_heads, num_layers, mlp_ratio = 64, 4, 2, 2.0
    seq_len = 8 * 8

    key = jax.random.PRNGKey(0)
    k_x, k_p = jax.random.split(key)
    x = jax.random.normal(k_x, (B, Cin, H, W), jnp.float32)
    params = init_params(k_p, cin=Cin, embed=embed, num_heads=num_heads,
                         num_layers=num_layers, mlp_ratio=mlp_ratio,
                         seq_len=seq_len, ksize=3)

    fwd = jax.jit(lambda inp: cct_forward(inp, params, num_heads=num_heads))
    out = fwd(x)
    jax.block_until_ready(out)
    assert out.shape == (B, embed), out.shape
    assert bool(jnp.all(jnp.isfinite(out)))
    print("KERNEL_OK")
</pallas_src>

<mosaic_0001>
module attributes {stable_mosaic.version = 11 : i64} {
  func.func @_tokenizer_kernel(%arg0: i32, %arg1: memref<256x32xf32, #tpu.memory_space<vmem>>, %arg2: memref<32x64xf32, #tpu.memory_space<vmem>>, %arg3: memref<3x64x256xf32, #tpu.memory_space<vmem>>, %arg4: memref<64x64xf32, #tpu.memory_space<vmem>>) attributes {dimension_semantics = [#tpu.dimension_semantics<parallel>], iteration_bounds = array<i64: 2>, scalar_prefetch = 0 : i64, scratch_operands = 0 : i64, tpu.core_type = #tpu.core_type<tc>, window_params = [{transform_indices = @transform_0, window_bounds = array<i64: 256, 32>}, {pipeline_mode = #tpu.pipeline_mode<synchronous>, transform_indices = @transform_1, window_bounds = array<i64: 32, 64>}, {pipeline_mode = #tpu.pipeline_mode<synchronous>, transform_indices = @transform_2, window_bounds = array<i64: 3, 64, 256>}, {transform_indices = @transform_3, window_bounds = array<i64: 64, 64>}]} {
    %c0 = arith.constant 0 : index
    %c0_0 = arith.constant 0 : index
    %0 = vector.load %arg1[%c0, %c0_0] : memref<256x32xf32, #tpu.memory_space<vmem>>, vector<256x32xf32>
    %c0_1 = arith.constant 0 : index
    %c0_2 = arith.constant 0 : index
    %1 = vector.load %arg2[%c0_1, %c0_2] : memref<32x64xf32, #tpu.memory_space<vmem>>, vector<32x64xf32>
    %cst = arith.constant dense<0.000000e+00> : vector<256x64xf32>
    %2 = tpu.matmul %0, %1, %cst {dimension_numbers = #tpu.dot_dimension_numbers<[1], [0], [0], [1], [0, 0, 1, 1], [], []>} : vector<256x32xf32>, vector<32x64xf32>, vector<256x64xf32> -> vector<256x64xf32>
    %cst_3 = arith.constant 0.000000e+00 : f32
    %3 = vector.broadcast %cst_3 : f32 to vector<256x64xf32>
    %4 = arith.maximumf %2, %3 : vector<256x64xf32>
    %cst_4 = arith.constant 0.000000e+00 : f32
    %5 = vector.broadcast %cst_4 : f32 to vector<16x64xf32>
    %6 = vector.extract_strided_slice %4 {offsets = [16, 0], sizes = [240, 64], strides = [1, 1]} : vector<256x64xf32> to vector<240x64xf32>
    %7 = tpu.concatenate %6, %5 in 0 : vector<240x64xf32>, vector<16x64xf32> -> vector<256x64xf32>
    %8 = vector.extract_strided_slice %4 {offsets = [0, 0], sizes = [240, 64], strides = [1, 1]} : vector<256x64xf32> to vector<240x64xf32>
    %9 = tpu.concatenate %5, %8 in 0 : vector<16x64xf32>, vector<240x64xf32> -> vector<256x64xf32>
    %10 = arith.maximumf %9, %7 : vector<256x64xf32>
    %11 = arith.maximumf %4, %10 : vector<256x64xf32>
    %c0_5 = arith.constant 0 : index
    %c0_6 = arith.constant 0 : index
    %c0_7 = arith.constant 0 : index
    %12 = vector.load %arg3[%c0_5, %c0_6, %c0_7] : memref<3x64x256xf32, #tpu.memory_space<vmem>>, vector<1x64x256xf32>
    %13 = vector.shape_cast %12 : vector<1x64x256xf32> to vector<64x256xf32>
    %cst_8 = arith.constant dense<0.000000e+00> : vector<64x64xf32>
    %14 = tpu.matmul %13, %11, %cst_8 {dimension_numbers = #tpu.dot_dimension_numbers<[1], [0], [0], [1], [0, 0, 1, 1], [], []>} : vector<64x256xf32>, vector<256x64xf32>, vector<64x64xf32> -> vector<64x64xf32>
    %c1 = arith.constant 1 : index
    %c0_9 = arith.constant 0 : index
    %c0_10 = arith.constant 0 : index
    %15 = vector.load %arg3[%c1, %c0_9, %c0_10] : memref<3x64x256xf32, #tpu.memory_space<vmem>>, vector<1x64x256xf32>
    %16 = vector.shape_cast %15 : vector<1x64x256xf32> to vector<64x256xf32>
    %cst_11 = arith.constant dense<0.000000e+00> : vector<64x64xf32>
    %17 = tpu.matmul %16, %11, %cst_11 {dimension_numbers = #tpu.dot_dimension_numbers<[1], [0], [0], [1], [0, 0, 1, 1], [], []>} : vector<64x256xf32>, vector<256x64xf32>, vector<64x64xf32> -> vector<64x64xf32>
    %18 = arith.maximumf %14, %17 : vector<64x64xf32>
    %c2 = arith.constant 2 : index
    %c0_12 = arith.constant 0 : index
    %c0_13 = arith.constant 0 : index
    %19 = vector.load %arg3[%c2, %c0_12, %c0_13] : memref<3x64x256xf32, #tpu.memory_space<vmem>>, vector<1x64x256xf32>
    %20 = vector.shape_cast %19 : vector<1x64x256xf32> to vector<64x256xf32>
    %cst_14 = arith.constant dense<0.000000e+00> : vector<64x64xf32>
    %21 = tpu.matmul %20, %11, %cst_14 {dimension_numbers = #tpu.dot_dimension_numbers<[1], [0], [0], [1], [0, 0, 1, 1], [], []>} : vector<64x256xf32>, vector<256x64xf32>, vector<64x64xf32> -> vector<64x64xf32>
    %22 = arith.maximumf %18, %21 : vector<64x64xf32>
    %c0_15 = arith.constant 0 : index
    %c0_16 = arith.constant 0 : index
    %23 = vector.load %arg4[%c0_15, %c0_16] : memref<64x64xf32, #tpu.memory_space<vmem>>, vector<64x64xf32>
    tpu.vector_store %arg4[%c0_15, %c0_16], %22 {strides = array<i32>} : memref<64x64xf32, #tpu.memory_space<vmem>>, vector<64x64xf32>,
    return
  }
  func.func @transform_0(%arg0: i32) -> (i32, i32) {
    %c0_i32 = arith.constant 0 : i32
    %c0_i32_0 = arith.constant 0 : i32
    return %arg0, %c0_i32 : i32, i32
  }
  func.func @transform_1(%arg0: i32) -> (i32, i32) {
    %c0_i32 = arith.constant 0 : i32
    %c0_i32_0 = arith.constant 0 : i32
    %c0_i32_1 = arith.constant 0 : i32
    return %c0_i32, %c0_i32_0 : i32, i32
  }
  func.func @transform_2(%arg0: i32) -> (i32, i32, i32) {
    %c0_i32 = arith.constant 0 : i32
    %c0_i32_0 = arith.constant 0 : i32
    %c0_i32_1 = arith.constant 0 : i32
    %c0_i32_2 = arith.constant 0 : i32
    return %c0_i32, %c0_i32_0, %c0_i32_1 : i32, i32, i32
  }
  func.func @transform_3(%arg0: i32) -> (i32, i32) {
    %c0_i32 = arith.constant 0 : i32
    %c0_i32_0 = arith.constant 0 : i32
    return %arg0, %c0_i32 : i32, i32
  }
}

module attributes {stable_mosaic.version = 11 : i64} {
  func.func @_encoder_stack_kernel(%arg0: i32, %arg1: memref<128x64xf32, #tpu.memory_space<vmem>>, %arg2: memref<128x64xf32, #tpu.memory_space<vmem>>, %arg3: memref<1x1x64xf32, #tpu.memory_space<vmem>>, %arg4: memref<1x1x64xf32, #tpu.memory_space<vmem>>, %arg5: memref<1x64x192xbf16, #tpu.memory_space<vmem>>, %arg6: memref<1x64x64xbf16, #tpu.memory_space<vmem>>, %arg7: memref<1x1x64xf32, #tpu.memory_space<vmem>>, %arg8: memref<1x1x64xf32, #tpu.memory_space<vmem>>, %arg9: memref<1x1x64xf32, #tpu.memory_space<vmem>>, %arg10: memref<1x64x128xbf16, #tpu.memory_space<vmem>>, %arg11: memref<1x1x128xf32, #tpu.memory_space<vmem>>, %arg12: memref<1x128x64xbf16, #tpu.memory_space<vmem>>, %arg13: memref<1x1x64xf32, #tpu.memory_space<vmem>>, %arg14: memref<1x64xf32, #tpu.memory_space<vmem>>, %arg15: memref<1x64xf32, #tpu.memory_space<vmem>>, %arg16: memref<1x64xf32, #tpu.memory_space<vmem>>, %arg17: memref<1x1xf32, #tpu.memory_space<vmem>>, %arg18: memref<2x64xf32, #tpu.memory_space<vmem>>, %arg19: memref<128x64xf32, #tpu.memory_space<vmem>>, %arg20: memref<128x64xf32, #tpu.memory_space<vmem>>) attributes {dimension_semantics = [#tpu.dimension_semantics<arbitrary>], iteration_bounds = array<i64: 2>, scalar_prefetch = 0 : i64, scratch_operands = 2 : i64, tpu.core_type = #tpu.core_type<tc>, window_params = [{pipeline_mode = #tpu.pipeline_mode<synchronous>, transform_indices = @transform_0, window_bounds = array<i64: 128, 64>}, {pipeline_mode = #tpu.pipeline_mode<synchronous>, transform_indices = @transform_1, window_bounds = array<i64: 128, 64>}, {transform_indices = @transform_2, window_bounds = array<i64: 1, 1, 64>}, {transform_indices = @transform_3, window_bounds = array<i64: 1, 1, 64>}, {transform_indices = @transform_4, window_bounds = array<i64: 1, 64, 192>}, {transform_indices = @transform_5, window_bounds = array<i64: 1, 64, 64>}, {transform_indices = @transform_6, window_bounds = array<i64: 1, 1, 64>}, {transform_indices = @transform_7, window_bounds = array<i64: 1, 1, 64>}, {transform_indices = @transform_8, window_bounds = array<i64: 1, 1, 64>}, {transform_indices = @transform_9, window_bounds = array<i64: 1, 64, 128>}, {transform_indices = @transform_10, window_bounds = array<i64: 1, 1, 128>}, {transform_indices = @transform_11, window_bounds = array<i64: 1, 128, 64>}, {transform_indices = @transform_12, window_bounds = array<i64: 1, 1, 64>}, {pipeline_mode = #tpu.pipeline_mode<synchronous>, transform_indices = @transform_13, window_bounds = array<i64: 1, 64>}, {pipeline_mode = #tpu.pipeline_mode<synchronous>, transform_indices = @transform_14, window_bounds = array<i64: 1, 64>}, {pipeline_mode = #tpu.pipeline_mode<synchronous>, transform_indices = @transform_15, window_bounds = array<i64: 1, 64>}, {pipeline_mode = #tpu.pipeline_mode<synchronous>, transform_indices = @transform_16, window_bounds = array<i64: 1, 1>}, {pipeline_mode = #tpu.pipeline_mode<synchronous>, transform_indices = @transform_17, window_bounds = array<i64: 2, 64>}]} {
    %c0_i32 = arith.constant 0 : i32
    %0 = arith.cmpi eq, %arg0, %c0_i32 : i32
    %1 = arith.extui %0 : i1 to i32
    %c0_i32_0 = arith.constant 0 : i32
    %2 = arith.cmpi ne, %1, %c0_i32_0 : i32
    scf.if %2 {
      %c0_101 = arith.constant 0 : index
      %c0_102 = arith.constant 0 : index
      %288 = vector.load %arg1[%c0_101, %c0_102] : memref<128x64xf32, #tpu.memory_space<vmem>>, vector<128x64xf32>
      %c0_103 = arith.constant 0 : index
      %c0_104 = arith.constant 0 : index
      %289 = vector.load %arg2[%c0_103, %c0_104] : memref<128x64xf32, #tpu.memory_space<vmem>>, vector<128x64xf32>
      %290 = arith.addf %288, %289 : vector<128x64xf32>
      %c0_105 = arith.constant 0 : index
      %c0_106 = arith.constant 0 : index
      %291 = vector.load %arg19[%c0_105, %c0_106] : memref<128x64xf32, #tpu.memory_space<vmem>>, vector<128x64xf32>
      tpu.vector_store %arg19[%c0_105, %c0_106], %290 {strides = array<i32>} : memref<128x64xf32, #tpu.memory_space<vmem>>, vector<128x64xf32>,
    } else {
    }
    %c0 = arith.constant 0 : index
    %c0_1 = arith.constant 0 : index
    %3 = vector.load %arg19[%c0, %c0_1] : memref<128x64xf32, #tpu.memory_space<vmem>>, vector<128x64xf32>
    %c0_2 = arith.constant 0 : index
    %c0_3 = arith.constant 0 : index
    %c0_4 = arith.constant 0 : index
    %4 = vector.load %arg3[%c0_2, %c0_3, %c0_4] : memref<1x1x64xf32, #tpu.memory_space<vmem>>, vector<1x1x64xf32>
    %5 = vector.shape_cast %4 : vector<1x1x64xf32> to vector<1x64xf32>
    %c0_5 = arith.constant 0 : index
    %c0_6 = arith.constant 0 : index
    %c0_7 = arith.constant 0 : index
    %6 = vector.load %arg4[%c0_5, %c0_6, %c0_7] : memref<1x1x64xf32, #tpu.memory_space<vmem>>, vector<1x1x64xf32>
    %7 = vector.shape_cast %6 : vector<1x1x64xf32> to vector<1x64xf32>
    %cst = arith.constant dense<0.000000e+00> : vector<128xf32>
    %8 = vector.multi_reduction <add>, %3, %cst [1] : vector<128x64xf32> to vector<128xf32>
    %9 = vector.shape_cast %8 : vector<128xf32> to vector<128x1xf32>
    %cst_8 = arith.constant 6.400000e+01 : f32
    %10 = vector.broadcast %cst_8 : f32 to vector<128x1xf32>
    %11 = arith.divf %9, %10 : vector<128x1xf32>
    %12 = vector.broadcast %11 : vector<128x1xf32> to vector<128x64xf32>
    %13 = arith.subf %3, %12 : vector<128x64xf32>
    %14 = arith.mulf %13, %13 : vector<128x64xf32>
    %cst_9 = arith.constant dense<0.000000e+00> : vector<128xf32>
    %15 = vector.multi_reduction <add>, %14, %cst_9 [1] : vector<128x64xf32> to vector<128xf32>
    %16 = vector.shape_cast %15 : vector<128xf32> to vector<128x1xf32>
    %cst_10 = arith.constant 6.400000e+01 : f32
    %17 = vector.broadcast %cst_10 : f32 to vector<128x1xf32>
    %18 = arith.divf %16, %17 : vector<128x1xf32>
    %cst_11 = arith.constant 9.99999974E-6 : f32
    %19 = vector.broadcast %cst_11 : f32 to vector<128x1xf32>
    %20 = arith.addf %18, %19 : vector<128x1xf32>
    %21 = math.rsqrt %20 : vector<128x1xf32>
    %22 = vector.broadcast %21 : vector<128x1xf32> to vector<128x64xf32>
    %23 = arith.mulf %13, %22 : vector<128x64xf32>
    %24 = vector.broadcast %5 : vector<1x64xf32> to vector<128x64xf32>
    %25 = arith.mulf %23, %24 : vector<128x64xf32>
    %26 = vector.broadcast %7 : vector<1x64xf32> to vector<128x64xf32>
    %27 = arith.addf %25, %26 : vector<128x64xf32>
    %28 = arith.truncf %27 : vector<128x64xf32> to vector<128x64xbf16>
    %c0_12 = arith.constant 0 : index
    %c0_13 = arith.constant 0 : index
    %c0_14 = arith.constant 0 : index
    %29 = vector.load %arg5[%c0_12, %c0_13, %c0_14] : memref<1x64x192xbf16, #tpu.memory_space<vmem>>, vector<1x64x192xbf16>
    %30 = vector.shape_cast %29 : vector<1x64x192xbf16> to vector<64x192xbf16>
    %cst_15 = arith.constant dense<0.000000e+00> : vector<128x192xf32>
    %31 = tpu.matmul %28, %30, %cst_15 {dimension_numbers = #tpu.dot_dimension_numbers<[1], [0], [0], [1], [0, 0, 1, 1], [], []>} : vector<128x64xbf16>, vector<64x192xbf16>, vector<128x192xf32> -> vector<128x192xf32>
    %c0_16 = arith.constant 0 : index
    %c0_17 = arith.constant 0 : index
    %c0_18 = arith.constant 0 : index
    %32 = vector.load %arg6[%c0_16, %c0_17, %c0_18] : memref<1x64x64xbf16, #tpu.memory_space<vmem>>, vector<1x64x64xbf16>
    %33 = vector.shape_cast %32 : vector<1x64x64xbf16> to vector<64x64xbf16>
    %34 = vector.extract_strided_slice %31 {offsets = [0, 0], sizes = [64, 192], strides = [1, 1]} : vector<128x192xf32> to vector<64x192xf32>
    %cst_19 = arith.constant 0.000000e+00 : f32
    %35 = vector.broadcast %cst_19 : f32 to vector<64x64xf32>
    %36 = vector.extract_strided_slice %34 {offsets = [0, 0], sizes = [64, 16], strides = [1, 1]} : vector<64x192xf32> to vector<64x16xf32>
    %37 = vector.extract_strided_slice %34 {offsets = [0, 64], sizes = [64, 16], strides = [1, 1]} : vector<64x192xf32> to vector<64x16xf32>
    %38 = vector.extract_strided_slice %34 {offsets = [0, 128], sizes = [64, 16], strides = [1, 1]} : vector<64x192xf32> to vector<64x16xf32>
    %39 = arith.truncf %36 : vector<64x16xf32> to vector<64x16xbf16>
    %40 = arith.truncf %37 : vector<64x16xf32> to vector<64x16xbf16>
    %cst_20 = arith.constant dense<0.000000e+00> : vector<64x64xf32>
    %41 = tpu.matmul %39, %40, %cst_20 {dimension_numbers = #tpu.dot_dimension_numbers<[1], [1], [0], [0], [0, 0, 1, 0], [], []>} : vector<64x16xbf16>, vector<64x16xbf16>, vector<64x64xf32> -> vector<64x64xf32>
    %cst_21 = arith.constant dense<0xFF800000> : vector<64xf32>
    %42 = vector.multi_reduction <maximumf>, %41, %cst_21 [1] : vector<64x64xf32> to vector<64xf32>
    %43 = vector.shape_cast %42 : vector<64xf32> to vector<64x1xf32>
    %44 = vector.broadcast %43 : vector<64x1xf32> to vector<64x64xf32>
    %45 = arith.subf %41, %44 : vector<64x64xf32>
    %46 = math.exp %45 : vector<64x64xf32>
    %cst_22 = arith.constant dense<0.000000e+00> : vector<64xf32>
    %47 = vector.multi_reduction <add>, %46, %cst_22 [1] : vector<64x64xf32> to vector<64xf32>
    %48 = vector.shape_cast %47 : vector<64xf32> to vector<64x1xf32>
    %49 = tpu.reciprocal %48 {approx = true} : vector<64x1xf32> -> vector<64x1xf32>
    %50 = vector.broadcast %49 : vector<64x1xf32> to vector<64x64xf32>
    %51 = arith.mulf %46, %50 : vector<64x64xf32>
    %52 = arith.truncf %51 : vector<64x64xf32> to vector<64x64xbf16>
    %53 = arith.truncf %38 : vector<64x16xf32> to vector<64x16xbf16>
    %cst_23 = arith.constant dense<0.000000e+00> : vector<64x16xf32>
    %54 = tpu.matmul %52, %53, %cst_23 {dimension_numbers = #tpu.dot_dimension_numbers<[1], [0], [0], [1], [0, 0, 1, 1], [], []>} : vector<64x64xbf16>, vector<64x16xbf16>, vector<64x16xf32> -> vector<64x16xf32>
    %55 = arith.truncf %54 : vector<64x16xf32> to vector<64x16xbf16>
    %56 = vector.extract_strided_slice %33 {offsets = [0, 0], sizes = [16, 64], strides = [1, 1]} : vector<64x64xbf16> to vector<16x64xbf16>
    %cst_24 = arith.constant dense<0.000000e+00> : vector<64x64xf32>
    %57 = tpu.matmul %55, %56, %cst_24 {dimension_numbers = #tpu.dot_dimension_numbers<[1], [0], [0], [1], [0, 0, 1, 1], [], []>} : vector<64x16xbf16>, vector<16x64xbf16>, vector<64x64xf32> -> vector<64x64xf32>
    %58 = arith.addf %35, %57 : vector<64x64xf32>
    %59 = vector.extract_strided_slice %34 {offsets = [0, 16], sizes = [64, 16], strides = [1, 1]} : vector<64x192xf32> to vector<64x16xf32>
    %60 = vector.extract_strided_slice %34 {offsets = [0, 80], sizes = [64, 16], strides = [1, 1]} : vector<64x192xf32> to vector<64x16xf32>
    %61 = vector.extract_strided_slice %34 {offsets = [0, 144], sizes = [64, 16], strides = [1, 1]} : vector<64x192xf32> to vector<64x16xf32>
    %62 = arith.truncf %59 : vector<64x16xf32> to vector<64x16xbf16>
    %63 = arith.truncf %60 : vector<64x16xf32> to vector<64x16xbf16>
    %cst_25 = arith.constant dense<0.000000e+00> : vector<64x64xf32>
    %64 = tpu.matmul %62, %63, %cst_25 {dimension_numbers = #tpu.dot_dimension_numbers<[1], [1], [0], [0], [0, 0, 1, 0], [], []>} : vector<64x16xbf16>, vector<64x16xbf16>, vector<64x64xf32> -> vector<64x64xf32>
    %cst_26 = arith.constant dense<0xFF800000> : vector<64xf32>
    %65 = vector.multi_reduction <maximumf>, %64, %cst_26 [1] : vector<64x64xf32> to vector<64xf32>
    %66 = vector.shape_cast %65 : vector<64xf32> to vector<64x1xf32>
    %67 = vector.broadcast %66 : vector<64x1xf32> to vector<64x64xf32>
    %68 = arith.subf %64, %67 : vector<64x64xf32>
    %69 = math.exp %68 : vector<64x64xf32>
    %cst_27 = arith.constant dense<0.000000e+00> : vector<64xf32>
    %70 = vector.multi_reduction <add>, %69, %cst_27 [1] : vector<64x64xf32> to vector<64xf32>
    %71 = vector.shape_cast %70 : vector<64xf32> to vector<64x1xf32>
    %72 = tpu.reciprocal %71 {approx = true} : vector<64x1xf32> -> vector<64x1xf32>
    %73 = vector.broadcast %72 : vector<64x1xf32> to vector<64x64xf32>
    %74 = arith.mulf %69, %73 : vector<64x64xf32>
    %75 = arith.truncf %74 : vector<64x64xf32> to vector<64x64xbf16>
    %76 = arith.truncf %61 : vector<64x16xf32> to vector<64x16xbf16>
    %cst_28 = arith.constant dense<0.000000e+00> : vector<64x16xf32>
    %77 = tpu.matmul %75, %76, %cst_28 {dimension_numbers = #tpu.dot_dimension_numbers<[1], [0], [0], [1], [0, 0, 1, 1], [], []>} : vector<64x64xbf16>, vector<64x16xbf16>, vector<64x16xf32> -> vector<64x16xf32>
    %78 = arith.truncf %77 : vector<64x16xf32> to vector<64x16xbf16>
    %79 = vector.extract_strided_slice %33 {offsets = [16, 0], sizes = [16, 64], strides = [1, 1]} : vector<64x64xbf16> to vector<16x64xbf16>
    %cst_29 = arith.constant dense<0.000000e+00> : vector<64x64xf32>
    %80 = tpu.matmul %78, %79, %cst_29 {dimension_numbers = #tpu.dot_dimension_numbers<[1], [0], [0], [1], [0, 0, 1, 1], [], []>} : vector<64x16xbf16>, vector<16x64xbf16>, vector<64x64xf32> -> vector<64x64xf32>
    %81 = arith.addf %58, %80 : vector<64x64xf32>
    %82 = vector.extract_strided_slice %34 {offsets = [0, 32], sizes = [64, 16], strides = [1, 1]} : vector<64x192xf32> to vector<64x16xf32>
    %83 = vector.extract_strided_slice %34 {offsets = [0, 96], sizes = [64, 16], strides = [1, 1]} : vector<64x192xf32> to vector<64x16xf32>
    %84 = vector.extract_strided_slice %34 {offsets = [0, 160], sizes = [64, 16], strides = [1, 1]} : vector<64x192xf32> to vector<64x16xf32>
    %85 = arith.truncf %82 : vector<64x16xf32> to vector<64x16xbf16>
    %86 = arith.truncf %83 : vector<64x16xf32> to vector<64x16xbf16>
    %cst_30 = arith.constant dense<0.000000e+00> : vector<64x64xf32>
    %87 = tpu.matmul %85, %86, %cst_30 {dimension_numbers = #tpu.dot_dimension_numbers<[1], [1], [0], [0], [0, 0, 1, 0], [], []>} : vector<64x16xbf16>, vector<64x16xbf16>, vector<64x64xf32> -> vector<64x64xf32>
    %cst_31 = arith.constant dense<0xFF800000> : vector<64xf32>
    %88 = vector.multi_reduction <maximumf>, %87, %cst_31 [1] : vector<64x64xf32> to vector<64xf32>
    %89 = vector.shape_cast %88 : vector<64xf32> to vector<64x1xf32>
    %90 = vector.broadcast %89 : vector<64x1xf32> to vector<64x64xf32>
    %91 = arith.subf %87, %90 : vector<64x64xf32>
    %92 = math.exp %91 : vector<64x64xf32>
    %cst_32 = arith.constant dense<0.000000e+00> : vector<64xf32>
    %93 = vector.multi_reduction <add>, %92, %cst_32 [1] : vector<64x64xf32> to vector<64xf32>
    %94 = vector.shape_cast %93 : vector<64xf32> to vector<64x1xf32>
    %95 = tpu.reciprocal %94 {approx = true} : vector<64x1xf32> -> vector<64x1xf32>
    %96 = vector.broadcast %95 : vector<64x1xf32> to vector<64x64xf32>
    %97 = arith.mulf %92, %96 : vector<64x64xf32>
    %98 = arith.truncf %97 : vector<64x64xf32> to vector<64x64xbf16>
    %99 = arith.truncf %84 : vector<64x16xf32> to vector<64x16xbf16>
    %cst_33 = arith.constant dense<0.000000e+00> : vector<64x16xf32>
    %100 = tpu.matmul %98, %99, %cst_33 {dimension_numbers = #tpu.dot_dimension_numbers<[1], [0], [0], [1], [0, 0, 1, 1], [], []>} : vector<64x64xbf16>, vector<64x16xbf16>, vector<64x16xf32> -> vector<64x16xf32>
    %101 = arith.truncf %100 : vector<64x16xf32> to vector<64x16xbf16>
    %102 = vector.extract_strided_slice %33 {offsets = [32, 0], sizes = [16, 64], strides = [1, 1]} : vector<64x64xbf16> to vector<16x64xbf16>
    %cst_34 = arith.constant dense<0.000000e+00> : vector<64x64xf32>
    %103 = tpu.matmul %101, %102, %cst_34 {dimension_numbers = #tpu.dot_dimension_numbers<[1], [0], [0], [1], [0, 0, 1, 1], [], []>} : vector<64x16xbf16>, vector<16x64xbf16>, vector<64x64xf32> -> vector<64x64xf32>
    %104 = arith.addf %81, %103 : vector<64x64xf32>
    %105 = vector.extract_strided_slice %34 {offsets = [0, 48], sizes = [64, 16], strides = [1, 1]} : vector<64x192xf32> to vector<64x16xf32>
    %106 = vector.extract_strided_slice %34 {offsets = [0, 112], sizes = [64, 16], strides = [1, 1]} : vector<64x192xf32> to vector<64x16xf32>
    %107 = vector.extract_strided_slice %34 {offsets = [0, 176], sizes = [64, 16], strides = [1, 1]} : vector<64x192xf32> to vector<64x16xf32>
    %108 = arith.truncf %105 : vector<64x16xf32> to vector<64x16xbf16>
    %109 = arith.truncf %106 : vector<64x16xf32> to vector<64x16xbf16>
    %cst_35 = arith.constant dense<0.000000e+00> : vector<64x64xf32>
    %110 = tpu.matmul %108, %109, %cst_35 {dimension_numbers = #tpu.dot_dimension_numbers<[1], [1], [0], [0], [0, 0, 1, 0], [], []>} : vector<64x16xbf16>, vector<64x16xbf16>, vector<64x64xf32> -> vector<64x64xf32>
    %cst_36 = arith.constant dense<0xFF800000> : vector<64xf32>
    %111 = vector.multi_reduction <maximumf>, %110, %cst_36 [1] : vector<64x64xf32> to vector<64xf32>
    %112 = vector.shape_cast %111 : vector<64xf32> to vector<64x1xf32>
    %113 = vector.broadcast %112 : vector<64x1xf32> to vector<64x64xf32>
    %114 = arith.subf %110, %113 : vector<64x64xf32>
    %115 = math.exp %114 : vector<64x64xf32>
    %cst_37 = arith.constant dense<0.000000e+00> : vector<64xf32>
    %116 = vector.multi_reduction <add>, %115, %cst_37 [1] : vector<64x64xf32> to vector<64xf32>
    %117 = vector.shape_cast %116 : vector<64xf32> to vector<64x1xf32>
    %118 = tpu.reciprocal %117 {approx = true} : vector<64x1xf32> -> vector<64x1xf32>
    %119 = vector.broadcast %118 : vector<64x1xf32> to vector<64x64xf32>
    %120 = arith.mulf %115, %119 : vector<64x64xf32>
    %121 = arith.truncf %120 : vector<64x64xf32> to vector<64x64xbf16>
    %122 = arith.truncf %107 : vector<64x16xf32> to vector<64x16xbf16>
    %cst_38 = arith.constant dense<0.000000e+00> : vector<64x16xf32>
    %123 = tpu.matmul %121, %122, %cst_38 {dimension_numbers = #tpu.dot_dimension_numbers<[1], [0], [0], [1], [0, 0, 1, 1], [], []>} : vector<64x64xbf16>, vector<64x16xbf16>, vector<64x16xf32> -> vector<64x16xf32>
    %124 = arith.truncf %123 : vector<64x16xf32> to vector<64x16xbf16>
    %125 = vector.extract_strided_slice %33 {offsets = [48, 0], sizes = [16, 64], strides = [1, 1]} : vector<64x64xbf16> to vector<16x64xbf16>
    %cst_39 = arith.constant dense<0.000000e+00> : vector<64x64xf32>
    %126 = tpu.matmul %124, %125, %cst_39 {dimension_numbers = #tpu.dot_dimension_numbers<[1], [0], [0], [1], [0, 0, 1, 1], [], []>} : vector<64x16xbf16>, vector<16x64xbf16>, vector<64x64xf32> -> vector<64x64xf32>
    %127 = arith.addf %104, %126 : vector<64x64xf32>
    %c0_40 = arith.constant 0 : index
    %c0_41 = arith.constant 0 : index
    %128 = vector.load %arg20[%c0_40, %c0_41] : memref<128x64xf32, #tpu.memory_space<vmem>>, vector<64x64xf32>
    tpu.vector_store %arg20[%c0_40, %c0_41], %127 {strides = array<i32>} : memref<128x64xf32, #tpu.memory_space<vmem>>, vector<64x64xf32>,
    %129 = vector.extract_strided_slice %31 {offsets = [64, 0], sizes = [64, 192], strides = [1, 1]} : vector<128x192xf32> to vector<64x192xf32>
    %cst_42 = arith.constant 0.000000e+00 : f32
    %130 = vector.broadcast %cst_42 : f32 to vector<64x64xf32>
    %131 = vector.extract_strided_slice %129 {offsets = [0, 0], sizes = [64, 16], strides = [1, 1]} : vector<64x192xf32> to vector<64x16xf32>
    %132 = vector.extract_strided_slice %129 {offsets = [0, 64], sizes = [64, 16], strides = [1, 1]} : vector<64x192xf32> to vector<64x16xf32>
    %133 = vector.extract_strided_slice %129 {offsets = [0, 128], sizes = [64, 16], strides = [1, 1]} : vector<64x192xf32> to vector<64x16xf32>
    %134 = arith.truncf %131 : vector<64x16xf32> to vector<64x16xbf16>
    %135 = arith.truncf %132 : vector<64x16xf32> to vector<64x16xbf16>
    %cst_43 = arith.constant dense<0.000000e+00> : vector<64x64xf32>
    %136 = tpu.matmul %134, %135, %cst_43 {dimension_numbers = #tpu.dot_dimension_numbers<[1], [1], [0], [0], [0, 0, 1, 0], [], []>} : vector<64x16xbf16>, vector<64x16xbf16>, vector<64x64xf32> -> vector<64x64xf32>
    %cst_44 = arith.constant dense<0xFF800000> : vector<64xf32>
    %137 = vector.multi_reduction <maximumf>, %136, %cst_44 [1] : vector<64x64xf32> to vector<64xf32>
    %138 = vector.shape_cast %137 : vector<64xf32> to vector<64x1xf32>
    %139 = vector.broadcast %138 : vector<64x1xf32> to vector<64x64xf32>
    %140 = arith.subf %136, %139 : vector<64x64xf32>
    %141 = math.exp %140 : vector<64x64xf32>
    %cst_45 = arith.constant dense<0.000000e+00> : vector<64xf32>
    %142 = vector.multi_reduction <add>, %141, %cst_45 [1] : vector<64x64xf32> to vector<64xf32>
    %143 = vector.shape_cast %142 : vector<64xf32> to vector<64x1xf32>
    %144 = tpu.reciprocal %143 {approx = true} : vector<64x1xf32> -> vector<64x1xf32>
    %145 = vector.broadcast %144 : vector<64x1xf32> to vector<64x64xf32>
    %146 = arith.mulf %141, %145 : vector<64x64xf32>
    %147 = arith.truncf %146 : vector<64x64xf32> to vector<64x64xbf16>
    %148 = arith.truncf %133 : vector<64x16xf32> to vector<64x16xbf16>
    %cst_46 = arith.constant dense<0.000000e+00> : vector<64x16xf32>
    %149 = tpu.matmul %147, %148, %cst_46 {dimension_numbers = #tpu.dot_dimension_numbers<[1], [0], [0], [1], [0, 0, 1, 1], [], []>} : vector<64x64xbf16>, vector<64x16xbf16>, vector<64x16xf32> -> vector<64x16xf32>
    %150 = arith.truncf %149 : vector<64x16xf32> to vector<64x16xbf16>
    %151 = vector.extract_strided_slice %33 {offsets = [0, 0], sizes = [16, 64], strides = [1, 1]} : vector<64x64xbf16> to vector<16x64xbf16>
    %cst_47 = arith.constant dense<0.000000e+00> : vector<64x64xf32>
    %152 = tpu.matmul %150, %151, %cst_47 {dimension_numbers = #tpu.dot_dimension_numbers<[1], [0], [0], [1], [0, 0, 1, 1], [], []>} : vector<64x16xbf16>, vector<16x64xbf16>, vector<64x64xf32> -> vector<64x64xf32>
    %153 = arith.addf %130, %152 : vector<64x64xf32>
    %154 = vector.extract_strided_slice %129 {offsets = [0, 16], sizes = [64, 16], strides = [1, 1]} : vector<64x192xf32> to vector<64x16xf32>
    %155 = vector.extract_strided_slice %129 {offsets = [0, 80], sizes = [64, 16], strides = [1, 1]} : vector<64x192xf32> to vector<64x16xf32>
    %156 = vector.extract_strided_slice %129 {offsets = [0, 144], sizes = [64, 16], strides = [1, 1]} : vector<64x192xf32> to vector<64x16xf32>
    %157 = arith.truncf %154 : vector<64x16xf32> to vector<64x16xbf16>
    %158 = arith.truncf %155 : vector<64x16xf32> to vector<64x16xbf16>
    %cst_48 = arith.constant dense<0.000000e+00> : vector<64x64xf32>
    %159 = tpu.matmul %157, %158, %cst_48 {dimension_numbers = #tpu.dot_dimension_numbers<[1], [1], [0], [0], [0, 0, 1, 0], [], []>} : vector<64x16xbf16>, vector<64x16xbf16>, vector<64x64xf32> -> vector<64x64xf32>
    %cst_49 = arith.constant dense<0xFF800000> : vector<64xf32>
    %160 = vector.multi_reduction <maximumf>, %159, %cst_49 [1] : vector<64x64xf32> to vector<64xf32>
    %161 = vector.shape_cast %160 : vector<64xf32> to vector<64x1xf32>
    %162 = vector.broadcast %161 : vector<64x1xf32> to vector<64x64xf32>
    %163 = arith.subf %159, %162 : vector<64x64xf32>
    %164 = math.exp %163 : vector<64x64xf32>
    %cst_50 = arith.constant dense<0.000000e+00> : vector<64xf32>
    %165 = vector.multi_reduction <add>, %164, %cst_50 [1] : vector<64x64xf32> to vector<64xf32>
    %166 = vector.shape_cast %165 : vector<64xf32> to vector<64x1xf32>
    %167 = tpu.reciprocal %166 {approx = true} : vector<64x1xf32> -> vector<64x1xf32>
    %168 = vector.broadcast %167 : vector<64x1xf32> to vector<64x64xf32>
    %169 = arith.mulf %164, %168 : vector<64x64xf32>
    %170 = arith.truncf %169 : vector<64x64xf32> to vector<64x64xbf16>
    %171 = arith.truncf %156 : vector<64x16xf32> to vector<64x16xbf16>
    %cst_51 = arith.constant dense<0.000000e+00> : vector<64x16xf32>
    %172 = tpu.matmul %170, %171, %cst_51 {dimension_numbers = #tpu.dot_dimension_numbers<[1], [0], [0], [1], [0, 0, 1, 1], [], []>} : vector<64x64xbf16>, vector<64x16xbf16>, vector<64x16xf32> -> vector<64x16xf32>
    %173 = arith.truncf %172 : vector<64x16xf32> to vector<64x16xbf16>
    %174 = vector.extract_strided_slice %33 {offsets = [16, 0], sizes = [16, 64], strides = [1, 1]} : vector<64x64xbf16> to vector<16x64xbf16>
    %cst_52 = arith.constant dense<0.000000e+00> : vector<64x64xf32>
    %175 = tpu.matmul %173, %174, %cst_52 {dimension_numbers = #tpu.dot_dimension_numbers<[1], [0], [0], [1], [0, 0, 1, 1], [], []>} : vector<64x16xbf16>, vector<16x64xbf16>, vector<64x64xf32> -> vector<64x64xf32>
    %176 = arith.addf %153, %175 : vector<64x64xf32>
    %177 = vector.extract_strided_slice %129 {offsets = [0, 32], sizes = [64, 16], strides = [1, 1]} : vector<64x192xf32> to vector<64x16xf32>
    %178 = vector.extract_strided_slice %129 {offsets = [0, 96], sizes = [64, 16], strides = [1, 1]} : vector<64x192xf32> to vector<64x16xf32>
    %179 = vector.extract_strided_slice %129 {offsets = [0, 160], sizes = [64, 16], strides = [1, 1]} : vector<64x192xf32> to vector<64x16xf32>
    %180 = arith.truncf %177 : vector<64x16xf32> to vector<64x16xbf16>
    %181 = arith.truncf %178 : vector<64x16xf32> to vector<64x16xbf16>
    %cst_53 = arith.constant dense<0.000000e+00> : vector<64x64xf32>
    %182 = tpu.matmul %180, %181, %cst_53 {dimension_numbers = #tpu.dot_dimension_numbers<[1], [1], [0], [0], [0, 0, 1, 0], [], []>} : vector<64x16xbf16>, vector<64x16xbf16>, vector<64x64xf32> -> vector<64x64xf32>
    %cst_54 = arith.constant dense<0xFF800000> : vector<64xf32>
    %183 = vector.multi_reduction <maximumf>, %182, %cst_54 [1] : vector<64x64xf32> to vector<64xf32>
    %184 = vector.shape_cast %183 : vector<64xf32> to vector<64x1xf32>
    %185 = vector.broadcast %184 : vector<64x1xf32> to vector<64x64xf32>
    %186 = arith.subf %182, %185 : vector<64x64xf32>
    %187 = math.exp %186 : vector<64x64xf32>
    %cst_55 = arith.constant dense<0.000000e+00> : vector<64xf32>
    %188 = vector.multi_reduction <add>, %187, %cst_55 [1] : vector<64x64xf32> to vector<64xf32>
    %189 = vector.shape_cast %188 : vector<64xf32> to vector<64x1xf32>
    %190 = tpu.reciprocal %189 {approx = true} : vector<64x1xf32> -> vector<64x1xf32>
    %191 = vector.broadcast %190 : vector<64x1xf32> to vector<64x64xf32>
    %192 = arith.mulf %187, %191 : vector<64x64xf32>
    %193 = arith.truncf %192 : vector<64x64xf32> to vector<64x64xbf16>
    %194 = arith.truncf %179 : vector<64x16xf32> to vector<64x16xbf16>
    %cst_56 = arith.constant dense<0.000000e+00> : vector<64x16xf32>
    %195 = tpu.matmul %193, %194, %cst_56 {dimension_numbers = #tpu.dot_dimension_numbers<[1], [0], [0], [1], [0, 0, 1, 1], [], []>} : vector<64x64xbf16>, vector<64x16xbf16>, vector<64x16xf32> -> vector<64x16xf32>
    %196 = arith.truncf %195 : vector<64x16xf32> to vector<64x16xbf16>
    %197 = vector.extract_strided_slice %33 {offsets = [32, 0], sizes = [16, 64], strides = [1, 1]} : vector<64x64xbf16> to vector<16x64xbf16>
    %cst_57 = arith.constant dense<0.000000e+00> : vector<64x64xf32>
    %198 = tpu.matmul %196, %197, %cst_57 {dimension_numbers = #tpu.dot_dimension_numbers<[1], [0], [0], [1], [0, 0, 1, 1], [], []>} : vector<64x16xbf16>, vector<16x64xbf16>, vector<64x64xf32> -> vector<64x64xf32>
    %199 = arith.addf %176, %198 : vector<64x64xf32>
    %200 = vector.extract_strided_slice %129 {offsets = [0, 48], sizes = [64, 16], strides = [1, 1]} : vector<64x192xf32> to vector<64x16xf32>
    %201 = vector.extract_strided_slice %129 {offsets = [0, 112], sizes = [64, 16], strides = [1, 1]} : vector<64x192xf32> to vector<64x16xf32>
    %202 = vector.extract_strided_slice %129 {offsets = [0, 176], sizes = [64, 16], strides = [1, 1]} : vector<64x192xf32> to vector<64x16xf32>
    %203 = arith.truncf %200 : vector<64x16xf32> to vector<64x16xbf16>
    %204 = arith.truncf %201 : vector<64x16xf32> to vector<64x16xbf16>
    %cst_58 = arith.constant dense<0.000000e+00> : vector<64x64xf32>
    %205 = tpu.matmul %203, %204, %cst_58 {dimension_numbers = #tpu.dot_dimension_numbers<[1], [1], [0], [0], [0, 0, 1, 0], [], []>} : vector<64x16xbf16>, vector<64x16xbf16>, vector<64x64xf32> -> vector<64x64xf32>
    %cst_59 = arith.constant dense<0xFF800000> : vector<64xf32>
    %206 = vector.multi_reduction <maximumf>, %205, %cst_59 [1] : vector<64x64xf32> to vector<64xf32>
    %207 = vector.shape_cast %206 : vector<64xf32> to vector<64x1xf32>
    %208 = vector.broadcast %207 : vector<64x1xf32> to vector<64x64xf32>
    %209 = arith.subf %205, %208 : vector<64x64xf32>
    %210 = math.exp %209 : vector<64x64xf32>
    %cst_60 = arith.constant dense<0.000000e+00> : vector<64xf32>
    %211 = vector.multi_reduction <add>, %210, %cst_60 [1] : vector<64x64xf32> to vector<64xf32>
    %212 = vector.shape_cast %211 : vector<64xf32> to vector<64x1xf32>
    %213 = tpu.reciprocal %212 {approx = true} : vector<64x1xf32> -> vector<64x1xf32>
    %214 = vector.broadcast %213 : vector<64x1xf32> to vector<64x64xf32>
    %215 = arith.mulf %210, %214 : vector<64x64xf32>
    %216 = arith.truncf %215 : vector<64x64xf32> to vector<64x64xbf16>
    %217 = arith.truncf %202 : vector<64x16xf32> to vector<64x16xbf16>
    %cst_61 = arith.constant dense<0.000000e+00> : vector<64x16xf32>
    %218 = tpu.matmul %216, %217, %cst_61 {dimension_numbers = #tpu.dot_dimension_numbers<[1], [0], [0], [1], [0, 0, 1, 1], [], []>} : vector<64x64xbf16>, vector<64x16xbf16>, vector<64x16xf32> -> vector<64x16xf32>
    %219 = arith.truncf %218 : vector<64x16xf32> to vector<64x16xbf16>
    %220 = vector.extract_strided_slice %33 {offsets = [48, 0], sizes = [16, 64], strides = [1, 1]} : vector<64x64xbf16> to vector<16x64xbf16>
    %cst_62 = arith.constant dense<0.000000e+00> : vector<64x64xf32>
    %221 = tpu.matmul %219, %220, %cst_62 {dimension_numbers = #tpu.dot_dimension_numbers<[1], [0], [0], [1], [0, 0, 1, 1], [], []>} : vector<64x16xbf16>, vector<16x64xbf16>, vector<64x64xf32> -> vector<64x64xf32>
    %222 = arith.addf %199, %221 : vector<64x64xf32>
    %c64 = arith.constant 64 : index
    %c0_63 = arith.constant 0 : index
    %223 = vector.load %arg20[%c64, %c0_63] : memref<128x64xf32, #tpu.memory_space<vmem>>, vector<64x64xf32>
    tpu.vector_store %arg20[%c64, %c0_63], %222 {strides = array<i32>} : memref<128x64xf32, #tpu.memory_space<vmem>>, vector<64x64xf32>,
    %c0_64 = arith.constant 0 : index
    %c0_65 = arith.constant 0 : index
    %224 = vector.load %arg20[%c0_64, %c0_65] : memref<128x64xf32, #tpu.memory_space<vmem>>, vector<128x64xf32>
    %225 = arith.addf %3, %224 : vector<128x64xf32>
    %c0_66 = arith.constant 0 : index
    %c0_67 = arith.constant 0 : index
    %c0_68 = arith.constant 0 : index
    %226 = vector.load %arg7[%c0_66, %c0_67, %c0_68] : memref<1x1x64xf32, #tpu.memory_space<vmem>>, vector<1x1x64xf32>
    %227 = vector.shape_cast %226 : vector<1x1x64xf32> to vector<1x64xf32>
    %228 = vector.broadcast %227 : vector<1x64xf32> to vector<128x64xf32>
    %229 = arith.addf %225, %228 : vector<128x64xf32>
    %c0_69 = arith.constant 0 : index
    %c0_70 = arith.constant 0 : index
    %c0_71 = arith.constant 0 : index
    %230 = vector.load %arg8[%c0_69, %c0_70, %c0_71] : memref<1x1x64xf32, #tpu.memory_space<vmem>>, vector<1x1x64xf32>
    %231 = vector.shape_cast %230 : vector<1x1x64xf32> to vector<1x64xf32>
    %c0_72 = arith.constant 0 : index
    %c0_73 = arith.constant 0 : index
    %c0_74 = arith.constant 0 : index
    %232 = vector.load %arg9[%c0_72, %c0_73, %c0_74] : memref<1x1x64xf32, #tpu.memory_space<vmem>>, vector<1x1x64xf32>
    %233 = vector.shape_cast %232 : vector<1x1x64xf32> to vector<1x64xf32>
    %cst_75 = arith.constant dense<0.000000e+00> : vector<128xf32>
    %234 = vector.multi_reduction <add>, %229, %cst_75 [1] : vector<128x64xf32> to vector<128xf32>
    %235 = vector.shape_cast %234 : vector<128xf32> to vector<128x1xf32>
    %cst_76 = arith.constant 6.400000e+01 : f32
    %236 = vector.broadcast %cst_76 : f32 to vector<128x1xf32>
    %237 = arith.divf %235, %236 : vector<128x1xf32>
    %238 = vector.broadcast %237 : vector<128x1xf32> to vector<128x64xf32>
    %239 = arith.subf %229, %238 : vector<128x64xf32>
    %240 = arith.mulf %239, %239 : vector<128x64xf32>
    %cst_77 = arith.constant dense<0.000000e+00> : vector<128xf32>
    %241 = vector.multi_reduction <add>, %240, %cst_77 [1] : vector<128x64xf32> to vector<128xf32>
    %242 = vector.shape_cast %241 : vector<128xf32> to vector<128x1xf32>
    %cst_78 = arith.constant 6.400000e+01 : f32
    %243 = vector.broadcast %cst_78 : f32 to vector<128x1xf32>
    %244 = arith.divf %242, %243 : vector<128x1xf32>
    %cst_79 = arith.constant 9.99999974E-6 : f32
    %245 = vector.broadcast %cst_79 : f32 to vector<128x1xf32>
    %246 = arith.addf %244, %245 : vector<128x1xf32>
    %247 = math.rsqrt %246 : vector<128x1xf32>
    %248 = vector.broadcast %247 : vector<128x1xf32> to vector<128x64xf32>
    %249 = arith.mulf %239, %248 : vector<128x64xf32>
    %250 = vector.broadcast %231 : vector<1x64xf32> to vector<128x64xf32>
    %251 = arith.mulf %249, %250 : vector<128x64xf32>
    %252 = vector.broadcast %233 : vector<1x64xf32> to vector<128x64xf32>
    %253 = arith.addf %251, %252 : vector<128x64xf32>
    %254 = arith.truncf %253 : vector<128x64xf32> to vector<128x64xbf16>
    %c0_80 = arith.constant 0 : index
    %c0_81 = arith.constant 0 : index
    %c0_82 = arith.constant 0 : index
    %255 = vector.load %arg10[%c0_80, %c0_81, %c0_82] : memref<1x64x128xbf16, #tpu.memory_space<vmem>>, vector<1x64x128xbf16>
    %256 = vector.shape_cast %255 : vector<1x64x128xbf16> to vector<64x128xbf16>
    %cst_83 = arith.constant dense<0.000000e+00> : vector<128x128xf32>
    %257 = tpu.matmul %254, %256, %cst_83 {dimension_numbers = #tpu.dot_dimension_numbers<[1], [0], [0], [1], [0, 0, 1, 1], [], []>} : vector<128x64xbf16>, vector<64x128xbf16>, vector<128x128xf32> -> vector<128x128xf32>
    %c0_84 = arith.constant 0 : index
    %c0_85 = arith.constant 0 : index
    %c0_86 = arith.constant 0 : index
    %258 = vector.load %arg11[%c0_84, %c0_85, %c0_86] : memref<1x1x128xf32, #tpu.memory_space<vmem>>, vector<1x1x128xf32>
    %259 = vector.shape_cast %258 : vector<1x1x128xf32> to vector<1x128xf32>
    %260 = vector.broadcast %259 : vector<1x128xf32> to vector<128x128xf32>
    %261 = arith.addf %257, %260 : vector<128x128xf32>
    %cst_87 = arith.constant 5.000000e-01 : f32
    %262 = vector.broadcast %cst_87 : f32 to vector<128x128xf32>
    %263 = arith.mulf %262, %261 : vector<128x128xf32>
    %cst_88 = arith.constant 4.471500e-02 : f32
    %264 = vector.broadcast %cst_88 : f32 to vector<128x128xf32>
    %265 = arith.mulf %264, %261 : vector<128x128xf32>
    %266 = arith.mulf %265, %261 : vector<128x128xf32>
    %267 = arith.mulf %266, %261 : vector<128x128xf32>
    %268 = arith.addf %261, %267 : vector<128x128xf32>
    %cst_89 = arith.constant 0.797884583 : f32
    %269 = vector.broadcast %cst_89 : f32 to vector<128x128xf32>
    %270 = arith.mulf %269, %268 : vector<128x128xf32>
    %271 = math.tanh %270 : vector<128x128xf32>
    %cst_90 = arith.constant 1.000000e+00 : f32
    %272 = vector.broadcast %cst_90 : f32 to vector<128x128xf32>
    %273 = arith.addf %272, %271 : vector<128x128xf32>
    %274 = arith.mulf %263, %273 : vector<128x128xf32>
    %275 = arith.truncf %274 : vector<128x128xf32> to vector<128x128xbf16>
    %c0_91 = arith.constant 0 : index
    %c0_92 = arith.constant 0 : index
    %c0_93 = arith.constant 0 : index
    %276 = vector.load %arg12[%c0_91, %c0_92, %c0_93] : memref<1x128x64xbf16, #tpu.memory_space<vmem>>, vector<1x128x64xbf16>
    %277 = vector.shape_cast %276 : vector<1x128x64xbf16> to vector<128x64xbf16>
    %cst_94 = arith.constant dense<0.000000e+00> : vector<128x64xf32>
    %278 = tpu.matmul %275, %277, %cst_94 {dimension_numbers = #tpu.dot_dimension_numbers<[1], [0], [0], [1], [0, 0, 1, 1], [], []>} : vector<128x128xbf16>, vector<128x64xbf16>, vector<128x64xf32> -> vector<128x64xf32>
    %c0_95 = arith.constant 0 : index
    %c0_96 = arith.constant 0 : index
    %c0_97 = arith.constant 0 : index
    %279 = vector.load %arg13[%c0_95, %c0_96, %c0_97] : memref<1x1x64xf32, #tpu.memory_space<vmem>>, vector<1x1x64xf32>
    %280 = vector.shape_cast %279 : vector<1x1x64xf32> to vector<1x64xf32>
    %281 = vector.broadcast %280 : vector<1x64xf32> to vector<128x64xf32>
    %282 = arith.addf %278, %281 : vector<128x64xf32>
    %283 = arith.addf %253, %282 : vector<128x64xf32>
    %c0_98 = arith.constant 0 : index
    %c0_99 = arith.constant 0 : index
    %284 = vector.load %arg19[%c0_98, %c0_99] : memref<128x64xf32, #tpu.memory_space<vmem>>, vector<128x64xf32>
    tpu.vector_store %arg19[%c0_98, %c0_99], %283 {strides = array<i32>} : memref<128x64xf32, #tpu.memory_space<vmem>>, vector<128x64xf32>,
    %c1_i32 = arith.constant 1 : i32
    %285 = arith.cmpi eq, %arg0, %c1_i32 : i32
    %286 = arith.extui %285 : i1 to i32
    %c0_i32_100 = arith.constant 0 : i32
    %287 = arith.cmpi ne, %286, %c0_i32_100 : i32
    scf.if %287 {
      %c0_101 = arith.constant 0 : index
      %c0_102 = arith.constant 0 : index
      %288 = vector.load %arg19[%c0_101, %c0_102] : memref<128x64xf32, #tpu.memory_space<vmem>>, vector<128x64xf32>
      %c0_103 = arith.constant 0 : index
      %c0_104 = arith.constant 0 : index
      %289 = vector.load %arg14[%c0_103, %c0_104] : memref<1x64xf32, #tpu.memory_space<vmem>>, vector<1x64xf32>
      %c0_105 = arith.constant 0 : index
      %c0_106 = arith.constant 0 : index
      %290 = vector.load %arg15[%c0_105, %c0_106] : memref<1x64xf32, #tpu.memory_space<vmem>>, vector<1x64xf32>
      %cst_107 = arith.constant dense<0.000000e+00> : vector<128xf32>
      %291 = vector.multi_reduction <add>, %288, %cst_107 [1] : vector<128x64xf32> to vector<128xf32>
      %292 = vector.shape_cast %291 : vector<128xf32> to vector<128x1xf32>
      %cst_108 = arith.constant 6.400000e+01 : f32
      %293 = vector.broadcast %cst_108 : f32 to vector<128x1xf32>
      %294 = arith.divf %292, %293 : vector<128x1xf32>
      %295 = vector.broadcast %294 : vector<128x1xf32> to vector<128x64xf32>
      %296 = arith.subf %288, %295 : vector<128x64xf32>
      %297 = arith.mulf %296, %296 : vector<128x64xf32>
      %cst_109 = arith.constant dense<0.000000e+00> : vector<128xf32>
      %298 = vector.multi_reduction <add>, %297, %cst_109 [1] : vector<128x64xf32> to vector<128xf32>
      %299 = vector.shape_cast %298 : vector<128xf32> to vector<128x1xf32>
      %cst_110 = arith.constant 6.400000e+01 : f32
      %300 = vector.broadcast %cst_110 : f32 to vector<128x1xf32>
      %301 = arith.divf %299, %300 : vector<128x1xf32>
      %cst_111 = arith.constant 9.99999974E-6 : f32
      %302 = vector.broadcast %cst_111 : f32 to vector<128x1xf32>
      %303 = arith.addf %301, %302 : vector<128x1xf32>
      %304 = math.rsqrt %303 : vector<128x1xf32>
      %305 = vector.broadcast %304 : vector<128x1xf32> to vector<128x64xf32>
      %306 = arith.mulf %296, %305 : vector<128x64xf32>
      %307 = vector.broadcast %289 : vector<1x64xf32> to vector<128x64xf32>
      %308 = arith.mulf %306, %307 : vector<128x64xf32>
      %309 = vector.broadcast %290 : vector<1x64xf32> to vector<128x64xf32>
      %310 = arith.addf %308, %309 : vector<128x64xf32>
      %311 = vector.extract_strided_slice %310 {offsets = [0, 0], sizes = [64, 64], strides = [1, 1]} : vector<128x64xf32> to vector<64x64xf32>
      %c0_112 = arith.constant 0 : index
      %c0_113 = arith.constant 0 : index
      %312 = vector.load %arg16[%c0_112, %c0_113] : memref<1x64xf32, #tpu.memory_space<vmem>>, vector<1x64xf32>
      %cst_114 = arith.constant dense<0.000000e+00> : vector<1x64xf32>
      %313 = tpu.matmul %312, %311, %cst_114 {dimension_numbers = #tpu.dot_dimension_numbers<[1], [1], [0], [0], [0, 0, 1, 0], [], []>} : vector<1x64xf32>, vector<64x64xf32>, vector<1x64xf32> -> vector<1x64xf32>
      %c0_115 = arith.constant 0 : index
      %c0_116 = arith.constant 0 : index
      %314 = vector.load %arg17[%c0_115, %c0_116] : memref<1x1xf32, #tpu.memory_space<vmem>>, vector<1x1xf32>
      %315 = vector.broadcast %314 : vector<1x1xf32> to vector<1x64xf32>
      %316 = arith.addf %313, %315 : vector<1x64xf32>
      %cst_117 = arith.constant dense<0xFF800000> : vector<1xf32>
      %317 = vector.multi_reduction <maximumf>, %316, %cst_117 [1] : vector<1x64xf32> to vector<1xf32>
      %318 = vector.shape_cast %317 : vector<1xf32> to vector<1x1xf32>
      %319 = vector.broadcast %318 : vector<1x1xf32> to vector<1x64xf32>
      %320 = arith.subf %316, %319 : vector<1x64xf32>
      %321 = math.exp %320 : vector<1x64xf32>
      %cst_118 = arith.constant dense<0.000000e+00> : vector<1xf32>
      %322 = vector.multi_reduction <add>, %321, %cst_118 [1] : vector<1x64xf32> to vector<1xf32>
      %323 = vector.shape_cast %322 : vector<1xf32> to vector<1x1xf32>
      %324 = tpu.reciprocal %323 {approx = true} : vector<1x1xf32> -> vector<1x1xf32>
      %325 = vector.broadcast %324 : vector<1x1xf32> to vector<1x64xf32>
      %326 = arith.mulf %321, %325 : vector<1x64xf32>
      %cst_119 = arith.constant dense<0.000000e+00> : vector<1x64xf32>
      %327 = tpu.matmul %326, %311, %cst_119 {dimension_numbers = #tpu.dot_dimension_numbers<[1], [0], [0], [1], [0, 0, 1, 1], [], []>} : vector<1x64xf32>, vector<64x64xf32>, vector<1x64xf32> -> vector<1x64xf32>
      %c0_120 = arith.constant 0 : index
      %c0_121 = arith.constant 0 : index
      %328 = vector.load %arg18[%c0_120, %c0_121] : memref<2x64xf32, #tpu.memory_space<vmem>>, vector<1x64xf32>
      tpu.vector_store %arg18[%c0_120, %c0_121], %327 {strides = array<i32>} : memref<2x64xf32, #tpu.memory_space<vmem>>, vector<1x64xf32>,
      %329 = vector.extract_strided_slice %310 {offsets = [64, 0], sizes = [64, 64], strides = [1, 1]} : vector<128x64xf32> to vector<64x64xf32>
      %c0_122 = arith.constant 0 : index
      %c0_123 = arith.constant 0 : index
      %330 = vector.load %arg16[%c0_122, %c0_123] : memref<1x64xf32, #tpu.memory_space<vmem>>, vector<1x64xf32>
      %cst_124 = arith.constant dense<0.000000e+00> : vector<1x64xf32>
      %331 = tpu.matmul %330, %329, %cst_124 {dimension_numbers = #tpu.dot_dimension_numbers<[1], [1], [0], [0], [0, 0, 1, 0], [], []>} : vector<1x64xf32>, vector<64x64xf32>, vector<1x64xf32> -> vector<1x64xf32>
      %c0_125 = arith.constant 0 : index
      %c0_126 = arith.constant 0 : index
      %332 = vector.load %arg17[%c0_125, %c0_126] : memref<1x1xf32, #tpu.memory_space<vmem>>, vector<1x1xf32>
      %333 = vector.broadcast %332 : vector<1x1xf32> to vector<1x64xf32>
      %334 = arith.addf %331, %333 : vector<1x64xf32>
      %cst_127 = arith.constant dense<0xFF800000> : vector<1xf32>
      %335 = vector.multi_reduction <maximumf>, %334, %cst_127 [1] : vector<1x64xf32> to vector<1xf32>
      %336 = vector.shape_cast %335 : vector<1xf32> to vector<1x1xf32>
      %337 = vector.broadcast %336 : vector<1x1xf32> to vector<1x64xf32>
      %338 = arith.subf %334, %337 : vector<1x64xf32>
      %339 = math.exp %338 : vector<1x64xf32>
      %cst_128 = arith.constant dense<0.000000e+00> : vector<1xf32>
      %340 = vector.multi_reduction <add>, %339, %cst_128 [1] : vector<1x64xf32> to vector<1xf32>
      %341 = vector.shape_cast %340 : vector<1xf32> to vector<1x1xf32>
      %342 = tpu.reciprocal %341 {approx = true} : vector<1x1xf32> -> vector<1x1xf32>
      %343 = vector.broadcast %342 : vector<1x1xf32> to vector<1x64xf32>
      %344 = arith.mulf %339, %343 : vector<1x64xf32>
      %cst_129 = arith.constant dense<0.000000e+00> : vector<1x64xf32>
      %345 = tpu.matmul %344, %329, %cst_129 {dimension_numbers = #tpu.dot_dimension_numbers<[1], [0], [0], [1], [0, 0, 1, 1], [], []>} : vector<1x64xf32>, vector<64x64xf32>, vector<1x64xf32> -> vector<1x64xf32>
      %c1 = arith.constant 1 : index
      %c0_130 = arith.constant 0 : index
      %346 = vector.load %arg18[%c1, %c0_130] : memref<2x64xf32, #tpu.memory_space<vmem>>, vector<1x64xf32>
      tpu.vector_store %arg18[%c1, %c0_130], %345 {strides = array<i32>} : memref<2x64xf32, #tpu.memory_space<vmem>>, vector<1x64xf32>,
    } else {
    }
    return
  }
  func.func @transform_0(%arg0: i32) -> (i32, i32) {
    %c0_i32 = arith.constant 0 : i32
    %c0_i32_0 = arith.constant 0 : i32
    %c0_i32_1 = arith.constant 0 : i32
    return %c0_i32, %c0_i32_0 : i32, i32
  }
  func.func @transform_1(%arg0: i32) -> (i32, i32) {
    %c0_i32 = arith.constant 0 : i32
    %c0_i32_0 = arith.constant 0 : i32
    %c0_i32_1 = arith.constant 0 : i32
    return %c0_i32, %c0_i32_0 : i32, i32
  }
  func.func @transform_2(%arg0: i32) -> (i32, i32, i32) {
    %c0_i32 = arith.constant 0 : i32
    %c0_i32_0 = arith.constant 0 : i32
    %c0_i32_1 = arith.constant 0 : i32
    return %arg0, %c0_i32, %c0_i32_0 : i32, i32, i32
  }
  func.func @transform_3(%arg0: i32) -> (i32, i32, i32) {
    %c0_i32 = arith.constant 0 : i32
    %c0_i32_0 = arith.constant 0 : i32
    %c0_i32_1 = arith.constant 0 : i32
    return %arg0, %c0_i32, %c0_i32_0 : i32, i32, i32
  }
  func.func @transform_4(%arg0: i32) -> (i32, i32, i32) {
    %c0_i32 = arith.constant 0 : i32
    %c0_i32_0 = arith.constant 0 : i32
    %c0_i32_1 = arith.constant 0 : i32
    return %arg0, %c0_i32, %c0_i32_0 : i32, i32, i32
  }
  func.func @transform_5(%arg0: i32) -> (i32, i32, i32) {
    %c0_i32 = arith.constant 0 : i32
    %c0_i32_0 = arith.constant 0 : i32
    %c0_i32_1 = arith.constant 0 : i32
    return %arg0, %c0_i32, %c0_i32_0 : i32, i32, i32
  }
  func.func @transform_6(%arg0: i32) -> (i32, i32, i32) {
    %c0_i32 = arith.constant 0 : i32
    %c0_i32_0 = arith.constant 0 : i32
    %c0_i32_1 = arith.constant 0 : i32
    return %arg0, %c0_i32, %c0_i32_0 : i32, i32, i32
  }
  func.func @transform_7(%arg0: i32) -> (i32, i32, i32) {
    %c0_i32 = arith.constant 0 : i32
    %c0_i32_0 = arith.constant 0 : i32
    %c0_i32_1 = arith.constant 0 : i32
    return %arg0, %c0_i32, %c0_i32_0 : i32, i32, i32
  }
  func.func @transform_8(%arg0: i32) -> (i32, i32, i32) {
    %c0_i32 = arith.constant 0 : i32
    %c0_i32_0 = arith.constant 0 : i32
    %c0_i32_1 = arith.constant 0 : i32
    return %arg0, %c0_i32, %c0_i32_0 : i32, i32, i32
  }
  func.func @transform_9(%arg0: i32) -> (i32, i32, i32) {
    %c0_i32 = arith.constant 0 : i32
    %c0_i32_0 = arith.constant 0 : i32
    %c0_i32_1 = arith.constant 0 : i32
    return %arg0, %c0_i32, %c0_i32_0 : i32, i32, i32
  }
  func.func @transform_10(%arg0: i32) -> (i32, i32, i32) {
    %c0_i32 = arith.constant 0 : i32
    %c0_i32_0 = arith.constant 0 : i32
    %c0_i32_1 = arith.constant 0 : i32
    return %arg0, %c0_i32, %c0_i32_0 : i32, i32, i32
  }
  func.func @transform_11(%arg0: i32) -> (i32, i32, i32) {
    %c0_i32 = arith.constant 0 : i32
    %c0_i32_0 = arith.constant 0 : i32
    %c0_i32_1 = arith.constant 0 : i32
    return %arg0, %c0_i32, %c0_i32_0 : i32, i32, i32
  }
  func.func @transform_12(%arg0: i32) -> (i32, i32, i32) {
    %c0_i32 = arith.constant 0 : i32
    %c0_i32_0 = arith.constant 0 : i32
    %c0_i32_1 = arith.constant 0 : i32
    return %arg0, %c0_i32, %c0_i32_0 : i32, i32, i32
  }
  func.func @transform_13(%arg0: i32) -> (i32, i32) {
    %c0_i32 = arith.constant 0 : i32
    %c0_i32_0 = arith.constant 0 : i32
    %c0_i32_1 = arith.constant 0 : i32
    return %c0_i32, %c0_i32_0 : i32, i32
  }
  func.func @transform_14(%arg0: i32) -> (i32, i32) {
    %c0_i32 = arith.constant 0 : i32
    %c0_i32_0 = arith.constant 0 : i32
    %c0_i32_1 = arith.constant 0 : i32
    return %c0_i32, %c0_i32_0 : i32, i32
  }
  func.func @transform_15(%arg0: i32) -> (i32, i32) {
    %c0_i32 = arith.constant 0 : i32
    %c0_i32_0 = arith.constant 0 : i32
    %c0_i32_1 = arith.constant 0 : i32
    return %c0_i32, %c0_i32_0 : i32, i32
  }
  func.func @transform_16(%arg0: i32) -> (i32, i32) {
    %c0_i32 = arith.constant 0 : i32
    %c0_i32_0 = arith.constant 0 : i32
    %c0_i32_1 = arith.constant 0 : i32
    return %c0_i32, %c0_i32_0 : i32, i32
  }
  func.func @transform_17(%arg0: i32) -> (i32, i32) {
    %c0_i32 = arith.constant 0 : i32
    %c0_i32_0 = arith.constant 0 : i32
    %c0_i32_1 = arith.constant 0 : i32
    return %c0_i32, %c0_i32_0 : i32, i32
  }
}

</mosaic_0001>

<llo_original>
// kernel: _lambda_.2
$region0: #{_lambda_.2}
  #allocation0 [shape = 'u32[]', space=smem, size = 0x4, offset = 0x4, fixed_abs, tag = 'smem constant byte address 0x4 - core index']
  #allocation1 [shape = 'u32[72,128]{1,0:T(1,128)}', space=vmem, size = 0x9000, scoped, tag = 'internal scratch']
  %s0 = inlined_call_operand.vmem [shape: f32[512,32], index: 0, kind: input, shape index: {}]
  %s1 = inlined_call_operand.vmem [shape: f32[32,64], index: 1, kind: input, shape index: {}]
  %s2 = inlined_call_operand.vmem [shape: f32[3,64,256], index: 2, kind: input, shape index: {}]
  %s3 = inlined_call_operand.vmem [shape: f32[128,64], index: 3, kind: output, shape index: {}]
  %s4 = sld [smem:[#allocation0]]
  $region45: #{_lambda_.2} parent=0
    _
  %s6 = ssub.s32 1, %s4
  %s7 = scalar_select 0, %s6, %s4
  loop: start=0, step=1, limit=4
  $region2: #{_lambda_.2} parent=0 // loop_pre_header
    _
  $region3: #{_lambda_.2} parent=0 // loop_header
    %s9 = sphi 0, %s13
    %p10 = scmp.ge.s32.totalorder %s9, 4
    %s19 = sphi 0, %s21
    %s22 = sphi 0, %s19
    %s23 = sphi 0, %s22
    %s39 = sphi 0, %s23
    %s43 = sphi 0, %s43
    %s45 = sphi 0, %s43
    %s46 = sphi 0, %s45
    %s60 = sphi 0, %s46
    %s64 = sphi 0, %s64
    %s66 = sphi 0, %s64
    %s67 = sphi 0, %s66
    %s81 = sphi 0, %s67
    %s87 = sphi 0, %s89
    %s90 = sphi 0, %s87
    %s91 = sphi 0, %s90
    %s107 = sphi 0, %s91
  $region4: #{_lambda_.2} parent=0 // loop_header_branch
    %12 = sbr.rel (%p10) target = $region8
  $region5: #{_lambda_.2} parent=0 // loop_body
    %s14 = ssub.s32 %s9, 1
    %s15 = ssub.s32 %s9, 2
    %s16 = sadd.s32 %s9, 1
    %s17 = ssub.s32 %s9, %s16
    %p18 = scmp.eq.s32.totalorder %s17, 0
    %s20 = sadd.s32 %s19, 1
    %s21 = scalar_select %p18, %s19, %s20
    %p24 = pneg %p18
    %p25 = scmp.eq.s32.totalorder %s9, 1
    %p26 = por %p24, %p25
    %p27 = scmp.ne.s32.totalorder %s19, %s22
    %p28 = scmp.eq.s32.totalorder %s9, 0
    %p29 = por %p27, %p28
    %p30 = scmp.ne.s32.totalorder %s19, %s22
    %p31 = scmp.eq.s32.totalorder %s14, 1
    %p32 = por %p30, %p31
    %p33 = scmp.ne.s32.totalorder %s22, %s23
    %p34 = scmp.eq.s32.totalorder %s14, 0
    %p35 = por %p33, %p34
    %p36 = scmp.ne.s32.totalorder %s22, %s23
    %p37 = scmp.eq.s32.totalorder %s15, 1
    %p38 = por %p36, %p37
    %p40 = scmp.ne.s32.totalorder %s23, %s39
    %p41 = scmp.eq.s32.totalorder %s15, 0
    %p42 = por %p40, %p41
    %s44 = sadd.s32 %s43, 1
    %p47 = scmp.eq.s32.totalorder %s9, 1
    %p48 = scmp.ne.s32.totalorder %s43, %s45
    %p49 = scmp.eq.s32.totalorder %s9, 0
    %p50 = por %p48, %p49
    %p51 = scmp.ne.s32.totalorder %s43, %s45
    %p52 = scmp.eq.s32.totalorder %s14, 1
    %p53 = por %p51, %p52
    %p54 = scmp.ne.s32.totalorder %s45, %s46
    %p55 = scmp.eq.s32.totalorder %s14, 0
    %p56 = por %p54, %p55
    %p57 = scmp.ne.s32.totalorder %s45, %s46
    %p58 = scmp.eq.s32.totalorder %s15, 1
    %p59 = por %p57, %p58
    %p61 = scmp.ne.s32.totalorder %s46, %s60
    %p62 = scmp.eq.s32.totalorder %s15, 0
    %p63 = por %p61, %p62
    %s65 = sadd.s32 %s64, 1
    %p68 = scmp.eq.s32.totalorder %s9, 1
    %p69 = scmp.ne.s32.totalorder %s64, %s66
    %p70 = scmp.eq.s32.totalorder %s9, 0
    %p71 = por %p69, %p70
    %p72 = scmp.ne.s32.totalorder %s64, %s66
    %p73 = scmp.eq.s32.totalorder %s14, 1
    %p74 = por %p72, %p73
    %p75 = scmp.ne.s32.totalorder %s66, %s67
    %p76 = scmp.eq.s32.totalorder %s14, 0
    %p77 = por %p75, %p76
    %p78 = scmp.ne.s32.totalorder %s66, %s67
    %p79 = scmp.eq.s32.totalorder %s15, 1
    %p80 = por %p78, %p79
    %p82 = scmp.ne.s32.totalorder %s67, %s81
    %p83 = scmp.eq.s32.totalorder %s15, 0
    %p84 = por %p82, %p83
    %s85 = ssub.s32 %s9, %s16
    %p86 = scmp.eq.s32.totalorder %s85, 0
    %s88 = sadd.s32 %s87, 1
    %s89 = scalar_select %p86, %s87, %s88
    %p92 = pneg %p86
    %p93 = scmp.eq.s32.totalorder %s9, 1
    %p94 = por %p92, %p93
    %p95 = scmp.ne.s32.totalorder %s87, %s90
    %p96 = scmp.eq.s32.totalorder %s9, 0
    %p97 = por %p95, %p96
    %p98 = scmp.ne.s32.totalorder %s87, %s90
    %p99 = scmp.eq.s32.totalorder %s14, 1
    %p100 = por %p98, %p99
    %p101 = scmp.ne.s32.totalorder %s90, %s91
    %p102 = scmp.eq.s32.totalorder %s14, 0
    %p103 = por %p101, %p102
    %p104 = scmp.ne.s32.totalorder %s90, %s91
    %p105 = scmp.eq.s32.totalorder %s15, 1
    %p106 = por %p104, %p105
    %p108 = scmp.ne.s32.totalorder %s91, %s107
    %p109 = scmp.eq.s32.totalorder %s15, 0
    %p110 = por %p108, %p109
    %p111 = scmp.le.s32.totalorder 1, %s9
    %p112 = scmp.lt.s32.totalorder %s9, 3
    %p113 = pnand %p111, %p112
    %p114 = pneg %p113
    // Predicated region
    $region9: #{_lambda_.2} parent=5 // pred_check
      _
    $region10: #{_lambda_.2} parent=5 // pred_check_branch
      %116 = sbr.rel (%p113) target = $region12
    $region11: #{_lambda_.2} parent=5 // pred_region
      %s117 = ssub.s32 %s9, 1
      // Predicated region
      $region13: #{_lambda_.2} parent=11 // pred_check
        %p118 = pneg %p56
      $region14: #{_lambda_.2} parent=11 // pred_check_branch
        %120 = sbr.rel (%p118) target = $region16
      $region15: #{_lambda_.2} parent=11 // pred_region
        _
      $region16: #{_lambda_.2} parent=11 // pred_fallthru
        _
      // Predicated region
      $region17: #{_lambda_.2} parent=11 // pred_check
        %p121 = pneg %p77
      $region18: #{_lambda_.2} parent=11 // pred_check_branch
        %123 = sbr.rel (%p121) target = $region20
      $region19: #{_lambda_.2} parent=11 // pred_region
        _
      $region20: #{_lambda_.2} parent=11 // pred_fallthru
        _
    $region12: #{_lambda_.2} parent=5 // pred_fallthru
      _
    %p124 = scmp.lt.s32.totalorder %s9, 2
    // Predicated region
    $region21: #{_lambda_.2} parent=5 // pred_check
      %p125 = pneg %p124
    $region22: #{_lambda_.2} parent=5 // pred_check_branch
      %127 = sbr.rel (%p125) target = $region24
    $region23: #{_lambda_.2} parent=5 // pred_region
      // Predicated region
      $region25: #{_lambda_.2} parent=23 // pred_check
        %p128 = pneg %p29
      $region26: #{_lambda_.2} parent=23 // pred_check_branch
        %130 = sbr.rel (%p128) target = $region28
      $region27: #{_lambda_.2} parent=23 // pred_region
        %s131 = smul.u32 32, %s9
        %p132 = scmp.lt.s32.totalorder %s131, 63
        %s133 = scalar_select %p132, %s131, 63
        %s134 = smul.addr %s133, 8
        %s135 = scalar_lea.vmem %s0, %s134
        %s136 = smul.u32 32, %s9
      $region28: #{_lambda_.2} parent=23 // pred_fallthru
        _
    $region24: #{_lambda_.2} parent=5 // pred_fallthru
      _
    %p137 = scmp.le.s32.totalorder 1, %s9
    %p138 = scmp.lt.s32.totalorder %s9, 3
    %p139 = pnand %p137, %p138
    %p140 = pneg %p139
    // Predicated region
    $region29: #{_lambda_.2} parent=5 // pred_check
      _
    $region30: #{_lambda_.2} parent=5 // pred_check_branch
      %142 = sbr.rel (%p139) target = $region32
    $region31: #{_lambda_.2} parent=5 // pred_region
      %s143 = ssub.s32 %s9, 1
      %s144 = smul.u32 32, %s14
      %p145 = scmp.lt.s32.totalorder %s144, 63
      %s146 = scalar_select %p145, %s144, 63
      %s147 = smul.addr %s146, 8
      %s148 = scalar_lea.vmem %s0, %s147
      %p149 = pneg %p35
      %p150 = pneg %p32
      %p151 = pneg %p56
      %p152 = pneg %p53
      %p153 = pneg %p77
      %p154 = pneg %p74
      %p155 = pneg %p103
      %p156 = pneg %p100
      %s157 = smul.u32 8, %s14
      %p158 = scmp.lt.s32.totalorder %s157, 15
      %s159 = scalar_select %p158, %s157, 15
      %s160 = smul.addr %s159, 8
      %s161 = scalar_lea.vmem %s3, %s160
      %s162 = smul.u32 32, %s14
      %p163 = scmp.lt.s32.totalorder %s162, 63
      %s164 = scalar_select %p163, %s162, 63
      %s165 = smul.addr %s164, 8
      %s166 = scalar_lea.vmem %s0, %s165
      %s167 = smul.u32 32, %s14
      %s168 = smul.u32 8, %s14
      %p169 = scmp.lt.s32.totalorder %s168, 15
      %s170 = scalar_select %p169, %s168, 15
      %s171 = smul.addr %s170, 8
      %s172 = scalar_lea.vmem %s3, %s171
      %s173 = smul.u32 8, %s14
      %v174 = vld [vmem:[%s166] sm:$0xff]
      %v175 = vld [vmem:[%s166 + $0x8] sm:$0xff]
      %v176 = vld [vmem:[%s166 + $0x10] sm:$0xff]
      %v177 = vld [vmem:[%s166 + $0x18] sm:$0xff]
      %v178 = vld [vmem:[%s166 + $0x20] sm:$0xff]
      %v179 = vld [vmem:[%s166 + $0x28] sm:$0xff]
      %v180 = vld [vmem:[%s166 + $0x30] sm:$0xff]
      %v181 = vld [vmem:[%s166 + $0x38] sm:$0xff]
      %v182 = vld [vmem:[%s166 + $0x40] sm:$0xff]
      %v183 = vld [vmem:[%s166 + $0x48] sm:$0xff]
      %v184 = vld [vmem:[%s166 + $0x50] sm:$0xff]
      %v185 = vld [vmem:[%s166 + $0x58] sm:$0xff]
      %v186 = vld [vmem:[%s166 + $0x60] sm:$0xff]
      %v187 = vld [vmem:[%s166 + $0x68] sm:$0xff]
      %v188 = vld [vmem:[%s166 + $0x70] sm:$0xff]
      %v189 = vld [vmem:[%s166 + $0x78] sm:$0xff]
      %v190 = vld [vmem:[%s166 + $0x80] sm:$0xff]
      %v191 = vld [vmem:[%s166 + $0x88] sm:$0xff]
      %v192 = vld [vmem:[%s166 + $0x90] sm:$0xff]
      %v193 = vld [vmem:[%s166 + $0x98] sm:$0xff]
      %v194 = vld [vmem:[%s166 + $0xa0] sm:$0xff]
      %v195 = vld [vmem:[%s166 + $0xa8] sm:$0xff]
      %v196 = vld [vmem:[%s166 + $0xb0] sm:$0xff]
      %v197 = vld [vmem:[%s166 + $0xb8] sm:$0xff]
      %v198 = vld [vmem:[%s166 + $0xc0] sm:$0xff]
      %v199 = vld [vmem:[%s166 + $0xc8] sm:$0xff]
      %v200 = vld [vmem:[%s166 + $0xd0] sm:$0xff]
      %v201 = vld [vmem:[%s166 + $0xd8] sm:$0xff]
      %v202 = vld [vmem:[%s166 + $0xe0] sm:$0xff]
      %v203 = vld [vmem:[%s166 + $0xe8] sm:$0xff]
      %v204 = vld [vmem:[%s166 + $0xf0] sm:$0xff]
      %v205 = vld [vmem:[%s166 + $0xf8] sm:$0xff]
      %v206 = vld [vmem:[%s1] sm:$0xff]
      %v207 = vld [vmem:[%s1 + $0x8] sm:$0xff]
      %v208 = vld [vmem:[%s1 + $0x10] sm:$0xff]
      %v209 = vld [vmem:[%s1 + $0x18] sm:$0xff]
      %vm210 = vcmask 261120
      %v212 = vsel %vm210, %v174, 0
      %v215 = vsel %vm210, %v175, 0
      %v218 = vsel %vm210, %v176, 0
      %v221 = vsel %vm210, %v177, 0
      %v224 = vsel %vm210, %v178, 0
      %v227 = vsel %vm210, %v179, 0
      %v230 = vsel %vm210, %v180, 0
      %v233 = vsel %vm210, %v181, 0
      %v236 = vsel %vm210, %v182, 0
      %v239 = vsel %vm210, %v183, 0
      %v242 = vsel %vm210, %v184, 0
      %v245 = vsel %vm210, %v185, 0
      %v248 = vsel %vm210, %v186, 0
      %v251 = vsel %vm210, %v187, 0
      %v254 = vsel %vm210, %v188, 0
      %v257 = vsel %vm210, %v189, 0
      %v260 = vsel %vm210, %v190, 0
      %v263 = vsel %vm210, %v191, 0
      %v266 = vsel %vm210, %v192, 0
      %v269 = vsel %vm210, %v193, 0
      %v272 = vsel %vm210, %v194, 0
      %v275 = vsel %vm210, %v195, 0
      %v278 = vsel %vm210, %v196, 0
      %v281 = vsel %vm210, %v197, 0
      %v284 = vsel %vm210, %v198, 0
      %v287 = vsel %vm210, %v199, 0
      %v290 = vsel %vm210, %v200, 0
      %v293 = vsel %vm210, %v201, 0
      %v296 = vsel %vm210, %v202, 0
      %v299 = vsel %vm210, %v203, 0
      %v302 = vsel %vm210, %v204, 0
      %v305 = vsel %vm210, %v205, 0
      %307 = vmatpush.msra.mxu0 0.0
      %308 = vmatpush.msra.mxu0 0.0
      %309 = vmatpush.msra.mxu0 0.0
      %310 = vmatpush.msra.mxu0 0.0
      %311 = vmatpush.msra.mxu0 0.0
      %312 = vmatpush.msra.mxu0 0.0
      %313 = vmatpush.msra.mxu0 0.0
      %314 = vmatpush.msra.mxu0 0.0
      %315 = vmatpush.msra.mxu0 0.0
      %316 = vmatpush.msra.mxu0 0.0
      %317 = vmatpush.msra.mxu0 0.0
      %318 = vmatpush.msra.mxu0 0.0
      %319 = vmatpush.msra.mxu0 %v209
      %320 = vmatpush.msra.mxu0 %v208
      %321 = vmatpush.msra.mxu0 %v207
      %322 = vmatpush.msra.mxu0 %v206
      %323 = vmatmul.f32.gmra.mxu0 %v212
      %v324 = vpop.f32.mrf.mxu0
      %v325 = vadd.f32 0.0, %v324
      %326 = vmatmul.f32.gmra.mxu0 %v215
      %v327 = vpop.f32.mrf.mxu0
      %v328 = vadd.f32 0.0, %v327
      %329 = vmatmul.f32.gmra.mxu0 %v218
      %v330 = vpop.f32.mrf.mxu0
      %v331 = vadd.f32 0.0, %v330
      %332 = vmatmul.f32.gmra.mxu0 %v221
      %v333 = vpop.f32.mrf.mxu0
      %v334 = vadd.f32 0.0, %v333
      %335 = vmatmul.f32.gmra.mxu0 %v224
      %v336 = vpop.f32.mrf.mxu0
      %v337 = vadd.f32 0.0, %v336
      %338 = vmatmul.f32.gmra.mxu0 %v227
      %v339 = vpop.f32.mrf.mxu0
      %v340 = vadd.f32 0.0, %v339
      %341 = vmatmul.f32.gmra.mxu0 %v230
      %v342 = vpop.f32.mrf.mxu0
      %v343 = vadd.f32 0.0, %v342
      %344 = vmatmul.f32.gmra.mxu0 %v233
      %v345 = vpop.f32.mrf.mxu0
      %v346 = vadd.f32 0.0, %v345
      %347 = vmatmul.f32.gmra.mxu0 %v236
      %v348 = vpop.f32.mrf.mxu0
      %v349 = vadd.f32 0.0, %v348
      %350 = vmatmul.f32.gmra.mxu0 %v239
      %v351 = vpop.f32.mrf.mxu0
      %v352 = vadd.f32 0.0, %v351
      %353 = vmatmul.f32.gmra.mxu0 %v242
      %v354 = vpop.f32.mrf.mxu0
      %v355 = vadd.f32 0.0, %v354
      %356 = vmatmul.f32.gmra.mxu0 %v245
      %v357 = vpop.f32.mrf.mxu0
      %v358 = vadd.f32 0.0, %v357
      %359 = vmatmul.f32.gmra.mxu0 %v248
      %v360 = vpop.f32.mrf.mxu0
      %v361 = vadd.f32 0.0, %v360
      %362 = vmatmul.f32.gmra.mxu0 %v251
      %v363 = vpop.f32.mrf.mxu0
      %v364 = vadd.f32 0.0, %v363
      %365 = vmatmul.f32.gmra.mxu0 %v254
      %v366 = vpop.f32.mrf.mxu0
      %v367 = vadd.f32 0.0, %v366
      %368 = vmatmul.f32.gmra.mxu0 %v257
      %v369 = vpop.f32.mrf.mxu0
      %v370 = vadd.f32 0.0, %v369
      %371 = vmatmul.f32.gmra.mxu0 %v260
      %v372 = vpop.f32.mrf.mxu0
      %v373 = vadd.f32 0.0, %v372
      %374 = vmatmul.f32.gmra.mxu0 %v263
      %v375 = vpop.f32.mrf.mxu0
      %v376 = vadd.f32 0.0, %v375
      %377 = vmatmul.f32.gmra.mxu0 %v266
      %v378 = vpop.f32.mrf.mxu0
      %v379 = vadd.f32 0.0, %v378
      %380 = vmatmul.f32.gmra.mxu0 %v269
      %v381 = vpop.f32.mrf.mxu0
      %v382 = vadd.f32 0.0, %v381
      %383 = vmatmul.f32.gmra.mxu0 %v272
      %v384 = vpop.f32.mrf.mxu0
      %v385 = vadd.f32 0.0, %v384
      %386 = vmatmul.f32.gmra.mxu0 %v275
      %v387 = vpop.f32.mrf.mxu0
      %v388 = vadd.f32 0.0, %v387
      %389 = vmatmul.f32.gmra.mxu0 %v278
      %v390 = vpop.f32.mrf.mxu0
      %v391 = vadd.f32 0.0, %v390
      %392 = vmatmul.f32.gmra.mxu0 %v281
      %v393 = vpop.f32.mrf.mxu0
      %v394 = vadd.f32 0.0, %v393
      %395 = vmatmul.f32.gmra.mxu0 %v284
      %v396 = vpop.f32.mrf.mxu0
      %v397 = vadd.f32 0.0, %v396
      %398 = vmatmul.f32.gmra.mxu0 %v287
      %v399 = vpop.f32.mrf.mxu0
      %v400 = vadd.f32 0.0, %v399
      %401 = vmatmul.f32.gmra.mxu0 %v290
      %v402 = vpop.f32.mrf.mxu0
      %v403 = vadd.f32 0.0, %v402
      %404 = vmatmul.f32.gmra.mxu0 %v293
      %v405 = vpop.f32.mrf.mxu0
      %v406 = vadd.f32 0.0, %v405
      %407 = vmatmul.f32.gmra.mxu0 %v296
      %v408 = vpop.f32.mrf.mxu0
      %v409 = vadd.f32 0.0, %v408
      %410 = vmatmul.f32.gmra.mxu0 %v299
      %v411 = vpop.f32.mrf.mxu0
      %v412 = vadd.f32 0.0, %v411
      %413 = vmatmul.f32.gmra.mxu0 %v302
      %v414 = vpop.f32.mrf.mxu0
      %v415 = vadd.f32 0.0, %v414
      %416 = vmatmul.f32.gmra.mxu0 %v305
      %v417 = vpop.f32.mrf.mxu0
      %v418 = vadd.f32 0.0, %v417
      %419 = vdwg.mxu0
      %v420 = vmax.f32 %v325, 0.0
      %v421 = vmax.f32 %v328, 0.0
      %v422 = vmax.f32 %v331, 0.0
      %v423 = vmax.f32 %v334, 0.0
      %v424 = vmax.f32 %v337, 0.0
      %v425 = vmax.f32 %v340, 0.0
      %v426 = vmax.f32 %v343, 0.0
      %v427 = vmax.f32 %v346, 0.0
      %v428 = vmax.f32 %v349, 0.0
      %v429 = vmax.f32 %v352, 0.0
      %v430 = vmax.f32 %v355, 0.0
      %v431 = vmax.f32 %v358, 0.0
      %v432 = vmax.f32 %v361, 0.0
      %v433 = vmax.f32 %v364, 0.0
      %v434 = vmax.f32 %v367, 0.0
      %v435 = vmax.f32 %v370, 0.0
      %v436 = vmax.f32 %v373, 0.0
      %v437 = vmax.f32 %v376, 0.0
      %v438 = vmax.f32 %v379, 0.0
      %v439 = vmax.f32 %v382, 0.0
      %v440 = vmax.f32 %v385, 0.0
      %v441 = vmax.f32 %v388, 0.0
      %v442 = vmax.f32 %v391, 0.0
      %v443 = vmax.f32 %v394, 0.0
      %v444 = vmax.f32 %v397, 0.0
      %v445 = vmax.f32 %v400, 0.0
      %v446 = vmax.f32 %v403, 0.0
      %v447 = vmax.f32 %v406, 0.0
      %v448 = vmax.f32 %v409, 0.0
      %v449 = vmax.f32 %v412, 0.0
      %v450 = vmax.f32 %v415, 0.0
      %v451 = vmax.f32 %v418, 0.0
      %v452 = vmax.f32 %v422, 0.0
      %v453 = vmax.f32 %v423, 0.0
      %v454 = vmax.f32 %v420, %v424
      %v455 = vmax.f32 %v421, %v425
      %v456 = vmax.f32 %v422, %v426
      %v457 = vmax.f32 %v423, %v427
      %v458 = vmax.f32 %v424, %v428
      %v459 = vmax.f32 %v425, %v429
      %v460 = vmax.f32 %v426, %v430
      %v461 = vmax.f32 %v427, %v431
      %v462 = vmax.f32 %v428, %v432
      %v463 = vmax.f32 %v429, %v433
      %v464 = vmax.f32 %v430, %v434
      %v465 = vmax.f32 %v431, %v435
      %v466 = vmax.f32 %v432, %v436
      %v467 = vmax.f32 %v433, %v437
      %v468 = vmax.f32 %v434, %v438
      %v469 = vmax.f32 %v435, %v439
      %v470 = vmax.f32 %v436, %v440
      %v471 = vmax.f32 %v437, %v441
      %v472 = vmax.f32 %v438, %v442
      %v473 = vmax.f32 %v439, %v443
      %v474 = vmax.f32 %v440, %v444
      %v475 = vmax.f32 %v441, %v445
      %v476 = vmax.f32 %v442, %v446
      %v477 = vmax.f32 %v443, %v447
      %v478 = vmax.f32 %v444, %v448
      %v479 = vmax.f32 %v445, %v449
      %v480 = vmax.f32 %v446, %v450
      %v481 = vmax.f32 %v447, %v451
      %v482 = vmax.f32 %v448, 0.0
      %v483 = vmax.f32 %v449, 0.0
      %v484 = vmax.f32 %v420, %v452
      %v485 = vmax.f32 %v421, %v453
      %v486 = vmax.f32 %v422, %v454
      %v487 = vmax.f32 %v423, %v455
      %v488 = vmax.f32 %v424, %v456
      %v489 = vmax.f32 %v425, %v457
      %v490 = vmax.f32 %v426, %v458
      %v491 = vmax.f32 %v427, %v459
      %v492 = vmax.f32 %v428, %v460
      %v493 = vmax.f32 %v429, %v461
      %v494 = vmax.f32 %v430, %v462
      %v495 = vmax.f32 %v431, %v463
      %v496 = vmax.f32 %v432, %v464
      %v497 = vmax.f32 %v433, %v465
      %v498 = vmax.f32 %v434, %v466
      %v499 = vmax.f32 %v435, %v467
      %v500 = vmax.f32 %v436, %v468
      %v501 = vmax.f32 %v437, %v469
      %v502 = vmax.f32 %v438, %v470
      %v503 = vmax.f32 %v439, %v471
      %v504 = vmax.f32 %v440, %v472
      %v505 = vmax.f32 %v441, %v473
      %v506 = vmax.f32 %v442, %v474
      %v507 = vmax.f32 %v443, %v475
      %v508 = vmax.f32 %v444, %v476
      %v509 = vmax.f32 %v445, %v477
      %v510 = vmax.f32 %v446, %v478
      %v511 = vmax.f32 %v447, %v479
      %v512 = vmax.f32 %v448, %v480
      %v513 = vmax.f32 %v449, %v481
      %v514 = vmax.f32 %v450, %v482
      %v515 = vmax.f32 %v451, %v483
      %v516 = vld [vmem:[%s2] sm:$0xff]
      %v517 = vld [vmem:[%s2 + $0x8] sm:$0xff]
      %v518 = vld [vmem:[%s2 + $0x10] sm:$0xff]
      %v519 = vld [vmem:[%s2 + $0x18] sm:$0xff]
      %v520 = vld [vmem:[%s2 + $0x20] sm:$0xff]
      %v521 = vld [vmem:[%s2 + $0x28] sm:$0xff]
      %v522 = vld [vmem:[%s2 + $0x30] sm:$0xff]
      %v523 = vld [vmem:[%s2 + $0x38] sm:$0xff]
      %v524 = vld [vmem:[%s2 + $0x40] sm:$0xff]
      %v525 = vld [vmem:[%s2 + $0x48] sm:$0xff]
      %v526 = vld [vmem:[%s2 + $0x50] sm:$0xff]
      %v527 = vld [vmem:[%s2 + $0x58] sm:$0xff]
      %v528 = vld [vmem:[%s2 + $0x60] sm:$0xff]
      %v529 = vld [vmem:[%s2 + $0x68] sm:$0xff]
      %v530 = vld [vmem:[%s2 + $0x70] sm:$0xff]
      %v531 = vld [vmem:[%s2 + $0x78] sm:$0xff]
      %532 = vmatpush.msra.mxu0 %v499
      %533 = vmatpush.msra.mxu0 %v498
      %534 = vmatpush.msra.mxu0 %v497
      %535 = vmatpush.msra.mxu0 %v496
      %536 = vmatpush.msra.mxu0 %v495
      %537 = vmatpush.msra.mxu0 %v494
      %538 = vmatpush.msra.mxu0 %v493
      %539 = vmatpush.msra.mxu0 %v492
      %540 = vmatpush.msra.mxu0 %v491
      %541 = vmatpush.msra.mxu0 %v490
      %542 = vmatpush.msra.mxu0 %v489
      %543 = vmatpush.msra.mxu0 %v488
      %544 = vmatpush.msra.mxu0 %v487
      %545 = vmatpush.msra.mxu0 %v486
      %546 = vmatpush.msra.mxu0 %v485
      %547 = vmatpush.msra.mxu0 %v484
      %548 = vmatmul.f32.gmra.mxu0 %v516
      %v549 = vpop.f32.mrf.mxu0
      %v550 = vadd.f32 0.0, %v549
      %551 = vmatmul.f32.gmra.mxu0 %v518
      %v552 = vpop.f32.mrf.mxu0
      %v553 = vadd.f32 0.0, %v552
      %554 = vmatmul.f32.gmra.mxu0 %v520
      %v555 = vpop.f32.mrf.mxu0
      %v556 = vadd.f32 0.0, %v555
      %557 = vmatmul.f32.gmra.mxu0 %v522
      %v558 = vpop.f32.mrf.mxu0
      %v559 = vadd.f32 0.0, %v558
      %560 = vmatmul.f32.gmra.mxu0 %v524
      %v561 = vpop.f32.mrf.mxu0
      %v562 = vadd.f32 0.0, %v561
      %563 = vmatmul.f32.gmra.mxu0 %v526
      %v564 = vpop.f32.mrf.mxu0
      %v565 = vadd.f32 0.0, %v564
      %566 = vmatmul.f32.gmra.mxu0 %v528
      %v567 = vpop.f32.mrf.mxu0
      %v568 = vadd.f32 0.0, %v567
      %569 = vmatmul.f32.gmra.mxu0 %v530
      %v570 = vpop.f32.mrf.mxu0
      %v571 = vadd.f32 0.0, %v570
      %572 = vdwg.mxu0
      %573 = vmatpush.msra.mxu0 %v515
      %574 = vmatpush.msra.mxu0 %v514
      %575 = vmatpush.msra.mxu0 %v513
      %576 = vmatpush.msra.mxu0 %v512
      %577 = vmatpush.msra.mxu0 %v511
      %578 = vmatpush.msra.mxu0 %v510
      %579 = vmatpush.msra.mxu0 %v509
      %580 = vmatpush.msra.mxu0 %v508
      %581 = vmatpush.msra.mxu0 %v507
      %582 = vmatpush.msra.mxu0 %v506
      %583 = vmatpush.msra.mxu0 %v505
      %584 = vmatpush.msra.mxu0 %v504
      %585 = vmatpush.msra.mxu0 %v503
      %586 = vmatpush.msra.mxu0 %v502
      %587 = vmatpush.msra.mxu0 %v501
      %588 = vmatpush.msra.mxu0 %v500
      %589 = vmatmul.f32.gmra.mxu0 %v517
      %v590 = vpop.f32.mrf.mxu0
      %v591 = vadd.f32 %v550, %v590
      %592 = vmatmul.f32.gmra.mxu0 %v519
      %v593 = vpop.f32.mrf.mxu0
      %v594 = vadd.f32 %v553, %v593
      %595 = vmatmul.f32.gmra.mxu0 %v521
      %v596 = vpop.f32.mrf.mxu0
      %v597 = vadd.f32 %v556, %v596
      %598 = vmatmul.f32.gmra.mxu0 %v523
      %v599 = vpop.f32.mrf.mxu0
      %v600 = vadd.f32 %v559, %v599
      %601 = vmatmul.f32.gmra.mxu0 %v525
      %v602 = vpop.f32.mrf.mxu0
      %v603 = vadd.f32 %v562, %v602
      %604 = vmatmul.f32.gmra.mxu0 %v527
      %v605 = vpop.f32.mrf.mxu0
      %v606 = vadd.f32 %v565, %v605
      %607 = vmatmul.f32.gmra.mxu0 %v529
      %v608 = vpop.f32.mrf.mxu0
      %v609 = vadd.f32 %v568, %v608
      %610 = vmatmul.f32.gmra.mxu0 %v531
      %v611 = vpop.f32.mrf.mxu0
      %v612 = vadd.f32 %v571, %v611
      %613 = vdwg.mxu0
      %s614 = scalar_lea.vmem %s2, 128
      %v615 = vld [vmem:[%s614] sm:$0xff]
      %v616 = vld [vmem:[%s614 + $0x8] sm:$0xff]
      %v617 = vld [vmem:[%s614 + $0x10] sm:$0xff]
      %v618 = vld [vmem:[%s614 + $0x18] sm:$0xff]
      %v619 = vld [vmem:[%s614 + $0x20] sm:$0xff]
      %v620 = vld [vmem:[%s614 + $0x28] sm:$0xff]
      %v621 = vld [vmem:[%s614 + $0x30] sm:$0xff]
      %v622 = vld [vmem:[%s614 + $0x38] sm:$0xff]
      %v623 = vld [vmem:[%s614 + $0x40] sm:$0xff]
      %v624 = vld [vmem:[%s614 + $0x48] sm:$0xff]
      %v625 = vld [vmem:[%s614 + $0x50] sm:$0xff]
      %v626 = vld [vmem:[%s614 + $0x58] sm:$0xff]
      %v627 = vld [vmem:[%s614 + $0x60] sm:$0xff]
      %v628 = vld [vmem:[%s614 + $0x68] sm:$0xff]
      %v629 = vld [vmem:[%s614 + $0x70] sm:$0xff]
      %v630 = vld [vmem:[%s614 + $0x78] sm:$0xff]
      %631 = vmatpush.msra.mxu0 %v499
      %632 = vmatpush.msra.mxu0 %v498
      %633 = vmatpush.msra.mxu0 %v497
      %634 = vmatpush.msra.mxu0 %v496
      %635 = vmatpush.msra.mxu0 %v495
      %636 = vmatpush.msra.mxu0 %v494
      %637 = vmatpush.msra.mxu0 %v493
      %638 = vmatpush.msra.mxu0 %v492
      %639 = vmatpush.msra.mxu0 %v491
      %640 = vmatpush.msra.mxu0 %v490
      %641 = vmatpush.msra.mxu0 %v489
      %642 = vmatpush.msra.mxu0 %v488
      %643 = vmatpush.msra.mxu0 %v487
      %644 = vmatpush.msra.mxu0 %v486
      %645 = vmatpush.msra.mxu0 %v485
      %646 = vmatpush.msra.mxu0 %v484
      %647 = vmatmul.f32.gmra.mxu0 %v615
      %v648 = vpop.f32.mrf.mxu0
      %v649 = vadd.f32 0.0, %v648
      %650 = vmatmul.f32.gmra.mxu0 %v617
      %v651 = vpop.f32.mrf.mxu0
      %v652 = vadd.f32 0.0, %v651
      %653 = vmatmul.f32.gmra.mxu0 %v619
      %v654 = vpop.f32.mrf.mxu0
      %v655 = vadd.f32 0.0, %v654
      %656 = vmatmul.f32.gmra.mxu0 %v621
      %v657 = vpop.f32.mrf.mxu0
      %v658 = vadd.f32 0.0, %v657
      %659 = vmatmul.f32.gmra.mxu0 %v623
      %v660 = vpop.f32.mrf.mxu0
      %v661 = vadd.f32 0.0, %v660
      %662 = vmatmul.f32.gmra.mxu0 %v625
      %v663 = vpop.f32.mrf.mxu0
      %v664 = vadd.f32 0.0, %v663
      %665 = vmatmul.f32.gmra.mxu0 %v627
      %v666 = vpop.f32.mrf.mxu0
      %v667 = vadd.f32 0.0, %v666
      %668 = vmatmul.f32.gmra.mxu0 %v629
      %v669 = vpop.f32.mrf.mxu0
      %v670 = vadd.f32 0.0, %v669
      %671 = vdwg.mxu0
      %672 = vmatpush.msra.mxu0 %v515
      %673 = vmatpush.msra.mxu0 %v514
      %674 = vmatpush.msra.mxu0 %v513
      %675 = vmatpush.msra.mxu0 %v512
      %676 = vmatpush.msra.mxu0 %v511
      %677 = vmatpush.msra.mxu0 %v510
      %678 = vmatpush.msra.mxu0 %v509
      %679 = vmatpush.msra.mxu0 %v508
      %680 = vmatpush.msra.mxu0 %v507
      %681 = vmatpush.msra.mxu0 %v506
      %682 = vmatpush.msra.mxu0 %v505
      %683 = vmatpush.msra.mxu0 %v504
      %684 = vmatpush.msra.mxu0 %v503
      %685 = vmatpush.msra.mxu0 %v502
      %686 = vmatpush.msra.mxu0 %v501
      %687 = vmatpush.msra.mxu0 %v500
      %688 = vmatmul.f32.gmra.mxu0 %v616
      %v689 = vpop.f32.mrf.mxu0
      %v690 = vadd.f32 %v649, %v689
      %691 = vmatmul.f32.gmra.mxu0 %v618
      %v692 = vpop.f32.mrf.mxu0
      %v693 = vadd.f32 %v652, %v692
      %694 = vmatmul.f32.gmra.mxu0 %v620
      %v695 = vpop.f32.mrf.mxu0
      %v696 = vadd.f32 %v655, %v695
      %697 = vmatmul.f32.gmra.mxu0 %v622
      %v698 = vpop.f32.mrf.mxu0
      %v699 = vadd.f32 %v658, %v698
      %700 = vmatmul.f32.gmra.mxu0 %v624
      %v701 = vpop.f32.mrf.mxu0
      %v702 = vadd.f32 %v661, %v701
      %703 = vmatmul.f32.gmra.mxu0 %v626
      %v704 = vpop.f32.mrf.mxu0
      %v705 = vadd.f32 %v664, %v704
      %706 = vmatmul.f32.gmra.mxu0 %v628
      %v707 = vpop.f32.mrf.mxu0
      %v708 = vadd.f32 %v667, %v707
      %709 = vmatmul.f32.gmra.mxu0 %v630
      %v710 = vpop.f32.mrf.mxu0
      %v711 = vadd.f32 %v670, %v710
      %712 = vdwg.mxu0
      %v713 = vmax.f32 %v591, %v690
      %v714 = vmax.f32 %v594, %v693
      %v715 = vmax.f32 %v597, %v696
      %v716 = vmax.f32 %v600, %v699
      %v717 = vmax.f32 %v603, %v702
      %v718 = vmax.f32 %v606, %v705
      %v719 = vmax.f32 %v609, %v708
      %v720 = vmax.f32 %v612, %v711
      %s721 = scalar_lea.vmem %s2, 256
      %v722 = vld [vmem:[%s721] sm:$0xff]
      %v723 = vld [vmem:[%s721 + $0x8] sm:$0xff]
      %v724 = vld [vmem:[%s721 + $0x10] sm:$0xff]
      %v725 = vld [vmem:[%s721 + $0x18] sm:$0xff]
      %v726 = vld [vmem:[%s721 + $0x20] sm:$0xff]
      %v727 = vld [vmem:[%s721 + $0x28] sm:$0xff]
      %v728 = vld [vmem:[%s721 + $0x30] sm:$0xff]
      %v729 = vld [vmem:[%s721 + $0x38] sm:$0xff]
      %v730 = vld [vmem:[%s721 + $0x40] sm:$0xff]
      %v731 = vld [vmem:[%s721 + $0x48] sm:$0xff]
      %v732 = vld [vmem:[%s721 + $0x50] sm:$0xff]
      %v733 = vld [vmem:[%s721 + $0x58] sm:$0xff]
      %v734 = vld [vmem:[%s721 + $0x60] sm:$0xff]
      %v735 = vld [vmem:[%s721 + $0x68] sm:$0xff]
      %v736 = vld [vmem:[%s721 + $0x70] sm:$0xff]
      %v737 = vld [vmem:[%s721 + $0x78] sm:$0xff]
      %738 = vmatpush.msra.mxu0 %v499
      %739 = vmatpush.msra.mxu0 %v498
      %740 = vmatpush.msra.mxu0 %v497
      %741 = vmatpush.msra.mxu0 %v496
      %742 = vmatpush.msra.mxu0 %v495
      %743 = vmatpush.msra.mxu0 %v494
      %744 = vmatpush.msra.mxu0 %v493
      %745 = vmatpush.msra.mxu0 %v492
      %746 = vmatpush.msra.mxu0 %v491
      %747 = vmatpush.msra.mxu0 %v490
      %748 = vmatpush.msra.mxu0 %v489
      %749 = vmatpush.msra.mxu0 %v488
      %750 = vmatpush.msra.mxu0 %v487
      %751 = vmatpush.msra.mxu0 %v486
      %752 = vmatpush.msra.mxu0 %v485
      %753 = vmatpush.msra.mxu0 %v484
      %754 = vmatmul.f32.gmra.mxu0 %v722
      %v755 = vpop.f32.mrf.mxu0
      %v756 = vadd.f32 0.0, %v755
      %757 = vmatmul.f32.gmra.mxu0 %v724
      %v758 = vpop.f32.mrf.mxu0
      %v759 = vadd.f32 0.0, %v758
      %760 = vmatmul.f32.gmra.mxu0 %v726
      %v761 = vpop.f32.mrf.mxu0
      %v762 = vadd.f32 0.0, %v761
      %763 = vmatmul.f32.gmra.mxu0 %v728
      %v764 = vpop.f32.mrf.mxu0
      %v765 = vadd.f32 0.0, %v764
      %766 = vmatmul.f32.gmra.mxu0 %v730
      %v767 = vpop.f32.mrf.mxu0
      %v768 = vadd.f32 0.0, %v767
      %769 = vmatmul.f32.gmra.mxu0 %v732
      %v770 = vpop.f32.mrf.mxu0
      %v771 = vadd.f32 0.0, %v770
      %772 = vmatmul.f32.gmra.mxu0 %v734
      %v773 = vpop.f32.mrf.mxu0
      %v774 = vadd.f32 0.0, %v773
      %775 = vmatmul.f32.gmra.mxu0 %v736
      %v776 = vpop.f32.mrf.mxu0
      %v777 = vadd.f32 0.0, %v776
      %778 = vdwg.mxu0
      %779 = vmatpush.msra.mxu0 %v515
      %780 = vmatpush.msra.mxu0 %v514
      %781 = vmatpush.msra.mxu0 %v513
      %782 = vmatpush.msra.mxu0 %v512
      %783 = vmatpush.msra.mxu0 %v511
      %784 = vmatpush.msra.mxu0 %v510
      %785 = vmatpush.msra.mxu0 %v509
      %786 = vmatpush.msra.mxu0 %v508
      %787 = vmatpush.msra.mxu0 %v507
      %788 = vmatpush.msra.mxu0 %v506
      %789 = vmatpush.msra.mxu0 %v505
      %790 = vmatpush.msra.mxu0 %v504
      %791 = vmatpush.msra.mxu0 %v503
      %792 = vmatpush.msra.mxu0 %v502
      %793 = vmatpush.msra.mxu0 %v501
      %794 = vmatpush.msra.mxu0 %v500
      %795 = vmatmul.f32.gmra.mxu0 %v723
      %v796 = vpop.f32.mrf.mxu0
      %v797 = vadd.f32 %v756, %v796
      %798 = vmatmul.f32.gmra.mxu0 %v725
      %v799 = vpop.f32.mrf.mxu0
      %v800 = vadd.f32 %v759, %v799
      %801 = vmatmul.f32.gmra.mxu0 %v727
      %v802 = vpop.f32.mrf.mxu0
      %v803 = vadd.f32 %v762, %v802
      %804 = vmatmul.f32.gmra.mxu0 %v729
      %v805 = vpop.f32.mrf.mxu0
      %v806 = vadd.f32 %v765, %v805
      %807 = vmatmul.f32.gmra.mxu0 %v731
      %v808 = vpop.f32.mrf.mxu0
      %v809 = vadd.f32 %v768, %v808
      %810 = vmatmul.f32.gmra.mxu0 %v733
      %v811 = vpop.f32.mrf.mxu0
      %v812 = vadd.f32 %v771, %v811
      %813 = vmatmul.f32.gmra.mxu0 %v735
      %v814 = vpop.f32.mrf.mxu0
      %v815 = vadd.f32 %v774, %v814
      %816 = vmatmul.f32.gmra.mxu0 %v737
      %v817 = vpop.f32.mrf.mxu0
      %v818 = vadd.f32 %v777, %v817
      %819 = vdwg.mxu0
      %v820 = vmax.f32 %v713, %v797
      %v821 = vmax.f32 %v714, %v800
      %v822 = vmax.f32 %v715, %v803
      %v823 = vmax.f32 %v716, %v806
      %v824 = vmax.f32 %v717, %v809
      %v825 = vmax.f32 %v718, %v812
      %v826 = vmax.f32 %v719, %v815
      %v827 = vmax.f32 %v720, %v818
      %vm828 = vcmask 523264
      %829 = vst.msk [vmem:[%s172] sm:$0xff] %vm828, %v820
      %830 = vst.msk [vmem:[%s172 + $0x8] sm:$0xff] %vm828, %v821
      %831 = vst.msk [vmem:[%s172 + $0x10] sm:$0xff] %vm828, %v822
      %832 = vst.msk [vmem:[%s172 + $0x18] sm:$0xff] %vm828, %v823
      %833 = vst.msk [vmem:[%s172 + $0x20] sm:$0xff] %vm828, %v824
      %834 = vst.msk [vmem:[%s172 + $0x28] sm:$0xff] %vm828, %v825
      %835 = vst.msk [vmem:[%s172 + $0x30] sm:$0xff] %vm828, %v826
      %836 = vst.msk [vmem:[%s172 + $0x38] sm:$0xff] %vm828, %v827
      %s837 = smul.u32 8, %s14
      %p838 = scmp.lt.s32.totalorder %s837, 15
      %s839 = scalar_select %p838, %s837, 15
      %s840 = smul.addr %s839, 8
      %s841 = scalar_lea.vmem %s3, %s840
      // Predicated region
      $region33: #{_lambda_.2} parent=31 // pred_check
        %p842 = pneg %p100
      $region34: #{_lambda_.2} parent=31 // pred_check_branch
        %844 = sbr.rel (%p842) target = $region36
      $region35: #{_lambda_.2} parent=31 // pred_region
        %s845 = smul.u32 8, %s14
      $region36: #{_lambda_.2} parent=31 // pred_fallthru
        _
    $region32: #{_lambda_.2} parent=5 // pred_fallthru
      _
    %p846 = scmp.le.s32.totalorder 2, %s9
    // Predicated region
    $region37: #{_lambda_.2} parent=5 // pred_check
      %p847 = pneg %p846
    $region38: #{_lambda_.2} parent=5 // pred_check_branch
      %849 = sbr.rel (%p847) target = $region40
    $region39: #{_lambda_.2} parent=5 // pred_region
      %s850 = ssub.s32 %s9, 2
      // Predicated region
      $region41: #{_lambda_.2} parent=39 // pred_check
        %p851 = pneg %p106
      $region42: #{_lambda_.2} parent=39 // pred_check_branch
        %853 = sbr.rel (%p851) target = $region44
      $region43: #{_lambda_.2} parent=39 // pred_region
        %s854 = smul.u32 8, %s15
        %p855 = scmp.lt.s32.totalorder %s854, 15
        %s856 = scalar_select %p855, %s854, 15
        %s857 = smul.addr %s856, 8
        %s858 = scalar_lea.vmem %s3, %s857
      $region44: #{_lambda_.2} parent=39 // pred_fallthru
        _
    $region40: #{_lambda_.2} parent=5 // pred_fallthru
      _
  $region6: #{_lambda_.2} parent=0 // loop_footer
    %s13 = sadd.s32 1, %s9
  $region7: #{_lambda_.2} parent=0 // loop_footer_branch
    %8 = sbr.rel target = $region3
  $region8: #{_lambda_.2} parent=0 // loop_exit
    _

// kernel: _lambda_.3
$region0: #{_lambda_.3}
  #allocation0 [shape = 'u32[]', space=smem, size = 0x4, offset = 0x4, fixed_abs, tag = 'smem constant byte address 0x4 - core index']
  #allocation1 [shape = 'u32[72,128]{1,0:T(1,128)}', space=vmem, size = 0x9000, scoped, tag = 'internal scratch']
  #allocation2 [shape = 'f32[128,64]{1,0:T(8,128)}', space=vmem, size = 0x10000, scoped, tag = 'scratch operand']
  #allocation3 [shape = 'f32[128,64]{1,0:T(8,128)}', space=vmem, size = 0x10000, scoped, tag = 'scratch operand']
  #allocation4 [shape = 'f32[1,1]{1,0:T(1,128)S(1)}', space=vmem, size = 0x200, scoped, tag = 'scoped memory for _lambda_.3']
  %s0 = inlined_call_operand.vmem [shape: f32[128,64], index: 0, kind: input, shape index: {}]
  %s1 = inlined_call_operand.vmem [shape: f32[128,64], index: 1, kind: input, shape index: {}]
  %s2 = inlined_call_operand.vmem [shape: f32[2,1,64], index: 2, kind: input, shape index: {}, may-alias: {2,7}]
  %s3 = inlined_call_operand.vmem [shape: f32[2,1,64], index: 3, kind: input, shape index: {}, may-alias: {3,6,8,12}]
  %s4 = inlined_call_operand.vmem [shape: bf16[2,64,192], index: 4, kind: input, shape index: {}]
  %s5 = inlined_call_operand.vmem [shape: bf16[2,64,64], index: 5, kind: input, shape index: {}]
  %s6 = inlined_call_operand.vmem [shape: f32[2,1,64], index: 6, kind: input, shape index: {}, may-alias: {3,6,8,12}]
  %s7 = inlined_call_operand.vmem [shape: f32[2,1,64], index: 7, kind: input, shape index: {}, may-alias: {2,7}]
  %s8 = inlined_call_operand.vmem [shape: f32[2,1,64], index: 8, kind: input, shape index: {}, may-alias: {3,6,8,12}]
  %s9 = inlined_call_operand.vmem [shape: bf16[2,64,128], index: 9, kind: input, shape index: {}]
  %s10 = inlined_call_operand.vmem [shape: f32[2,1,128], index: 10, kind: input, shape index: {}]
  %s11 = inlined_call_operand.vmem [shape: bf16[2,128,64], index: 11, kind: input, shape index: {}]
  %s12 = inlined_call_operand.vmem [shape: f32[2,1,64], index: 12, kind: input, shape index: {}, may-alias: {3,6,8,12}]
  %s13 = inlined_call_operand.vmem [shape: f32[1,64], index: 13, kind: input, shape index: {}]
  %s14 = inlined_call_operand.vmem [shape: f32[1,64], index: 14, kind: input, shape index: {}]
  %s15 = inlined_call_operand.vmem [shape: f32[1,64], index: 15, kind: input, shape index: {}]
  %s16 = inlined_call_operand.<no memory space> [shape: f32[1,1], index: 16, kind: input, shape index: {}]
  %s17 = inlined_call_operand.hbm [shape: f32[2,64], index: 17, kind: output, shape index: {}]
  %s18 = sld [smem:[#allocation0]]
  $region109: #{_lambda_.3} parent=0
    _
  %s20 = ssub.s32 1, %s18
  %s21 = scalar_select 0, %s20, %s18
  %v22 = vstv %s16
  %23 = vst [vmem:[#allocation4] sm:$0x1] %v22
  $region1: #{_lambda_.3} parent=0
    #allocation5 [shape = 'u8[1024]{0}', space=vmem, size = 0x400, scoped, tag = 'output window, operand 0, single buffered']
    #allocation6 [shape = 's32[2]{0}', space=sflag, size = 0x8, scoped, tag = 'scoped memory for _lambda_.3']
    %24 = vsyncpa [#allocation6], 0
    loop: start=0, step=1, limit=4
    $region2: #{_lambda_.3} parent=1 // loop_pre_header
      _
    $region3: #{_lambda_.3} parent=1 // loop_header
      %s26 = sphi 0, %s30
      %p27 = scmp.ge.s32.totalorder %s26, 4
      %s34 = sphi 0, %s34
      %s36 = sphi 0, %s34
      %s37 = sphi 0, %s36
      %s51 = sphi 0, %s37
      %s55 = sphi 0, %s55
      %s57 = sphi 0, %s55
      %s58 = sphi 0, %s57
      %s72 = sphi 0, %s58
      %s78 = sphi 0, %s80
      %s81 = sphi 0, %s78
      %s82 = sphi 0, %s81
      %s98 = sphi 0, %s82
      %s104 = sphi 0, %s106
      %s107 = sphi 0, %s104
      %s108 = sphi 0, %s107
      %s124 = sphi 0, %s108
      %s130 = sphi 0, %s132
      %s133 = sphi 0, %s130
      %s134 = sphi 0, %s133
      %s150 = sphi 0, %s134
      %s156 = sphi 0, %s158
      %s159 = sphi 0, %s156
      %s160 = sphi 0, %s159
      %s176 = sphi 0, %s160
      %s182 = sphi 0, %s184
      %s185 = sphi 0, %s182
      %s186 = sphi 0, %s185
      %s202 = sphi 0, %s186
      %s208 = sphi 0, %s210
      %s211 = sphi 0, %s208
      %s212 = sphi 0, %s211
      %s228 = sphi 0, %s212
      %s234 = sphi 0, %s236
      %s237 = sphi 0, %s234
      %s238 = sphi 0, %s237
      %s254 = sphi 0, %s238
      %s260 = sphi 0, %s262
      %s263 = sphi 0, %s260
      %s264 = sphi 0, %s263
      %s280 = sphi 0, %s264
      %s286 = sphi 0, %s288
      %s289 = sphi 0, %s286
      %s290 = sphi 0, %s289
      %s306 = sphi 0, %s290
      %s312 = sphi 0, %s314
      %s315 = sphi 0, %s312
      %s316 = sphi 0, %s315
      %s332 = sphi 0, %s316
      %s338 = sphi 0, %s340
      %s341 = sphi 0, %s338
      %s342 = sphi 0, %s341
      %s358 = sphi 0, %s342
      %s362 = sphi 0, %s362
      %s364 = sphi 0, %s362
      %s365 = sphi 0, %s364
      %s379 = sphi 0, %s365
      %s383 = sphi 0, %s383
      %s385 = sphi 0, %s383
      %s386 = sphi 0, %s385
      %s400 = sphi 0, %s386
      %s404 = sphi 0, %s404
      %s406 = sphi 0, %s404
      %s407 = sphi 0, %s406
      %s421 = sphi 0, %s407
      %s425 = sphi 0, %s425
      %s427 = sphi 0, %s425
      %s428 = sphi 0, %s427
      %s442 = sphi 0, %s428
      %s446 = sphi 0, %s446
      %s448 = sphi 0, %s446
      %s449 = sphi 0, %s448
      %s463 = sphi 0, %s449
    $region4: #{_lambda_.3} parent=1 // loop_header_branch
      %29 = sbr.rel (%p27) target = $region8
    $region5: #{_lambda_.3} parent=1 // loop_body
      %s31 = ssub.s32 %s26, 1
      %s32 = ssub.s32 %s26, 2
      %s33 = sadd.s32 %s26, 1
      %s35 = sadd.s32 %s34, 1
      %p38 = scmp.eq.s32.totalorder %s26, 1
      %p39 = scmp.ne.s32.totalorder %s34, %s36
      %p40 = scmp.eq.s32.totalorder %s26, 0
      %p41 = por %p39, %p40
      %p42 = scmp.ne.s32.totalorder %s34, %s36
      %p43 = scmp.eq.s32.totalorder %s31, 1
      %p44 = por %p42, %p43
      %p45 = scmp.ne.s32.totalorder %s36, %s37
      %p46 = scmp.eq.s32.totalorder %s31, 0
      %p47 = por %p45, %p46
      %p48 = scmp.ne.s32.totalorder %s36, %s37
      %p49 = scmp.eq.s32.totalorder %s32, 1
      %p50 = por %p48, %p49
      %p52 = scmp.ne.s32.totalorder %s37, %s51
      %p53 = scmp.eq.s32.totalorder %s32, 0
      %p54 = por %p52, %p53
      %s56 = sadd.s32 %s55, 1
      %p59 = scmp.eq.s32.totalorder %s26, 1
      %p60 = scmp.ne.s32.totalorder %s55, %s57
      %p61 = scmp.eq.s32.totalorder %s26, 0
      %p62 = por %p60, %p61
      %p63 = scmp.ne.s32.totalorder %s55, %s57
      %p64 = scmp.eq.s32.totalorder %s31, 1
      %p65 = por %p63, %p64
      %p66 = scmp.ne.s32.totalorder %s57, %s58
      %p67 = scmp.eq.s32.totalorder %s31, 0
      %p68 = por %p66, %p67
      %p69 = scmp.ne.s32.totalorder %s57, %s58
      %p70 = scmp.eq.s32.totalorder %s32, 1
      %p71 = por %p69, %p70
      %p73 = scmp.ne.s32.totalorder %s58, %s72
      %p74 = scmp.eq.s32.totalorder %s32, 0
      %p75 = por %p73, %p74
      %s76 = ssub.s32 %s26, %s33
      %p77 = scmp.eq.s32.totalorder %s76, 0
      %s79 = sadd.s32 %s78, 1
      %s80 = scalar_select %p77, %s78, %s79
      %p83 = pneg %p77
      %p84 = scmp.eq.s32.totalorder %s26, 1
      %p85 = por %p83, %p84
      %p86 = scmp.ne.s32.totalorder %s78, %s81
      %p87 = scmp.eq.s32.totalorder %s26, 0
      %p88 = por %p86, %p87
      %p89 = scmp.ne.s32.totalorder %s78, %s81
      %p90 = scmp.eq.s32.totalorder %s31, 1
      %p91 = por %p89, %p90
      %p92 = scmp.ne.s32.totalorder %s81, %s82
      %p93 = scmp.eq.s32.totalorder %s31, 0
      %p94 = por %p92, %p93
      %p95 = scmp.ne.s32.totalorder %s81, %s82
      %p96 = scmp.eq.s32.totalorder %s32, 1
      %p97 = por %p95, %p96
      %p99 = scmp.ne.s32.totalorder %s82, %s98
      %p100 = scmp.eq.s32.totalorder %s32, 0
      %p101 = por %p99, %p100
      %s102 = ssub.s32 %s26, %s33
      %p103 = scmp.eq.s32.totalorder %s102, 0
      %s105 = sadd.s32 %s104, 1
      %s106 = scalar_select %p103, %s104, %s105
      %p109 = pneg %p103
      %p110 = scmp.eq.s32.totalorder %s26, 1
      %p111 = por %p109, %p110
      %p112 = scmp.ne.s32.totalorder %s104, %s107
      %p113 = scmp.eq.s32.totalorder %s26, 0
      %p114 = por %p112, %p113
      %p115 = scmp.ne.s32.totalorder %s104, %s107
      %p116 = scmp.eq.s32.totalorder %s31, 1
      %p117 = por %p115, %p116
      %p118 = scmp.ne.s32.totalorder %s107, %s108
      %p119 = scmp.eq.s32.totalorder %s31, 0
      %p120 = por %p118, %p119
      %p121 = scmp.ne.s32.totalorder %s107, %s108
      %p122 = scmp.eq.s32.totalorder %s32, 1
      %p123 = por %p121, %p122
      %p125 = scmp.ne.s32.totalorder %s108, %s124
      %p126 = scmp.eq.s32.totalorder %s32, 0
      %p127 = por %p125, %p126
      %s128 = ssub.s32 %s26, %s33
      %p129 = scmp.eq.s32.totalorder %s128, 0
      %s131 = sadd.s32 %s130, 1
      %s132 = scalar_select %p129, %s130, %s131
      %p135 = pneg %p129
      %p136 = scmp.eq.s32.totalorder %s26, 1
      %p137 = por %p135, %p136
      %p138 = scmp.ne.s32.totalorder %s130, %s133
      %p139 = scmp.eq.s32.totalorder %s26, 0
      %p140 = por %p138, %p139
      %p141 = scmp.ne.s32.totalorder %s130, %s133
      %p142 = scmp.eq.s32.totalorder %s31, 1
      %p143 = por %p141, %p142
      %p144 = scmp.ne.s32.totalorder %s133, %s134
      %p145 = scmp.eq.s32.totalorder %s31, 0
      %p146 = por %p144, %p145
      %p147 = scmp.ne.s32.totalorder %s133, %s134
      %p148 = scmp.eq.s32.totalorder %s32, 1
      %p149 = por %p147, %p148
      %p151 = scmp.ne.s32.totalorder %s134, %s150
      %p152 = scmp.eq.s32.totalorder %s32, 0
      %p153 = por %p151, %p152
      %s154 = ssub.s32 %s26, %s33
      %p155 = scmp.eq.s32.totalorder %s154, 0
      %s157 = sadd.s32 %s156, 1
      %s158 = scalar_select %p155, %s156, %s157
      %p161 = pneg %p155
      %p162 = scmp.eq.s32.totalorder %s26, 1
      %p163 = por %p161, %p162
      %p164 = scmp.ne.s32.totalorder %s156, %s159
      %p165 = scmp.eq.s32.totalorder %s26, 0
      %p166 = por %p164, %p165
      %p167 = scmp.ne.s32.totalorder %s156, %s159
      %p168 = scmp.eq.s32.totalorder %s31, 1
      %p169 = por %p167, %p168
      %p170 = scmp.ne.s32.totalorder %s159, %s160
      %p171 = scmp.eq.s32.totalorder %s31, 0
      %p172 = por %p170, %p171
      %p173 = scmp.ne.s32.totalorder %s159, %s160
      %p174 = scmp.eq.s32.totalorder %s32, 1
      %p175 = por %p173, %p174
      %p177 = scmp.ne.s32.totalorder %s160, %s176
      %p178 = scmp.eq.s32.totalorder %s32, 0
      %p179 = por %p177, %p178
      %s180 = ssub.s32 %s26, %s33
      %p181 = scmp.eq.s32.totalorder %s180, 0
      %s183 = sadd.s32 %s182, 1
      %s184 = scalar_select %p181, %s182, %s183
      %p187 = pneg %p181
      %p188 = scmp.eq.s32.totalorder %s26, 1
      %p189 = por %p187, %p188
      %p190 = scmp.ne.s32.totalorder %s182, %s185
      %p191 = scmp.eq.s32.totalorder %s26, 0
      %p192 = por %p190, %p191
      %p193 = scmp.ne.s32.totalorder %s182, %s185
      %p194 = scmp.eq.s32.totalorder %s31, 1
      %p195 = por %p193, %p194
      %p196 = scmp.ne.s32.totalorder %s185, %s186
      %p197 = scmp.eq.s32.totalorder %s31, 0
      %p198 = por %p196, %p197
      %p199 = scmp.ne.s32.totalorder %s185, %s186
      %p200 = scmp.eq.s32.totalorder %s32, 1
      %p201 = por %p199, %p200
      %p203 = scmp.ne.s32.totalorder %s186, %s202
      %p204 = scmp.eq.s32.totalorder %s32, 0
      %p205 = por %p203, %p204
      %s206 = ssub.s32 %s26, %s33
      %p207 = scmp.eq.s32.totalorder %s206, 0
      %s209 = sadd.s32 %s208, 1
      %s210 = scalar_select %p207, %s208, %s209
      %p213 = pneg %p207
      %p214 = scmp.eq.s32.totalorder %s26, 1
      %p215 = por %p213, %p214
      %p216 = scmp.ne.s32.totalorder %s208, %s211
      %p217 = scmp.eq.s32.totalorder %s26, 0
      %p218 = por %p216, %p217
      %p219 = scmp.ne.s32.totalorder %s208, %s211
      %p220 = scmp.eq.s32.totalorder %s31, 1
      %p221 = por %p219, %p220
      %p222 = scmp.ne.s32.totalorder %s211, %s212
      %p223 = scmp.eq.s32.totalorder %s31, 0
      %p224 = por %p222, %p223
      %p225 = scmp.ne.s32.totalorder %s211, %s212
      %p226 = scmp.eq.s32.totalorder %s32, 1
      %p227 = por %p225, %p226
      %p229 = scmp.ne.s32.totalorder %s212, %s228
      %p230 = scmp.eq.s32.totalorder %s32, 0
      %p231 = por %p229, %p230
      %s232 = ssub.s32 %s26, %s33
      %p233 = scmp.eq.s32.totalorder %s232, 0
      %s235 = sadd.s32 %s234, 1
      %s236 = scalar_select %p233, %s234, %s235
      %p239 = pneg %p233
      %p240 = scmp.eq.s32.totalorder %s26, 1
      %p241 = por %p239, %p240
      %p242 = scmp.ne.s32.totalorder %s234, %s237
      %p243 = scmp.eq.s32.totalorder %s26, 0
      %p244 = por %p242, %p243
      %p245 = scmp.ne.s32.totalorder %s234, %s237
      %p246 = scmp.eq.s32.totalorder %s31, 1
      %p247 = por %p245, %p246
      %p248 = scmp.ne.s32.totalorder %s237, %s238
      %p249 = scmp.eq.s32.totalorder %s31, 0
      %p250 = por %p248, %p249
      %p251 = scmp.ne.s32.totalorder %s237, %s238
      %p252 = scmp.eq.s32.totalorder %s32, 1
      %p253 = por %p251, %p252
      %p255 = scmp.ne.s32.totalorder %s238, %s254
      %p256 = scmp.eq.s32.totalorder %s32, 0
      %p257 = por %p255, %p256
      %s258 = ssub.s32 %s26, %s33
      %p259 = scmp.eq.s32.totalorder %s258, 0
      %s261 = sadd.s32 %s260, 1
      %s262 = scalar_select %p259, %s260, %s261
      %p265 = pneg %p259
      %p266 = scmp.eq.s32.totalorder %s26, 1
      %p267 = por %p265, %p266
      %p268 = scmp.ne.s32.totalorder %s260, %s263
      %p269 = scmp.eq.s32.totalorder %s26, 0
      %p270 = por %p268, %p269
      %p271 = scmp.ne.s32.totalorder %s260, %s263
      %p272 = scmp.eq.s32.totalorder %s31, 1
      %p273 = por %p271, %p272
      %p274 = scmp.ne.s32.totalorder %s263, %s264
      %p275 = scmp.eq.s32.totalorder %s31, 0
      %p276 = por %p274, %p275
      %p277 = scmp.ne.s32.totalorder %s263, %s264
      %p278 = scmp.eq.s32.totalorder %s32, 1
      %p279 = por %p277, %p278
      %p281 = scmp.ne.s32.totalorder %s264, %s280
      %p282 = scmp.eq.s32.totalorder %s32, 0
      %p283 = por %p281, %p282
      %s284 = ssub.s32 %s26, %s33
      %p285 = scmp.eq.s32.totalorder %s284, 0
      %s287 = sadd.s32 %s286, 1
      %s288 = scalar_select %p285, %s286, %s287
      %p291 = pneg %p285
      %p292 = scmp.eq.s32.totalorder %s26, 1
      %p293 = por %p291, %p292
      %p294 = scmp.ne.s32.totalorder %s286, %s289
      %p295 = scmp.eq.s32.totalorder %s26, 0
      %p296 = por %p294, %p295
      %p297 = scmp.ne.s32.totalorder %s286, %s289
      %p298 = scmp.eq.s32.totalorder %s31, 1
      %p299 = por %p297, %p298
      %p300 = scmp.ne.s32.totalorder %s289, %s290
      %p301 = scmp.eq.s32.totalorder %s31, 0
      %p302 = por %p300, %p301
      %p303 = scmp.ne.s32.totalorder %s289, %s290
      %p304 = scmp.eq.s32.totalorder %s32, 1
      %p305 = por %p303, %p304
      %p307 = scmp.ne.s32.totalorder %s290, %s306
      %p308 = scmp.eq.s32.totalorder %s32, 0
      %p309 = por %p307, %p308
      %s310 = ssub.s32 %s26, %s33
      %p311 = scmp.eq.s32.totalorder %s310, 0
      %s313 = sadd.s32 %s312, 1
      %s314 = scalar_select %p311, %s312, %s313
      %p317 = pneg %p311
      %p318 = scmp.eq.s32.totalorder %s26, 1
      %p319 = por %p317, %p318
      %p320 = scmp.ne.s32.totalorder %s312, %s315
      %p321 = scmp.eq.s32.totalorder %s26, 0
      %p322 = por %p320, %p321
      %p323 = scmp.ne.s32.totalorder %s312, %s315
      %p324 = scmp.eq.s32.totalorder %s31, 1
      %p325 = por %p323, %p324
      %p326 = scmp.ne.s32.totalorder %s315, %s316
      %p327 = scmp.eq.s32.totalorder %s31, 0
      %p328 = por %p326, %p327
      %p329 = scmp.ne.s32.totalorder %s315, %s316
      %p330 = scmp.eq.s32.totalorder %s32, 1
      %p331 = por %p329, %p330
      %p333 = scmp.ne.s32.totalorder %s316, %s332
      %p334 = scmp.eq.s32.totalorder %s32, 0
      %p335 = por %p333, %p334
      %s336 = ssub.s32 %s26, %s33
      %p337 = scmp.eq.s32.totalorder %s336, 0
      %s339 = sadd.s32 %s338, 1
      %s340 = scalar_select %p337, %s338, %s339
      %p343 = pneg %p337
      %p344 = scmp.eq.s32.totalorder %s26, 1
      %p345 = por %p343, %p344
      %p346 = scmp.ne.s32.totalorder %s338, %s341
      %p347 = scmp.eq.s32.totalorder %s26, 0
      %p348 = por %p346, %p347
      %p349 = scmp.ne.s32.totalorder %s338, %s341
      %p350 = scmp.eq.s32.totalorder %s31, 1
      %p351 = por %p349, %p350
      %p352 = scmp.ne.s32.totalorder %s341, %s342
      %p353 = scmp.eq.s32.totalorder %s31, 0
      %p354 = por %p352, %p353
      %p355 = scmp.ne.s32.totalorder %s341, %s342
      %p356 = scmp.eq.s32.totalorder %s32, 1
      %p357 = por %p355, %p356
      %p359 = scmp.ne.s32.totalorder %s342, %s358
      %p360 = scmp.eq.s32.totalorder %s32, 0
      %p361 = por %p359, %p360
      %s363 = sadd.s32 %s362, 1
      %p366 = scmp.eq.s32.totalorder %s26, 1
      %p367 = scmp.ne.s32.totalorder %s362, %s364
      %p368 = scmp.eq.s32.totalorder %s26, 0
      %p369 = por %p367, %p368
      %p370 = scmp.ne.s32.totalorder %s362, %s364
      %p371 = scmp.eq.s32.totalorder %s31, 1
      %p372 = por %p370, %p371
      %p373 = scmp.ne.s32.totalorder %s364, %s365
      %p374 = scmp.eq.s32.totalorder %s31, 0
      %p375 = por %p373, %p374
      %p376 = scmp.ne.s32.totalorder %s364, %s365
      %p377 = scmp.eq.s32.totalorder %s32, 1
      %p378 = por %p376, %p377
      %p380 = scmp.ne.s32.totalorder %s365, %s379
      %p381 = scmp.eq.s32.totalorder %s32, 0
      %p382 = por %p380, %p381
      %s384 = sadd.s32 %s383, 1
      %p387 = scmp.eq.s32.totalorder %s26, 1
      %p388 = scmp.ne.s32.totalorder %s383, %s385
      %p389 = scmp.eq.s32.totalorder %s26, 0
      %p390 = por %p388, %p389
      %p391 = scmp.ne.s32.totalorder %s383, %s385
      %p392 = scmp.eq.s32.totalorder %s31, 1
      %p393 = por %p391, %p392
      %p394 = scmp.ne.s32.totalorder %s385, %s386
      %p395 = scmp.eq.s32.totalorder %s31, 0
      %p396 = por %p394, %p395
      %p397 = scmp.ne.s32.totalorder %s385, %s386
      %p398 = scmp.eq.s32.totalorder %s32, 1
      %p399 = por %p397, %p398
      %p401 = scmp.ne.s32.totalorder %s386, %s400
      %p402 = scmp.eq.s32.totalorder %s32, 0
      %p403 = por %p401, %p402
      %s405 = sadd.s32 %s404, 1
      %p408 = scmp.eq.s32.totalorder %s26, 1
      %p409 = scmp.ne.s32.totalorder %s404, %s406
      %p410 = scmp.eq.s32.totalorder %s26, 0
      %p411 = por %p409, %p410
      %p412 = scmp.ne.s32.totalorder %s404, %s406
      %p413 = scmp.eq.s32.totalorder %s31, 1
      %p414 = por %p412, %p413
      %p415 = scmp.ne.s32.totalorder %s406, %s407
      %p416 = scmp.eq.s32.totalorder %s31, 0
      %p417 = por %p415, %p416
      %p418 = scmp.ne.s32.totalorder %s406, %s407
      %p419 = scmp.eq.s32.totalorder %s32, 1
      %p420 = por %p418, %p419
      %p422 = scmp.ne.s32.totalorder %s407, %s421
      %p423 = scmp.eq.s32.totalorder %s32, 0
      %p424 = por %p422, %p423
      %s426 = sadd.s32 %s425, 1
      %p429 = scmp.eq.s32.totalorder %s26, 1
      %p430 = scmp.ne.s32.totalorder %s425, %s427
      %p431 = scmp.eq.s32.totalorder %s26, 0
      %p432 = por %p430, %p431
      %p433 = scmp.ne.s32.totalorder %s425, %s427
      %p434 = scmp.eq.s32.totalorder %s31, 1
      %p435 = por %p433, %p434
      %p436 = scmp.ne.s32.totalorder %s427, %s428
      %p437 = scmp.eq.s32.totalorder %s31, 0
      %p438 = por %p436, %p437
      %p439 = scmp.ne.s32.totalorder %s427, %s428
      %p440 = scmp.eq.s32.totalorder %s32, 1
      %p441 = por %p439, %p440
      %p443 = scmp.ne.s32.totalorder %s428, %s442
      %p444 = scmp.eq.s32.totalorder %s32, 0
      %p445 = por %p443, %p444
      %s447 = sadd.s32 %s446, 1
      %p450 = scmp.eq.s32.totalorder %s26, 1
      %p451 = scmp.ne.s32.totalorder %s446, %s448
      %p452 = scmp.eq.s32.totalorder %s26, 0
      %p453 = por %p451, %p452
      %p454 = scmp.ne.s32.totalorder %s446, %s448
      %p455 = scmp.eq.s32.totalorder %s31, 1
      %p456 = por %p454, %p455
      %p457 = scmp.ne.s32.totalorder %s448, %s449
      %p458 = scmp.eq.s32.totalorder %s31, 0
      %p459 = por %p457, %p458
      %p460 = scmp.ne.s32.totalorder %s448, %s449
      %p461 = scmp.eq.s32.totalorder %s32, 1
      %p462 = por %p460, %p461
      %p464 = scmp.ne.s32.totalorder %s449, %s463
      %p465 = scmp.eq.s32.totalorder %s32, 0
      %p466 = por %p464, %p465
      %p467 = scmp.le.s32.totalorder 1, %s26
      %p468 = scmp.lt.s32.totalorder %s26, 3
      %p469 = pnand %p467, %p468
      %p470 = pneg %p469
      // Predicated region
      $region9: #{_lambda_.3} parent=5 // pred_check
        _
      $region10: #{_lambda_.3} parent=5 // pred_check_branch
        %472 = sbr.rel (%p469) target = $region12
      $region11: #{_lambda_.3} parent=5 // pred_region
        %s473 = ssub.s32 %s26, 1
        // Predicated region
        $region13: #{_lambda_.3} parent=11 // pred_check
          %p474 = pneg %p47
        $region14: #{_lambda_.3} parent=11 // pred_check_branch
          %476 = sbr.rel (%p474) target = $region16
        $region15: #{_lambda_.3} parent=11 // pred_region
          _
        $region16: #{_lambda_.3} parent=11 // pred_fallthru
          _
        // Predicated region
        $region17: #{_lambda_.3} parent=11 // pred_check
          %p477 = pneg %p68
        $region18: #{_lambda_.3} parent=11 // pred_check_branch
          %479 = sbr.rel (%p477) target = $region20
        $region19: #{_lambda_.3} parent=11 // pred_region
          _
        $region20: #{_lambda_.3} parent=11 // pred_fallthru
          _
        // Predicated region
        $region21: #{_lambda_.3} parent=11 // pred_check
          %p480 = pneg %p375
        $region22: #{_lambda_.3} parent=11 // pred_check_branch
          %482 = sbr.rel (%p480) target = $region24
        $region23: #{_lambda_.3} parent=11 // pred_region
          _
        $region24: #{_lambda_.3} parent=11 // pred_fallthru
          _
        // Predicated region
        $region25: #{_lambda_.3} parent=11 // pred_check
          %p483 = pneg %p396
        $region26: #{_lambda_.3} parent=11 // pred_check_branch
          %485 = sbr.rel (%p483) target = $region28
        $region27: #{_lambda_.3} parent=11 // pred_region
          _
        $region28: #{_lambda_.3} parent=11 // pred_fallthru
          _
        // Predicated region
        $region29: #{_lambda_.3} parent=11 // pred_check
          %p486 = pneg %p417
        $region30: #{_lambda_.3} parent=11 // pred_check_branch
          %488 = sbr.rel (%p486) target = $region32
        $region31: #{_lambda_.3} parent=11 // pred_region
          _
        $region32: #{_lambda_.3} parent=11 // pred_fallthru
          _
        // Predicated region
        $region33: #{_lambda_.3} parent=11 // pred_check
          %p489 = pneg %p438
        $region34: #{_lambda_.3} parent=11 // pred_check_branch
          %491 = sbr.rel (%p489) target = $region36
        $region35: #{_lambda_.3} parent=11 // pred_region
          _
        $region36: #{_lambda_.3} parent=11 // pred_fallthru
          _
      $region12: #{_lambda_.3} parent=5 // pred_fallthru
        _
      %p492 = scmp.lt.s32.totalorder %s26, 2
      // Predicated region
      $region37: #{_lambda_.3} parent=5 // pred_check
        %p493 = pneg %p492
      $region38: #{_lambda_.3} parent=5 // pred_check_branch
        %495 = sbr.rel (%p493) target = $region40
      $region39: #{_lambda_.3} parent=5 // pred_region
        // Predicated region
        $region41: #{_lambda_.3} parent=39 // pred_check
          %p496 = pneg %p88
        $region42: #{_lambda_.3} parent=39 // pred_check_branch
          %498 = sbr.rel (%p496) target = $region44
        $region43: #{_lambda_.3} parent=39 // pred_region
          %p499 = scmp.lt.s32.totalorder %s26, 1
          %s500 = scalar_select %p499, %s26, 1
          %s501 = scalar_lea.vmem %s2, %s500
        $region44: #{_lambda_.3} parent=39 // pred_fallthru
          _
        // Predicated region
        $region45: #{_lambda_.3} parent=39 // pred_check
          %p502 = pneg %p114
        $region46: #{_lambda_.3} parent=39 // pred_check_branch
          %504 = sbr.rel (%p502) target = $region48
        $region47: #{_lambda_.3} parent=39 // pred_region
          %p505 = scmp.lt.s32.totalorder %s26, 1
          %s506 = scalar_select %p505, %s26, 1
          %s507 = scalar_lea.vmem %s3, %s506
        $region48: #{_lambda_.3} parent=39 // pred_fallthru
          _
        // Predicated region
        $region49: #{_lambda_.3} parent=39 // pred_check
          %p508 = pneg %p140
        $region50: #{_lambda_.3} parent=39 // pred_check_branch
          %510 = sbr.rel (%p508) target = $region52
        $region51: #{_lambda_.3} parent=39 // pred_region
          %p511 = scmp.lt.s32.totalorder %s26, 1
          %s512 = scalar_select %p511, %s26, 1
          %s513 = smul.addr %s512, 16
          %s514 = smul.addr %s513, 4
          %s515 = scalar_lea.vmem %s4, %s514
        $region52: #{_lambda_.3} parent=39 // pred_fallthru
          _
        // Predicated region
        $region53: #{_lambda_.3} parent=39 // pred_check
          %p516 = pneg %p166
        $region54: #{_lambda_.3} parent=39 // pred_check_branch
          %518 = sbr.rel (%p516) target = $region56
        $region55: #{_lambda_.3} parent=39 // pred_region
          %p519 = scmp.lt.s32.totalorder %s26, 1
          %s520 = scalar_select %p519, %s26, 1
          %s521 = smul.addr %s520, 8
          %s522 = smul.addr %s521, 4
          %s523 = scalar_lea.vmem %s5, %s522
        $region56: #{_lambda_.3} parent=39 // pred_fallthru
          _
        // Predicated region
        $region57: #{_lambda_.3} parent=39 // pred_check
          %p524 = pneg %p192
        $region58: #{_lambda_.3} parent=39 // pred_check_branch
          %526 = sbr.rel (%p524) target = $region60
        $region59: #{_lambda_.3} parent=39 // pred_region
          %p527 = scmp.lt.s32.totalorder %s26, 1
          %s528 = scalar_select %p527, %s26, 1
          %s529 = scalar_lea.vmem %s6, %s528
        $region60: #{_lambda_.3} parent=39 // pred_fallthru
          _
        // Predicated region
        $region61: #{_lambda_.3} parent=39 // pred_check
          %p530 = pneg %p218
        $region62: #{_lambda_.3} parent=39 // pred_check_branch
          %532 = sbr.rel (%p530) target = $region64
        $region63: #{_lambda_.3} parent=39 // pred_region
          %p533 = scmp.lt.s32.totalorder %s26, 1
          %s534 = scalar_select %p533, %s26, 1
          %s535 = scalar_lea.vmem %s7, %s534
        $region64: #{_lambda_.3} parent=39 // pred_fallthru
          _
        // Predicated region
        $region65: #{_lambda_.3} parent=39 // pred_check
          %p536 = pneg %p244
        $region66: #{_lambda_.3} parent=39 // pred_check_branch
          %538 = sbr.rel (%p536) target = $region68
        $region67: #{_lambda_.3} parent=39 // pred_region
          %p539 = scmp.lt.s32.totalorder %s26, 1
          %s540 = scalar_select %p539, %s26, 1
          %s541 = scalar_lea.vmem %s8, %s540
        $region68: #{_lambda_.3} parent=39 // pred_fallthru
          _
        // Predicated region
        $region69: #{_lambda_.3} parent=39 // pred_check
          %p542 = pneg %p270
        $region70: #{_lambda_.3} parent=39 // pred_check_branch
          %544 = sbr.rel (%p542) target = $region72
        $region71: #{_lambda_.3} parent=39 // pred_region
          %p545 = scmp.lt.s32.totalorder %s26, 1
          %s546 = scalar_select %p545, %s26, 1
          %s547 = smul.addr %s546, 8
          %s548 = smul.addr %s547, 4
          %s549 = scalar_lea.vmem %s9, %s548
        $region72: #{_lambda_.3} parent=39 // pred_fallthru
          _
        // Predicated region
        $region73: #{_lambda_.3} parent=39 // pred_check
          %p550 = pneg %p296
        $region74: #{_lambda_.3} parent=39 // pred_check_branch
          %552 = sbr.rel (%p550) target = $region76
        $region75: #{_lambda_.3} parent=39 // pred_region
          %p553 = scmp.lt.s32.totalorder %s26, 1
          %s554 = scalar_select %p553, %s26, 1
          %s555 = scalar_lea.vmem %s10, %s554
        $region76: #{_lambda_.3} parent=39 // pred_fallthru
          _
        // Predicated region
        $region77: #{_lambda_.3} parent=39 // pred_check
          %p556 = pneg %p322
        $region78: #{_lambda_.3} parent=39 // pred_check_branch
          %558 = sbr.rel (%p556) target = $region80
        $region79: #{_lambda_.3} parent=39 // pred_region
          %p559 = scmp.lt.s32.totalorder %s26, 1
          %s560 = scalar_select %p559, %s26, 1
          %s561 = smul.addr %s560, 16
          %s562 = smul.addr %s561, 4
          %s563 = scalar_lea.vmem %s11, %s562
        $region80: #{_lambda_.3} parent=39 // pred_fallthru
          _
        // Predicated region
        $region81: #{_lambda_.3} parent=39 // pred_check
          %p564 = pneg %p348
        $region82: #{_lambda_.3} parent=39 // pred_check_branch
          %566 = sbr.rel (%p564) target = $region84
        $region83: #{_lambda_.3} parent=39 // pred_region
          %p567 = scmp.lt.s32.totalorder %s26, 1
          %s568 = scalar_select %p567, %s26, 1
          %s569 = scalar_lea.vmem %s12, %s568
        $region84: #{_lambda_.3} parent=39 // pred_fallthru
          _
      $region40: #{_lambda_.3} parent=5 // pred_fallthru
        _
      %p570 = scmp.le.s32.totalorder 1, %s26
      %p571 = scmp.lt.s32.totalorder %s26, 3
      %p572 = pnand %p570, %p571
      %p573 = pneg %p572
      // Predicated region
      $region85: #{_lambda_.3} parent=5 // pred_check
        _
      $region86: #{_lambda_.3} parent=5 // pred_check_branch
        %575 = sbr.rel (%p572) target = $region88
      $region87: #{_lambda_.3} parent=5 // pred_region
        %s576 = ssub.s32 %s26, 1
        %p577 = pneg %p47
        %p578 = pneg %p44
        %p579 = pneg %p68
        %p580 = pneg %p65
        %p581 = scmp.lt.s32.totalorder %s31, 1
        %s582 = scalar_select %p581, %s31, 1
        %s583 = scalar_lea.vmem %s2, %s582
        %p584 = pneg %p94
        %p585 = pneg %p91
        %p586 = scmp.lt.s32.totalorder %s31, 1
        %s587 = scalar_select %p586, %s31, 1
        %s588 = scalar_lea.vmem %s3, %s587
        %p589 = pneg %p120
        %p590 = pneg %p117
        %p591 = scmp.lt.s32.totalorder %s31, 1
        %s592 = scalar_select %p591, %s31, 1
        %s593 = smul.addr %s592, 16
        %s594 = smul.addr %s593, 4
        %s595 = scalar_lea.vmem %s4, %s594
        %p596 = pneg %p146
        %p597 = pneg %p143
        %p598 = scmp.lt.s32.totalorder %s31, 1
        %s599 = scalar_select %p598, %s31, 1
        %s600 = smul.addr %s599, 8
        %s601 = smul.addr %s600, 4
        %s602 = scalar_lea.vmem %s5, %s601
        %p603 = pneg %p172
        %p604 = pneg %p169
        %p605 = scmp.lt.s32.totalorder %s31, 1
        %s606 = scalar_select %p605, %s31, 1
        %s607 = scalar_lea.vmem %s6, %s606
        %p608 = pneg %p198
        %p609 = pneg %p195
        %p610 = scmp.lt.s32.totalorder %s31, 1
        %s611 = scalar_select %p610, %s31, 1
        %s612 = scalar_lea.vmem %s7, %s611
        %p613 = pneg %p224
        %p614 = pneg %p221
        %p615 = scmp.lt.s32.totalorder %s31, 1
        %s616 = scalar_select %p615, %s31, 1
        %s617 = scalar_lea.vmem %s8, %s616
        %p618 = pneg %p250
        %p619 = pneg %p247
        %p620 = scmp.lt.s32.totalorder %s31, 1
        %s621 = scalar_select %p620, %s31, 1
        %s622 = smul.addr %s621, 8
        %s623 = smul.addr %s622, 4
        %s624 = scalar_lea.vmem %s9, %s623
        %p625 = pneg %p276
        %p626 = pneg %p273
        %p627 = scmp.lt.s32.totalorder %s31, 1
        %s628 = scalar_select %p627, %s31, 1
        %s629 = scalar_lea.vmem %s10, %s628
        %p630 = pneg %p302
        %p631 = pneg %p299
        %p632 = scmp.lt.s32.totalorder %s31, 1
        %s633 = scalar_select %p632, %s31, 1
        %s634 = smul.addr %s633, 16
        %s635 = smul.addr %s634, 4
        %s636 = scalar_lea.vmem %s11, %s635
        %p637 = pneg %p328
        %p638 = pneg %p325
        %p639 = scmp.lt.s32.totalorder %s31, 1
        %s640 = scalar_select %p639, %s31, 1
        %s641 = scalar_lea.vmem %s12, %s640
        %p642 = pneg %p354
        %p643 = pneg %p351
        %p644 = pneg %p375
        %p645 = pneg %p372
        %p646 = pneg %p396
        %p647 = pneg %p393
        %p648 = pneg %p417
        %p649 = pneg %p414
        %p650 = pneg %p438
        %p651 = pneg %p435
        %p652 = pneg %p459
        %p653 = pneg %p456
        %p654 = scmp.lt.s32.totalorder %s31, 1
        %s655 = scalar_select %p654, %s31, 1
        %s656 = scalar_lea.vmem %s2, %s655
        %p657 = scmp.lt.s32.totalorder %s31, 1
        %s658 = scalar_select %p657, %s31, 1
        %s659 = scalar_lea.vmem %s3, %s658
        %p660 = scmp.lt.s32.totalorder %s31, 1
        %s661 = scalar_select %p660, %s31, 1
        %s662 = smul.addr %s661, 16
        %s663 = smul.addr %s662, 4
        %s664 = scalar_lea.vmem %s4, %s663
        %p665 = scmp.lt.s32.totalorder %s31, 1
        %s666 = scalar_select %p665, %s31, 1
        %s667 = smul.addr %s666, 8
        %s668 = smul.addr %s667, 4
        %s669 = scalar_lea.vmem %s5, %s668
        %p670 = scmp.lt.s32.totalorder %s31, 1
        %s671 = scalar_select %p670, %s31, 1
        %s672 = scalar_lea.vmem %s6, %s671
        %p673 = scmp.lt.s32.totalorder %s31, 1
        %s674 = scalar_select %p673, %s31, 1
        %s675 = scalar_lea.vmem %s7, %s674
        %p676 = scmp.lt.s32.totalorder %s31, 1
        %s677 = scalar_select %p676, %s31, 1
        %s678 = scalar_lea.vmem %s8, %s677
        %p679 = scmp.lt.s32.totalorder %s31, 1
        %s680 = scalar_select %p679, %s31, 1
        %s681 = smul.addr %s680, 8
        %s682 = smul.addr %s681, 4
        %s683 = scalar_lea.vmem %s9, %s682
        %p684 = scmp.lt.s32.totalorder %s31, 1
        %s685 = scalar_select %p684, %s31, 1
        %s686 = scalar_lea.vmem %s10, %s685
        %p687 = scmp.lt.s32.totalorder %s31, 1
        %s688 = scalar_select %p687, %s31, 1
        %s689 = smul.addr %s688, 16
        %s690 = smul.addr %s689, 4
        %s691 = scalar_lea.vmem %s11, %s690
        %p692 = scmp.lt.s32.totalorder %s31, 1
        %s693 = scalar_select %p692, %s31, 1
        %s694 = scalar_lea.vmem %s12, %s693
        %p696 = scmp.eq.s32.totalorder %s31, 0
        // Predicated region
        $region89: #{_lambda_.3} parent=87 // pred_check
          %p697 = pneg %p696
        $region90: #{_lambda_.3} parent=87 // pred_check_branch
          %699 = sbr.rel (%p697) target = $region92
        $region91: #{_lambda_.3} parent=87 // pred_region
          %v700 = vld [vmem:[%s0] sm:$0xff]
          %v701 = vld [vmem:[%s0 + $0x8] sm:$0xff]
          %v702 = vld [vmem:[%s0 + $0x10] sm:$0xff]
          %v703 = vld [vmem:[%s0 + $0x18] sm:$0xff]
          %v704 = vld [vmem:[%s0 + $0x20] sm:$0xff]
          %v705 = vld [vmem:[%s0 + $0x28] sm:$0xff]
          %v706 = vld [vmem:[%s0 + $0x30] sm:$0xff]
          %v707 = vld [vmem:[%s0 + $0x38] sm:$0xff]
          %v708 = vld [vmem:[%s0 + $0x40] sm:$0xff]
          %v709 = vld [vmem:[%s0 + $0x48] sm:$0xff]
          %v710 = vld [vmem:[%s0 + $0x50] sm:$0xff]
          %v711 = vld [vmem:[%s0 + $0x58] sm:$0xff]
          %v712 = vld [vmem:[%s0 + $0x60] sm:$0xff]
          %v713 = vld [vmem:[%s0 + $0x68] sm:$0xff]
          %v714 = vld [vmem:[%s0 + $0x70] sm:$0xff]
          %v715 = vld [vmem:[%s0 + $0x78] sm:$0xff]
          %v716 = vld [vmem:[%s1] sm:$0xff]
          %v717 = vld [vmem:[%s1 + $0x8] sm:$0xff]
          %v718 = vld [vmem:[%s1 + $0x10] sm:$0xff]
          %v719 = vld [vmem:[%s1 + $0x18] sm:$0xff]
          %v720 = vld [vmem:[%s1 + $0x20] sm:$0xff]
          %v721 = vld [vmem:[%s1 + $0x28] sm:$0xff]
          %v722 = vld [vmem:[%s1 + $0x30] sm:$0xff]
          %v723 = vld [vmem:[%s1 + $0x38] sm:$0xff]
          %v724 = vld [vmem:[%s1 + $0x40] sm:$0xff]
          %v725 = vld [vmem:[%s1 + $0x48] sm:$0xff]
          %v726 = vld [vmem:[%s1 + $0x50] sm:$0xff]
          %v727 = vld [vmem:[%s1 + $0x58] sm:$0xff]
          %v728 = vld [vmem:[%s1 + $0x60] sm:$0xff]
          %v729 = vld [vmem:[%s1 + $0x68] sm:$0xff]
          %v730 = vld [vmem:[%s1 + $0x70] sm:$0xff]
          %v731 = vld [vmem:[%s1 + $0x78] sm:$0xff]
          %v732 = vadd.f32 %v700, %v716
          %v733 = vadd.f32 %v701, %v717
          %v734 = vadd.f32 %v702, %v718
          %v735 = vadd.f32 %v703, %v719
          %v736 = vadd.f32 %v704, %v720
          %v737 = vadd.f32 %v705, %v721
          %v738 = vadd.f32 %v706, %v722
          %v739 = vadd.f32 %v707, %v723
          %v740 = vadd.f32 %v708, %v724
          %v741 = vadd.f32 %v709, %v725
          %v742 = vadd.f32 %v710, %v726
          %v743 = vadd.f32 %v711, %v727
          %v744 = vadd.f32 %v712, %v728
          %v745 = vadd.f32 %v713, %v729
          %v746 = vadd.f32 %v714, %v730
          %v747 = vadd.f32 %v715, %v731
          %vm748 = vcmask 523264
          %749 = vst.msk [vmem:[#allocation2] sm:$0xff] %vm748, %v732
          %750 = vst.msk [vmem:[#allocation2 + $0x8] sm:$0xff] %vm748, %v733
          %751 = vst.msk [vmem:[#allocation2 + $0x10] sm:$0xff] %vm748, %v734
          %752 = vst.msk [vmem:[#allocation2 + $0x18] sm:$0xff] %vm748, %v735
          %753 = vst.msk [vmem:[#allocation2 + $0x20] sm:$0xff] %vm748, %v736
          %754 = vst.msk [vmem:[#allocation2 + $0x28] sm:$0xff] %vm748, %v737
          %755 = vst.msk [vmem:[#allocation2 + $0x30] sm:$0xff] %vm748, %v738
          %756 = vst.msk [vmem:[#allocation2 + $0x38] sm:$0xff] %vm748, %v739
          %757 = vst.msk [vmem:[#allocation2 + $0x40] sm:$0xff] %vm748, %v740
          %758 = vst.msk [vmem:[#allocation2 + $0x48] sm:$0xff] %vm748, %v741
          %759 = vst.msk [vmem:[#allocation2 + $0x50] sm:$0xff] %vm748, %v742
          %760 = vst.msk [vmem:[#allocation2 + $0x58] sm:$0xff] %vm748, %v743
          %761 = vst.msk [vmem:[#allocation2 + $0x60] sm:$0xff] %vm748, %v744
          %762 = vst.msk [vmem:[#allocation2 + $0x68] sm:$0xff] %vm748, %v745
          %763 = vst.msk [vmem:[#allocation2 + $0x70] sm:$0xff] %vm748, %v746
          %764 = vst.msk [vmem:[#allocation2 + $0x78] sm:$0xff] %vm748, %v747
        $region92: #{_lambda_.3} parent=87 // pred_fallthru
          _
        %v765 = vld [vmem:[#allocation2] sm:$0xff]
        %v766 = vld [vmem:[#allocation2 + $0x8] sm:$0xff]
        %v767 = vld [vmem:[#allocation2 + $0x10] sm:$0xff]
        %v768 = vld [vmem:[#allocation2 + $0x18] sm:$0xff]
        %v769 = vld [vmem:[#allocation2 + $0x20] sm:$0xff]
        %v770 = vld [vmem:[#allocation2 + $0x28] sm:$0xff]
        %v771 = vld [vmem:[#allocation2 + $0x30] sm:$0xff]
        %v772 = vld [vmem:[#allocation2 + $0x38] sm:$0xff]
        %v773 = vld [vmem:[#allocation2 + $0x40] sm:$0xff]
        %v774 = vld [vmem:[#allocation2 + $0x48] sm:$0xff]
        %v775 = vld [vmem:[#allocation2 + $0x50] sm:$0xff]
        %v776 = vld [vmem:[#allocation2 + $0x58] sm:$0xff]
        %v777 = vld [vmem:[#allocation2 + $0x60] sm:$0xff]
        %v778 = vld [vmem:[#allocation2 + $0x68] sm:$0xff]
        %v779 = vld [vmem:[#allocation2 + $0x70] sm:$0xff]
        %v780 = vld [vmem:[#allocation2 + $0x78] sm:$0xff]
        %v781 = vld [vmem:[%s656] sm:$0x1]
        %v782 = vld [vmem:[%s659] sm:$0x1]
        %vm783 = vcmask 523264
        %v784 = vsel %vm783, %v765, 0.0
        %785 = vadd.xlane.f32.xlu0 %v784
        %v786 = vpop.xlane.xlu0 %785
        %v787 = vsel %vm783, %v766, 0.0
        %788 = vadd.xlane.f32.xlu0 %v787
        %v789 = vpop.xlane.xlu0 %788
        %v790 = vsel %vm783, %v767, 0.0
        %791 = vadd.xlane.f32.xlu0 %v790
        %v792 = vpop.xlane.xlu0 %791
        %v793 = vsel %vm783, %v768, 0.0
        %794 = vadd.xlane.f32.xlu0 %v793
        %v795 = vpop.xlane.xlu0 %794
        %v796 = vsel %vm783, %v769, 0.0
        %797 = vadd.xlane.f32.xlu0 %v796
        %v798 = vpop.xlane.xlu0 %797
        %v799 = vsel %vm783, %v770, 0.0
        %800 = vadd.xlane.f32.xlu0 %v799
        %v801 = vpop.xlane.xlu0 %800
        %v802 = vsel %vm783, %v771, 0.0
        %803 = vadd.xlane.f32.xlu0 %v802
        %v804 = vpop.xlane.xlu0 %803
        %v805 = vsel %vm783, %v772, 0.0
        %806 = vadd.xlane.f32.xlu0 %v805
        %v807 = vpop.xlane.xlu0 %806
        %v808 = vsel %vm783, %v773, 0.0
        %809 = vadd.xlane.f32.xlu0 %v808
        %v810 = vpop.xlane.xlu0 %809
        %v811 = vsel %vm783, %v774, 0.0
        %812 = vadd.xlane.f32.xlu0 %v811
        %v813 = vpop.xlane.xlu0 %812
        %v814 = vsel %vm783, %v775, 0.0
        %815 = vadd.xlane.f32.xlu0 %v814
        %v816 = vpop.xlane.xlu0 %815
        %v817 = vsel %vm783, %v776, 0.0
        %818 = vadd.xlane.f32.xlu0 %v817
        %v819 = vpop.xlane.xlu0 %818
        %v820 = vsel %vm783, %v777, 0.0
        %821 = vadd.xlane.f32.xlu0 %v820
        %v822 = vpop.xlane.xlu0 %821
        %v823 = vsel %vm783, %v778, 0.0
        %824 = vadd.xlane.f32.xlu0 %v823
        %v825 = vpop.xlane.xlu0 %824
        %v826 = vsel %vm783, %v779, 0.0
        %827 = vadd.xlane.f32.xlu0 %v826
        %v828 = vpop.xlane.xlu0 %827
        %v829 = vsel %vm783, %v780, 0.0
        %830 = vadd.xlane.f32.xlu0 %v829
        %v831 = vpop.xlane.xlu0 %830
        %v832 = vrcp.pop 64.0
        %v833 = vmul.f32 64.0, %v832
        %v834 = vsub.f32 1.0, %v833
        %v835 = vmul.f32 %v832, %v834
        %v836 = vadd.f32 %v832, %v835
        %vm837 = vweird.f32 %v832
        %v838 = vsel %vm837, %v832, %v836
        %v839 = vmul.f32 %v786, %v838
        %v840 = vmul.f32 %v789, %v838
        %v841 = vmul.f32 %v792, %v838
        %v842 = vmul.f32 %v795, %v838
        %v843 = vmul.f32 %v798, %v838
        %v844 = vmul.f32 %v801, %v838
        %v845 = vmul.f32 %v804, %v838
        %v846 = vmul.f32 %v807, %v838
        %v847 = vmul.f32 %v810, %v838
        %v848 = vmul.f32 %v813, %v838
        %v849 = vmul.f32 %v816, %v838
        %v850 = vmul.f32 %v819, %v838
        %v851 = vmul.f32 %v822, %v838
        %v852 = vmul.f32 %v825, %v838
        %v853 = vmul.f32 %v828, %v838
        %v854 = vmul.f32 %v831, %v838
        %v855 = vsub.f32 %v765, %v839
        %v856 = vsub.f32 %v766, %v840
        %v857 = vsub.f32 %v767, %v841
        %v858 = vsub.f32 %v768, %v842
        %v859 = vsub.f32 %v769, %v843
        %v860 = vsub.f32 %v770, %v844
        %v861 = vsub.f32 %v771, %v845
        %v862 = vsub.f32 %v772, %v846
        %v863 = vsub.f32 %v773, %v847
        %v864 = vsub.f32 %v774, %v848
        %v865 = vsub.f32 %v775, %v849
        %v866 = vsub.f32 %v776, %v850
        %v867 = vsub.f32 %v777, %v851
        %v868 = vsub.f32 %v778, %v852
        %v869 = vsub.f32 %v779, %v853
        %v870 = vsub.f32 %v780, %v854
        %v871 = vmul.f32 %v855, %v855
        %v872 = vmul.f32 %v856, %v856
        %v873 = vmul.f32 %v857, %v857
        %v874 = vmul.f32 %v858, %v858
        %v875 = vmul.f32 %v859, %v859
        %v876 = vmul.f32 %v860, %v860
        %v877 = vmul.f32 %v861, %v861
        %v878 = vmul.f32 %v862, %v862
        %v879 = vmul.f32 %v863, %v863
        %v880 = vmul.f32 %v864, %v864
        %v881 = vmul.f32 %v865, %v865
        %v882 = vmul.f32 %v866, %v866
        %v883 = vmul.f32 %v867, %v867
        %v884 = vmul.f32 %v868, %v868
        %v885 = vmul.f32 %v869, %v869
        %v886 = vmul.f32 %v870, %v870
        %v887 = vsel %vm783, %v871, 0.0
        %888 = vadd.xlane.f32.xlu0 %v887
        %v889 = vpop.xlane.xlu0 %888
        %v890 = vsel %vm783, %v872, 0.0
        %891 = vadd.xlane.f32.xlu0 %v890
        %v892 = vpop.xlane.xlu0 %891
        %v893 = vsel %vm783, %v873, 0.0
        %894 = vadd.xlane.f32.xlu0 %v893
        %v895 = vpop.xlane.xlu0 %894
        %v896 = vsel %vm783, %v874, 0.0
        %897 = vadd.xlane.f32.xlu0 %v896
        %v898 = vpop.xlane.xlu0 %897
        %v899 = vsel %vm783, %v875, 0.0
        %900 = vadd.xlane.f32.xlu0 %v899
        %v901 = vpop.xlane.xlu0 %900
        %v902 = vsel %vm783, %v876, 0.0
        %903 = vadd.xlane.f32.xlu0 %v902
        %v904 = vpop.xlane.xlu0 %903
        %v905 = vsel %vm783, %v877, 0.0
        %906 = vadd.xlane.f32.xlu0 %v905
        %v907 = vpop.xlane.xlu0 %906
        %v908 = vsel %vm783, %v878, 0.0
        %909 = vadd.xlane.f32.xlu0 %v908
        %v910 = vpop.xlane.xlu0 %909
        %v911 = vsel %vm783, %v879, 0.0
        %912 = vadd.xlane.f32.xlu0 %v911
        %v913 = vpop.xlane.xlu0 %912
        %v914 = vsel %vm783, %v880, 0.0
        %915 = vadd.xlane.f32.xlu0 %v914
        %v916 = vpop.xlane.xlu0 %915
        %v917 = vsel %vm783, %v881, 0.0
        %918 = vadd.xlane.f32.xlu0 %v917
        %v919 = vpop.xlane.xlu0 %918
        %v920 = vsel %vm783, %v882, 0.0
        %921 = vadd.xlane.f32.xlu0 %v920
        %v922 = vpop.xlane.xlu0 %921
        %v923 = vsel %vm783, %v883, 0.0
        %924 = vadd.xlane.f32.xlu0 %v923
        %v925 = vpop.xlane.xlu0 %924
        %v926 = vsel %vm783, %v884, 0.0
        %927 = vadd.xlane.f32.xlu0 %v926
        %v928 = vpop.xlane.xlu0 %927
        %v929 = vsel %vm783, %v885, 0.0
        %930 = vadd.xlane.f32.xlu0 %v929
        %v931 = vpop.xlane.xlu0 %930
        %v932 = vsel %vm783, %v886, 0.0
        %933 = vadd.xlane.f32.xlu0 %v932
        %v934 = vpop.xlane.xlu0 %933
        %v935 = vmul.f32 %v889, %v838
        %v936 = vmul.f32 %v892, %v838
        %v937 = vmul.f32 %v895, %v838
        %v938 = vmul.f32 %v898, %v838
        %v939 = vmul.f32 %v901, %v838
        %v940 = vmul.f32 %v904, %v838
        %v941 = vmul.f32 %v907, %v838
        %v942 = vmul.f32 %v910, %v838
        %v943 = vmul.f32 %v913, %v838
        %v944 = vmul.f32 %v916, %v838
        %v945 = vmul.f32 %v919, %v838
        %v946 = vmul.f32 %v922, %v838
        %v947 = vmul.f32 %v925, %v838
        %v948 = vmul.f32 %v928, %v838
        %v949 = vmul.f32 %v931, %v838
        %v950 = vmul.f32 %v934, %v838
        %v951 = vadd.f32 %v935, 1e-05
        %v952 = vadd.f32 %v936, 1e-05
        %v953 = vadd.f32 %v937, 1e-05
        %v954 = vadd.f32 %v938, 1e-05
        %v955 = vadd.f32 %v939, 1e-05
        %v956 = vadd.f32 %v940, 1e-05
        %v957 = vadd.f32 %v941, 1e-05
        %v958 = vadd.f32 %v942, 1e-05
        %v959 = vadd.f32 %v943, 1e-05
        %v960 = vadd.f32 %v944, 1e-05
        %v961 = vadd.f32 %v945, 1e-05
        %v962 = vadd.f32 %v946, 1e-05
        %v963 = vadd.f32 %v947, 1e-05
        %v964 = vadd.f32 %v948, 1e-05
        %v965 = vadd.f32 %v949, 1e-05
        %v966 = vadd.f32 %v950, 1e-05
        %v967 = vrsqrt.pop %v951
        %v968 = vmul.f32 %v967, %v951
        %v969 = vmul.f32 %v968, %v967
        %v970 = vmul.f32 0.5, %v969
        %v971 = vsub.f32 1.5, %v970
        %v972 = vmul.f32 %v967, %v971
        %vm973 = vweird.f32 %v951
        %vm974 = vweird.f32 %v967
        %vm975 = vmor %vm973, %vm974
        %v976 = vsel %vm975, %v967, %v972
        %v977 = vrsqrt.pop %v952
        %v978 = vmul.f32 %v977, %v952
        %v979 = vmul.f32 %v978, %v977
        %v980 = vmul.f32 0.5, %v979
        %v981 = vsub.f32 1.5, %v980
        %v982 = vmul.f32 %v977, %v981
        %vm983 = vweird.f32 %v952
        %vm984 = vweird.f32 %v977
        %vm985 = vmor %vm983, %vm984
        %v986 = vsel %vm985, %v977, %v982
        %v987 = vrsqrt.pop %v953
        %v988 = vmul.f32 %v987, %v953
        %v989 = vmul.f32 %v988, %v987
        %v990 = vmul.f32 0.5, %v989
        %v991 = vsub.f32 1.5, %v990
        %v992 = vmul.f32 %v987, %v991
        %vm993 = vweird.f32 %v953
        %vm994 = vweird.f32 %v987
        %vm995 = vmor %vm993, %vm994
        %v996 = vsel %vm995, %v987, %v992
        %v997 = vrsqrt.pop %v954
        %v998 = vmul.f32 %v997, %v954
        %v999 = vmul.f32 %v998, %v997
        %v1000 = vmul.f32 0.5, %v999
        %v1001 = vsub.f32 1.5, %v1000
        %v1002 = vmul.f32 %v997, %v1001
        %vm1003 = vweird.f32 %v954
        %vm1004 = vweird.f32 %v997
        %vm1005 = vmor %vm1003, %vm1004
        %v1006 = vsel %vm1005, %v997, %v1002
        %v1007 = vrsqrt.pop %v955
        %v1008 = vmul.f32 %v1007, %v955
        %v1009 = vmul.f32 %v1008, %v1007
        %v1010 = vmul.f32 0.5, %v1009
        %v1011 = vsub.f32 1.5, %v1010
        %v1012 = vmul.f32 %v1007, %v1011
        %vm1013 = vweird.f32 %v955
        %vm1014 = vweird.f32 %v1007
        %vm1015 = vmor %vm1013, %vm1014
        %v1016 = vsel %vm1015, %v1007, %v1012
        %v1017 = vrsqrt.pop %v956
        %v1018 = vmul.f32 %v1017, %v956
        %v1019 = vmul.f32 %v1018, %v1017
        %v1020 = vmul.f32 0.5, %v1019
        %v1021 = vsub.f32 1.5, %v1020
        %v1022 = vmul.f32 %v1017, %v1021
        %vm1023 = vweird.f32 %v956
        %vm1024 = vweird.f32 %v1017
        %vm1025 = vmor %vm1023, %vm1024
        %v1026 = vsel %vm1025, %v1017, %v1022
        %v1027 = vrsqrt.pop %v957
        %v1028 = vmul.f32 %v1027, %v957
        %v1029 = vmul.f32 %v1028, %v1027
        %v1030 = vmul.f32 0.5, %v1029
        %v1031 = vsub.f32 1.5, %v1030
        %v1032 = vmul.f32 %v1027, %v1031
        %vm1033 = vweird.f32 %v957
        %vm1034 = vweird.f32 %v1027
        %vm1035 = vmor %vm1033, %vm1034
        %v1036 = vsel %vm1035, %v1027, %v1032
        %v1037 = vrsqrt.pop %v958
        %v1038 = vmul.f32 %v1037, %v958
        %v1039 = vmul.f32 %v1038, %v1037
        %v1040 = vmul.f32 0.5, %v1039
        %v1041 = vsub.f32 1.5, %v1040
        %v1042 = vmul.f32 %v1037, %v1041
        %vm1043 = vweird.f32 %v958
        %vm1044 = vweird.f32 %v1037
        %vm1045 = vmor %vm1043, %vm1044
        %v1046 = vsel %vm1045, %v1037, %v1042
        %v1047 = vrsqrt.pop %v959
        %v1048 = vmul.f32 %v1047, %v959
        %v1049 = vmul.f32 %v1048, %v1047
        %v1050 = vmul.f32 0.5, %v1049
        %v1051 = vsub.f32 1.5, %v1050
        %v1052 = vmul.f32 %v1047, %v1051
        %vm1053 = vweird.f32 %v959
        %vm1054 = vweird.f32 %v1047
        %vm1055 = vmor %vm1053, %vm1054
        %v1056 = vsel %vm1055, %v1047, %v1052
        %v1057 = vrsqrt.pop %v960
        %v1058 = vmul.f32 %v1057, %v960
        %v1059 = vmul.f32 %v1058, %v1057
        %v1060 = vmul.f32 0.5, %v1059
        %v1061 = vsub.f32 1.5, %v1060
        %v1062 = vmul.f32 %v1057, %v1061
        %vm1063 = vweird.f32 %v960
        %vm1064 = vweird.f32 %v1057
        %vm1065 = vmor %vm1063, %vm1064
        %v1066 = vsel %vm1065, %v1057, %v1062
        %v1067 = vrsqrt.pop %v961
        %v1068 = vmul.f32 %v1067, %v961
        %v1069 = vmul.f32 %v1068, %v1067
        %v1070 = vmul.f32 0.5, %v1069
        %v1071 = vsub.f32 1.5, %v1070
        %v1072 = vmul.f32 %v1067, %v1071
        %vm1073 = vweird.f32 %v961
        %vm1074 = vweird.f32 %v1067
        %vm1075 = vmor %vm1073, %vm1074
        %v1076 = vsel %vm1075, %v1067, %v1072
        %v1077 = vrsqrt.pop %v962
        %v1078 = vmul.f32 %v1077, %v962
        %v1079 = vmul.f32 %v1078, %v1077
        %v1080 = vmul.f32 0.5, %v1079
        %v1081 = vsub.f32 1.5, %v1080
        %v1082 = vmul.f32 %v1077, %v1081
        %vm1083 = vweird.f32 %v962
        %vm1084 = vweird.f32 %v1077
        %vm1085 = vmor %vm1083, %vm1084
        %v1086 = vsel %vm1085, %v1077, %v1082
        %v1087 = vrsqrt.pop %v963
        %v1088 = vmul.f32 %v1087, %v963
        %v1089 = vmul.f32 %v1088, %v1087
        %v1090 = vmul.f32 0.5, %v1089
        %v1091 = vsub.f32 1.5, %v1090
        %v1092 = vmul.f32 %v1087, %v1091
        %vm1093 = vweird.f32 %v963
        %vm1094 = vweird.f32 %v1087
        %vm1095 = vmor %vm1093, %vm1094
        %v1096 = vsel %vm1095, %v1087, %v1092
        %v1097 = vrsqrt.pop %v964
        %v1098 = vmul.f32 %v1097, %v964
        %v1099 = vmul.f32 %v1098, %v1097
        %v1100 = vmul.f32 0.5, %v1099
        %v1101 = vsub.f32 1.5, %v1100
        %v1102 = vmul.f32 %v1097, %v1101
        %vm1103 = vweird.f32 %v964
        %vm1104 = vweird.f32 %v1097
        %vm1105 = vmor %vm1103, %vm1104
        %v1106 = vsel %vm1105, %v1097, %v1102
        %v1107 = vrsqrt.pop %v965
        %v1108 = vmul.f32 %v1107, %v965
        %v1109 = vmul.f32 %v1108, %v1107
        %v1110 = vmul.f32 0.5, %v1109
        %v1111 = vsub.f32 1.5, %v1110
        %v1112 = vmul.f32 %v1107, %v1111
        %vm1113 = vweird.f32 %v965
        %vm1114 = vweird.f32 %v1107
        %vm1115 = vmor %vm1113, %vm1114
        %v1116 = vsel %vm1115, %v1107, %v1112
        %v1117 = vrsqrt.pop %v966
        %v1118 = vmul.f32 %v1117, %v966
        %v1119 = vmul.f32 %v1118, %v1117
        %v1120 = vmul.f32 0.5, %v1119
        %v1121 = vsub.f32 1.5, %v1120
        %v1122 = vmul.f32 %v1117, %v1121
        %vm1123 = vweird.f32 %v966
        %vm1124 = vweird.f32 %v1117
        %vm1125 = vmor %vm1123, %vm1124
        %v1126 = vsel %vm1125, %v1117, %v1122
        %v1127 = vmul.f32 %v855, %v976
        %v1128 = vmul.f32 %v856, %v986
        %v1129 = vmul.f32 %v857, %v996
        %v1130 = vmul.f32 %v858, %v1006
        %v1131 = vmul.f32 %v859, %v1016
        %v1132 = vmul.f32 %v860, %v1026
        %v1133 = vmul.f32 %v861, %v1036
        %v1134 = vmul.f32 %v862, %v1046
        %v1135 = vmul.f32 %v863, %v1056
        %v1136 = vmul.f32 %v864, %v1066
        %v1137 = vmul.f32 %v865, %v1076
        %v1138 = vmul.f32 %v866, %v1086
        %v1139 = vmul.f32 %v867, %v1096
        %v1140 = vmul.f32 %v868, %v1106
        %v1141 = vmul.f32 %v869, %v1116
        %v1142 = vmul.f32 %v870, %v1126
        %v1144 = vperm.slane %v781, 0
        %v1146 = vmul.f32 %v1127, %v1144
        %v1147 = vmul.f32 %v1128, %v1144
        %v1148 = vmul.f32 %v1129, %v1144
        %v1149 = vmul.f32 %v1130, %v1144
        %v1150 = vmul.f32 %v1131, %v1144
        %v1151 = vmul.f32 %v1132, %v1144
        %v1152 = vmul.f32 %v1133, %v1144
        %v1153 = vmul.f32 %v1134, %v1144
        %v1154 = vmul.f32 %v1135, %v1144
        %v1155 = vmul.f32 %v1136, %v1144
        %v1156 = vmul.f32 %v1137, %v1144
        %v1157 = vmul.f32 %v1138, %v1144
        %v1158 = vmul.f32 %v1139, %v1144
        %v1159 = vmul.f32 %v1140, %v1144
        %v1160 = vmul.f32 %v1141, %v1144
        %v1161 = vmul.f32 %v1142, %v1144
        %v1163 = vperm.slane %v782, 0
        %v1165 = vadd.f32 %v1146, %v1163
        %v1166 = vadd.f32 %v1147, %v1163
        %v1167 = vadd.f32 %v1148, %v1163
        %v1168 = vadd.f32 %v1149, %v1163
        %v1169 = vadd.f32 %v1150, %v1163
        %v1170 = vadd.f32 %v1151, %v1163
        %v1171 = vadd.f32 %v1152, %v1163
        %v1172 = vadd.f32 %v1153, %v1163
        %v1173 = vadd.f32 %v1154, %v1163
        %v1174 = vadd.f32 %v1155, %v1163
        %v1175 = vadd.f32 %v1156, %v1163
        %v1176 = vadd.f32 %v1157, %v1163
        %v1177 = vadd.f32 %v1158, %v1163
        %v1178 = vadd.f32 %v1159, %v1163
        %v1179 = vadd.f32 %v1160, %v1163
        %v1180 = vadd.f32 %v1161, %v1163
        %v1181 = vpack.c.bf16 %v1166, %v1165
        %v1182 = vpack.c.bf16 %v1168, %v1167
        %v1183 = vpack.c.bf16 %v1170, %v1169
        %v1184 = vpack.c.bf16 %v1172, %v1171
        %v1185 = vpack.c.bf16 %v1174, %v1173
        %v1186 = vpack.c.bf16 %v1176, %v1175
        %v1187 = vpack.c.bf16 %v1178, %v1177
        %v1188 = vpack.c.bf16 %v1180, %v1179
        %v1189 = vld [vmem:[%s664] sm:$0xff]
        %v1190 = vld [vmem:[%s664 + $0x8] sm:$0xff]
        %v1191 = vld [vmem:[%s664 + $0x10] sm:$0xff]
        %v1192 = vld [vmem:[%s664 + $0x18] sm:$0xff]
        %v1193 = vld [vmem:[%s664 + $0x20] sm:$0xff]
        %v1194 = vld [vmem:[%s664 + $0x28] sm:$0xff]
        %v1195 = vld [vmem:[%s664 + $0x30] sm:$0xff]
        %v1196 = vld [vmem:[%s664 + $0x38] sm:$0xff]
        %v1205 = vunpack.c.l.b16 %v1189
        %v1206 = vunpack.c.h.b16 %v1189
        %v1207 = vunpack.c.l.b16 %v1190
        %v1208 = vunpack.c.h.b16 %v1190
        %v1209 = vunpack.c.l.b16 %v1191
        %v1210 = vunpack.c.h.b16 %v1191
        %v1211 = vunpack.c.l.b16 %v1192
        %v1212 = vunpack.c.h.b16 %v1192
        %v1213 = vunpack.c.l.b16 %v1193
        %v1214 = vunpack.c.h.b16 %v1193
        %v1215 = vunpack.c.l.b16 %v1194
        %v1216 = vunpack.c.h.b16 %v1194
        %v1217 = vunpack.c.l.b16 %v1195
        %v1218 = vunpack.c.h.b16 %v1195
        %v1219 = vunpack.c.l.b16 %v1196
        %v1220 = vunpack.c.h.b16 %v1196
        %v1221 = vpack.c.b16 %v1207, %v1205
        %v1222 = vpack.c.b16 %v1208, %v1206
        %v1223 = vpack.c.b16 %v1211, %v1209
        %v1224 = vpack.c.b16 %v1212, %v1210
        %v1225 = vpack.c.b16 %v1215, %v1213
        %v1226 = vpack.c.b16 %v1216, %v1214
        %v1227 = vpack.c.b16 %v1219, %v1217
        %v1228 = vpack.c.b16 %v1220, %v1218
        %v1238 = vsel %vm783, %v1181, 0
        %v1241 = vsel %vm783, %v1182, 0
        %v1244 = vsel %vm783, %v1183, 0
        %v1247 = vsel %vm783, %v1184, 0
        %v1250 = vsel %vm783, %v1185, 0
        %v1253 = vsel %vm783, %v1186, 0
        %v1256 = vsel %vm783, %v1187, 0
        %v1259 = vsel %vm783, %v1188, 0
        %1261 = vmatpush.bf16.msra.mxu0 0
        %1262 = vmatpush.bf16.msra.mxu0 0
        %1263 = vmatpush.bf16.msra.mxu0 0
        %1264 = vmatpush.bf16.msra.mxu0 0
        %1265 = vmatpush.bf16.msra.mxu0 %v1227
        %1266 = vmatpush.bf16.msra.mxu0 %v1225
        %1267 = vmatpush.bf16.msra.mxu0 %v1223
        %1268 = vmatpush.bf16.msra.mxu0 %v1221
        %1269 = vmatmul.bf16.gmra.mxu0 %v1238
        %v1270 = vpop.f32.mrf.mxu0
        %v1271 = vadd.f32 0.0, %v1270
        %v1272 = vpop.f32.mrf.mxu0
        %v1273 = vadd.f32 0.0, %v1272
        %1274 = vmatmul.bf16.gmra.mxu0 %v1241
        %v1275 = vpop.f32.mrf.mxu0
        %v1276 = vadd.f32 0.0, %v1275
        %v1277 = vpop.f32.mrf.mxu0
        %v1278 = vadd.f32 0.0, %v1277
        %1279 = vmatmul.bf16.gmra.mxu0 %v1244
        %v1280 = vpop.f32.mrf.mxu0
        %v1281 = vadd.f32 0.0, %v1280
        %v1282 = vpop.f32.mrf.mxu0
        %v1283 = vadd.f32 0.0, %v1282
        %1284 = vmatmul.bf16.gmra.mxu0 %v1247
        %v1285 = vpop.f32.mrf.mxu0
        %v1286 = vadd.f32 0.0, %v1285
        %v1287 = vpop.f32.mrf.mxu0
        %v1288 = vadd.f32 0.0, %v1287
        %1289 = vmatmul.bf16.gmra.mxu0 %v1250
        %v1290 = vpop.f32.mrf.mxu0
        %v1291 = vadd.f32 0.0, %v1290
        %v1292 = vpop.f32.mrf.mxu0
        %v1293 = vadd.f32 0.0, %v1292
        %1294 = vmatmul.bf16.gmra.mxu0 %v1253
        %v1295 = vpop.f32.mrf.mxu0
        %v1296 = vadd.f32 0.0, %v1295
        %v1297 = vpop.f32.mrf.mxu0
        %v1298 = vadd.f32 0.0, %v1297
        %1299 = vmatmul.bf16.gmra.mxu0 %v1256
        %v1300 = vpop.f32.mrf.mxu0
        %v1301 = vadd.f32 0.0, %v1300
        %v1302 = vpop.f32.mrf.mxu0
        %v1303 = vadd.f32 0.0, %v1302
        %1304 = vmatmul.bf16.gmra.mxu0 %v1259
        %v1305 = vpop.f32.mrf.mxu0
        %v1306 = vadd.f32 0.0, %v1305
        %v1307 = vpop.f32.mrf.mxu0
        %v1308 = vadd.f32 0.0, %v1307
        %1309 = vdwg.mxu0
        %1310 = vmatpush.bf16.msra.mxu0 0
        %1311 = vmatpush.bf16.msra.mxu0 0
        %1312 = vmatpush.bf16.msra.mxu0 0
        %1313 = vmatpush.bf16.msra.mxu0 0
        %1314 = vmatpush.bf16.msra.mxu0 %v1228
        %1315 = vmatpush.bf16.msra.mxu0 %v1226
        %1316 = vmatpush.bf16.msra.mxu0 %v1224
        %1317 = vmatpush.bf16.msra.mxu0 %v1222
        %1318 = vmatmul.bf16.gmra.mxu0 %v1238
        %v1319 = vpop.f32.mrf.mxu0
        %v1320 = vadd.f32 0.0, %v1319
        %v1321 = vpop.f32.mrf.mxu0
        %v1322 = vadd.f32 0.0, %v1321
        %1323 = vmatmul.bf16.gmra.mxu0 %v1241
        %v1324 = vpop.f32.mrf.mxu0
        %v1325 = vadd.f32 0.0, %v1324
        %v1326 = vpop.f32.mrf.mxu0
        %v1327 = vadd.f32 0.0, %v1326
        %1328 = vmatmul.bf16.gmra.mxu0 %v1244
        %v1329 = vpop.f32.mrf.mxu0
        %v1330 = vadd.f32 0.0, %v1329
        %v1331 = vpop.f32.mrf.mxu0
        %v1332 = vadd.f32 0.0, %v1331
        %1333 = vmatmul.bf16.gmra.mxu0 %v1247
        %v1334 = vpop.f32.mrf.mxu0
        %v1335 = vadd.f32 0.0, %v1334
        %v1336 = vpop.f32.mrf.mxu0
        %v1337 = vadd.f32 0.0, %v1336
        %1338 = vmatmul.bf16.gmra.mxu0 %v1250
        %v1339 = vpop.f32.mrf.mxu0
        %v1340 = vadd.f32 0.0, %v1339
        %v1341 = vpop.f32.mrf.mxu0
        %v1342 = vadd.f32 0.0, %v1341
        %1343 = vmatmul.bf16.gmra.mxu0 %v1253
        %v1344 = vpop.f32.mrf.mxu0
        %v1345 = vadd.f32 0.0, %v1344
        %v1346 = vpop.f32.mrf.mxu0
        %v1347 = vadd.f32 0.0, %v1346
        %1348 = vmatmul.bf16.gmra.mxu0 %v1256
        %v1349 = vpop.f32.mrf.mxu0
        %v1350 = vadd.f32 0.0, %v1349
        %v1351 = vpop.f32.mrf.mxu0
        %v1352 = vadd.f32 0.0, %v1351
        %1353 = vmatmul.bf16.gmra.mxu0 %v1259
        %v1354 = vpop.f32.mrf.mxu0
        %v1355 = vadd.f32 0.0, %v1354
        %v1356 = vpop.f32.mrf.mxu0
        %v1357 = vadd.f32 0.0, %v1356
        %1358 = vdwg.mxu0
        %v1359 = vld [vmem:[%s669] sm:$0xf]
        %v1360 = vld [vmem:[%s669 + $0x4] sm:$0xf]
        %v1361 = vld [vmem:[%s669 + $0x8] sm:$0xf]
        %v1362 = vld [vmem:[%s669 + $0xc] sm:$0xf]
        %v1363 = vld [vmem:[%s669 + $0x10] sm:$0xf]
        %v1364 = vld [vmem:[%s669 + $0x14] sm:$0xf]
        %v1365 = vld [vmem:[%s669 + $0x18] sm:$0xf]
        %v1366 = vld [vmem:[%s669 + $0x1c] sm:$0xf]
        %v1367 = vpack.c.bf16 %v1273, %v1271
        %v1368 = vpack.c.bf16 %v1278, %v1276
        %v1369 = vpack.c.bf16 %v1283, %v1281
        %v1370 = vpack.c.bf16 %v1288, %v1286
        %1375 = vrot.lane.b32.xlu0 %v1367, 64
        %v1376 = vpop.permute.xlu0 %1375
        %1377 = vrot.lane.b32.xlu0 %v1368, 64
        %v1378 = vpop.permute.xlu0 %1377
        %1379 = vrot.lane.b32.xlu0 %v1369, 64
        %v1380 = vpop.permute.xlu0 %1379
        %1381 = vrot.lane.b32.xlu0 %v1370, 64
        %v1382 = vpop.permute.xlu0 %1381
        %vm1383 = vcmask 130048
        %v1385 = vsel %vm1383, %v1367, 0
        %v1388 = vsel %vm1383, %v1368, 0
        %v1391 = vsel %vm1383, %v1369, 0
        %v1394 = vsel %vm1383, %v1370, 0
        %v1397 = vsel %vm1383, %v1376, 0
        %v1400 = vsel %vm1383, %v1378, 0
        %v1403 = vsel %vm1383, %v1380, 0
        %v1406 = vsel %vm1383, %v1382, 0
        %1408 = vmatpush.bf16.xpose.msra.mxu0 0
        %1409 = vmatpush.bf16.xpose.msra.mxu0 0
        %1410 = vmatpush.bf16.xpose.msra.mxu0 0
        %1411 = vmatpush.bf16.xpose.msra.mxu0 0
        %1412 = vmatpush.bf16.xpose.msra.mxu0 %v1406
        %1413 = vmatpush.bf16.xpose.msra.mxu0 %v1403
        %1414 = vmatpush.bf16.xpose.msra.mxu0 %v1400
        %1415 = vmatpush.bf16.xpose.msra.mxu0 %v1397
        %1416 = vmatmul.bf16.gmra.mxu0 %v1385
        %v1417 = vpop.f32.mrf.mxu0
        %v1418 = vadd.f32 0.0, %v1417
        %v1419 = vpop.f32.mrf.mxu0
        %v1420 = vadd.f32 0.0, %v1419
        %1421 = vmatmul.bf16.gmra.mxu0 %v1388
        %v1422 = vpop.f32.mrf.mxu0
        %v1423 = vadd.f32 0.0, %v1422
        %v1424 = vpop.f32.mrf.mxu0
        %v1425 = vadd.f32 0.0, %v1424
        %1426 = vmatmul.bf16.gmra.mxu0 %v1391
        %v1427 = vpop.f32.mrf.mxu0
        %v1428 = vadd.f32 0.0, %v1427
        %v1429 = vpop.f32.mrf.mxu0
        %v1430 = vadd.f32 0.0, %v1429
        %1431 = vmatmul.bf16.gmra.mxu0 %v1394
        %v1432 = vpop.f32.mrf.mxu0
        %v1433 = vadd.f32 0.0, %v1432
        %v1434 = vpop.f32.mrf.mxu0
        %v1435 = vadd.f32 0.0, %v1434
        %1436 = vdwg.mxu0
        %v1437 = vsel %vm783, %v1418, -inf
        %1438 = vmax.xlane.f32.xlu0 %v1437
        %v1439 = vpop.xlane.xlu0 %1438
        %v1440 = vsel %vm783, %v1420, -inf
        %1441 = vmax.xlane.f32.xlu0 %v1440
        %v1442 = vpop.xlane.xlu0 %1441
        %v1443 = vsel %vm783, %v1423, -inf
        %1444 = vmax.xlane.f32.xlu0 %v1443
        %v1445 = vpop.xlane.xlu0 %1444
        %v1446 = vsel %vm783, %v1425, -inf
        %1447 = vmax.xlane.f32.xlu0 %v1446
        %v1448 = vpop.xlane.xlu0 %1447
        %v1449 = vsel %vm783, %v1428, -inf
        %1450 = vmax.xlane.f32.xlu0 %v1449
        %v1451 = vpop.xlane.xlu0 %1450
        %v1452 = vsel %vm783, %v1430, -inf
        %1453 = vmax.xlane.f32.xlu0 %v1452
        %v1454 = vpop.xlane.xlu0 %1453
        %v1455 = vsel %vm783, %v1433, -inf
        %1456 = vmax.xlane.f32.xlu0 %v1455
        %v1457 = vpop.xlane.xlu0 %1456
        %v1458 = vsel %vm783, %v1435, -inf
        %1459 = vmax.xlane.f32.xlu0 %v1458
        %v1460 = vpop.xlane.xlu0 %1459
        %v1461 = vsub.f32 %v1418, %v1439
        %v1462 = vsub.f32 %v1420, %v1442
        %v1463 = vsub.f32 %v1423, %v1445
        %v1464 = vsub.f32 %v1425, %v1448
        %v1465 = vsub.f32 %v1428, %v1451
        %v1466 = vsub.f32 %v1430, %v1454
        %v1467 = vsub.f32 %v1433, %v1457
        %v1468 = vsub.f32 %v1435, %v1460
        %v1469 = vmul.f32 %v1461, 1.442695
        %v1470 = vpow.pop %v1469
        %v1471 = vmul.f32 %v1462, 1.442695
        %v1472 = vpow.pop %v1471
        %v1473 = vmul.f32 %v1463, 1.442695
        %v1474 = vpow.pop %v1473
        %v1475 = vmul.f32 %v1464, 1.442695
        %v1476 = vpow.pop %v1475
        %v1477 = vmul.f32 %v1465, 1.442695
        %v1478 = vpow.pop %v1477
        %v1479 = vmul.f32 %v1466, 1.442695
        %v1480 = vpow.pop %v1479
        %v1481 = vmul.f32 %v1467, 1.442695
        %v1482 = vpow.pop %v1481
        %v1483 = vmul.f32 %v1468, 1.442695
        %v1484 = vpow.pop %v1483
        %v1485 = vsel %vm783, %v1470, 0.0
        %1486 = vadd.xlane.f32.xlu0 %v1485
        %v1487 = vpop.xlane.xlu0 %1486
        %v1488 = vsel %vm783, %v1472, 0.0
        %1489 = vadd.xlane.f32.xlu0 %v1488
        %v1490 = vpop.xlane.xlu0 %1489
        %v1491 = vsel %vm783, %v1474, 0.0
        %1492 = vadd.xlane.f32.xlu0 %v1491
        %v1493 = vpop.xlane.xlu0 %1492
        %v1494 = vsel %vm783, %v1476, 0.0
        %1495 = vadd.xlane.f32.xlu0 %v1494
        %v1496 = vpop.xlane.xlu0 %1495
        %v1497 = vsel %vm783, %v1478, 0.0
        %1498 = vadd.xlane.f32.xlu0 %v1497
        %v1499 = vpop.xlane.xlu0 %1498
        %v1500 = vsel %vm783, %v1480, 0.0
        %1501 = vadd.xlane.f32.xlu0 %v1500
        %v1502 = vpop.xlane.xlu0 %1501
        %v1503 = vsel %vm783, %v1482, 0.0
        %1504 = vadd.xlane.f32.xlu0 %v1503
        %v1505 = vpop.xlane.xlu0 %1504
        %v1506 = vsel %vm783, %v1484, 0.0
        %1507 = vadd.xlane.f32.xlu0 %v1506
        %v1508 = vpop.xlane.xlu0 %1507
        %v1509 = vrcp.pop %v1487
        %v1510 = vrcp.pop %v1490
        %v1511 = vrcp.pop %v1493
        %v1512 = vrcp.pop %v1496
        %v1513 = vrcp.pop %v1499
        %v1514 = vrcp.pop %v1502
        %v1515 = vrcp.pop %v1505
        %v1516 = vrcp.pop %v1508
        %v1517 = vmul.f32 %v1470, %v1509
        %v1518 = vmul.f32 %v1472, %v1510
        %v1519 = vmul.f32 %v1474, %v1511
        %v1520 = vmul.f32 %v1476, %v1512
        %v1521 = vmul.f32 %v1478, %v1513
        %v1522 = vmul.f32 %v1480, %v1514
        %v1523 = vmul.f32 %v1482, %v1515
        %v1524 = vmul.f32 %v1484, %v1516
        %v1525 = vpack.c.bf16 %v1518, %v1517
        %v1526 = vpack.c.bf16 %v1520, %v1519
        %v1527 = vpack.c.bf16 %v1522, %v1521
        %v1528 = vpack.c.bf16 %v1524, %v1523
        %v1529 = vpack.c.bf16 %v1322, %v1320
        %v1530 = vpack.c.bf16 %v1327, %v1325
        %v1531 = vpack.c.bf16 %v1332, %v1330
        %v1532 = vpack.c.bf16 %v1337, %v1335
        %v1534 = vsel %vm783, %v1525, 0
        %v1537 = vsel %vm783, %v1526, 0
        %v1540 = vsel %vm783, %v1527, 0
        %v1543 = vsel %vm783, %v1528, 0
        %1545 = vmatpush.bf16.msra.mxu0 0
        %1546 = vmatpush.bf16.msra.mxu0 0
        %1547 = vmatpush.bf16.msra.mxu0 0
        %1548 = vmatpush.bf16.msra.mxu0 0
        %1549 = vmatpush.bf16.msra.mxu0 %v1532
        %1550 = vmatpush.bf16.msra.mxu0 %v1531
        %1551 = vmatpush.bf16.msra.mxu0 %v1530
        %1552 = vmatpush.bf16.msra.mxu0 %v1529
        %1553 = vmatmul.bf16.gmra.mxu0 %v1534
        %v1554 = vpop.f32.mrf.mxu0
        %v1555 = vadd.f32 0.0, %v1554
        %v1556 = vpop.f32.mrf.mxu0
        %v1557 = vadd.f32 0.0, %v1556
        %1558 = vmatmul.bf16.gmra.mxu0 %v1537
        %v1559 = vpop.f32.mrf.mxu0
        %v1560 = vadd.f32 0.0, %v1559
        %v1561 = vpop.f32.mrf.mxu0
        %v1562 = vadd.f32 0.0, %v1561
        %1563 = vmatmul.bf16.gmra.mxu0 %v1540
        %v1564 = vpop.f32.mrf.mxu0
        %v1565 = vadd.f32 0.0, %v1564
        %v1566 = vpop.f32.mrf.mxu0
        %v1567 = vadd.f32 0.0, %v1566
        %1568 = vmatmul.bf16.gmra.mxu0 %v1543
        %v1569 = vpop.f32.mrf.mxu0
        %v1570 = vadd.f32 0.0, %v1569
        %v1571 = vpop.f32.mrf.mxu0
        %v1572 = vadd.f32 0.0, %v1571
        %1573 = vdwg.mxu0
        %v1574 = vpack.c.bf16 %v1557, %v1555
        %v1575 = vpack.c.bf16 %v1562, %v1560
        %v1576 = vpack.c.bf16 %v1567, %v1565
        %v1577 = vpack.c.bf16 %v1572, %v1570
        %1578 = vrot.lane.b32.xlu0 %v1367, 112
        %v1579 = vpop.permute.xlu0 %1578
        %1580 = vrot.lane.b32.xlu0 %v1368, 112
        %v1581 = vpop.permute.xlu0 %1580
        %1582 = vrot.lane.b32.xlu0 %v1369, 112
        %v1583 = vpop.permute.xlu0 %1582
        %1584 = vrot.lane.b32.xlu0 %v1370, 112
        %v1585 = vpop.permute.xlu0 %1584
        %1586 = vrot.lane.b32.xlu0 %v1367, 48
        %v1587 = vpop.permute.xlu0 %1586
        %1588 = vrot.lane.b32.xlu0 %v1368, 48
        %v1589 = vpop.permute.xlu0 %1588
        %1590 = vrot.lane.b32.xlu0 %v1369, 48
        %v1591 = vpop.permute.xlu0 %1590
        %1592 = vrot.lane.b32.xlu0 %v1370, 48
        %v1593 = vpop.permute.xlu0 %1592
        %v1595 = vsel %vm1383, %v1579, 0
        %v1598 = vsel %vm1383, %v1581, 0
        %v1601 = vsel %vm1383, %v1583, 0
        %v1604 = vsel %vm1383, %v1585, 0
        %v1607 = vsel %vm1383, %v1587, 0
        %v1610 = vsel %vm1383, %v1589, 0
        %v1613 = vsel %vm1383, %v1591, 0
        %v1616 = vsel %vm1383, %v1593, 0
        %1618 = vmatpush.bf16.xpose.msra.mxu0 0
        %1619 = vmatpush.bf16.xpose.msra.mxu0 0
        %1620 = vmatpush.bf16.xpose.msra.mxu0 0
        %1621 = vmatpush.bf16.xpose.msra.mxu0 0
        %1622 = vmatpush.bf16.xpose.msra.mxu0 %v1616
        %1623 = vmatpush.bf16.xpose.msra.mxu0 %v1613
        %1624 = vmatpush.bf16.xpose.msra.mxu0 %v1610
        %1625 = vmatpush.bf16.xpose.msra.mxu0 %v1607
        %1626 = vmatmul.bf16.gmra.mxu0 %v1595
        %v1627 = vpop.f32.mrf.mxu0
        %v1628 = vadd.f32 0.0, %v1627
        %v1629 = vpop.f32.mrf.mxu0
        %v1630 = vadd.f32 0.0, %v1629
        %1631 = vmatmul.bf16.gmra.mxu0 %v1598
        %v1632 = vpop.f32.mrf.mxu0
        %v1633 = vadd.f32 0.0, %v1632
        %v1634 = vpop.f32.mrf.mxu0
        %v1635 = vadd.f32 0.0, %v1634
        %1636 = vmatmul.bf16.gmra.mxu0 %v1601
        %v1637 = vpop.f32.mrf.mxu0
        %v1638 = vadd.f32 0.0, %v1637
        %v1639 = vpop.f32.mrf.mxu0
        %v1640 = vadd.f32 0.0, %v1639
        %1641 = vmatmul.bf16.gmra.mxu0 %v1604
        %v1642 = vpop.f32.mrf.mxu0
        %v1643 = vadd.f32 0.0, %v1642
        %v1644 = vpop.f32.mrf.mxu0
        %v1645 = vadd.f32 0.0, %v1644
        %1646 = vdwg.mxu0
        %v1647 = vsel %vm783, %v1628, -inf
        %1648 = vmax.xlane.f32.xlu0 %v1647
        %v1649 = vpop.xlane.xlu0 %1648
        %v1650 = vsel %vm783, %v1630, -inf
        %1651 = vmax.xlane.f32.xlu0 %v1650
        %v1652 = vpop.xlane.xlu0 %1651
        %v1653 = vsel %vm783, %v1633, -inf
        %1654 = vmax.xlane.f32.xlu0 %v1653
        %v1655 = vpop.xlane.xlu0 %1654
        %v1656 = vsel %vm783, %v1635, -inf
        %1657 = vmax.xlane.f32.xlu0 %v1656
        %v1658 = vpop.xlane.xlu0 %1657
        %v1659 = vsel %vm783, %v1638, -inf
        %1660 = vmax.xlane.f32.xlu0 %v1659
        %v1661 = vpop.xlane.xlu0 %1660
        %v1662 = vsel %vm783, %v1640, -inf
        %1663 = vmax.xlane.f32.xlu0 %v1662
        %v1664 = vpop.xlane.xlu0 %1663
        %v1665 = vsel %vm783, %v1643, -inf
        %1666 = vmax.xlane.f32.xlu0 %v1665
        %v1667 = vpop.xlane.xlu0 %1666
        %v1668 = vsel %vm783, %v1645, -inf
        %1669 = vmax.xlane.f32.xlu0 %v1668
        %v1670 = vpop.xlane.xlu0 %1669
        %v1671 = vsub.f32 %v1628, %v1649
        %v1672 = vsub.f32 %v1630, %v1652
        %v1673 = vsub.f32 %v1633, %v1655
        %v1674 = vsub.f32 %v1635, %v1658
        %v1675 = vsub.f32 %v1638, %v1661
        %v1676 = vsub.f32 %v1640, %v1664
        %v1677 = vsub.f32 %v1643, %v1667
        %v1678 = vsub.f32 %v1645, %v1670
        %v1679 = vmul.f32 %v1671, 1.442695
        %v1680 = vpow.pop %v1679
        %v1681 = vmul.f32 %v1672, 1.442695
        %v1682 = vpow.pop %v1681
        %v1683 = vmul.f32 %v1673, 1.442695
        %v1684 = vpow.pop %v1683
        %v1685 = vmul.f32 %v1674, 1.442695
        %v1686 = vpow.pop %v1685
        %v1687 = vmul.f32 %v1675, 1.442695
        %v1688 = vpow.pop %v1687
        %v1689 = vmul.f32 %v1676, 1.442695
        %v1690 = vpow.pop %v1689
        %v1691 = vmul.f32 %v1677, 1.442695
        %v1692 = vpow.pop %v1691
        %v1693 = vmul.f32 %v1678, 1.442695
        %v1694 = vpow.pop %v1693
        %v1695 = vsel %vm783, %v1680, 0.0
        %1696 = vadd.xlane.f32.xlu0 %v1695
        %v1697 = vpop.xlane.xlu0 %1696
        %v1698 = vsel %vm783, %v1682, 0.0
        %1699 = vadd.xlane.f32.xlu0 %v1698
        %v1700 = vpop.xlane.xlu0 %1699
        %v1701 = vsel %vm783, %v1684, 0.0
        %1702 = vadd.xlane.f32.xlu0 %v1701
        %v1703 = vpop.xlane.xlu0 %1702
        %v1704 = vsel %vm783, %v1686, 0.0
        %1705 = vadd.xlane.f32.xlu0 %v1704
        %v1706 = vpop.xlane.xlu0 %1705
        %v1707 = vsel %vm783, %v1688, 0.0
        %1708 = vadd.xlane.f32.xlu0 %v1707
        %v1709 = vpop.xlane.xlu0 %1708
        %v1710 = vsel %vm783, %v1690, 0.0
        %1711 = vadd.xlane.f32.xlu0 %v1710
        %v1712 = vpop.xlane.xlu0 %1711
        %v1713 = vsel %vm783, %v1692, 0.0
        %1714 = vadd.xlane.f32.xlu0 %v1713
        %v1715 = vpop.xlane.xlu0 %1714
        %v1716 = vsel %vm783, %v1694, 0.0
        %1717 = vadd.xlane.f32.xlu0 %v1716
        %v1718 = vpop.xlane.xlu0 %1717
        %v1719 = vrcp.pop %v1697
        %v1720 = vrcp.pop %v1700
        %v1721 = vrcp.pop %v1703
        %v1722 = vrcp.pop %v1706
        %v1723 = vrcp.pop %v1709
        %v1724 = vrcp.pop %v1712
        %v1725 = vrcp.pop %v1715
        %v1726 = vrcp.pop %v1718
        %v1727 = vmul.f32 %v1680, %v1719
        %v1728 = vmul.f32 %v1682, %v1720
        %v1729 = vmul.f32 %v1684, %v1721
        %v1730 = vmul.f32 %v1686, %v1722
        %v1731 = vmul.f32 %v1688, %v1723
        %v1732 = vmul.f32 %v1690, %v1724
        %v1733 = vmul.f32 %v1692, %v1725
        %v1734 = vmul.f32 %v1694, %v1726
        %v1735 = vpack.c.bf16 %v1728, %v1727
        %v1736 = vpack.c.bf16 %v1730, %v1729
        %v1737 = vpack.c.bf16 %v1732, %v1731
        %v1738 = vpack.c.bf16 %v1734, %v1733
        %1743 = vrot.lane.b32.xlu0 %v1529, 112
        %v1744 = vpop.permute.xlu0 %1743
        %1745 = vrot.lane.b32.xlu0 %v1530, 112
        %v1746 = vpop.permute.xlu0 %1745
        %1747 = vrot.lane.b32.xlu0 %v1531, 112
        %v1748 = vpop.permute.xlu0 %1747
        %1749 = vrot.lane.b32.xlu0 %v1532, 112
        %v1750 = vpop.permute.xlu0 %1749
        %v1756 = vsel %vm783, %v1735, 0
        %v1759 = vsel %vm783, %v1736, 0
        %v1762 = vsel %vm783, %v1737, 0
        %v1765 = vsel %vm783, %v1738, 0
        %1767 = vmatpush.bf16.msra.mxu0 0
        %1768 = vmatpush.bf16.msra.mxu0 0
        %1769 = vmatpush.bf16.msra.mxu0 0
        %1770 = vmatpush.bf16.msra.mxu0 0
        %1771 = vmatpush.bf16.msra.mxu0 %v1750
        %1772 = vmatpush.bf16.msra.mxu0 %v1748
        %1773 = vmatpush.bf16.msra.mxu0 %v1746
        %1774 = vmatpush.bf16.msra.mxu0 %v1744
        %1775 = vmatmul.bf16.gmra.mxu0 %v1756
        %v1776 = vpop.f32.mrf.mxu0
        %v1777 = vadd.f32 0.0, %v1776
        %v1778 = vpop.f32.mrf.mxu0
        %v1779 = vadd.f32 0.0, %v1778
        %1780 = vmatmul.bf16.gmra.mxu0 %v1759
        %v1781 = vpop.f32.mrf.mxu0
        %v1782 = vadd.f32 0.0, %v1781
        %v1783 = vpop.f32.mrf.mxu0
        %v1784 = vadd.f32 0.0, %v1783
        %1785 = vmatmul.bf16.gmra.mxu0 %v1762
        %v1786 = vpop.f32.mrf.mxu0
        %v1787 = vadd.f32 0.0, %v1786
        %v1788 = vpop.f32.mrf.mxu0
        %v1789 = vadd.f32 0.0, %v1788
        %1790 = vmatmul.bf16.gmra.mxu0 %v1765
        %v1791 = vpop.f32.mrf.mxu0
        %v1792 = vadd.f32 0.0, %v1791
        %v1793 = vpop.f32.mrf.mxu0
        %v1794 = vadd.f32 0.0, %v1793
        %1795 = vdwg.mxu0
        %v1796 = vpack.c.bf16 %v1779, %v1777
        %v1797 = vpack.c.bf16 %v1784, %v1782
        %v1798 = vpack.c.bf16 %v1789, %v1787
        %v1799 = vpack.c.bf16 %v1794, %v1792
        %v1802 = vunpack.c.l.b16 %v1361
        %v1803 = vunpack.c.l.b16 %v1362
        %v1804 = vpack.c.b16 %v1803, %v1802
        %v1807 = vsel %vm1383, %v1796, 0
        %v1810 = vsel %vm1383, %v1797, 0
        %v1813 = vsel %vm1383, %v1798, 0
        %v1816 = vsel %vm1383, %v1799, 0
        %1818 = vmatpush.bf16.msra.mxu0 0
        %1819 = vmatpush.bf16.msra.mxu0 0
        %1820 = vmatpush.bf16.msra.mxu0 0
        %1821 = vmatpush.bf16.msra.mxu0 0
        %1822 = vmatpush.bf16.msra.mxu0 0
        %1823 = vmatpush.bf16.msra.mxu0 0
        %1824 = vmatpush.bf16.msra.mxu0 0
        %1825 = vmatpush.bf16.msra.mxu0 %v1804
        %1826 = vmatmul.bf16.gmra.mxu0 %v1807
        %v1827 = vpop.f32.mrf.mxu0
        %v1828 = vadd.f32 0.0, %v1827
        %v1829 = vpop.f32.mrf.mxu0
        %v1830 = vadd.f32 0.0, %v1829
        %1831 = vmatmul.bf16.gmra.mxu0 %v1810
        %v1832 = vpop.f32.mrf.mxu0
        %v1833 = vadd.f32 0.0, %v1832
        %v1834 = vpop.f32.mrf.mxu0
        %v1835 = vadd.f32 0.0, %v1834
        %1836 = vmatmul.bf16.gmra.mxu0 %v1813
        %v1837 = vpop.f32.mrf.mxu0
        %v1838 = vadd.f32 0.0, %v1837
        %v1839 = vpop.f32.mrf.mxu0
        %v1840 = vadd.f32 0.0, %v1839
        %1841 = vmatmul.bf16.gmra.mxu0 %v1816
        %v1842 = vpop.f32.mrf.mxu0
        %v1843 = vadd.f32 0.0, %v1842
        %v1844 = vpop.f32.mrf.mxu0
        %v1845 = vadd.f32 0.0, %v1844
        %1846 = vdwg.mxu0
        %v1849 = vunpack.c.l.b16 %v1359
        %v1850 = vunpack.c.l.b16 %v1360
        %v1851 = vpack.c.b16 %v1850, %v1849
        %v1854 = vsel %vm1383, %v1574, 0
        %v1857 = vsel %vm1383, %v1575, 0
        %v1860 = vsel %vm1383, %v1576, 0
        %v1863 = vsel %vm1383, %v1577, 0
        %1865 = vmatpush.bf16.msra.mxu0 0
        %1866 = vmatpush.bf16.msra.mxu0 0
        %1867 = vmatpush.bf16.msra.mxu0 0
        %1868 = vmatpush.bf16.msra.mxu0 0
        %1869 = vmatpush.bf16.msra.mxu0 0
        %1870 = vmatpush.bf16.msra.mxu0 0
        %1871 = vmatpush.bf16.msra.mxu0 0
        %1872 = vmatpush.bf16.msra.mxu0 %v1851
        %1873 = vmatmul.bf16.gmra.mxu0 %v1854
        %v1874 = vpop.f32.mrf.mxu0
        %v1875 = vadd.f32 %v1828, %v1874
        %v1876 = vpop.f32.mrf.mxu0
        %v1877 = vadd.f32 %v1830, %v1876
        %1878 = vmatmul.bf16.gmra.mxu0 %v1857
        %v1879 = vpop.f32.mrf.mxu0
        %v1880 = vadd.f32 %v1833, %v1879
        %v1881 = vpop.f32.mrf.mxu0
        %v1882 = vadd.f32 %v1835, %v1881
        %1883 = vmatmul.bf16.gmra.mxu0 %v1860
        %v1884 = vpop.f32.mrf.mxu0
        %v1885 = vadd.f32 %v1838, %v1884
        %v1886 = vpop.f32.mrf.mxu0
        %v1887 = vadd.f32 %v1840, %v1886
        %1888 = vmatmul.bf16.gmra.mxu0 %v1863
        %v1889 = vpop.f32.mrf.mxu0
        %v1890 = vadd.f32 %v1843, %v1889
        %v1891 = vpop.f32.mrf.mxu0
        %v1892 = vadd.f32 %v1845, %v1891
        %1893 = vdwg.mxu0
        %1894 = vrot.lane.b32.xlu0 %v1367, 96
        %v1895 = vpop.permute.xlu0 %1894
        %1896 = vrot.lane.b32.xlu0 %v1368, 96
        %v1897 = vpop.permute.xlu0 %1896
        %1898 = vrot.lane.b32.xlu0 %v1369, 96
        %v1899 = vpop.permute.xlu0 %1898
        %1900 = vrot.lane.b32.xlu0 %v1370, 96
        %v1901 = vpop.permute.xlu0 %1900
        %1902 = vrot.lane.b32.xlu0 %v1367, 32
        %v1903 = vpop.permute.xlu0 %1902
        %1904 = vrot.lane.b32.xlu0 %v1368, 32
        %v1905 = vpop.permute.xlu0 %1904
        %1906 = vrot.lane.b32.xlu0 %v1369, 32
        %v1907 = vpop.permute.xlu0 %1906
        %1908 = vrot.lane.b32.xlu0 %v1370, 32
        %v1909 = vpop.permute.xlu0 %1908
        %v1911 = vsel %vm1383, %v1895, 0
        %v1914 = vsel %vm1383, %v1897, 0
        %v1917 = vsel %vm1383, %v1899, 0
        %v1920 = vsel %vm1383, %v1901, 0
        %v1923 = vsel %vm1383, %v1903, 0
        %v1926 = vsel %vm1383, %v1905, 0
        %v1929 = vsel %vm1383, %v1907, 0
        %v1932 = vsel %vm1383, %v1909, 0
        %1934 = vmatpush.bf16.xpose.msra.mxu0 0
        %1935 = vmatpush.bf16.xpose.msra.mxu0 0
        %1936 = vmatpush.bf16.xpose.msra.mxu0 0
        %1937 = vmatpush.bf16.xpose.msra.mxu0 0
        %1938 = vmatpush.bf16.xpose.msra.mxu0 %v1932
        %1939 = vmatpush.bf16.xpose.msra.mxu0 %v1929
        %1940 = vmatpush.bf16.xpose.msra.mxu0 %v1926
        %1941 = vmatpush.bf16.xpose.msra.mxu0 %v1923
        %1942 = vmatmul.bf16.gmra.mxu0 %v1911
        %v1943 = vpop.f32.mrf.mxu0
        %v1944 = vadd.f32 0.0, %v1943
        %v1945 = vpop.f32.mrf.mxu0
        %v1946 = vadd.f32 0.0, %v1945
        %1947 = vmatmul.bf16.gmra.mxu0 %v1914
        %v1948 = vpop.f32.mrf.mxu0
        %v1949 = vadd.f32 0.0, %v1948
        %v1950 = vpop.f32.mrf.mxu0
        %v1951 = vadd.f32 0.0, %v1950
        %1952 = vmatmul.bf16.gmra.mxu0 %v1917
        %v1953 = vpop.f32.mrf.mxu0
        %v1954 = vadd.f32 0.0, %v1953
        %v1955 = vpop.f32.mrf.mxu0
        %v1956 = vadd.f32 0.0, %v1955
        %1957 = vmatmul.bf16.gmra.mxu0 %v1920
        %v1958 = vpop.f32.mrf.mxu0
        %v1959 = vadd.f32 0.0, %v1958
        %v1960 = vpop.f32.mrf.mxu0
        %v1961 = vadd.f32 0.0, %v1960
        %1962 = vdwg.mxu0
        %v1963 = vsel %vm783, %v1944, -inf
        %1964 = vmax.xlane.f32.xlu0 %v1963
        %v1965 = vpop.xlane.xlu0 %1964
        %v1966 = vsel %vm783, %v1946, -inf
        %1967 = vmax.xlane.f32.xlu0 %v1966
        %v1968 = vpop.xlane.xlu0 %1967
        %v1969 = vsel %vm783, %v1949, -inf
        %1970 = vmax.xlane.f32.xlu0 %v1969
        %v1971 = vpop.xlane.xlu0 %1970
        %v1972 = vsel %vm783, %v1951, -inf
        %1973 = vmax.xlane.f32.xlu0 %v1972
        %v1974 = vpop.xlane.xlu0 %1973
        %v1975 = vsel %vm783, %v1954, -inf
        %1976 = vmax.xlane.f32.xlu0 %v1975
        %v1977 = vpop.xlane.xlu0 %1976
        %v1978 = vsel %vm783, %v1956, -inf
        %1979 = vmax.xlane.f32.xlu0 %v1978
        %v1980 = vpop.xlane.xlu0 %1979
        %v1981 = vsel %vm783, %v1959, -inf
        %1982 = vmax.xlane.f32.xlu0 %v1981
        %v1983 = vpop.xlane.xlu0 %1982
        %v1984 = vsel %vm783, %v1961, -inf
        %1985 = vmax.xlane.f32.xlu0 %v1984
        %v1986 = vpop.xlane.xlu0 %1985
        %v1987 = vsub.f32 %v1944, %v1965
        %v1988 = vsub.f32 %v1946, %v1968
        %v1989 = vsub.f32 %v1949, %v1971
        %v1990 = vsub.f32 %v1951, %v1974
        %v1991 = vsub.f32 %v1954, %v1977
        %v1992 = vsub.f32 %v1956, %v1980
        %v1993 = vsub.f32 %v1959, %v1983
        %v1994 = vsub.f32 %v1961, %v1986
        %v1995 = vmul.f32 %v1987, 1.442695
        %v1996 = vpow.pop %v1995
        %v1997 = vmul.f32 %v1988, 1.442695
        %v1998 = vpow.pop %v1997
        %v1999 = vmul.f32 %v1989, 1.442695
        %v2000 = vpow.pop %v1999
        %v2001 = vmul.f32 %v1990, 1.442695
        %v2002 = vpow.pop %v2001
        %v2003 = vmul.f32 %v1991, 1.442695
        %v2004 = vpow.pop %v2003
        %v2005 = vmul.f32 %v1992, 1.442695
        %v2006 = vpow.pop %v2005
        %v2007 = vmul.f32 %v1993, 1.442695
        %v2008 = vpow.pop %v2007
        %v2009 = vmul.f32 %v1994, 1.442695
        %v2010 = vpow.pop %v2009
        %v2011 = vsel %vm783, %v1996, 0.0
        %2012 = vadd.xlane.f32.xlu0 %v2011
        %v2013 = vpop.xlane.xlu0 %2012
        %v2014 = vsel %vm783, %v1998, 0.0
        %2015 = vadd.xlane.f32.xlu0 %v2014
        %v2016 = vpop.xlane.xlu0 %2015
        %v2017 = vsel %vm783, %v2000, 0.0
        %2018 = vadd.xlane.f32.xlu0 %v2017
        %v2019 = vpop.xlane.xlu0 %2018
        %v2020 = vsel %vm783, %v2002, 0.0
        %2021 = vadd.xlane.f32.xlu0 %v2020
        %v2022 = vpop.xlane.xlu0 %2021
        %v2023 = vsel %vm783, %v2004, 0.0
        %2024 = vadd.xlane.f32.xlu0 %v2023
        %v2025 = vpop.xlane.xlu0 %2024
        %v2026 = vsel %vm783, %v2006, 0.0
        %2027 = vadd.xlane.f32.xlu0 %v2026
        %v2028 = vpop.xlane.xlu0 %2027
        %v2029 = vsel %vm783, %v2008, 0.0
        %2030 = vadd.xlane.f32.xlu0 %v2029
        %v2031 = vpop.xlane.xlu0 %2030
        %v2032 = vsel %vm783, %v2010, 0.0
        %2033 = vadd.xlane.f32.xlu0 %v2032
        %v2034 = vpop.xlane.xlu0 %2033
        %v2035 = vrcp.pop %v2013
        %v2036 = vrcp.pop %v2016
        %v2037 = vrcp.pop %v2019
        %v2038 = vrcp.pop %v2022
        %v2039 = vrcp.pop %v2025
        %v2040 = vrcp.pop %v2028
        %v2041 = vrcp.pop %v2031
        %v2042 = vrcp.pop %v2034
        %v2043 = vmul.f32 %v1996, %v2035
        %v2044 = vmul.f32 %v1998, %v2036
        %v2045 = vmul.f32 %v2000, %v2037
        %v2046 = vmul.f32 %v2002, %v2038
        %v2047 = vmul.f32 %v2004, %v2039
        %v2048 = vmul.f32 %v2006, %v2040
        %v2049 = vmul.f32 %v2008, %v2041
        %v2050 = vmul.f32 %v2010, %v2042
        %v2051 = vpack.c.bf16 %v2044, %v2043
        %v2052 = vpack.c.bf16 %v2046, %v2045
        %v2053 = vpack.c.bf16 %v2048, %v2047
        %v2054 = vpack.c.bf16 %v2050, %v2049
        %2055 = vrot.lane.b32.xlu0 %v1529, 96
        %v2056 = vpop.permute.xlu0 %2055
        %2057 = vrot.lane.b32.xlu0 %v1530, 96
        %v2058 = vpop.permute.xlu0 %2057
        %2059 = vrot.lane.b32.xlu0 %v1531, 96
        %v2060 = vpop.permute.xlu0 %2059
        %2061 = vrot.lane.b32.xlu0 %v1532, 96
        %v2062 = vpop.permute.xlu0 %2061
        %v2068 = vsel %vm783, %v2051, 0
        %v2071 = vsel %vm783, %v2052, 0
        %v2074 = vsel %vm783, %v2053, 0
        %v2077 = vsel %vm783, %v2054, 0
        %2079 = vmatpush.bf16.msra.mxu0 0
        %2080 = vmatpush.bf16.msra.mxu0 0
        %2081 = vmatpush.bf16.msra.mxu0 0
        %2082 = vmatpush.bf16.msra.mxu0 0
        %2083 = vmatpush.bf16.msra.mxu0 %v2062
        %2084 = vmatpush.bf16.msra.mxu0 %v2060
        %2085 = vmatpush.bf16.msra.mxu0 %v2058
        %2086 = vmatpush.bf16.msra.mxu0 %v2056
        %2087 = vmatmul.bf16.gmra.mxu0 %v2068
        %v2088 = vpop.f32.mrf.mxu0
        %v2089 = vadd.f32 0.0, %v2088
        %v2090 = vpop.f32.mrf.mxu0
        %v2091 = vadd.f32 0.0, %v2090
        %2092 = vmatmul.bf16.gmra.mxu0 %v2071
        %v2093 = vpop.f32.mrf.mxu0
        %v2094 = vadd.f32 0.0, %v2093
        %v2095 = vpop.f32.mrf.mxu0
        %v2096 = vadd.f32 0.0, %v2095
        %2097 = vmatmul.bf16.gmra.mxu0 %v2074
        %v2098 = vpop.f32.mrf.mxu0
        %v2099 = vadd.f32 0.0, %v2098
        %v2100 = vpop.f32.mrf.mxu0
        %v2101 = vadd.f32 0.0, %v2100
        %2102 = vmatmul.bf16.gmra.mxu0 %v2077
        %v2103 = vpop.f32.mrf.mxu0
        %v2104 = vadd.f32 0.0, %v2103
        %v2105 = vpop.f32.mrf.mxu0
        %v2106 = vadd.f32 0.0, %v2105
        %2107 = vdwg.mxu0
        %v2108 = vpack.c.bf16 %v2091, %v2089
        %v2109 = vpack.c.bf16 %v2096, %v2094
        %v2110 = vpack.c.bf16 %v2101, %v2099
        %v2111 = vpack.c.bf16 %v2106, %v2104
        %v2114 = vunpack.c.l.b16 %v1363
        %v2115 = vunpack.c.l.b16 %v1364
        %v2116 = vpack.c.b16 %v2115, %v2114
        %v2119 = vsel %vm1383, %v2108, 0
        %v2122 = vsel %vm1383, %v2109, 0
        %v2125 = vsel %vm1383, %v2110, 0
        %v2128 = vsel %vm1383, %v2111, 0
        %2130 = vmatpush.bf16.msra.mxu0 0
        %2131 = vmatpush.bf16.msra.mxu0 0
        %2132 = vmatpush.bf16.msra.mxu0 0
        %2133 = vmatpush.bf16.msra.mxu0 0
        %2134 = vmatpush.bf16.msra.mxu0 0
        %2135 = vmatpush.bf16.msra.mxu0 0
        %2136 = vmatpush.bf16.msra.mxu0 0
        %2137 = vmatpush.bf16.msra.mxu0 %v2116
        %2138 = vmatmul.bf16.gmra.mxu0 %v2119
        %v2139 = vpop.f32.mrf.mxu0
        %v2140 = vadd.f32 0.0, %v2139
        %v2141 = vpop.f32.mrf.mxu0
        %v2142 = vadd.f32 0.0, %v2141
        %2143 = vmatmul.bf16.gmra.mxu0 %v2122
        %v2144 = vpop.f32.mrf.mxu0
        %v2145 = vadd.f32 0.0, %v2144
        %v2146 = vpop.f32.mrf.mxu0
        %v2147 = vadd.f32 0.0, %v2146
        %2148 = vmatmul.bf16.gmra.mxu0 %v2125
        %v2149 = vpop.f32.mrf.mxu0
        %v2150 = vadd.f32 0.0, %v2149
        %v2151 = vpop.f32.mrf.mxu0
        %v2152 = vadd.f32 0.0, %v2151
        %2153 = vmatmul.bf16.gmra.mxu0 %v2128
        %v2154 = vpop.f32.mrf.mxu0
        %v2155 = vadd.f32 0.0, %v2154
        %v2156 = vpop.f32.mrf.mxu0
        %v2157 = vadd.f32 0.0, %v2156
        %2158 = vdwg.mxu0
        %v2159 = vadd.f32 %v1875, %v2140
        %v2160 = vadd.f32 %v1877, %v2142
        %v2161 = vadd.f32 %v1880, %v2145
        %v2162 = vadd.f32 %v1882, %v2147
        %v2163 = vadd.f32 %v1885, %v2150
        %v2164 = vadd.f32 %v1887, %v2152
        %v2165 = vadd.f32 %v1890, %v2155
        %v2166 = vadd.f32 %v1892, %v2157
        %2167 = vrot.lane.b32.xlu0 %v1367, 80
        %v2168 = vpop.permute.xlu0 %2167
        %2169 = vrot.lane.b32.xlu0 %v1368, 80
        %v2170 = vpop.permute.xlu0 %2169
        %2171 = vrot.lane.b32.xlu0 %v1369, 80
        %v2172 = vpop.permute.xlu0 %2171
        %2173 = vrot.lane.b32.xlu0 %v1370, 80
        %v2174 = vpop.permute.xlu0 %2173
        %2175 = vrot.lane.b32.xlu0 %v1367, 16
        %v2176 = vpop.permute.xlu0 %2175
        %2177 = vrot.lane.b32.xlu0 %v1368, 16
        %v2178 = vpop.permute.xlu0 %2177
        %2179 = vrot.lane.b32.xlu0 %v1369, 16
        %v2180 = vpop.permute.xlu0 %2179
        %2181 = vrot.lane.b32.xlu0 %v1370, 16
        %v2182 = vpop.permute.xlu0 %2181
        %v2184 = vsel %vm1383, %v2168, 0
        %v2187 = vsel %vm1383, %v2170, 0
        %v2190 = vsel %vm1383, %v2172, 0
        %v2193 = vsel %vm1383, %v2174, 0
        %v2196 = vsel %vm1383, %v2176, 0
        %v2199 = vsel %vm1383, %v2178, 0
        %v2202 = vsel %vm1383, %v2180, 0
        %v2205 = vsel %vm1383, %v2182, 0
        %2207 = vmatpush.bf16.xpose.msra.mxu0 0
        %2208 = vmatpush.bf16.xpose.msra.mxu0 0
        %2209 = vmatpush.bf16.xpose.msra.mxu0 0
        %2210 = vmatpush.bf16.xpose.msra.mxu0 0
        %2211 = vmatpush.bf16.xpose.msra.mxu0 %v2205
        %2212 = vmatpush.bf16.xpose.msra.mxu0 %v2202
        %2213 = vmatpush.bf16.xpose.msra.mxu0 %v2199
        %2214 = vmatpush.bf16.xpose.msra.mxu0 %v2196
        %2215 = vmatmul.bf16.gmra.mxu0 %v2184
        %v2216 = vpop.f32.mrf.mxu0
        %v2217 = vadd.f32 0.0, %v2216
        %v2218 = vpop.f32.mrf.mxu0
        %v2219 = vadd.f32 0.0, %v2218
        %2220 = vmatmul.bf16.gmra.mxu0 %v2187
        %v2221 = vpop.f32.mrf.mxu0
        %v2222 = vadd.f32 0.0, %v2221
        %v2223 = vpop.f32.mrf.mxu0
        %v2224 = vadd.f32 0.0, %v2223
        %2225 = vmatmul.bf16.gmra.mxu0 %v2190
        %v2226 = vpop.f32.mrf.mxu0
        %v2227 = vadd.f32 0.0, %v2226
        %v2228 = vpop.f32.mrf.mxu0
        %v2229 = vadd.f32 0.0, %v2228
        %2230 = vmatmul.bf16.gmra.mxu0 %v2193
        %v2231 = vpop.f32.mrf.mxu0
        %v2232 = vadd.f32 0.0, %v2231
        %v2233 = vpop.f32.mrf.mxu0
        %v2234 = vadd.f32 0.0, %v2233
        %2235 = vdwg.mxu0
        %v2236 = vsel %vm783, %v2217, -inf
        %2237 = vmax.xlane.f32.xlu0 %v2236
        %v2238 = vpop.xlane.xlu0 %2237
        %v2239 = vsel %vm783, %v2219, -inf
        %2240 = vmax.xlane.f32.xlu0 %v2239
        %v2241 = vpop.xlane.xlu0 %2240
        %v2242 = vsel %vm783, %v2222, -inf
        %2243 = vmax.xlane.f32.xlu0 %v2242
        %v2244 = vpop.xlane.xlu0 %2243
        %v2245 = vsel %vm783, %v2224, -inf
        %2246 = vmax.xlane.f32.xlu0 %v2245
        %v2247 = vpop.xlane.xlu0 %2246
        %v2248 = vsel %vm783, %v2227, -inf
        %2249 = vmax.xlane.f32.xlu0 %v2248
        %v2250 = vpop.xlane.xlu0 %2249
        %v2251 = vsel %vm783, %v2229, -inf
        %2252 = vmax.xlane.f32.xlu0 %v2251
        %v2253 = vpop.xlane.xlu0 %2252
        %v2254 = vsel %vm783, %v2232, -inf
        %2255 = vmax.xlane.f32.xlu0 %v2254
        %v2256 = vpop.xlane.xlu0 %2255
        %v2257 = vsel %vm783, %v2234, -inf
        %2258 = vmax.xlane.f32.xlu0 %v2257
        %v2259 = vpop.xlane.xlu0 %2258
        %v2260 = vsub.f32 %v2217, %v2238
        %v2261 = vsub.f32 %v2219, %v2241
        %v2262 = vsub.f32 %v2222, %v2244
        %v2263 = vsub.f32 %v2224, %v2247
        %v2264 = vsub.f32 %v2227, %v2250
        %v2265 = vsub.f32 %v2229, %v2253
        %v2266 = vsub.f32 %v2232, %v2256
        %v2267 = vsub.f32 %v2234, %v2259
        %v2268 = vmul.f32 %v2260, 1.442695
        %v2269 = vpow.pop %v2268
        %v2270 = vmul.f32 %v2261, 1.442695
        %v2271 = vpow.pop %v2270
        %v2272 = vmul.f32 %v2262, 1.442695
        %v2273 = vpow.pop %v2272
        %v2274 = vmul.f32 %v2263, 1.442695
        %v2275 = vpow.pop %v2274
        %v2276 = vmul.f32 %v2264, 1.442695
        %v2277 = vpow.pop %v2276
        %v2278 = vmul.f32 %v2265, 1.442695
        %v2279 = vpow.pop %v2278
        %v2280 = vmul.f32 %v2266, 1.442695
        %v2281 = vpow.pop %v2280
        %v2282 = vmul.f32 %v2267, 1.442695
        %v2283 = vpow.pop %v2282
        %v2284 = vsel %vm783, %v2269, 0.0
        %2285 = vadd.xlane.f32.xlu0 %v2284
        %v2286 = vpop.xlane.xlu0 %2285
        %v2287 = vsel %vm783, %v2271, 0.0
        %2288 = vadd.xlane.f32.xlu0 %v2287
        %v2289 = vpop.xlane.xlu0 %2288
        %v2290 = vsel %vm783, %v2273, 0.0
        %2291 = vadd.xlane.f32.xlu0 %v2290
        %v2292 = vpop.xlane.xlu0 %2291
        %v2293 = vsel %vm783, %v2275, 0.0
        %2294 = vadd.xlane.f32.xlu0 %v2293
        %v2295 = vpop.xlane.xlu0 %2294
        %v2296 = vsel %vm783, %v2277, 0.0
        %2297 = vadd.xlane.f32.xlu0 %v2296
        %v2298 = vpop.xlane.xlu0 %2297
        %v2299 = vsel %vm783, %v2279, 0.0
        %2300 = vadd.xlane.f32.xlu0 %v2299
        %v2301 = vpop.xlane.xlu0 %2300
        %v2302 = vsel %vm783, %v2281, 0.0
        %2303 = vadd.xlane.f32.xlu0 %v2302
        %v2304 = vpop.xlane.xlu0 %2303
        %v2305 = vsel %vm783, %v2283, 0.0
        %2306 = vadd.xlane.f32.xlu0 %v2305
        %v2307 = vpop.xlane.xlu0 %2306
        %v2308 = vrcp.pop %v2286
        %v2309 = vrcp.pop %v2289
        %v2310 = vrcp.pop %v2292
        %v2311 = vrcp.pop %v2295
        %v2312 = vrcp.pop %v2298
        %v2313 = vrcp.pop %v2301
        %v2314 = vrcp.pop %v2304
        %v2315 = vrcp.pop %v2307
        %v2316 = vmul.f32 %v2269, %v2308
        %v2317 = vmul.f32 %v2271, %v2309
        %v2318 = vmul.f32 %v2273, %v2310
        %v2319 = vmul.f32 %v2275, %v2311
        %v2320 = vmul.f32 %v2277, %v2312
        %v2321 = vmul.f32 %v2279, %v2313
        %v2322 = vmul.f32 %v2281, %v2314
        %v2323 = vmul.f32 %v2283, %v2315
        %v2324 = vpack.c.bf16 %v2317, %v2316
        %v2325 = vpack.c.bf16 %v2319, %v2318
        %v2326 = vpack.c.bf16 %v2321, %v2320
        %v2327 = vpack.c.bf16 %v2323, %v2322
        %2328 = vrot.lane.b32.xlu0 %v1529, 80
        %v2329 = vpop.permute.xlu0 %2328
        %2330 = vrot.lane.b32.xlu0 %v1530, 80
        %v2331 = vpop.permute.xlu0 %2330
        %2332 = vrot.lane.b32.xlu0 %v1531, 80
        %v2333 = vpop.permute.xlu0 %2332
        %2334 = vrot.lane.b32.xlu0 %v1532, 80
        %v2335 = vpop.permute.xlu0 %2334
        %v2341 = vsel %vm783, %v2324, 0
        %v2344 = vsel %vm783, %v2325, 0
        %v2347 = vsel %vm783, %v2326, 0
        %v2350 = vsel %vm783, %v2327, 0
        %2352 = vmatpush.bf16.msra.mxu0 0
        %2353 = vmatpush.bf16.msra.mxu0 0
        %2354 = vmatpush.bf16.msra.mxu0 0
        %2355 = vmatpush.bf16.msra.mxu0 0
        %2356 = vmatpush.bf16.msra.mxu0 %v2335
        %2357 = vmatpush.bf16.msra.mxu0 %v2333
        %2358 = vmatpush.bf16.msra.mxu0 %v2331
        %2359 = vmatpush.bf16.msra.mxu0 %v2329
        %2360 = vmatmul.bf16.gmra.mxu0 %v2341
        %v2361 = vpop.f32.mrf.mxu0
        %v2362 = vadd.f32 0.0, %v2361
        %v2363 = vpop.f32.mrf.mxu0
        %v2364 = vadd.f32 0.0, %v2363
        %2365 = vmatmul.bf16.gmra.mxu0 %v2344
        %v2366 = vpop.f32.mrf.mxu0
        %v2367 = vadd.f32 0.0, %v2366
        %v2368 = vpop.f32.mrf.mxu0
        %v2369 = vadd.f32 0.0, %v2368
        %2370 = vmatmul.bf16.gmra.mxu0 %v2347
        %v2371 = vpop.f32.mrf.mxu0
        %v2372 = vadd.f32 0.0, %v2371
        %v2373 = vpop.f32.mrf.mxu0
        %v2374 = vadd.f32 0.0, %v2373
        %2375 = vmatmul.bf16.gmra.mxu0 %v2350
        %v2376 = vpop.f32.mrf.mxu0
        %v2377 = vadd.f32 0.0, %v2376
        %v2378 = vpop.f32.mrf.mxu0
        %v2379 = vadd.f32 0.0, %v2378
        %2380 = vdwg.mxu0
        %v2381 = vpack.c.bf16 %v2364, %v2362
        %v2382 = vpack.c.bf16 %v2369, %v2367
        %v2383 = vpack.c.bf16 %v2374, %v2372
        %v2384 = vpack.c.bf16 %v2379, %v2377
        %v2387 = vunpack.c.l.b16 %v1365
        %v2388 = vunpack.c.l.b16 %v1366
        %v2389 = vpack.c.b16 %v2388, %v2387
        %v2392 = vsel %vm1383, %v2381, 0
        %v2395 = vsel %vm1383, %v2382, 0
        %v2398 = vsel %vm1383, %v2383, 0
        %v2401 = vsel %vm1383, %v2384, 0
        %2403 = vmatpush.bf16.msra.mxu0 0
        %2404 = vmatpush.bf16.msra.mxu0 0
        %2405 = vmatpush.bf16.msra.mxu0 0
        %2406 = vmatpush.bf16.msra.mxu0 0
        %2407 = vmatpush.bf16.msra.mxu0 0
        %2408 = vmatpush.bf16.msra.mxu0 0
        %2409 = vmatpush.bf16.msra.mxu0 0
        %2410 = vmatpush.bf16.msra.mxu0 %v2389
        %2411 = vmatmul.bf16.gmra.mxu0 %v2392
        %v2412 = vpop.f32.mrf.mxu0
        %v2413 = vadd.f32 0.0, %v2412
        %v2414 = vpop.f32.mrf.mxu0
        %v2415 = vadd.f32 0.0, %v2414
        %2416 = vmatmul.bf16.gmra.mxu0 %v2395
        %v2417 = vpop.f32.mrf.mxu0
        %v2418 = vadd.f32 0.0, %v2417
        %v2419 = vpop.f32.mrf.mxu0
        %v2420 = vadd.f32 0.0, %v2419
        %2421 = vmatmul.bf16.gmra.mxu0 %v2398
        %v2422 = vpop.f32.mrf.mxu0
        %v2423 = vadd.f32 0.0, %v2422
        %v2424 = vpop.f32.mrf.mxu0
        %v2425 = vadd.f32 0.0, %v2424
        %2426 = vmatmul.bf16.gmra.mxu0 %v2401
        %v2427 = vpop.f32.mrf.mxu0
        %v2428 = vadd.f32 0.0, %v2427
        %v2429 = vpop.f32.mrf.mxu0
        %v2430 = vadd.f32 0.0, %v2429
        %2431 = vdwg.mxu0
        %v2432 = vadd.f32 %v2159, %v2413
        %v2433 = vadd.f32 %v2160, %v2415
        %v2434 = vadd.f32 %v2161, %v2418
        %v2435 = vadd.f32 %v2162, %v2420
        %v2436 = vadd.f32 %v2163, %v2423
        %v2437 = vadd.f32 %v2164, %v2425
        %v2438 = vadd.f32 %v2165, %v2428
        %v2439 = vadd.f32 %v2166, %v2430
        %2440 = vst.msk [vmem:[#allocation3] sm:$0xff] %vm783, %v2432
        %2441 = vst.msk [vmem:[#allocation3 + $0x8] sm:$0xff] %vm783, %v2433
        %2442 = vst.msk [vmem:[#allocation3 + $0x10] sm:$0xff] %vm783, %v2434
        %2443 = vst.msk [vmem:[#allocation3 + $0x18] sm:$0xff] %vm783, %v2435
        %2444 = vst.msk [vmem:[#allocation3 + $0x20] sm:$0xff] %vm783, %v2436
        %2445 = vst.msk [vmem:[#allocation3 + $0x28] sm:$0xff] %vm783, %v2437
        %2446 = vst.msk [vmem:[#allocation3 + $0x30] sm:$0xff] %vm783, %v2438
        %2447 = vst.msk [vmem:[#allocation3 + $0x38] sm:$0xff] %vm783, %v2439
        %v2448 = vpack.c.bf16 %v1293, %v1291
        %v2449 = vpack.c.bf16 %v1298, %v1296
        %v2450 = vpack.c.bf16 %v1303, %v1301
        %v2451 = vpack.c.bf16 %v1308, %v1306
        %2456 = vrot.lane.b32.xlu0 %v2448, 64
        %v2457 = vpop.permute.xlu0 %2456
        %2458 = vrot.lane.b32.xlu0 %v2449, 64
        %v2459 = vpop.permute.xlu0 %2458
        %2460 = vrot.lane.b32.xlu0 %v2450, 64
        %v2461 = vpop.permute.xlu0 %2460
        %2462 = vrot.lane.b32.xlu0 %v2451, 64
        %v2463 = vpop.permute.xlu0 %2462
        %v2465 = vsel %vm1383, %v2448, 0
        %v2468 = vsel %vm1383, %v2449, 0
        %v2471 = vsel %vm1383, %v2450, 0
        %v2474 = vsel %vm1383, %v2451, 0
        %v2477 = vsel %vm1383, %v2457, 0
        %v2480 = vsel %vm1383, %v2459, 0
        %v2483 = vsel %vm1383, %v2461, 0
        %v2486 = vsel %vm1383, %v2463, 0
        %2488 = vmatpush.bf16.xpose.msra.mxu0 0
        %2489 = vmatpush.bf16.xpose.msra.mxu0 0
        %2490 = vmatpush.bf16.xpose.msra.mxu0 0
        %2491 = vmatpush.bf16.xpose.msra.mxu0 0
        %2492 = vmatpush.bf16.xpose.msra.mxu0 %v2486
        %2493 = vmatpush.bf16.xpose.msra.mxu0 %v2483
        %2494 = vmatpush.bf16.xpose.msra.mxu0 %v2480
        %2495 = vmatpush.bf16.xpose.msra.mxu0 %v2477
        %2496 = vmatmul.bf16.gmra.mxu0 %v2465
        %v2497 = vpop.f32.mrf.mxu0
        %v2498 = vadd.f32 0.0, %v2497
        %v2499 = vpop.f32.mrf.mxu0
        %v2500 = vadd.f32 0.0, %v2499
        %2501 = vmatmul.bf16.gmra.mxu0 %v2468
        %v2502 = vpop.f32.mrf.mxu0
        %v2503 = vadd.f32 0.0, %v2502
        %v2504 = vpop.f32.mrf.mxu0
        %v2505 = vadd.f32 0.0, %v2504
        %2506 = vmatmul.bf16.gmra.mxu0 %v2471
        %v2507 = vpop.f32.mrf.mxu0
        %v2508 = vadd.f32 0.0, %v2507
        %v2509 = vpop.f32.mrf.mxu0
        %v2510 = vadd.f32 0.0, %v2509
        %2511 = vmatmul.bf16.gmra.mxu0 %v2474
        %v2512 = vpop.f32.mrf.mxu0
        %v2513 = vadd.f32 0.0, %v2512
        %v2514 = vpop.f32.mrf.mxu0
        %v2515 = vadd.f32 0.0, %v2514
        %2516 = vdwg.mxu0
        %v2517 = vsel %vm783, %v2498, -inf
        %2518 = vmax.xlane.f32.xlu0 %v2517
        %v2519 = vpop.xlane.xlu0 %2518
        %v2520 = vsel %vm783, %v2500, -inf
        %2521 = vmax.xlane.f32.xlu0 %v2520
        %v2522 = vpop.xlane.xlu0 %2521
        %v2523 = vsel %vm783, %v2503, -inf
        %2524 = vmax.xlane.f32.xlu0 %v2523
        %v2525 = vpop.xlane.xlu0 %2524
        %v2526 = vsel %vm783, %v2505, -inf
        %2527 = vmax.xlane.f32.xlu0 %v2526
        %v2528 = vpop.xlane.xlu0 %2527
        %v2529 = vsel %vm783, %v2508, -inf
        %2530 = vmax.xlane.f32.xlu0 %v2529
        %v2531 = vpop.xlane.xlu0 %2530
        %v2532 = vsel %vm783, %v2510, -inf
        %2533 = vmax.xlane.f32.xlu0 %v2532
        %v2534 = vpop.xlane.xlu0 %2533
        %v2535 = vsel %vm783, %v2513, -inf
        %2536 = vmax.xlane.f32.xlu0 %v2535
        %v2537 = vpop.xlane.xlu0 %2536
        %v2538 = vsel %vm783, %v2515, -inf
        %2539 = vmax.xlane.f32.xlu0 %v2538
        %v2540 = vpop.xlane.xlu0 %2539
        %v2541 = vsub.f32 %v2498, %v2519
        %v2542 = vsub.f32 %v2500, %v2522
        %v2543 = vsub.f32 %v2503, %v2525
        %v2544 = vsub.f32 %v2505, %v2528
        %v2545 = vsub.f32 %v2508, %v2531
        %v2546 = vsub.f32 %v2510, %v2534
        %v2547 = vsub.f32 %v2513, %v2537
        %v2548 = vsub.f32 %v2515, %v2540
        %v2549 = vmul.f32 %v2541, 1.442695
        %v2550 = vpow.pop %v2549
        %v2551 = vmul.f32 %v2542, 1.442695
        %v2552 = vpow.pop %v2551
        %v2553 = vmul.f32 %v2543, 1.442695
        %v2554 = vpow.pop %v2553
        %v2555 = vmul.f32 %v2544, 1.442695
        %v2556 = vpow.pop %v2555
        %v2557 = vmul.f32 %v2545, 1.442695
        %v2558 = vpow.pop %v2557
        %v2559 = vmul.f32 %v2546, 1.442695
        %v2560 = vpow.pop %v2559
        %v2561 = vmul.f32 %v2547, 1.442695
        %v2562 = vpow.pop %v2561
        %v2563 = vmul.f32 %v2548, 1.442695
        %v2564 = vpow.pop %v2563
        %v2565 = vsel %vm783, %v2550, 0.0
        %2566 = vadd.xlane.f32.xlu0 %v2565
        %v2567 = vpop.xlane.xlu0 %2566
        %v2568 = vsel %vm783, %v2552, 0.0
        %2569 = vadd.xlane.f32.xlu0 %v2568
        %v2570 = vpop.xlane.xlu0 %2569
        %v2571 = vsel %vm783, %v2554, 0.0
        %2572 = vadd.xlane.f32.xlu0 %v2571
        %v2573 = vpop.xlane.xlu0 %2572
        %v2574 = vsel %vm783, %v2556, 0.0
        %2575 = vadd.xlane.f32.xlu0 %v2574
        %v2576 = vpop.xlane.xlu0 %2575
        %v2577 = vsel %vm783, %v2558, 0.0
        %2578 = vadd.xlane.f32.xlu0 %v2577
        %v2579 = vpop.xlane.xlu0 %2578
        %v2580 = vsel %vm783, %v2560, 0.0
        %2581 = vadd.xlane.f32.xlu0 %v2580
        %v2582 = vpop.xlane.xlu0 %2581
        %v2583 = vsel %vm783, %v2562, 0.0
        %2584 = vadd.xlane.f32.xlu0 %v2583
        %v2585 = vpop.xlane.xlu0 %2584
        %v2586 = vsel %vm783, %v2564, 0.0
        %2587 = vadd.xlane.f32.xlu0 %v2586
        %v2588 = vpop.xlane.xlu0 %2587
        %v2589 = vrcp.pop %v2567
        %v2590 = vrcp.pop %v2570
        %v2591 = vrcp.pop %v2573
        %v2592 = vrcp.pop %v2576
        %v2593 = vrcp.pop %v2579
        %v2594 = vrcp.pop %v2582
        %v2595 = vrcp.pop %v2585
        %v2596 = vrcp.pop %v2588
        %v2597 = vmul.f32 %v2550, %v2589
        %v2598 = vmul.f32 %v2552, %v2590
        %v2599 = vmul.f32 %v2554, %v2591
        %v2600 = vmul.f32 %v2556, %v2592
        %v2601 = vmul.f32 %v2558, %v2593
        %v2602 = vmul.f32 %v2560, %v2594
        %v2603 = vmul.f32 %v2562, %v2595
        %v2604 = vmul.f32 %v2564, %v2596
        %v2605 = vpack.c.bf16 %v2598, %v2597
        %v2606 = vpack.c.bf16 %v2600, %v2599
        %v2607 = vpack.c.bf16 %v2602, %v2601
        %v2608 = vpack.c.bf16 %v2604, %v2603
        %v2609 = vpack.c.bf16 %v1342, %v1340
        %v2610 = vpack.c.bf16 %v1347, %v1345
        %v2611 = vpack.c.bf16 %v1352, %v1350
        %v2612 = vpack.c.bf16 %v1357, %v1355
        %v2614 = vsel %vm783, %v2605, 0
        %v2617 = vsel %vm783, %v2606, 0
        %v2620 = vsel %vm783, %v2607, 0
        %v2623 = vsel %vm783, %v2608, 0
        %2625 = vmatpush.bf16.msra.mxu0 0
        %2626 = vmatpush.bf16.msra.mxu0 0
        %2627 = vmatpush.bf16.msra.mxu0 0
        %2628 = vmatpush.bf16.msra.mxu0 0
        %2629 = vmatpush.bf16.msra.mxu0 %v2612
        %2630 = vmatpush.bf16.msra.mxu0 %v2611
        %2631 = vmatpush.bf16.msra.mxu0 %v2610
        %2632 = vmatpush.bf16.msra.mxu0 %v2609
        %2633 = vmatmul.bf16.gmra.mxu0 %v2614
        %v2634 = vpop.f32.mrf.mxu0
        %v2635 = vadd.f32 0.0, %v2634
        %v2636 = vpop.f32.mrf.mxu0
        %v2637 = vadd.f32 0.0, %v2636
        %2638 = vmatmul.bf16.gmra.mxu0 %v2617
        %v2639 = vpop.f32.mrf.mxu0
        %v2640 = vadd.f32 0.0, %v2639
        %v2641 = vpop.f32.mrf.mxu0
        %v2642 = vadd.f32 0.0, %v2641
        %2643 = vmatmul.bf16.gmra.mxu0 %v2620
        %v2644 = vpop.f32.mrf.mxu0
        %v2645 = vadd.f32 0.0, %v2644
        %v2646 = vpop.f32.mrf.mxu0
        %v2647 = vadd.f32 0.0, %v2646
        %2648 = vmatmul.bf16.gmra.mxu0 %v2623
        %v2649 = vpop.f32.mrf.mxu0
        %v2650 = vadd.f32 0.0, %v2649
        %v2651 = vpop.f32.mrf.mxu0
        %v2652 = vadd.f32 0.0, %v2651
        %2653 = vdwg.mxu0
        %v2654 = vpack.c.bf16 %v2637, %v2635
        %v2655 = vpack.c.bf16 %v2642, %v2640
        %v2656 = vpack.c.bf16 %v2647, %v2645
        %v2657 = vpack.c.bf16 %v2652, %v2650
        %2658 = vrot.lane.b32.xlu0 %v2448, 112
        %v2659 = vpop.permute.xlu0 %2658
        %2660 = vrot.lane.b32.xlu0 %v2449, 112
        %v2661 = vpop.permute.xlu0 %2660
        %2662 = vrot.lane.b32.xlu0 %v2450, 112
        %v2663 = vpop.permute.xlu0 %2662
        %2664 = vrot.lane.b32.xlu0 %v2451, 112
        %v2665 = vpop.permute.xlu0 %2664
        %2666 = vrot.lane.b32.xlu0 %v2448, 48
        %v2667 = vpop.permute.xlu0 %2666
        %2668 = vrot.lane.b32.xlu0 %v2449, 48
        %v2669 = vpop.permute.xlu0 %2668
        %2670 = vrot.lane.b32.xlu0 %v2450, 48
        %v2671 = vpop.permute.xlu0 %2670
        %2672 = vrot.lane.b32.xlu0 %v2451, 48
        %v2673 = vpop.permute.xlu0 %2672
        %v2675 = vsel %vm1383, %v2659, 0
        %v2678 = vsel %vm1383, %v2661, 0
        %v2681 = vsel %vm1383, %v2663, 0
        %v2684 = vsel %vm1383, %v2665, 0
        %v2687 = vsel %vm1383, %v2667, 0
        %v2690 = vsel %vm1383, %v2669, 0
        %v2693 = vsel %vm1383, %v2671, 0
        %v2696 = vsel %vm1383, %v2673, 0
        %2698 = vmatpush.bf16.xpose.msra.mxu0 0
        %2699 = vmatpush.bf16.xpose.msra.mxu0 0
        %2700 = vmatpush.bf16.xpose.msra.mxu0 0
        %2701 = vmatpush.bf16.xpose.msra.mxu0 0
        %2702 = vmatpush.bf16.xpose.msra.mxu0 %v2696
        %2703 = vmatpush.bf16.xpose.msra.mxu0 %v2693
        %2704 = vmatpush.bf16.xpose.msra.mxu0 %v2690
        %2705 = vmatpush.bf16.xpose.msra.mxu0 %v2687
        %2706 = vmatmul.bf16.gmra.mxu0 %v2675
        %v2707 = vpop.f32.mrf.mxu0
        %v2708 = vadd.f32 0.0, %v2707
        %v2709 = vpop.f32.mrf.mxu0
        %v2710 = vadd.f32 0.0, %v2709
        %2711 = vmatmul.bf16.gmra.mxu0 %v2678
        %v2712 = vpop.f32.mrf.mxu0
        %v2713 = vadd.f32 0.0, %v2712
        %v2714 = vpop.f32.mrf.mxu0
        %v2715 = vadd.f32 0.0, %v2714
        %2716 = vmatmul.bf16.gmra.mxu0 %v2681
        %v2717 = vpop.f32.mrf.mxu0
        %v2718 = vadd.f32 0.0, %v2717
        %v2719 = vpop.f32.mrf.mxu0
        %v2720 = vadd.f32 0.0, %v2719
        %2721 = vmatmul.bf16.gmra.mxu0 %v2684
        %v2722 = vpop.f32.mrf.mxu0
        %v2723 = vadd.f32 0.0, %v2722
        %v2724 = vpop.f32.mrf.mxu0
        %v2725 = vadd.f32 0.0, %v2724
        %2726 = vdwg.mxu0
        %v2727 = vsel %vm783, %v2708, -inf
        %2728 = vmax.xlane.f32.xlu0 %v2727
        %v2729 = vpop.xlane.xlu0 %2728
        %v2730 = vsel %vm783, %v2710, -inf
        %2731 = vmax.xlane.f32.xlu0 %v2730
        %v2732 = vpop.xlane.xlu0 %2731
        %v2733 = vsel %vm783, %v2713, -inf
        %2734 = vmax.xlane.f32.xlu0 %v2733
        %v2735 = vpop.xlane.xlu0 %2734
        %v2736 = vsel %vm783, %v2715, -inf
        %2737 = vmax.xlane.f32.xlu0 %v2736
        %v2738 = vpop.xlane.xlu0 %2737
        %v2739 = vsel %vm783, %v2718, -inf
        %2740 = vmax.xlane.f32.xlu0 %v2739
        %v2741 = vpop.xlane.xlu0 %2740
        %v2742 = vsel %vm783, %v2720, -inf
        %2743 = vmax.xlane.f32.xlu0 %v2742
        %v2744 = vpop.xlane.xlu0 %2743
        %v2745 = vsel %vm783, %v2723, -inf
        %2746 = vmax.xlane.f32.xlu0 %v2745
        %v2747 = vpop.xlane.xlu0 %2746
        %v2748 = vsel %vm783, %v2725, -inf
        %2749 = vmax.xlane.f32.xlu0 %v2748
        %v2750 = vpop.xlane.xlu0 %2749
        %v2751 = vsub.f32 %v2708, %v2729
        %v2752 = vsub.f32 %v2710, %v2732
        %v2753 = vsub.f32 %v2713, %v2735
        %v2754 = vsub.f32 %v2715, %v2738
        %v2755 = vsub.f32 %v2718, %v2741
        %v2756 = vsub.f32 %v2720, %v2744
        %v2757 = vsub.f32 %v2723, %v2747
        %v2758 = vsub.f32 %v2725, %v2750
        %v2759 = vmul.f32 %v2751, 1.442695
        %v2760 = vpow.pop %v2759
        %v2761 = vmul.f32 %v2752, 1.442695
        %v2762 = vpow.pop %v2761
        %v2763 = vmul.f32 %v2753, 1.442695
        %v2764 = vpow.pop %v2763
        %v2765 = vmul.f32 %v2754, 1.442695
        %v2766 = vpow.pop %v2765
        %v2767 = vmul.f32 %v2755, 1.442695
        %v2768 = vpow.pop %v2767
        %v2769 = vmul.f32 %v2756, 1.442695
        %v2770 = vpow.pop %v2769
        %v2771 = vmul.f32 %v2757, 1.442695
        %v2772 = vpow.pop %v2771
        %v2773 = vmul.f32 %v2758, 1.442695
        %v2774 = vpow.pop %v2773
        %v2775 = vsel %vm783, %v2760, 0.0
        %2776 = vadd.xlane.f32.xlu0 %v2775
        %v2777 = vpop.xlane.xlu0 %2776
        %v2778 = vsel %vm783, %v2762, 0.0
        %2779 = vadd.xlane.f32.xlu0 %v2778
        %v2780 = vpop.xlane.xlu0 %2779
        %v2781 = vsel %vm783, %v2764, 0.0
        %2782 = vadd.xlane.f32.xlu0 %v2781
        %v2783 = vpop.xlane.xlu0 %2782
        %v2784 = vsel %vm783, %v2766, 0.0
        %2785 = vadd.xlane.f32.xlu0 %v2784
        %v2786 = vpop.xlane.xlu0 %2785
        %v2787 = vsel %vm783, %v2768, 0.0
        %2788 = vadd.xlane.f32.xlu0 %v2787
        %v2789 = vpop.xlane.xlu0 %2788
        %v2790 = vsel %vm783, %v2770, 0.0
        %2791 = vadd.xlane.f32.xlu0 %v2790
        %v2792 = vpop.xlane.xlu0 %2791
        %v2793 = vsel %vm783, %v2772, 0.0
        %2794 = vadd.xlane.f32.xlu0 %v2793
        %v2795 = vpop.xlane.xlu0 %2794
        %v2796 = vsel %vm783, %v2774, 0.0
        %2797 = vadd.xlane.f32.xlu0 %v2796
        %v2798 = vpop.xlane.xlu0 %2797
        %v2799 = vrcp.pop %v2777
        %v2800 = vrcp.pop %v2780
        %v2801 = vrcp.pop %v2783
        %v2802 = vrcp.pop %v2786
        %v2803 = vrcp.pop %v2789
        %v2804 = vrcp.pop %v2792
        %v2805 = vrcp.pop %v2795
        %v2806 = vrcp.pop %v2798
        %v2807 = vmul.f32 %v2760, %v2799
        %v2808 = vmul.f32 %v2762, %v2800
        %v2809 = vmul.f32 %v2764, %v2801
        %v2810 = vmul.f32 %v2766, %v2802
        %v2811 = vmul.f32 %v2768, %v2803
        %v2812 = vmul.f32 %v2770, %v2804
        %v2813 = vmul.f32 %v2772, %v2805
        %v2814 = vmul.f32 %v2774, %v2806
        %v2815 = vpack.c.bf16 %v2808, %v2807
        %v2816 = vpack.c.bf16 %v2810, %v2809
        %v2817 = vpack.c.bf16 %v2812, %v2811
        %v2818 = vpack.c.bf16 %v2814, %v2813
        %2823 = vrot.lane.b32.xlu0 %v2609, 112
        %v2824 = vpop.permute.xlu0 %2823
        %2825 = vrot.lane.b32.xlu0 %v2610, 112
        %v2826 = vpop.permute.xlu0 %2825
        %2827 = vrot.lane.b32.xlu0 %v2611, 112
        %v2828 = vpop.permute.xlu0 %2827
        %2829 = vrot.lane.b32.xlu0 %v2612, 112
        %v2830 = vpop.permute.xlu0 %2829
        %v2836 = vsel %vm783, %v2815, 0
        %v2839 = vsel %vm783, %v2816, 0
        %v2842 = vsel %vm783, %v2817, 0
        %v2845 = vsel %vm783, %v2818, 0
        %2847 = vmatpush.bf16.msra.mxu0 0
        %2848 = vmatpush.bf16.msra.mxu0 0
        %2849 = vmatpush.bf16.msra.mxu0 0
        %2850 = vmatpush.bf16.msra.mxu0 0
        %2851 = vmatpush.bf16.msra.mxu0 %v2830
        %2852 = vmatpush.bf16.msra.mxu0 %v2828
        %2853 = vmatpush.bf16.msra.mxu0 %v2826
        %2854 = vmatpush.bf16.msra.mxu0 %v2824
        %2855 = vmatmul.bf16.gmra.mxu0 %v2836
        %v2856 = vpop.f32.mrf.mxu0
        %v2857 = vadd.f32 0.0, %v2856
        %v2858 = vpop.f32.mrf.mxu0
        %v2859 = vadd.f32 0.0, %v2858
        %2860 = vmatmul.bf16.gmra.mxu0 %v2839
        %v2861 = vpop.f32.mrf.mxu0
        %v2862 = vadd.f32 0.0, %v2861
        %v2863 = vpop.f32.mrf.mxu0
        %v2864 = vadd.f32 0.0, %v2863
        %2865 = vmatmul.bf16.gmra.mxu0 %v2842
        %v2866 = vpop.f32.mrf.mxu0
        %v2867 = vadd.f32 0.0, %v2866
        %v2868 = vpop.f32.mrf.mxu0
        %v2869 = vadd.f32 0.0, %v2868
        %2870 = vmatmul.bf16.gmra.mxu0 %v2845
        %v2871 = vpop.f32.mrf.mxu0
        %v2872 = vadd.f32 0.0, %v2871
        %v2873 = vpop.f32.mrf.mxu0
        %v2874 = vadd.f32 0.0, %v2873
        %2875 = vdwg.mxu0
        %v2876 = vpack.c.bf16 %v2859, %v2857
        %v2877 = vpack.c.bf16 %v2864, %v2862
        %v2878 = vpack.c.bf16 %v2869, %v2867
        %v2879 = vpack.c.bf16 %v2874, %v2872
        %v2881 = vsel %vm1383, %v2876, 0
        %v2884 = vsel %vm1383, %v2877, 0
        %v2887 = vsel %vm1383, %v2878, 0
        %v2890 = vsel %vm1383, %v2879, 0
        %2892 = vmatpush.bf16.msra.mxu0 0
        %2893 = vmatpush.bf16.msra.mxu0 0
        %2894 = vmatpush.bf16.msra.mxu0 0
        %2895 = vmatpush.bf16.msra.mxu0 0
        %2896 = vmatpush.bf16.msra.mxu0 0
        %2897 = vmatpush.bf16.msra.mxu0 0
        %2898 = vmatpush.bf16.msra.mxu0 0
        %2899 = vmatpush.bf16.msra.mxu0 %v1804
        %2900 = vmatmul.bf16.gmra.mxu0 %v2881
        %v2901 = vpop.f32.mrf.mxu0
        %v2902 = vadd.f32 0.0, %v2901
        %v2903 = vpop.f32.mrf.mxu0
        %v2904 = vadd.f32 0.0, %v2903
        %2905 = vmatmul.bf16.gmra.mxu0 %v2884
        %v2906 = vpop.f32.mrf.mxu0
        %v2907 = vadd.f32 0.0, %v2906
        %v2908 = vpop.f32.mrf.mxu0
        %v2909 = vadd.f32 0.0, %v2908
        %2910 = vmatmul.bf16.gmra.mxu0 %v2887
        %v2911 = vpop.f32.mrf.mxu0
        %v2912 = vadd.f32 0.0, %v2911
        %v2913 = vpop.f32.mrf.mxu0
        %v2914 = vadd.f32 0.0, %v2913
        %2915 = vmatmul.bf16.gmra.mxu0 %v2890
        %v2916 = vpop.f32.mrf.mxu0
        %v2917 = vadd.f32 0.0, %v2916
        %v2918 = vpop.f32.mrf.mxu0
        %v2919 = vadd.f32 0.0, %v2918
        %2920 = vdwg.mxu0
        %v2922 = vsel %vm1383, %v2654, 0
        %v2925 = vsel %vm1383, %v2655, 0
        %v2928 = vsel %vm1383, %v2656, 0
        %v2931 = vsel %vm1383, %v2657, 0
        %2933 = vmatpush.bf16.msra.mxu0 0
        %2934 = vmatpush.bf16.msra.mxu0 0
        %2935 = vmatpush.bf16.msra.mxu0 0
        %2936 = vmatpush.bf16.msra.mxu0 0
        %2937 = vmatpush.bf16.msra.mxu0 0
        %2938 = vmatpush.bf16.msra.mxu0 0
        %2939 = vmatpush.bf16.msra.mxu0 0
        %2940 = vmatpush.bf16.msra.mxu0 %v1851
        %2941 = vmatmul.bf16.gmra.mxu0 %v2922
        %v2942 = vpop.f32.mrf.mxu0
        %v2943 = vadd.f32 %v2902, %v2942
        %v2944 = vpop.f32.mrf.mxu0
        %v2945 = vadd.f32 %v2904, %v2944
        %2946 = vmatmul.bf16.gmra.mxu0 %v2925
        %v2947 = vpop.f32.mrf.mxu0
        %v2948 = vadd.f32 %v2907, %v2947
        %v2949 = vpop.f32.mrf.mxu0
        %v2950 = vadd.f32 %v2909, %v2949
        %2951 = vmatmul.bf16.gmra.mxu0 %v2928
        %v2952 = vpop.f32.mrf.mxu0
        %v2953 = vadd.f32 %v2912, %v2952
        %v2954 = vpop.f32.mrf.mxu0
        %v2955 = vadd.f32 %v2914, %v2954
        %2956 = vmatmul.bf16.gmra.mxu0 %v2931
        %v2957 = vpop.f32.mrf.mxu0
        %v2958 = vadd.f32 %v2917, %v2957
        %v2959 = vpop.f32.mrf.mxu0
        %v2960 = vadd.f32 %v2919, %v2959
        %2961 = vdwg.mxu0
        %2962 = vrot.lane.b32.xlu0 %v2448, 96
        %v2963 = vpop.permute.xlu0 %2962
        %2964 = vrot.lane.b32.xlu0 %v2449, 96
        %v2965 = vpop.permute.xlu0 %2964
        %2966 = vrot.lane.b32.xlu0 %v2450, 96
        %v2967 = vpop.permute.xlu0 %2966
        %2968 = vrot.lane.b32.xlu0 %v2451, 96
        %v2969 = vpop.permute.xlu0 %2968
        %2970 = vrot.lane.b32.xlu0 %v2448, 32
        %v2971 = vpop.permute.xlu0 %2970
        %2972 = vrot.lane.b32.xlu0 %v2449, 32
        %v2973 = vpop.permute.xlu0 %2972
        %2974 = vrot.lane.b32.xlu0 %v2450, 32
        %v2975 = vpop.permute.xlu0 %2974
        %2976 = vrot.lane.b32.xlu0 %v2451, 32
        %v2977 = vpop.permute.xlu0 %2976
        %v2979 = vsel %vm1383, %v2963, 0
        %v2982 = vsel %vm1383, %v2965, 0
        %v2985 = vsel %vm1383, %v2967, 0
        %v2988 = vsel %vm1383, %v2969, 0
        %v2991 = vsel %vm1383, %v2971, 0
        %v2994 = vsel %vm1383, %v2973, 0
        %v2997 = vsel %vm1383, %v2975, 0
        %v3000 = vsel %vm1383, %v2977, 0
        %3002 = vmatpush.bf16.xpose.msra.mxu0 0
        %3003 = vmatpush.bf16.xpose.msra.mxu0 0
        %3004 = vmatpush.bf16.xpose.msra.mxu0 0
        %3005 = vmatpush.bf16.xpose.msra.mxu0 0
        %3006 = vmatpush.bf16.xpose.msra.mxu0 %v3000
        %3007 = vmatpush.bf16.xpose.msra.mxu0 %v2997
        %3008 = vmatpush.bf16.xpose.msra.mxu0 %v2994
        %3009 = vmatpush.bf16.xpose.msra.mxu0 %v2991
        %3010 = vmatmul.bf16.gmra.mxu0 %v2979
        %v3011 = vpop.f32.mrf.mxu0
        %v3012 = vadd.f32 0.0, %v3011
        %v3013 = vpop.f32.mrf.mxu0
        %v3014 = vadd.f32 0.0, %v3013
        %3015 = vmatmul.bf16.gmra.mxu0 %v2982
        %v3016 = vpop.f32.mrf.mxu0
        %v3017 = vadd.f32 0.0, %v3016
        %v3018 = vpop.f32.mrf.mxu0
        %v3019 = vadd.f32 0.0, %v3018
        %3020 = vmatmul.bf16.gmra.mxu0 %v2985
        %v3021 = vpop.f32.mrf.mxu0
        %v3022 = vadd.f32 0.0, %v3021
        %v3023 = vpop.f32.mrf.mxu0
        %v3024 = vadd.f32 0.0, %v3023
        %3025 = vmatmul.bf16.gmra.mxu0 %v2988
        %v3026 = vpop.f32.mrf.mxu0
        %v3027 = vadd.f32 0.0, %v3026
        %v3028 = vpop.f32.mrf.mxu0
        %v3029 = vadd.f32 0.0, %v3028
        %3030 = vdwg.mxu0
        %v3031 = vsel %vm783, %v3012, -inf
        %3032 = vmax.xlane.f32.xlu0 %v3031
        %v3033 = vpop.xlane.xlu0 %3032
        %v3034 = vsel %vm783, %v3014, -inf
        %3035 = vmax.xlane.f32.xlu0 %v3034
        %v3036 = vpop.xlane.xlu0 %3035
        %v3037 = vsel %vm783, %v3017, -inf
        %3038 = vmax.xlane.f32.xlu0 %v3037
        %v3039 = vpop.xlane.xlu0 %3038
        %v3040 = vsel %vm783, %v3019, -inf
        %3041 = vmax.xlane.f32.xlu0 %v3040
        %v3042 = vpop.xlane.xlu0 %3041
        %v3043 = vsel %vm783, %v3022, -inf
        %3044 = vmax.xlane.f32.xlu0 %v3043
        %v3045 = vpop.xlane.xlu0 %3044
        %v3046 = vsel %vm783, %v3024, -inf
        %3047 = vmax.xlane.f32.xlu0 %v3046
        %v3048 = vpop.xlane.xlu0 %3047
        %v3049 = vsel %vm783, %v3027, -inf
        %3050 = vmax.xlane.f32.xlu0 %v3049
        %v3051 = vpop.xlane.xlu0 %3050
        %v3052 = vsel %vm783, %v3029, -inf
        %3053 = vmax.xlane.f32.xlu0 %v3052
        %v3054 = vpop.xlane.xlu0 %3053
        %v3055 = vsub.f32 %v3012, %v3033
        %v3056 = vsub.f32 %v3014, %v3036
        %v3057 = vsub.f32 %v3017, %v3039
        %v3058 = vsub.f32 %v3019, %v3042
        %v3059 = vsub.f32 %v3022, %v3045
        %v3060 = vsub.f32 %v3024, %v3048
        %v3061 = vsub.f32 %v3027, %v3051
        %v3062 = vsub.f32 %v3029, %v3054
        %v3063 = vmul.f32 %v3055, 1.442695
        %v3064 = vpow.pop %v3063
        %v3065 = vmul.f32 %v3056, 1.442695
        %v3066 = vpow.pop %v3065
        %v3067 = vmul.f32 %v3057, 1.442695
        %v3068 = vpow.pop %v3067
        %v3069 = vmul.f32 %v3058, 1.442695
        %v3070 = vpow.pop %v3069
        %v3071 = vmul.f32 %v3059, 1.442695
        %v3072 = vpow.pop %v3071
        %v3073 = vmul.f32 %v3060, 1.442695
        %v3074 = vpow.pop %v3073
        %v3075 = vmul.f32 %v3061, 1.442695
        %v3076 = vpow.pop %v3075
        %v3077 = vmul.f32 %v3062, 1.442695
        %v3078 = vpow.pop %v3077
        %v3079 = vsel %vm783, %v3064, 0.0
        %3080 = vadd.xlane.f32.xlu0 %v3079
        %v3081 = vpop.xlane.xlu0 %3080
        %v3082 = vsel %vm783, %v3066, 0.0
        %3083 = vadd.xlane.f32.xlu0 %v3082
        %v3084 = vpop.xlane.xlu0 %3083
        %v3085 = vsel %vm783, %v3068, 0.0
        %3086 = vadd.xlane.f32.xlu0 %v3085
        %v3087 = vpop.xlane.xlu0 %3086
        %v3088 = vsel %vm783, %v3070, 0.0
        %3089 = vadd.xlane.f32.xlu0 %v3088
        %v3090 = vpop.xlane.xlu0 %3089
        %v3091 = vsel %vm783, %v3072, 0.0
        %3092 = vadd.xlane.f32.xlu0 %v3091
        %v3093 = vpop.xlane.xlu0 %3092
        %v3094 = vsel %vm783, %v3074, 0.0
        %3095 = vadd.xlane.f32.xlu0 %v3094
        %v3096 = vpop.xlane.xlu0 %3095
        %v3097 = vsel %vm783, %v3076, 0.0
        %3098 = vadd.xlane.f32.xlu0 %v3097
        %v3099 = vpop.xlane.xlu0 %3098
        %v3100 = vsel %vm783, %v3078, 0.0
        %3101 = vadd.xlane.f32.xlu0 %v3100
        %v3102 = vpop.xlane.xlu0 %3101
        %v3103 = vrcp.pop %v3081
        %v3104 = vrcp.pop %v3084
        %v3105 = vrcp.pop %v3087
        %v3106 = vrcp.pop %v3090
        %v3107 = vrcp.pop %v3093
        %v3108 = vrcp.pop %v3096
        %v3109 = vrcp.pop %v3099
        %v3110 = vrcp.pop %v3102
        %v3111 = vmul.f32 %v3064, %v3103
        %v3112 = vmul.f32 %v3066, %v3104
        %v3113 = vmul.f32 %v3068, %v3105
        %v3114 = vmul.f32 %v3070, %v3106
        %v3115 = vmul.f32 %v3072, %v3107
        %v3116 = vmul.f32 %v3074, %v3108
        %v3117 = vmul.f32 %v3076, %v3109
        %v3118 = vmul.f32 %v3078, %v3110
        %v3119 = vpack.c.bf16 %v3112, %v3111
        %v3120 = vpack.c.bf16 %v3114, %v3113
        %v3121 = vpack.c.bf16 %v3116, %v3115
        %v3122 = vpack.c.bf16 %v3118, %v3117
        %3123 = vrot.lane.b32.xlu0 %v2609, 96
        %v3124 = vpop.permute.xlu0 %3123
        %3125 = vrot.lane.b32.xlu0 %v2610, 96
        %v3126 = vpop.permute.xlu0 %3125
        %3127 = vrot.lane.b32.xlu0 %v2611, 96
        %v3128 = vpop.permute.xlu0 %3127
        %3129 = vrot.lane.b32.xlu0 %v2612, 96
        %v3130 = vpop.permute.xlu0 %3129
        %v3136 = vsel %vm783, %v3119, 0
        %v3139 = vsel %vm783, %v3120, 0
        %v3142 = vsel %vm783, %v3121, 0
        %v3145 = vsel %vm783, %v3122, 0
        %3147 = vmatpush.bf16.msra.mxu0 0
        %3148 = vmatpush.bf16.msra.mxu0 0
        %3149 = vmatpush.bf16.msra.mxu0 0
        %3150 = vmatpush.bf16.msra.mxu0 0
        %3151 = vmatpush.bf16.msra.mxu0 %v3130
        %3152 = vmatpush.bf16.msra.mxu0 %v3128
        %3153 = vmatpush.bf16.msra.mxu0 %v3126
        %3154 = vmatpush.bf16.msra.mxu0 %v3124
        %3155 = vmatmul.bf16.gmra.mxu0 %v3136
        %v3156 = vpop.f32.mrf.mxu0
        %v3157 = vadd.f32 0.0, %v3156
        %v3158 = vpop.f32.mrf.mxu0
        %v3159 = vadd.f32 0.0, %v3158
        %3160 = vmatmul.bf16.gmra.mxu0 %v3139
        %v3161 = vpop.f32.mrf.mxu0
        %v3162 = vadd.f32 0.0, %v3161
        %v3163 = vpop.f32.mrf.mxu0
        %v3164 = vadd.f32 0.0, %v3163
        %3165 = vmatmul.bf16.gmra.mxu0 %v3142
        %v3166 = vpop.f32.mrf.mxu0
        %v3167 = vadd.f32 0.0, %v3166
        %v3168 = vpop.f32.mrf.mxu0
        %v3169 = vadd.f32 0.0, %v3168
        %3170 = vmatmul.bf16.gmra.mxu0 %v3145
        %v3171 = vpop.f32.mrf.mxu0
        %v3172 = vadd.f32 0.0, %v3171
        %v3173 = vpop.f32.mrf.mxu0
        %v3174 = vadd.f32 0.0, %v3173
        %3175 = vdwg.mxu0
        %v3176 = vpack.c.bf16 %v3159, %v3157
        %v3177 = vpack.c.bf16 %v3164, %v3162
        %v3178 = vpack.c.bf16 %v3169, %v3167
        %v3179 = vpack.c.bf16 %v3174, %v3172
        %v3181 = vsel %vm1383, %v3176, 0
        %v3184 = vsel %vm1383, %v3177, 0
        %v3187 = vsel %vm1383, %v3178, 0
        %v3190 = vsel %vm1383, %v3179, 0
        %3192 = vmatpush.bf16.msra.mxu0 0
        %3193 = vmatpush.bf16.msra.mxu0 0
        %3194 = vmatpush.bf16.msra.mxu0 0
        %3195 = vmatpush.bf16.msra.mxu0 0
        %3196 = vmatpush.bf16.msra.mxu0 0
        %3197 = vmatpush.bf16.msra.mxu0 0
        %3198 = vmatpush.bf16.msra.mxu0 0
        %3199 = vmatpush.bf16.msra.mxu0 %v2116
        %3200 = vmatmul.bf16.gmra.mxu0 %v3181
        %v3201 = vpop.f32.mrf.mxu0
        %v3202 = vadd.f32 0.0, %v3201
        %v3203 = vpop.f32.mrf.mxu0
        %v3204 = vadd.f32 0.0, %v3203
        %3205 = vmatmul.bf16.gmra.mxu0 %v3184
        %v3206 = vpop.f32.mrf.mxu0
        %v3207 = vadd.f32 0.0, %v3206
        %v3208 = vpop.f32.mrf.mxu0
        %v3209 = vadd.f32 0.0, %v3208
        %3210 = vmatmul.bf16.gmra.mxu0 %v3187
        %v3211 = vpop.f32.mrf.mxu0
        %v3212 = vadd.f32 0.0, %v3211
        %v3213 = vpop.f32.mrf.mxu0
        %v3214 = vadd.f32 0.0, %v3213
        %3215 = vmatmul.bf16.gmra.mxu0 %v3190
        %v3216 = vpop.f32.mrf.mxu0
        %v3217 = vadd.f32 0.0, %v3216
        %v3218 = vpop.f32.mrf.mxu0
        %v3219 = vadd.f32 0.0, %v3218
        %3220 = vdwg.mxu0
        %v3221 = vadd.f32 %v2943, %v3202
        %v3222 = vadd.f32 %v2945, %v3204
        %v3223 = vadd.f32 %v2948, %v3207
        %v3224 = vadd.f32 %v2950, %v3209
        %v3225 = vadd.f32 %v2953, %v3212
        %v3226 = vadd.f32 %v2955, %v3214
        %v3227 = vadd.f32 %v2958, %v3217
        %v3228 = vadd.f32 %v2960, %v3219
        %3229 = vrot.lane.b32.xlu0 %v2448, 80
        %v3230 = vpop.permute.xlu0 %3229
        %3231 = vrot.lane.b32.xlu0 %v2449, 80
        %v3232 = vpop.permute.xlu0 %3231
        %3233 = vrot.lane.b32.xlu0 %v2450, 80
        %v3234 = vpop.permute.xlu0 %3233
        %3235 = vrot.lane.b32.xlu0 %v2451, 80
        %v3236 = vpop.permute.xlu0 %3235
        %3237 = vrot.lane.b32.xlu0 %v2448, 16
        %v3238 = vpop.permute.xlu0 %3237
        %3239 = vrot.lane.b32.xlu0 %v2449, 16
        %v3240 = vpop.permute.xlu0 %3239
        %3241 = vrot.lane.b32.xlu0 %v2450, 16
        %v3242 = vpop.permute.xlu0 %3241
        %3243 = vrot.lane.b32.xlu0 %v2451, 16
        %v3244 = vpop.permute.xlu0 %3243
        %v3246 = vsel %vm1383, %v3230, 0
        %v3249 = vsel %vm1383, %v3232, 0
        %v3252 = vsel %vm1383, %v3234, 0
        %v3255 = vsel %vm1383, %v3236, 0
        %v3258 = vsel %vm1383, %v3238, 0
        %v3261 = vsel %vm1383, %v3240, 0
        %v3264 = vsel %vm1383, %v3242, 0
        %v3267 = vsel %vm1383, %v3244, 0
        %3269 = vmatpush.bf16.xpose.msra.mxu0 0
        %3270 = vmatpush.bf16.xpose.msra.mxu0 0
        %3271 = vmatpush.bf16.xpose.msra.mxu0 0
        %3272 = vmatpush.bf16.xpose.msra.mxu0 0
        %3273 = vmatpush.bf16.xpose.msra.mxu0 %v3267
        %3274 = vmatpush.bf16.xpose.msra.mxu0 %v3264
        %3275 = vmatpush.bf16.xpose.msra.mxu0 %v3261
        %3276 = vmatpush.bf16.xpose.msra.mxu0 %v3258
        %3277 = vmatmul.bf16.gmra.mxu0 %v3246
        %v3278 = vpop.f32.mrf.mxu0
        %v3279 = vadd.f32 0.0, %v3278
        %v3280 = vpop.f32.mrf.mxu0
        %v3281 = vadd.f32 0.0, %v3280
        %3282 = vmatmul.bf16.gmra.mxu0 %v3249
        %v3283 = vpop.f32.mrf.mxu0
        %v3284 = vadd.f32 0.0, %v3283
        %v3285 = vpop.f32.mrf.mxu0
        %v3286 = vadd.f32 0.0, %v3285
        %3287 = vmatmul.bf16.gmra.mxu0 %v3252
        %v3288 = vpop.f32.mrf.mxu0
        %v3289 = vadd.f32 0.0, %v3288
        %v3290 = vpop.f32.mrf.mxu0
        %v3291 = vadd.f32 0.0, %v3290
        %3292 = vmatmul.bf16.gmra.mxu0 %v3255
        %v3293 = vpop.f32.mrf.mxu0
        %v3294 = vadd.f32 0.0, %v3293
        %v3295 = vpop.f32.mrf.mxu0
        %v3296 = vadd.f32 0.0, %v3295
        %3297 = vdwg.mxu0
        %v3298 = vsel %vm783, %v3279, -inf
        %3299 = vmax.xlane.f32.xlu0 %v3298
        %v3300 = vpop.xlane.xlu0 %3299
        %v3301 = vsel %vm783, %v3281, -inf
        %3302 = vmax.xlane.f32.xlu0 %v3301
        %v3303 = vpop.xlane.xlu0 %3302
        %v3304 = vsel %vm783, %v3284, -inf
        %3305 = vmax.xlane.f32.xlu0 %v3304
        %v3306 = vpop.xlane.xlu0 %3305
        %v3307 = vsel %vm783, %v3286, -inf
        %3308 = vmax.xlane.f32.xlu0 %v3307
        %v3309 = vpop.xlane.xlu0 %3308
        %v3310 = vsel %vm783, %v3289, -inf
        %3311 = vmax.xlane.f32.xlu0 %v3310
        %v3312 = vpop.xlane.xlu0 %3311
        %v3313 = vsel %vm783, %v3291, -inf
        %3314 = vmax.xlane.f32.xlu0 %v3313
        %v3315 = vpop.xlane.xlu0 %3314
        %v3316 = vsel %vm783, %v3294, -inf
        %3317 = vmax.xlane.f32.xlu0 %v3316
        %v3318 = vpop.xlane.xlu0 %3317
        %v3319 = vsel %vm783, %v3296, -inf
        %3320 = vmax.xlane.f32.xlu0 %v3319
        %v3321 = vpop.xlane.xlu0 %3320
        %v3322 = vsub.f32 %v3279, %v3300
        %v3323 = vsub.f32 %v3281, %v3303
        %v3324 = vsub.f32 %v3284, %v3306
        %v3325 = vsub.f32 %v3286, %v3309
        %v3326 = vsub.f32 %v3289, %v3312
        %v3327 = vsub.f32 %v3291, %v3315
        %v3328 = vsub.f32 %v3294, %v3318
        %v3329 = vsub.f32 %v3296, %v3321
        %v3330 = vmul.f32 %v3322, 1.442695
        %v3331 = vpow.pop %v3330
        %v3332 = vmul.f32 %v3323, 1.442695
        %v3333 = vpow.pop %v3332
        %v3334 = vmul.f32 %v3324, 1.442695
        %v3335 = vpow.pop %v3334
        %v3336 = vmul.f32 %v3325, 1.442695
        %v3337 = vpow.pop %v3336
        %v3338 = vmul.f32 %v3326, 1.442695
        %v3339 = vpow.pop %v3338
        %v3340 = vmul.f32 %v3327, 1.442695
        %v3341 = vpow.pop %v3340
        %v3342 = vmul.f32 %v3328, 1.442695
        %v3343 = vpow.pop %v3342
        %v3344 = vmul.f32 %v3329, 1.442695
        %v3345 = vpow.pop %v3344
        %v3346 = vsel %vm783, %v3331, 0.0
        %3347 = vadd.xlane.f32.xlu0 %v3346
        %v3348 = vpop.xlane.xlu0 %3347
        %v3349 = vsel %vm783, %v3333, 0.0
        %3350 = vadd.xlane.f32.xlu0 %v3349
        %v3351 = vpop.xlane.xlu0 %3350
        %v3352 = vsel %vm783, %v3335, 0.0
        %3353 = vadd.xlane.f32.xlu0 %v3352
        %v3354 = vpop.xlane.xlu0 %3353
        %v3355 = vsel %vm783, %v3337, 0.0
        %3356 = vadd.xlane.f32.xlu0 %v3355
        %v3357 = vpop.xlane.xlu0 %3356
        %v3358 = vsel %vm783, %v3339, 0.0
        %3359 = vadd.xlane.f32.xlu0 %v3358
        %v3360 = vpop.xlane.xlu0 %3359
        %v3361 = vsel %vm783, %v3341, 0.0
        %3362 = vadd.xlane.f32.xlu0 %v3361
        %v3363 = vpop.xlane.xlu0 %3362
        %v3364 = vsel %vm783, %v3343, 0.0
        %3365 = vadd.xlane.f32.xlu0 %v3364
        %v3366 = vpop.xlane.xlu0 %3365
        %v3367 = vsel %vm783, %v3345, 0.0
        %3368 = vadd.xlane.f32.xlu0 %v3367
        %v3369 = vpop.xlane.xlu0 %3368
        %v3370 = vrcp.pop %v3348
        %v3371 = vrcp.pop %v3351
        %v3372 = vrcp.pop %v3354
        %v3373 = vrcp.pop %v3357
        %v3374 = vrcp.pop %v3360
        %v3375 = vrcp.pop %v3363
        %v3376 = vrcp.pop %v3366
        %v3377 = vrcp.pop %v3369
        %v3378 = vmul.f32 %v3331, %v3370
        %v3379 = vmul.f32 %v3333, %v3371
        %v3380 = vmul.f32 %v3335, %v3372
        %v3381 = vmul.f32 %v3337, %v3373
        %v3382 = vmul.f32 %v3339, %v3374
        %v3383 = vmul.f32 %v3341, %v3375
        %v3384 = vmul.f32 %v3343, %v3376
        %v3385 = vmul.f32 %v3345, %v3377
        %v3386 = vpack.c.bf16 %v3379, %v3378
        %v3387 = vpack.c.bf16 %v3381, %v3380
        %v3388 = vpack.c.bf16 %v3383, %v3382
        %v3389 = vpack.c.bf16 %v3385, %v3384
        %3390 = vrot.lane.b32.xlu0 %v2609, 80
        %v3391 = vpop.permute.xlu0 %3390
        %3392 = vrot.lane.b32.xlu0 %v2610, 80
        %v3393 = vpop.permute.xlu0 %3392
        %3394 = vrot.lane.b32.xlu0 %v2611, 80
        %v3395 = vpop.permute.xlu0 %3394
        %3396 = vrot.lane.b32.xlu0 %v2612, 80
        %v3397 = vpop.permute.xlu0 %3396
        %v3403 = vsel %vm783, %v3386, 0
        %v3406 = vsel %vm783, %v3387, 0
        %v3409 = vsel %vm783, %v3388, 0
        %v3412 = vsel %vm783, %v3389, 0
        %3414 = vmatpush.bf16.msra.mxu0 0
        %3415 = vmatpush.bf16.msra.mxu0 0
        %3416 = vmatpush.bf16.msra.mxu0 0
        %3417 = vmatpush.bf16.msra.mxu0 0
        %3418 = vmatpush.bf16.msra.mxu0 %v3397
        %3419 = vmatpush.bf16.msra.mxu0 %v3395
        %3420 = vmatpush.bf16.msra.mxu0 %v3393
        %3421 = vmatpush.bf16.msra.mxu0 %v3391
        %3422 = vmatmul.bf16.gmra.mxu0 %v3403
        %v3423 = vpop.f32.mrf.mxu0
        %v3424 = vadd.f32 0.0, %v3423
        %v3425 = vpop.f32.mrf.mxu0
        %v3426 = vadd.f32 0.0, %v3425
        %3427 = vmatmul.bf16.gmra.mxu0 %v3406
        %v3428 = vpop.f32.mrf.mxu0
        %v3429 = vadd.f32 0.0, %v3428
        %v3430 = vpop.f32.mrf.mxu0
        %v3431 = vadd.f32 0.0, %v3430
        %3432 = vmatmul.bf16.gmra.mxu0 %v3409
        %v3433 = vpop.f32.mrf.mxu0
        %v3434 = vadd.f32 0.0, %v3433
        %v3435 = vpop.f32.mrf.mxu0
        %v3436 = vadd.f32 0.0, %v3435
        %3437 = vmatmul.bf16.gmra.mxu0 %v3412
        %v3438 = vpop.f32.mrf.mxu0
        %v3439 = vadd.f32 0.0, %v3438
        %v3440 = vpop.f32.mrf.mxu0
        %v3441 = vadd.f32 0.0, %v3440
        %3442 = vdwg.mxu0
        %v3443 = vpack.c.bf16 %v3426, %v3424
        %v3444 = vpack.c.bf16 %v3431, %v3429
        %v3445 = vpack.c.bf16 %v3436, %v3434
        %v3446 = vpack.c.bf16 %v3441, %v3439
        %v3448 = vsel %vm1383, %v3443, 0
        %v3451 = vsel %vm1383, %v3444, 0
        %v3454 = vsel %vm1383, %v3445, 0
        %v3457 = vsel %vm1383, %v3446, 0
        %3459 = vmatpush.bf16.msra.mxu0 0
        %3460 = vmatpush.bf16.msra.mxu0 0
        %3461 = vmatpush.bf16.msra.mxu0 0
        %3462 = vmatpush.bf16.msra.mxu0 0
        %3463 = vmatpush.bf16.msra.mxu0 0
        %3464 = vmatpush.bf16.msra.mxu0 0
        %3465 = vmatpush.bf16.msra.mxu0 0
        %3466 = vmatpush.bf16.msra.mxu0 %v2389
        %3467 = vmatmul.bf16.gmra.mxu0 %v3448
        %v3468 = vpop.f32.mrf.mxu0
        %v3469 = vadd.f32 0.0, %v3468
        %v3470 = vpop.f32.mrf.mxu0
        %v3471 = vadd.f32 0.0, %v3470
        %3472 = vmatmul.bf16.gmra.mxu0 %v3451
        %v3473 = vpop.f32.mrf.mxu0
        %v3474 = vadd.f32 0.0, %v3473
        %v3475 = vpop.f32.mrf.mxu0
        %v3476 = vadd.f32 0.0, %v3475
        %3477 = vmatmul.bf16.gmra.mxu0 %v3454
        %v3478 = vpop.f32.mrf.mxu0
        %v3479 = vadd.f32 0.0, %v3478
        %v3480 = vpop.f32.mrf.mxu0
        %v3481 = vadd.f32 0.0, %v3480
        %3482 = vmatmul.bf16.gmra.mxu0 %v3457
        %v3483 = vpop.f32.mrf.mxu0
        %v3484 = vadd.f32 0.0, %v3483
        %v3485 = vpop.f32.mrf.mxu0
        %v3486 = vadd.f32 0.0, %v3485
        %3487 = vdwg.mxu0
        %v3488 = vadd.f32 %v3221, %v3469
        %v3489 = vadd.f32 %v3222, %v3471
        %v3490 = vadd.f32 %v3223, %v3474
        %v3491 = vadd.f32 %v3224, %v3476
        %v3492 = vadd.f32 %v3225, %v3479
        %v3493 = vadd.f32 %v3226, %v3481
        %v3494 = vadd.f32 %v3227, %v3484
        %v3495 = vadd.f32 %v3228, %v3486
        %3496 = vst.msk [vmem:[#allocation3 + $0x40] sm:$0xff] %vm783, %v3488
        %3497 = vst.msk [vmem:[#allocation3 + $0x48] sm:$0xff] %vm783, %v3489
        %3498 = vst.msk [vmem:[#allocation3 + $0x50] sm:$0xff] %vm783, %v3490
        %3499 = vst.msk [vmem:[#allocation3 + $0x58] sm:$0xff] %vm783, %v3491
        %3500 = vst.msk [vmem:[#allocation3 + $0x60] sm:$0xff] %vm783, %v3492
        %3501 = vst.msk [vmem:[#allocation3 + $0x68] sm:$0xff] %vm783, %v3493
        %3502 = vst.msk [vmem:[#allocation3 + $0x70] sm:$0xff] %vm783, %v3494
        %3503 = vst.msk [vmem:[#allocation3 + $0x78] sm:$0xff] %vm783, %v3495
        %v3504 = vld [vmem:[#allocation3] sm:$0xff]
        %v3505 = vld [vmem:[#allocation3 + $0x8] sm:$0xff]
        %v3506 = vld [vmem:[#allocation3 + $0x10] sm:$0xff]
        %v3507 = vld [vmem:[#allocation3 + $0x18] sm:$0xff]
        %v3508 = vld [vmem:[#allocation3 + $0x20] sm:$0xff]
        %v3509 = vld [vmem:[#allocation3 + $0x28] sm:$0xff]
        %v3510 = vld [vmem:[#allocation3 + $0x30] sm:$0xff]
        %v3511 = vld [vmem:[#allocation3 + $0x38] sm:$0xff]
        %v3512 = vld [vmem:[#allocation3 + $0x40] sm:$0xff]
        %v3513 = vld [vmem:[#allocation3 + $0x48] sm:$0xff]
        %v3514 = vld [vmem:[#allocation3 + $0x50] sm:$0xff]
        %v3515 = vld [vmem:[#allocation3 + $0x58] sm:$0xff]
        %v3516 = vld [vmem:[#allocation3 + $0x60] sm:$0xff]
        %v3517 = vld [vmem:[#allocation3 + $0x68] sm:$0xff]
        %v3518 = vld [vmem:[#allocation3 + $0x70] sm:$0xff]
        %v3519 = vld [vmem:[#allocation3 + $0x78] sm:$0xff]
        %v3520 = vadd.f32 %v765, %v3504
        %v3521 = vadd.f32 %v766, %v3505
        %v3522 = vadd.f32 %v767, %v3506
        %v3523 = vadd.f32 %v768, %v3507
        %v3524 = vadd.f32 %v769, %v3508
        %v3525 = vadd.f32 %v770, %v3509
        %v3526 = vadd.f32 %v771, %v3510
        %v3527 = vadd.f32 %v772, %v3511
        %v3528 = vadd.f32 %v773, %v3512
        %v3529 = vadd.f32 %v774, %v3513
        %v3530 = vadd.f32 %v775, %v3514
        %v3531 = vadd.f32 %v776, %v3515
        %v3532 = vadd.f32 %v777, %v3516
        %v3533 = vadd.f32 %v778, %v3517
        %v3534 = vadd.f32 %v779, %v3518
        %v3535 = vadd.f32 %v780, %v3519
        %v3536 = vld [vmem:[%s672] sm:$0x1]
        %v3538 = vperm.slane %v3536, 0
        %v3540 = vadd.f32 %v3520, %v3538
        %v3541 = vadd.f32 %v3521, %v3538
        %v3542 = vadd.f32 %v3522, %v3538
        %v3543 = vadd.f32 %v3523, %v3538
        %v3544 = vadd.f32 %v3524, %v3538
        %v3545 = vadd.f32 %v3525, %v3538
        %v3546 = vadd.f32 %v3526, %v3538
        %v3547 = vadd.f32 %v3527, %v3538
        %v3548 = vadd.f32 %v3528, %v3538
        %v3549 = vadd.f32 %v3529, %v3538
        %v3550 = vadd.f32 %v3530, %v3538
        %v3551 = vadd.f32 %v3531, %v3538
        %v3552 = vadd.f32 %v3532, %v3538
        %v3553 = vadd.f32 %v3533, %v3538
        %v3554 = vadd.f32 %v3534, %v3538
        %v3555 = vadd.f32 %v3535, %v3538
        %v3556 = vld [vmem:[%s675] sm:$0x1]
        %v3557 = vld [vmem:[%s678] sm:$0x1]
        %v3558 = vsel %vm783, %v3540, 0.0
        %3559 = vadd.xlane.f32.xlu0 %v3558
        %v3560 = vpop.xlane.xlu0 %3559
        %v3561 = vsel %vm783, %v3541, 0.0
        %3562 = vadd.xlane.f32.xlu0 %v3561
        %v3563 = vpop.xlane.xlu0 %3562
        %v3564 = vsel %vm783, %v3542, 0.0
        %3565 = vadd.xlane.f32.xlu0 %v3564
        %v3566 = vpop.xlane.xlu0 %3565
        %v3567 = vsel %vm783, %v3543, 0.0
        %3568 = vadd.xlane.f32.xlu0 %v3567
        %v3569 = vpop.xlane.xlu0 %3568
        %v3570 = vsel %vm783, %v3544, 0.0
        %3571 = vadd.xlane.f32.xlu0 %v3570
        %v3572 = vpop.xlane.xlu0 %3571
        %v3573 = vsel %vm783, %v3545, 0.0
        %3574 = vadd.xlane.f32.xlu0 %v3573
        %v3575 = vpop.xlane.xlu0 %3574
        %v3576 = vsel %vm783, %v3546, 0.0
        %3577 = vadd.xlane.f32.xlu0 %v3576
        %v3578 = vpop.xlane.xlu0 %3577
        %v3579 = vsel %vm783, %v3547, 0.0
        %3580 = vadd.xlane.f32.xlu0 %v3579
        %v3581 = vpop.xlane.xlu0 %3580
        %v3582 = vsel %vm783, %v3548, 0.0
        %3583 = vadd.xlane.f32.xlu0 %v3582
        %v3584 = vpop.xlane.xlu0 %3583
        %v3585 = vsel %vm783, %v3549, 0.0
        %3586 = vadd.xlane.f32.xlu0 %v3585
        %v3587 = vpop.xlane.xlu0 %3586
        %v3588 = vsel %vm783, %v3550, 0.0
        %3589 = vadd.xlane.f32.xlu0 %v3588
        %v3590 = vpop.xlane.xlu0 %3589
        %v3591 = vsel %vm783, %v3551, 0.0
        %3592 = vadd.xlane.f32.xlu0 %v3591
        %v3593 = vpop.xlane.xlu0 %3592
        %v3594 = vsel %vm783, %v3552, 0.0
        %3595 = vadd.xlane.f32.xlu0 %v3594
        %v3596 = vpop.xlane.xlu0 %3595
        %v3597 = vsel %vm783, %v3553, 0.0
        %3598 = vadd.xlane.f32.xlu0 %v3597
        %v3599 = vpop.xlane.xlu0 %3598
        %v3600 = vsel %vm783, %v3554, 0.0
        %3601 = vadd.xlane.f32.xlu0 %v3600
        %v3602 = vpop.xlane.xlu0 %3601
        %v3603 = vsel %vm783, %v3555, 0.0
        %3604 = vadd.xlane.f32.xlu0 %v3603
        %v3605 = vpop.xlane.xlu0 %3604
        %v3606 = vmul.f32 %v3560, %v838
        %v3607 = vmul.f32 %v3563, %v838
        %v3608 = vmul.f32 %v3566, %v838
        %v3609 = vmul.f32 %v3569, %v838
        %v3610 = vmul.f32 %v3572, %v838
        %v3611 = vmul.f32 %v3575, %v838
        %v3612 = vmul.f32 %v3578, %v838
        %v3613 = vmul.f32 %v3581, %v838
        %v3614 = vmul.f32 %v3584, %v838
        %v3615 = vmul.f32 %v3587, %v838
        %v3616 = vmul.f32 %v3590, %v838
        %v3617 = vmul.f32 %v3593, %v838
        %v3618 = vmul.f32 %v3596, %v838
        %v3619 = vmul.f32 %v3599, %v838
        %v3620 = vmul.f32 %v3602, %v838
        %v3621 = vmul.f32 %v3605, %v838
        %v3622 = vsub.f32 %v3540, %v3606
        %v3623 = vsub.f32 %v3541, %v3607
        %v3624 = vsub.f32 %v3542, %v3608
        %v3625 = vsub.f32 %v3543, %v3609
        %v3626 = vsub.f32 %v3544, %v3610
        %v3627 = vsub.f32 %v3545, %v3611
        %v3628 = vsub.f32 %v3546, %v3612
        %v3629 = vsub.f32 %v3547, %v3613
        %v3630 = vsub.f32 %v3548, %v3614
        %v3631 = vsub.f32 %v3549, %v3615
        %v3632 = vsub.f32 %v3550, %v3616
        %v3633 = vsub.f32 %v3551, %v3617
        %v3634 = vsub.f32 %v3552, %v3618
        %v3635 = vsub.f32 %v3553, %v3619
        %v3636 = vsub.f32 %v3554, %v3620
        %v3637 = vsub.f32 %v3555, %v3621
        %v3638 = vmul.f32 %v3622, %v3622
        %v3639 = vmul.f32 %v3623, %v3623
        %v3640 = vmul.f32 %v3624, %v3624
        %v3641 = vmul.f32 %v3625, %v3625
        %v3642 = vmul.f32 %v3626, %v3626
        %v3643 = vmul.f32 %v3627, %v3627
        %v3644 = vmul.f32 %v3628, %v3628
        %v3645 = vmul.f32 %v3629, %v3629
        %v3646 = vmul.f32 %v3630, %v3630
        %v3647 = vmul.f32 %v3631, %v3631
        %v3648 = vmul.f32 %v3632, %v3632
        %v3649 = vmul.f32 %v3633, %v3633
        %v3650 = vmul.f32 %v3634, %v3634
        %v3651 = vmul.f32 %v3635, %v3635
        %v3652 = vmul.f32 %v3636, %v3636
        %v3653 = vmul.f32 %v3637, %v3637
        %v3654 = vsel %vm783, %v3638, 0.0
        %3655 = vadd.xlane.f32.xlu0 %v3654
        %v3656 = vpop.xlane.xlu0 %3655
        %v3657 = vsel %vm783, %v3639, 0.0
        %3658 = vadd.xlane.f32.xlu0 %v3657
        %v3659 = vpop.xlane.xlu0 %3658
        %v3660 = vsel %vm783, %v3640, 0.0
        %3661 = vadd.xlane.f32.xlu0 %v3660
        %v3662 = vpop.xlane.xlu0 %3661
        %v3663 = vsel %vm783, %v3641, 0.0
        %3664 = vadd.xlane.f32.xlu0 %v3663
        %v3665 = vpop.xlane.xlu0 %3664
        %v3666 = vsel %vm783, %v3642, 0.0
        %3667 = vadd.xlane.f32.xlu0 %v3666
        %v3668 = vpop.xlane.xlu0 %3667
        %v3669 = vsel %vm783, %v3643, 0.0
        %3670 = vadd.xlane.f32.xlu0 %v3669
        %v3671 = vpop.xlane.xlu0 %3670
        %v3672 = vsel %vm783, %v3644, 0.0
        %3673 = vadd.xlane.f32.xlu0 %v3672
        %v3674 = vpop.xlane.xlu0 %3673
        %v3675 = vsel %vm783, %v3645, 0.0
        %3676 = vadd.xlane.f32.xlu0 %v3675
        %v3677 = vpop.xlane.xlu0 %3676
        %v3678 = vsel %vm783, %v3646, 0.0
        %3679 = vadd.xlane.f32.xlu0 %v3678
        %v3680 = vpop.xlane.xlu0 %3679
        %v3681 = vsel %vm783, %v3647, 0.0
        %3682 = vadd.xlane.f32.xlu0 %v3681
        %v3683 = vpop.xlane.xlu0 %3682
        %v3684 = vsel %vm783, %v3648, 0.0
        %3685 = vadd.xlane.f32.xlu0 %v3684
        %v3686 = vpop.xlane.xlu0 %3685
        %v3687 = vsel %vm783, %v3649, 0.0
        %3688 = vadd.xlane.f32.xlu0 %v3687
        %v3689 = vpop.xlane.xlu0 %3688
        %v3690 = vsel %vm783, %v3650, 0.0
        %3691 = vadd.xlane.f32.xlu0 %v3690
        %v3692 = vpop.xlane.xlu0 %3691
        %v3693 = vsel %vm783, %v3651, 0.0
        %3694 = vadd.xlane.f32.xlu0 %v3693
        %v3695 = vpop.xlane.xlu0 %3694
        %v3696 = vsel %vm783, %v3652, 0.0
        %3697 = vadd.xlane.f32.xlu0 %v3696
        %v3698 = vpop.xlane.xlu0 %3697
        %v3699 = vsel %vm783, %v3653, 0.0
        %3700 = vadd.xlane.f32.xlu0 %v3699
        %v3701 = vpop.xlane.xlu0 %3700
        %v3702 = vmul.f32 %v3656, %v838
        %v3703 = vmul.f32 %v3659, %v838
        %v3704 = vmul.f32 %v3662, %v838
        %v3705 = vmul.f32 %v3665, %v838
        %v3706 = vmul.f32 %v3668, %v838
        %v3707 = vmul.f32 %v3671, %v838
        %v3708 = vmul.f32 %v3674, %v838
        %v3709 = vmul.f32 %v3677, %v838
        %v3710 = vmul.f32 %v3680, %v838
        %v3711 = vmul.f32 %v3683, %v838
        %v3712 = vmul.f32 %v3686, %v838
        %v3713 = vmul.f32 %v3689, %v838
        %v3714 = vmul.f32 %v3692, %v838
        %v3715 = vmul.f32 %v3695, %v838
        %v3716 = vmul.f32 %v3698, %v838
        %v3717 = vmul.f32 %v3701, %v838
        %v3718 = vadd.f32 %v3702, 1e-05
        %v3719 = vadd.f32 %v3703, 1e-05
        %v3720 = vadd.f32 %v3704, 1e-05
        %v3721 = vadd.f32 %v3705, 1e-05
        %v3722 = vadd.f32 %v3706, 1e-05
        %v3723 = vadd.f32 %v3707, 1e-05
        %v3724 = vadd.f32 %v3708, 1e-05
        %v3725 = vadd.f32 %v3709, 1e-05
        %v3726 = vadd.f32 %v3710, 1e-05
        %v3727 = vadd.f32 %v3711, 1e-05
        %v3728 = vadd.f32 %v3712, 1e-05
        %v3729 = vadd.f32 %v3713, 1e-05
        %v3730 = vadd.f32 %v3714, 1e-05
        %v3731 = vadd.f32 %v3715, 1e-05
        %v3732 = vadd.f32 %v3716, 1e-05
        %v3733 = vadd.f32 %v3717, 1e-05
        %v3734 = vrsqrt.pop %v3718
        %v3735 = vmul.f32 %v3734, %v3718
        %v3736 = vmul.f32 %v3735, %v3734
        %v3737 = vmul.f32 0.5, %v3736
        %v3738 = vsub.f32 1.5, %v3737
        %v3739 = vmul.f32 %v3734, %v3738
        %vm3740 = vweird.f32 %v3718
        %vm3741 = vweird.f32 %v3734
        %vm3742 = vmor %vm3740, %vm3741
        %v3743 = vsel %vm3742, %v3734, %v3739
        %v3744 = vrsqrt.pop %v3719
        %v3745 = vmul.f32 %v3744, %v3719
        %v3746 = vmul.f32 %v3745, %v3744
        %v3747 = vmul.f32 0.5, %v3746
        %v3748 = vsub.f32 1.5, %v3747
        %v3749 = vmul.f32 %v3744, %v3748
        %vm3750 = vweird.f32 %v3719
        %vm3751 = vweird.f32 %v3744
        %vm3752 = vmor %vm3750, %vm3751
        %v3753 = vsel %vm3752, %v3744, %v3749
        %v3754 = vrsqrt.pop %v3720
        %v3755 = vmul.f32 %v3754, %v3720
        %v3756 = vmul.f32 %v3755, %v3754
        %v3757 = vmul.f32 0.5, %v3756
        %v3758 = vsub.f32 1.5, %v3757
        %v3759 = vmul.f32 %v3754, %v3758
        %vm3760 = vweird.f32 %v3720
        %vm3761 = vweird.f32 %v3754
        %vm3762 = vmor %vm3760, %vm3761
        %v3763 = vsel %vm3762, %v3754, %v3759
        %v3764 = vrsqrt.pop %v3721
        %v3765 = vmul.f32 %v3764, %v3721
        %v3766 = vmul.f32 %v3765, %v3764
        %v3767 = vmul.f32 0.5, %v3766
        %v3768 = vsub.f32 1.5, %v3767
        %v3769 = vmul.f32 %v3764, %v3768
        %vm3770 = vweird.f32 %v3721
        %vm3771 = vweird.f32 %v3764
        %vm3772 = vmor %vm3770, %vm3771
        %v3773 = vsel %vm3772, %v3764, %v3769
        %v3774 = vrsqrt.pop %v3722
        %v3775 = vmul.f32 %v3774, %v3722
        %v3776 = vmul.f32 %v3775, %v3774
        %v3777 = vmul.f32 0.5, %v3776
        %v3778 = vsub.f32 1.5, %v3777
        %v3779 = vmul.f32 %v3774, %v3778
        %vm3780 = vweird.f32 %v3722
        %vm3781 = vweird.f32 %v3774
        %vm3782 = vmor %vm3780, %vm3781
        %v3783 = vsel %vm3782, %v3774, %v3779
        %v3784 = vrsqrt.pop %v3723
        %v3785 = vmul.f32 %v3784, %v3723
        %v3786 = vmul.f32 %v3785, %v3784
        %v3787 = vmul.f32 0.5, %v3786
        %v3788 = vsub.f32 1.5, %v3787
        %v3789 = vmul.f32 %v3784, %v3788
        %vm3790 = vweird.f32 %v3723
        %vm3791 = vweird.f32 %v3784
        %vm3792 = vmor %vm3790, %vm3791
        %v3793 = vsel %vm3792, %v3784, %v3789
        %v3794 = vrsqrt.pop %v3724
        %v3795 = vmul.f32 %v3794, %v3724
        %v3796 = vmul.f32 %v3795, %v3794
        %v3797 = vmul.f32 0.5, %v3796
        %v3798 = vsub.f32 1.5, %v3797
        %v3799 = vmul.f32 %v3794, %v3798
        %vm3800 = vweird.f32 %v3724
        %vm3801 = vweird.f32 %v3794
        %vm3802 = vmor %vm3800, %vm3801
        %v3803 = vsel %vm3802, %v3794, %v3799
        %v3804 = vrsqrt.pop %v3725
        %v3805 = vmul.f32 %v3804, %v3725
        %v3806 = vmul.f32 %v3805, %v3804
        %v3807 = vmul.f32 0.5, %v3806
        %v3808 = vsub.f32 1.5, %v3807
        %v3809 = vmul.f32 %v3804, %v3808
        %vm3810 = vweird.f32 %v3725
        %vm3811 = vweird.f32 %v3804
        %vm3812 = vmor %vm3810, %vm3811
        %v3813 = vsel %vm3812, %v3804, %v3809
        %v3814 = vrsqrt.pop %v3726
        %v3815 = vmul.f32 %v3814, %v3726
        %v3816 = vmul.f32 %v3815, %v3814
        %v3817 = vmul.f32 0.5, %v3816
        %v3818 = vsub.f32 1.5, %v3817
        %v3819 = vmul.f32 %v3814, %v3818
        %vm3820 = vweird.f32 %v3726
        %vm3821 = vweird.f32 %v3814
        %vm3822 = vmor %vm3820, %vm3821
        %v3823 = vsel %vm3822, %v3814, %v3819
        %v3824 = vrsqrt.pop %v3727
        %v3825 = vmul.f32 %v3824, %v3727
        %v3826 = vmul.f32 %v3825, %v3824
        %v3827 = vmul.f32 0.5, %v3826
        %v3828 = vsub.f32 1.5, %v3827
        %v3829 = vmul.f32 %v3824, %v3828
        %vm3830 = vweird.f32 %v3727
        %vm3831 = vweird.f32 %v3824
        %vm3832 = vmor %vm3830, %vm3831
        %v3833 = vsel %vm3832, %v3824, %v3829
        %v3834 = vrsqrt.pop %v3728
        %v3835 = vmul.f32 %v3834, %v3728
        %v3836 = vmul.f32 %v3835, %v3834
        %v3837 = vmul.f32 0.5, %v3836
        %v3838 = vsub.f32 1.5, %v3837
        %v3839 = vmul.f32 %v3834, %v3838
        %vm3840 = vweird.f32 %v3728
        %vm3841 = vweird.f32 %v3834
        %vm3842 = vmor %vm3840, %vm3841
        %v3843 = vsel %vm3842, %v3834, %v3839
        %v3844 = vrsqrt.pop %v3729
        %v3845 = vmul.f32 %v3844, %v3729
        %v3846 = vmul.f32 %v3845, %v3844
        %v3847 = vmul.f32 0.5, %v3846
        %v3848 = vsub.f32 1.5, %v3847
        %v3849 = vmul.f32 %v3844, %v3848
        %vm3850 = vweird.f32 %v3729
        %vm3851 = vweird.f32 %v3844
        %vm3852 = vmor %vm3850, %vm3851
        %v3853 = vsel %vm3852, %v3844, %v3849
        %v3854 = vrsqrt.pop %v3730
        %v3855 = vmul.f32 %v3854, %v3730
        %v3856 = vmul.f32 %v3855, %v3854
        %v3857 = vmul.f32 0.5, %v3856
        %v3858 = vsub.f32 1.5, %v3857
        %v3859 = vmul.f32 %v3854, %v3858
        %vm3860 = vweird.f32 %v3730
        %vm3861 = vweird.f32 %v3854
        %vm3862 = vmor %vm3860, %vm3861
        %v3863 = vsel %vm3862, %v3854, %v3859
        %v3864 = vrsqrt.pop %v3731
        %v3865 = vmul.f32 %v3864, %v3731
        %v3866 = vmul.f32 %v3865, %v3864
        %v3867 = vmul.f32 0.5, %v3866
        %v3868 = vsub.f32 1.5, %v3867
        %v3869 = vmul.f32 %v3864, %v3868
        %vm3870 = vweird.f32 %v3731
        %vm3871 = vweird.f32 %v3864
        %vm3872 = vmor %vm3870, %vm3871
        %v3873 = vsel %vm3872, %v3864, %v3869
        %v3874 = vrsqrt.pop %v3732
        %v3875 = vmul.f32 %v3874, %v3732
        %v3876 = vmul.f32 %v3875, %v3874
        %v3877 = vmul.f32 0.5, %v3876
        %v3878 = vsub.f32 1.5, %v3877
        %v3879 = vmul.f32 %v3874, %v3878
        %vm3880 = vweird.f32 %v3732
        %vm3881 = vweird.f32 %v3874
        %vm3882 = vmor %vm3880, %vm3881
        %v3883 = vsel %vm3882, %v3874, %v3879
        %v3884 = vrsqrt.pop %v3733
        %v3885 = vmul.f32 %v3884, %v3733
        %v3886 = vmul.f32 %v3885, %v3884
        %v3887 = vmul.f32 0.5, %v3886
        %v3888 = vsub.f32 1.5, %v3887
        %v3889 = vmul.f32 %v3884, %v3888
        %vm3890 = vweird.f32 %v3733
        %vm3891 = vweird.f32 %v3884
        %vm3892 = vmor %vm3890, %vm3891
        %v3893 = vsel %vm3892, %v3884, %v3889
        %v3894 = vmul.f32 %v3622, %v3743
        %v3895 = vmul.f32 %v3623, %v3753
        %v3896 = vmul.f32 %v3624, %v3763
        %v3897 = vmul.f32 %v3625, %v3773
        %v3898 = vmul.f32 %v3626, %v3783
        %v3899 = vmul.f32 %v3627, %v3793
        %v3900 = vmul.f32 %v3628, %v3803
        %v3901 = vmul.f32 %v3629, %v3813
        %v3902 = vmul.f32 %v3630, %v3823
        %v3903 = vmul.f32 %v3631, %v3833
        %v3904 = vmul.f32 %v3632, %v3843
        %v3905 = vmul.f32 %v3633, %v3853
        %v3906 = vmul.f32 %v3634, %v3863
        %v3907 = vmul.f32 %v3635, %v3873
        %v3908 = vmul.f32 %v3636, %v3883
        %v3909 = vmul.f32 %v3637, %v3893
        %v3911 = vperm.slane %v3556, 0
        %v3913 = vmul.f32 %v3894, %v3911
        %v3914 = vmul.f32 %v3895, %v3911
        %v3915 = vmul.f32 %v3896, %v3911
        %v3916 = vmul.f32 %v3897, %v3911
        %v3917 = vmul.f32 %v3898, %v3911
        %v3918 = vmul.f32 %v3899, %v3911
        %v3919 = vmul.f32 %v3900, %v3911
        %v3920 = vmul.f32 %v3901, %v3911
        %v3921 = vmul.f32 %v3902, %v3911
        %v3922 = vmul.f32 %v3903, %v3911
        %v3923 = vmul.f32 %v3904, %v3911
        %v3924 = vmul.f32 %v3905, %v3911
        %v3925 = vmul.f32 %v3906, %v3911
        %v3926 = vmul.f32 %v3907, %v3911
        %v3927 = vmul.f32 %v3908, %v3911
        %v3928 = vmul.f32 %v3909, %v3911
        %v3930 = vperm.slane %v3557, 0
        %v3932 = vadd.f32 %v3913, %v3930
        %v3933 = vadd.f32 %v3914, %v3930
        %v3934 = vadd.f32 %v3915, %v3930
        %v3935 = vadd.f32 %v3916, %v3930
        %v3936 = vadd.f32 %v3917, %v3930
        %v3937 = vadd.f32 %v3918, %v3930
        %v3938 = vadd.f32 %v3919, %v3930
        %v3939 = vadd.f32 %v3920, %v3930
        %v3940 = vadd.f32 %v3921, %v3930
        %v3941 = vadd.f32 %v3922, %v3930
        %v3942 = vadd.f32 %v3923, %v3930
        %v3943 = vadd.f32 %v3924, %v3930
        %v3944 = vadd.f32 %v3925, %v3930
        %v3945 = vadd.f32 %v3926, %v3930
        %v3946 = vadd.f32 %v3927, %v3930
        %v3947 = vadd.f32 %v3928, %v3930
        %v3948 = vpack.c.bf16 %v3933, %v3932
        %v3949 = vpack.c.bf16 %v3935, %v3934
        %v3950 = vpack.c.bf16 %v3937, %v3936
        %v3951 = vpack.c.bf16 %v3939, %v3938
        %v3952 = vpack.c.bf16 %v3941, %v3940
        %v3953 = vpack.c.bf16 %v3943, %v3942
        %v3954 = vpack.c.bf16 %v3945, %v3944
        %v3955 = vpack.c.bf16 %v3947, %v3946
        %v3956 = vld [vmem:[%s683] sm:$0xf]
        %v3957 = vld [vmem:[%s683 + $0x4] sm:$0xf]
        %v3958 = vld [vmem:[%s683 + $0x8] sm:$0xf]
        %v3959 = vld [vmem:[%s683 + $0xc] sm:$0xf]
        %v3960 = vld [vmem:[%s683 + $0x10] sm:$0xf]
        %v3961 = vld [vmem:[%s683 + $0x14] sm:$0xf]
        %v3962 = vld [vmem:[%s683 + $0x18] sm:$0xf]
        %v3963 = vld [vmem:[%s683 + $0x1c] sm:$0xf]
        %v3964 = vld [vmem:[%s686] sm:$0x1]
        %v3966 = vperm.slane %v3964, 0
        %v3976 = vunpack.c.l.b16 %v3956
        %v3977 = vunpack.c.l.b16 %v3957
        %v3978 = vunpack.c.l.b16 %v3958
        %v3979 = vunpack.c.l.b16 %v3959
        %v3980 = vunpack.c.l.b16 %v3960
        %v3981 = vunpack.c.l.b16 %v3961
        %v3982 = vunpack.c.l.b16 %v3962
        %v3983 = vunpack.c.l.b16 %v3963
        %v3984 = vpack.c.b16 %v3977, %v3976
        %v3985 = vpack.c.b16 %v3979, %v3978
        %v3986 = vpack.c.b16 %v3981, %v3980
        %v3987 = vpack.c.b16 %v3983, %v3982
        %v3993 = vsel %vm783, %v3948, 0
        %v3996 = vsel %vm783, %v3949, 0
        %v3999 = vsel %vm783, %v3950, 0
        %v4002 = vsel %vm783, %v3951, 0
        %v4005 = vsel %vm783, %v3952, 0
        %v4008 = vsel %vm783, %v3953, 0
        %v4011 = vsel %vm783, %v3954, 0
        %v4014 = vsel %vm783, %v3955, 0
        %4016 = vmatpush.bf16.msra.mxu0 0
        %4017 = vmatpush.bf16.msra.mxu0 0
        %4018 = vmatpush.bf16.msra.mxu0 0
        %4019 = vmatpush.bf16.msra.mxu0 0
        %4020 = vmatpush.bf16.msra.mxu0 %v3987
        %4021 = vmatpush.bf16.msra.mxu0 %v3986
        %4022 = vmatpush.bf16.msra.mxu0 %v3985
        %4023 = vmatpush.bf16.msra.mxu0 %v3984
        %4024 = vmatmul.bf16.gmra.mxu0 %v3993
        %v4025 = vpop.f32.mrf.mxu0
        %v4026 = vadd.f32 %v3966, %v4025
        %v4027 = vpop.f32.mrf.mxu0
        %v4028 = vadd.f32 %v3966, %v4027
        %4029 = vmatmul.bf16.gmra.mxu0 %v3996
        %v4030 = vpop.f32.mrf.mxu0
        %v4031 = vadd.f32 %v3966, %v4030
        %v4032 = vpop.f32.mrf.mxu0
        %v4033 = vadd.f32 %v3966, %v4032
        %4034 = vmatmul.bf16.gmra.mxu0 %v3999
        %v4035 = vpop.f32.mrf.mxu0
        %v4036 = vadd.f32 %v3966, %v4035
        %v4037 = vpop.f32.mrf.mxu0
        %v4038 = vadd.f32 %v3966, %v4037
        %4039 = vmatmul.bf16.gmra.mxu0 %v4002
        %v4040 = vpop.f32.mrf.mxu0
        %v4041 = vadd.f32 %v3966, %v4040
        %v4042 = vpop.f32.mrf.mxu0
        %v4043 = vadd.f32 %v3966, %v4042
        %4044 = vmatmul.bf16.gmra.mxu0 %v4005
        %v4045 = vpop.f32.mrf.mxu0
        %v4046 = vadd.f32 %v3966, %v4045
        %v4047 = vpop.f32.mrf.mxu0
        %v4048 = vadd.f32 %v3966, %v4047
        %4049 = vmatmul.bf16.gmra.mxu0 %v4008
        %v4050 = vpop.f32.mrf.mxu0
        %v4051 = vadd.f32 %v3966, %v4050
        %v4052 = vpop.f32.mrf.mxu0
        %v4053 = vadd.f32 %v3966, %v4052
        %4054 = vmatmul.bf16.gmra.mxu0 %v4011
        %v4055 = vpop.f32.mrf.mxu0
        %v4056 = vadd.f32 %v3966, %v4055
        %v4057 = vpop.f32.mrf.mxu0
        %v4058 = vadd.f32 %v3966, %v4057
        %4059 = vmatmul.bf16.gmra.mxu0 %v4014
        %v4060 = vpop.f32.mrf.mxu0
        %v4061 = vadd.f32 %v3966, %v4060
        %v4062 = vpop.f32.mrf.mxu0
        %v4063 = vadd.f32 %v3966, %v4062
        %4064 = vdwg.mxu0
        %v4065 = vmul.f32 %v4026, 0.5
        %v4066 = vmul.f32 %v4028, 0.5
        %v4067 = vmul.f32 %v4031, 0.5
        %v4068 = vmul.f32 %v4033, 0.5
        %v4069 = vmul.f32 %v4036, 0.5
        %v4070 = vmul.f32 %v4038, 0.5
        %v4071 = vmul.f32 %v4041, 0.5
        %v4072 = vmul.f32 %v4043, 0.5
        %v4073 = vmul.f32 %v4046, 0.5
        %v4074 = vmul.f32 %v4048, 0.5
        %v4075 = vmul.f32 %v4051, 0.5
        %v4076 = vmul.f32 %v4053, 0.5
        %v4077 = vmul.f32 %v4056, 0.5
        %v4078 = vmul.f32 %v4058, 0.5
        %v4079 = vmul.f32 %v4061, 0.5
        %v4080 = vmul.f32 %v4063, 0.5
        %v4081 = vmul.f32 %v4026, 0.044715
        %v4082 = vmul.f32 %v4028, 0.044715
        %v4083 = vmul.f32 %v4031, 0.044715
        %v4084 = vmul.f32 %v4033, 0.044715
        %v4085 = vmul.f32 %v4036, 0.044715
        %v4086 = vmul.f32 %v4038, 0.044715
        %v4087 = vmul.f32 %v4041, 0.044715
        %v4088 = vmul.f32 %v4043, 0.044715
        %v4089 = vmul.f32 %v4046, 0.044715
        %v4090 = vmul.f32 %v4048, 0.044715
        %v4091 = vmul.f32 %v4051, 0.044715
        %v4092 = vmul.f32 %v4053, 0.044715
        %v4093 = vmul.f32 %v4056, 0.044715
        %v4094 = vmul.f32 %v4058, 0.044715
        %v4095 = vmul.f32 %v4061, 0.044715
        %v4096 = vmul.f32 %v4063, 0.044715
        %v4097 = vmul.f32 %v4081, %v4026
        %v4098 = vmul.f32 %v4082, %v4028
        %v4099 = vmul.f32 %v4083, %v4031
        %v4100 = vmul.f32 %v4084, %v4033
        %v4101 = vmul.f32 %v4085, %v4036
        %v4102 = vmul.f32 %v4086, %v4038
        %v4103 = vmul.f32 %v4087, %v4041
        %v4104 = vmul.f32 %v4088, %v4043
        %v4105 = vmul.f32 %v4089, %v4046
        %v4106 = vmul.f32 %v4090, %v4048
        %v4107 = vmul.f32 %v4091, %v4051
        %v4108 = vmul.f32 %v4092, %v4053
        %v4109 = vmul.f32 %v4093, %v4056
        %v4110 = vmul.f32 %v4094, %v4058
        %v4111 = vmul.f32 %v4095, %v4061
        %v4112 = vmul.f32 %v4096, %v4063
        %v4113 = vmul.f32 %v4097, %v4026
        %v4114 = vmul.f32 %v4098, %v4028
        %v4115 = vmul.f32 %v4099, %v4031
        %v4116 = vmul.f32 %v4100, %v4033
        %v4117 = vmul.f32 %v4101, %v4036
        %v4118 = vmul.f32 %v4102, %v4038
        %v4119 = vmul.f32 %v4103, %v4041
        %v4120 = vmul.f32 %v4104, %v4043
        %v4121 = vmul.f32 %v4105, %v4046
        %v4122 = vmul.f32 %v4106, %v4048
        %v4123 = vmul.f32 %v4107, %v4051
        %v4124 = vmul.f32 %v4108, %v4053
        %v4125 = vmul.f32 %v4109, %v4056
        %v4126 = vmul.f32 %v4110, %v4058
        %v4127 = vmul.f32 %v4111, %v4061
        %v4128 = vmul.f32 %v4112, %v4063
        %v4129 = vadd.f32 %v4026, %v4113
        %v4130 = vadd.f32 %v4028, %v4114
        %v4131 = vadd.f32 %v4031, %v4115
        %v4132 = vadd.f32 %v4033, %v4116
        %v4133 = vadd.f32 %v4036, %v4117
        %v4134 = vadd.f32 %v4038, %v4118
        %v4135 = vadd.f32 %v4041, %v4119
        %v4136 = vadd.f32 %v4043, %v4120
        %v4137 = vadd.f32 %v4046, %v4121
        %v4138 = vadd.f32 %v4048, %v4122
        %v4139 = vadd.f32 %v4051, %v4123
        %v4140 = vadd.f32 %v4053, %v4124
        %v4141 = vadd.f32 %v4056, %v4125
        %v4142 = vadd.f32 %v4058, %v4126
        %v4143 = vadd.f32 %v4061, %v4127
        %v4144 = vadd.f32 %v4063, %v4128
        %v4145 = vmul.f32 %v4129, 0.7978846
        %v4146 = vmul.f32 %v4130, 0.7978846
        %v4147 = vmul.f32 %v4131, 0.7978846
        %v4148 = vmul.f32 %v4132, 0.7978846
        %v4149 = vmul.f32 %v4133, 0.7978846
        %v4150 = vmul.f32 %v4134, 0.7978846
        %v4151 = vmul.f32 %v4135, 0.7978846
        %v4152 = vmul.f32 %v4136, 0.7978846
        %v4153 = vmul.f32 %v4137, 0.7978846
        %v4154 = vmul.f32 %v4138, 0.7978846
        %v4155 = vmul.f32 %v4139, 0.7978846
        %v4156 = vmul.f32 %v4140, 0.7978846
        %v4157 = vmul.f32 %v4141, 0.7978846
        %v4158 = vmul.f32 %v4142, 0.7978846
        %v4159 = vmul.f32 %v4143, 0.7978846
        %v4160 = vmul.f32 %v4144, 0.7978846
        %v4161 = vtanh.pop %v4145
        %v4162 = vtanh.pop %v4146
        %v4163 = vtanh.pop %v4147
        %v4164 = vtanh.pop %v4148
        %v4165 = vtanh.pop %v4149
        %v4166 = vtanh.pop %v4150
        %v4167 = vtanh.pop %v4151
        %v4168 = vtanh.pop %v4152
        %v4169 = vtanh.pop %v4153
        %v4170 = vtanh.pop %v4154
        %v4171 = vtanh.pop %v4155
        %v4172 = vtanh.pop %v4156
        %v4173 = vtanh.pop %v4157
        %v4174 = vtanh.pop %v4158
        %v4175 = vtanh.pop %v4159
        %v4176 = vtanh.pop %v4160
        %v4177 = vadd.f32 %v4161, 1.0
        %v4178 = vadd.f32 %v4162, 1.0
        %v4179 = vadd.f32 %v4163, 1.0
        %v4180 = vadd.f32 %v4164, 1.0
        %v4181 = vadd.f32 %v4165, 1.0
        %v4182 = vadd.f32 %v4166, 1.0
        %v4183 = vadd.f32 %v4167, 1.0
        %v4184 = vadd.f32 %v4168, 1.0
        %v4185 = vadd.f32 %v4169, 1.0
        %v4186 = vadd.f32 %v4170, 1.0
        %v4187 = vadd.f32 %v4171, 1.0
        %v4188 = vadd.f32 %v4172, 1.0
        %v4189 = vadd.f32 %v4173, 1.0
        %v4190 = vadd.f32 %v4174, 1.0
        %v4191 = vadd.f32 %v4175, 1.0
        %v4192 = vadd.f32 %v4176, 1.0
        %v4193 = vmul.f32 %v4065, %v4177
        %v4194 = vmul.f32 %v4066, %v4178
        %v4195 = vmul.f32 %v4067, %v4179
        %v4196 = vmul.f32 %v4068, %v4180
        %v4197 = vmul.f32 %v4069, %v4181
        %v4198 = vmul.f32 %v4070, %v4182
        %v4199 = vmul.f32 %v4071, %v4183
        %v4200 = vmul.f32 %v4072, %v4184
        %v4201 = vmul.f32 %v4073, %v4185
        %v4202 = vmul.f32 %v4074, %v4186
        %v4203 = vmul.f32 %v4075, %v4187
        %v4204 = vmul.f32 %v4076, %v4188
        %v4205 = vmul.f32 %v4077, %v4189
        %v4206 = vmul.f32 %v4078, %v4190
        %v4207 = vmul.f32 %v4079, %v4191
        %v4208 = vmul.f32 %v4080, %v4192
        %v4209 = vpack.c.bf16 %v4194, %v4193
        %v4210 = vpack.c.bf16 %v4196, %v4195
        %v4211 = vpack.c.bf16 %v4198, %v4197
        %v4212 = vpack.c.bf16 %v4200, %v4199
        %v4213 = vpack.c.bf16 %v4202, %v4201
        %v4214 = vpack.c.bf16 %v4204, %v4203
        %v4215 = vpack.c.bf16 %v4206, %v4205
        %v4216 = vpack.c.bf16 %v4208, %v4207
        %v4217 = vld [vmem:[%s691] sm:$0xf]
        %v4218 = vld [vmem:[%s691 + $0x4] sm:$0xf]
        %v4219 = vld [vmem:[%s691 + $0x8] sm:$0xf]
        %v4220 = vld [vmem:[%s691 + $0xc] sm:$0xf]
        %v4221 = vld [vmem:[%s691 + $0x10] sm:$0xf]
        %v4222 = vld [vmem:[%s691 + $0x14] sm:$0xf]
        %v4223 = vld [vmem:[%s691 + $0x18] sm:$0xf]
        %v4224 = vld [vmem:[%s691 + $0x1c] sm:$0xf]
        %v4225 = vld [vmem:[%s691 + $0x20] sm:$0xf]
        %v4226 = vld [vmem:[%s691 + $0x24] sm:$0xf]
        %v4227 = vld [vmem:[%s691 + $0x28] sm:$0xf]
        %v4228 = vld [vmem:[%s691 + $0x2c] sm:$0xf]
        %v4229 = vld [vmem:[%s691 + $0x30] sm:$0xf]
        %v4230 = vld [vmem:[%s691 + $0x34] sm:$0xf]
        %v4231 = vld [vmem:[%s691 + $0x38] sm:$0xf]
        %v4232 = vld [vmem:[%s691 + $0x3c] sm:$0xf]
        %v4233 = vld [vmem:[%s694] sm:$0x1]
        %v4235 = vperm.slane %v4233, 0
        %v4253 = vunpack.c.l.b16 %v4217
        %v4254 = vunpack.c.l.b16 %v4218
        %v4255 = vunpack.c.l.b16 %v4219
        %v4256 = vunpack.c.l.b16 %v4220
        %v4257 = vunpack.c.l.b16 %v4221
        %v4258 = vunpack.c.l.b16 %v4222
        %v4259 = vunpack.c.l.b16 %v4223
        %v4260 = vunpack.c.l.b16 %v4224
        %v4261 = vunpack.c.l.b16 %v4225
        %v4262 = vunpack.c.l.b16 %v4226
        %v4263 = vunpack.c.l.b16 %v4227
        %v4264 = vunpack.c.l.b16 %v4228
        %v4265 = vunpack.c.l.b16 %v4229
        %v4266 = vunpack.c.l.b16 %v4230
        %v4267 = vunpack.c.l.b16 %v4231
        %v4268 = vunpack.c.l.b16 %v4232
        %v4269 = vpack.c.b16 %v4254, %v4253
        %v4270 = vpack.c.b16 %v4256, %v4255
        %v4271 = vpack.c.b16 %v4258, %v4257
        %v4272 = vpack.c.b16 %v4260, %v4259
        %v4273 = vpack.c.b16 %v4262, %v4261
        %v4274 = vpack.c.b16 %v4264, %v4263
        %v4275 = vpack.c.b16 %v4266, %v4265
        %v4276 = vpack.c.b16 %v4268, %v4267
        %4285 = vmatpush.bf16.msra.mxu0 %v4276
        %4286 = vmatpush.bf16.msra.mxu0 %v4275
        %4287 = vmatpush.bf16.msra.mxu0 %v4274
        %4288 = vmatpush.bf16.msra.mxu0 %v4273
        %4289 = vmatpush.bf16.msra.mxu0 %v4272
        %4290 = vmatpush.bf16.msra.mxu0 %v4271
        %4291 = vmatpush.bf16.msra.mxu0 %v4270
        %4292 = vmatpush.bf16.msra.mxu0 %v4269
        %4293 = vmatmul.bf16.gmra.mxu0 %v4209
        %v4294 = vpop.f32.mrf.mxu0
        %v4295 = vadd.f32 %v4235, %v4294
        %v4296 = vpop.f32.mrf.mxu0
        %v4297 = vadd.f32 %v4235, %v4296
        %4298 = vmatmul.bf16.gmra.mxu0 %v4210
        %v4299 = vpop.f32.mrf.mxu0
        %v4300 = vadd.f32 %v4235, %v4299
        %v4301 = vpop.f32.mrf.mxu0
        %v4302 = vadd.f32 %v4235, %v4301
        %4303 = vmatmul.bf16.gmra.mxu0 %v4211
        %v4304 = vpop.f32.mrf.mxu0
        %v4305 = vadd.f32 %v4235, %v4304
        %v4306 = vpop.f32.mrf.mxu0
        %v4307 = vadd.f32 %v4235, %v4306
        %4308 = vmatmul.bf16.gmra.mxu0 %v4212
        %v4309 = vpop.f32.mrf.mxu0
        %v4310 = vadd.f32 %v4235, %v4309
        %v4311 = vpop.f32.mrf.mxu0
        %v4312 = vadd.f32 %v4235, %v4311
        %4313 = vmatmul.bf16.gmra.mxu0 %v4213
        %v4314 = vpop.f32.mrf.mxu0
        %v4315 = vadd.f32 %v4235, %v4314
        %v4316 = vpop.f32.mrf.mxu0
        %v4317 = vadd.f32 %v4235, %v4316
        %4318 = vmatmul.bf16.gmra.mxu0 %v4214
        %v4319 = vpop.f32.mrf.mxu0
        %v4320 = vadd.f32 %v4235, %v4319
        %v4321 = vpop.f32.mrf.mxu0
        %v4322 = vadd.f32 %v4235, %v4321
        %4323 = vmatmul.bf16.gmra.mxu0 %v4215
        %v4324 = vpop.f32.mrf.mxu0
        %v4325 = vadd.f32 %v4235, %v4324
        %v4326 = vpop.f32.mrf.mxu0
        %v4327 = vadd.f32 %v4235, %v4326
        %4328 = vmatmul.bf16.gmra.mxu0 %v4216
        %v4329 = vpop.f32.mrf.mxu0
        %v4330 = vadd.f32 %v4235, %v4329
        %v4331 = vpop.f32.mrf.mxu0
        %v4332 = vadd.f32 %v4235, %v4331
        %4333 = vdwg.mxu0
        %v4334 = vadd.f32 %v3932, %v4295
        %v4335 = vadd.f32 %v3933, %v4297
        %v4336 = vadd.f32 %v3934, %v4300
        %v4337 = vadd.f32 %v3935, %v4302
        %v4338 = vadd.f32 %v3936, %v4305
        %v4339 = vadd.f32 %v3937, %v4307
        %v4340 = vadd.f32 %v3938, %v4310
        %v4341 = vadd.f32 %v3939, %v4312
        %v4342 = vadd.f32 %v3940, %v4315
        %v4343 = vadd.f32 %v3941, %v4317
        %v4344 = vadd.f32 %v3942, %v4320
        %v4345 = vadd.f32 %v3943, %v4322
        %v4346 = vadd.f32 %v3944, %v4325
        %v4347 = vadd.f32 %v3945, %v4327
        %v4348 = vadd.f32 %v3946, %v4330
        %v4349 = vadd.f32 %v3947, %v4332
        %4350 = vst.msk [vmem:[#allocation2] sm:$0xff] %vm783, %v4334
        %4351 = vst.msk [vmem:[#allocation2 + $0x8] sm:$0xff] %vm783, %v4335
        %4352 = vst.msk [vmem:[#allocation2 + $0x10] sm:$0xff] %vm783, %v4336
        %4353 = vst.msk [vmem:[#allocation2 + $0x18] sm:$0xff] %vm783, %v4337
        %4354 = vst.msk [vmem:[#allocation2 + $0x20] sm:$0xff] %vm783, %v4338
        %4355 = vst.msk [vmem:[#allocation2 + $0x28] sm:$0xff] %vm783, %v4339
        %4356 = vst.msk [vmem:[#allocation2 + $0x30] sm:$0xff] %vm783, %v4340
        %4357 = vst.msk [vmem:[#allocation2 + $0x38] sm:$0xff] %vm783, %v4341
        %4358 = vst.msk [vmem:[#allocation2 + $0x40] sm:$0xff] %vm783, %v4342
        %4359 = vst.msk [vmem:[#allocation2 + $0x48] sm:$0xff] %vm783, %v4343
        %4360 = vst.msk [vmem:[#allocation2 + $0x50] sm:$0xff] %vm783, %v4344
        %4361 = vst.msk [vmem:[#allocation2 + $0x58] sm:$0xff] %vm783, %v4345
        %4362 = vst.msk [vmem:[#allocation2 + $0x60] sm:$0xff] %vm783, %v4346
        %4363 = vst.msk [vmem:[#allocation2 + $0x68] sm:$0xff] %vm783, %v4347
        %4364 = vst.msk [vmem:[#allocation2 + $0x70] sm:$0xff] %vm783, %v4348
        %4365 = vst.msk [vmem:[#allocation2 + $0x78] sm:$0xff] %vm783, %v4349
        %p4366 = scmp.eq.s32.totalorder %s31, 1
        // Predicated region
        $region93: #{_lambda_.3} parent=87 // pred_check
          %p4367 = pneg %p4366
        $region94: #{_lambda_.3} parent=87 // pred_check_branch
          %4369 = sbr.rel (%p4367) target = $region96
        $region95: #{_lambda_.3} parent=87 // pred_region
          %v4370 = vld [vmem:[#allocation2] sm:$0xff]
          %v4371 = vld [vmem:[#allocation2 + $0x8] sm:$0xff]
          %v4372 = vld [vmem:[#allocation2 + $0x10] sm:$0xff]
          %v4373 = vld [vmem:[#allocation2 + $0x18] sm:$0xff]
          %v4374 = vld [vmem:[#allocation2 + $0x20] sm:$0xff]
          %v4375 = vld [vmem:[#allocation2 + $0x28] sm:$0xff]
          %v4376 = vld [vmem:[#allocation2 + $0x30] sm:$0xff]
          %v4377 = vld [vmem:[#allocation2 + $0x38] sm:$0xff]
          %v4378 = vld [vmem:[#allocation2 + $0x40] sm:$0xff]
          %v4379 = vld [vmem:[#allocation2 + $0x48] sm:$0xff]
          %v4380 = vld [vmem:[#allocation2 + $0x50] sm:$0xff]
          %v4381 = vld [vmem:[#allocation2 + $0x58] sm:$0xff]
          %v4382 = vld [vmem:[#allocation2 + $0x60] sm:$0xff]
          %v4383 = vld [vmem:[#allocation2 + $0x68] sm:$0xff]
          %v4384 = vld [vmem:[#allocation2 + $0x70] sm:$0xff]
          %v4385 = vld [vmem:[#allocation2 + $0x78] sm:$0xff]
          %v4386 = vld [vmem:[%s13] sm:$0x1]
          %v4387 = vld [vmem:[%s14] sm:$0x1]
          %v4388 = vsel %vm783, %v4370, 0.0
          %4389 = vadd.xlane.f32.xlu0 %v4388
          %v4390 = vpop.xlane.xlu0 %4389
          %v4391 = vsel %vm783, %v4371, 0.0
          %4392 = vadd.xlane.f32.xlu0 %v4391
          %v4393 = vpop.xlane.xlu0 %4392
          %v4394 = vsel %vm783, %v4372, 0.0
          %4395 = vadd.xlane.f32.xlu0 %v4394
          %v4396 = vpop.xlane.xlu0 %4395
          %v4397 = vsel %vm783, %v4373, 0.0
          %4398 = vadd.xlane.f32.xlu0 %v4397
          %v4399 = vpop.xlane.xlu0 %4398
          %v4400 = vsel %vm783, %v4374, 0.0
          %4401 = vadd.xlane.f32.xlu0 %v4400
          %v4402 = vpop.xlane.xlu0 %4401
          %v4403 = vsel %vm783, %v4375, 0.0
          %4404 = vadd.xlane.f32.xlu0 %v4403
          %v4405 = vpop.xlane.xlu0 %4404
          %v4406 = vsel %vm783, %v4376, 0.0
          %4407 = vadd.xlane.f32.xlu0 %v4406
          %v4408 = vpop.xlane.xlu0 %4407
          %v4409 = vsel %vm783, %v4377, 0.0
          %4410 = vadd.xlane.f32.xlu0 %v4409
          %v4411 = vpop.xlane.xlu0 %4410
          %v4412 = vsel %vm783, %v4378, 0.0
          %4413 = vadd.xlane.f32.xlu0 %v4412
          %v4414 = vpop.xlane.xlu0 %4413
          %v4415 = vsel %vm783, %v4379, 0.0
          %4416 = vadd.xlane.f32.xlu0 %v4415
          %v4417 = vpop.xlane.xlu0 %4416
          %v4418 = vsel %vm783, %v4380, 0.0
          %4419 = vadd.xlane.f32.xlu0 %v4418
          %v4420 = vpop.xlane.xlu0 %4419
          %v4421 = vsel %vm783, %v4381, 0.0
          %4422 = vadd.xlane.f32.xlu0 %v4421
          %v4423 = vpop.xlane.xlu0 %4422
          %v4424 = vsel %vm783, %v4382, 0.0
          %4425 = vadd.xlane.f32.xlu0 %v4424
          %v4426 = vpop.xlane.xlu0 %4425
          %v4427 = vsel %vm783, %v4383, 0.0
          %4428 = vadd.xlane.f32.xlu0 %v4427
          %v4429 = vpop.xlane.xlu0 %4428
          %v4430 = vsel %vm783, %v4384, 0.0
          %4431 = vadd.xlane.f32.xlu0 %v4430
          %v4432 = vpop.xlane.xlu0 %4431
          %v4433 = vsel %vm783, %v4385, 0.0
          %4434 = vadd.xlane.f32.xlu0 %v4433
          %v4435 = vpop.xlane.xlu0 %4434
          %v4436 = vmul.f32 %v4390, %v838
          %v4437 = vmul.f32 %v4393, %v838
          %v4438 = vmul.f32 %v4396, %v838
          %v4439 = vmul.f32 %v4399, %v838
          %v4440 = vmul.f32 %v4402, %v838
          %v4441 = vmul.f32 %v4405, %v838
          %v4442 = vmul.f32 %v4408, %v838
          %v4443 = vmul.f32 %v4411, %v838
          %v4444 = vmul.f32 %v4414, %v838
          %v4445 = vmul.f32 %v4417, %v838
          %v4446 = vmul.f32 %v4420, %v838
          %v4447 = vmul.f32 %v4423, %v838
          %v4448 = vmul.f32 %v4426, %v838
          %v4449 = vmul.f32 %v4429, %v838
          %v4450 = vmul.f32 %v4432, %v838
          %v4451 = vmul.f32 %v4435, %v838
          %v4452 = vsub.f32 %v4370, %v4436
          %v4453 = vsub.f32 %v4371, %v4437
          %v4454 = vsub.f32 %v4372, %v4438
          %v4455 = vsub.f32 %v4373, %v4439
          %v4456 = vsub.f32 %v4374, %v4440
          %v4457 = vsub.f32 %v4375, %v4441
          %v4458 = vsub.f32 %v4376, %v4442
          %v4459 = vsub.f32 %v4377, %v4443
          %v4460 = vsub.f32 %v4378, %v4444
          %v4461 = vsub.f32 %v4379, %v4445
          %v4462 = vsub.f32 %v4380, %v4446
          %v4463 = vsub.f32 %v4381, %v4447
          %v4464 = vsub.f32 %v4382, %v4448
          %v4465 = vsub.f32 %v4383, %v4449
          %v4466 = vsub.f32 %v4384, %v4450
          %v4467 = vsub.f32 %v4385, %v4451
          %v4468 = vmul.f32 %v4452, %v4452
          %v4469 = vmul.f32 %v4453, %v4453
          %v4470 = vmul.f32 %v4454, %v4454
          %v4471 = vmul.f32 %v4455, %v4455
          %v4472 = vmul.f32 %v4456, %v4456
          %v4473 = vmul.f32 %v4457, %v4457
          %v4474 = vmul.f32 %v4458, %v4458
          %v4475 = vmul.f32 %v4459, %v4459
          %v4476 = vmul.f32 %v4460, %v4460
          %v4477 = vmul.f32 %v4461, %v4461
          %v4478 = vmul.f32 %v4462, %v4462
          %v4479 = vmul.f32 %v4463, %v4463
          %v4480 = vmul.f32 %v4464, %v4464
          %v4481 = vmul.f32 %v4465, %v4465
          %v4482 = vmul.f32 %v4466, %v4466
          %v4483 = vmul.f32 %v4467, %v4467
          %v4484 = vsel %vm783, %v4468, 0.0
          %4485 = vadd.xlane.f32.xlu0 %v4484
          %v4486 = vpop.xlane.xlu0 %4485
          %v4487 = vsel %vm783, %v4469, 0.0
          %4488 = vadd.xlane.f32.xlu0 %v4487
          %v4489 = vpop.xlane.xlu0 %4488
          %v4490 = vsel %vm783, %v4470, 0.0
          %4491 = vadd.xlane.f32.xlu0 %v4490
          %v4492 = vpop.xlane.xlu0 %4491
          %v4493 = vsel %vm783, %v4471, 0.0
          %4494 = vadd.xlane.f32.xlu0 %v4493
          %v4495 = vpop.xlane.xlu0 %4494
          %v4496 = vsel %vm783, %v4472, 0.0
          %4497 = vadd.xlane.f32.xlu0 %v4496
          %v4498 = vpop.xlane.xlu0 %4497
          %v4499 = vsel %vm783, %v4473, 0.0
          %4500 = vadd.xlane.f32.xlu0 %v4499
          %v4501 = vpop.xlane.xlu0 %4500
          %v4502 = vsel %vm783, %v4474, 0.0
          %4503 = vadd.xlane.f32.xlu0 %v4502
          %v4504 = vpop.xlane.xlu0 %4503
          %v4505 = vsel %vm783, %v4475, 0.0
          %4506 = vadd.xlane.f32.xlu0 %v4505
          %v4507 = vpop.xlane.xlu0 %4506
          %v4508 = vsel %vm783, %v4476, 0.0
          %4509 = vadd.xlane.f32.xlu0 %v4508
          %v4510 = vpop.xlane.xlu0 %4509
          %v4511 = vsel %vm783, %v4477, 0.0
          %4512 = vadd.xlane.f32.xlu0 %v4511
          %v4513 = vpop.xlane.xlu0 %4512
          %v4514 = vsel %vm783, %v4478, 0.0
          %4515 = vadd.xlane.f32.xlu0 %v4514
          %v4516 = vpop.xlane.xlu0 %4515
          %v4517 = vsel %vm783, %v4479, 0.0
          %4518 = vadd.xlane.f32.xlu0 %v4517
          %v4519 = vpop.xlane.xlu0 %4518
          %v4520 = vsel %vm783, %v4480, 0.0
          %4521 = vadd.xlane.f32.xlu0 %v4520
          %v4522 = vpop.xlane.xlu0 %4521
          %v4523 = vsel %vm783, %v4481, 0.0
          %4524 = vadd.xlane.f32.xlu0 %v4523
          %v4525 = vpop.xlane.xlu0 %4524
          %v4526 = vsel %vm783, %v4482, 0.0
          %4527 = vadd.xlane.f32.xlu0 %v4526
          %v4528 = vpop.xlane.xlu0 %4527
          %v4529 = vsel %vm783, %v4483, 0.0
          %4530 = vadd.xlane.f32.xlu0 %v4529
          %v4531 = vpop.xlane.xlu0 %4530
          %v4532 = vmul.f32 %v4486, %v838
          %v4533 = vmul.f32 %v4489, %v838
          %v4534 = vmul.f32 %v4492, %v838
          %v4535 = vmul.f32 %v4495, %v838
          %v4536 = vmul.f32 %v4498, %v838
          %v4537 = vmul.f32 %v4501, %v838
          %v4538 = vmul.f32 %v4504, %v838
          %v4539 = vmul.f32 %v4507, %v838
          %v4540 = vmul.f32 %v4510, %v838
          %v4541 = vmul.f32 %v4513, %v838
          %v4542 = vmul.f32 %v4516, %v838
          %v4543 = vmul.f32 %v4519, %v838
          %v4544 = vmul.f32 %v4522, %v838
          %v4545 = vmul.f32 %v4525, %v838
          %v4546 = vmul.f32 %v4528, %v838
          %v4547 = vmul.f32 %v4531, %v838
          %v4548 = vadd.f32 %v4532, 1e-05
          %v4549 = vadd.f32 %v4533, 1e-05
          %v4550 = vadd.f32 %v4534, 1e-05
          %v4551 = vadd.f32 %v4535, 1e-05
          %v4552 = vadd.f32 %v4536, 1e-05
          %v4553 = vadd.f32 %v4537, 1e-05
          %v4554 = vadd.f32 %v4538, 1e-05
          %v4555 = vadd.f32 %v4539, 1e-05
          %v4556 = vadd.f32 %v4540, 1e-05
          %v4557 = vadd.f32 %v4541, 1e-05
          %v4558 = vadd.f32 %v4542, 1e-05
          %v4559 = vadd.f32 %v4543, 1e-05
          %v4560 = vadd.f32 %v4544, 1e-05
          %v4561 = vadd.f32 %v4545, 1e-05
          %v4562 = vadd.f32 %v4546, 1e-05
          %v4563 = vadd.f32 %v4547, 1e-05
          %v4564 = vrsqrt.pop %v4548
          %v4565 = vmul.f32 %v4564, %v4548
          %v4566 = vmul.f32 %v4565, %v4564
          %v4567 = vmul.f32 0.5, %v4566
          %v4568 = vsub.f32 1.5, %v4567
          %v4569 = vmul.f32 %v4564, %v4568
          %vm4570 = vweird.f32 %v4548
          %vm4571 = vweird.f32 %v4564
          %vm4572 = vmor %vm4570, %vm4571
          %v4573 = vsel %vm4572, %v4564, %v4569
          %v4574 = vrsqrt.pop %v4549
          %v4575 = vmul.f32 %v4574, %v4549
          %v4576 = vmul.f32 %v4575, %v4574
          %v4577 = vmul.f32 0.5, %v4576
          %v4578 = vsub.f32 1.5, %v4577
          %v4579 = vmul.f32 %v4574, %v4578
          %vm4580 = vweird.f32 %v4549
          %vm4581 = vweird.f32 %v4574
          %vm4582 = vmor %vm4580, %vm4581
          %v4583 = vsel %vm4582, %v4574, %v4579
          %v4584 = vrsqrt.pop %v4550
          %v4585 = vmul.f32 %v4584, %v4550
          %v4586 = vmul.f32 %v4585, %v4584
          %v4587 = vmul.f32 0.5, %v4586
          %v4588 = vsub.f32 1.5, %v4587
          %v4589 = vmul.f32 %v4584, %v4588
          %vm4590 = vweird.f32 %v4550
          %vm4591 = vweird.f32 %v4584
          %vm4592 = vmor %vm4590, %vm4591
          %v4593 = vsel %vm4592, %v4584, %v4589
          %v4594 = vrsqrt.pop %v4551
          %v4595 = vmul.f32 %v4594, %v4551
          %v4596 = vmul.f32 %v4595, %v4594
          %v4597 = vmul.f32 0.5, %v4596
          %v4598 = vsub.f32 1.5, %v4597
          %v4599 = vmul.f32 %v4594, %v4598
          %vm4600 = vweird.f32 %v4551
          %vm4601 = vweird.f32 %v4594
          %vm4602 = vmor %vm4600, %vm4601
          %v4603 = vsel %vm4602, %v4594, %v4599
          %v4604 = vrsqrt.pop %v4552
          %v4605 = vmul.f32 %v4604, %v4552
          %v4606 = vmul.f32 %v4605, %v4604
          %v4607 = vmul.f32 0.5, %v4606
          %v4608 = vsub.f32 1.5, %v4607
          %v4609 = vmul.f32 %v4604, %v4608
          %vm4610 = vweird.f32 %v4552
          %vm4611 = vweird.f32 %v4604
          %vm4612 = vmor %vm4610, %vm4611
          %v4613 = vsel %vm4612, %v4604, %v4609
          %v4614 = vrsqrt.pop %v4553
          %v4615 = vmul.f32 %v4614, %v4553
          %v4616 = vmul.f32 %v4615, %v4614
          %v4617 = vmul.f32 0.5, %v4616
          %v4618 = vsub.f32 1.5, %v4617
          %v4619 = vmul.f32 %v4614, %v4618
          %vm4620 = vweird.f32 %v4553
          %vm4621 = vweird.f32 %v4614
          %vm4622 = vmor %vm4620, %vm4621
          %v4623 = vsel %vm4622, %v4614, %v4619
          %v4624 = vrsqrt.pop %v4554
          %v4625 = vmul.f32 %v4624, %v4554
          %v4626 = vmul.f32 %v4625, %v4624
          %v4627 = vmul.f32 0.5, %v4626
          %v4628 = vsub.f32 1.5, %v4627
          %v4629 = vmul.f32 %v4624, %v4628
          %vm4630 = vweird.f32 %v4554
          %vm4631 = vweird.f32 %v4624
          %vm4632 = vmor %vm4630, %vm4631
          %v4633 = vsel %vm4632, %v4624, %v4629
          %v4634 = vrsqrt.pop %v4555
          %v4635 = vmul.f32 %v4634, %v4555
          %v4636 = vmul.f32 %v4635, %v4634
          %v4637 = vmul.f32 0.5, %v4636
          %v4638 = vsub.f32 1.5, %v4637
          %v4639 = vmul.f32 %v4634, %v4638
          %vm4640 = vweird.f32 %v4555
          %vm4641 = vweird.f32 %v4634
          %vm4642 = vmor %vm4640, %vm4641
          %v4643 = vsel %vm4642, %v4634, %v4639
          %v4644 = vrsqrt.pop %v4556
          %v4645 = vmul.f32 %v4644, %v4556
          %v4646 = vmul.f32 %v4645, %v4644
          %v4647 = vmul.f32 0.5, %v4646
          %v4648 = vsub.f32 1.5, %v4647
          %v4649 = vmul.f32 %v4644, %v4648
          %vm4650 = vweird.f32 %v4556
          %vm4651 = vweird.f32 %v4644
          %vm4652 = vmor %vm4650, %vm4651
          %v4653 = vsel %vm4652, %v4644, %v4649
          %v4654 = vrsqrt.pop %v4557
          %v4655 = vmul.f32 %v4654, %v4557
          %v4656 = vmul.f32 %v4655, %v4654
          %v4657 = vmul.f32 0.5, %v4656
          %v4658 = vsub.f32 1.5, %v4657
          %v4659 = vmul.f32 %v4654, %v4658
          %vm4660 = vweird.f32 %v4557
          %vm4661 = vweird.f32 %v4654
          %vm4662 = vmor %vm4660, %vm4661
          %v4663 = vsel %vm4662, %v4654, %v4659
          %v4664 = vrsqrt.pop %v4558
          %v4665 = vmul.f32 %v4664, %v4558
          %v4666 = vmul.f32 %v4665, %v4664
          %v4667 = vmul.f32 0.5, %v4666
          %v4668 = vsub.f32 1.5, %v4667
          %v4669 = vmul.f32 %v4664, %v4668
          %vm4670 = vweird.f32 %v4558
          %vm4671 = vweird.f32 %v4664
          %vm4672 = vmor %vm4670, %vm4671
          %v4673 = vsel %vm4672, %v4664, %v4669
          %v4674 = vrsqrt.pop %v4559
          %v4675 = vmul.f32 %v4674, %v4559
          %v4676 = vmul.f32 %v4675, %v4674
          %v4677 = vmul.f32 0.5, %v4676
          %v4678 = vsub.f32 1.5, %v4677
          %v4679 = vmul.f32 %v4674, %v4678
          %vm4680 = vweird.f32 %v4559
          %vm4681 = vweird.f32 %v4674
          %vm4682 = vmor %vm4680, %vm4681
          %v4683 = vsel %vm4682, %v4674, %v4679
          %v4684 = vrsqrt.pop %v4560
          %v4685 = vmul.f32 %v4684, %v4560
          %v4686 = vmul.f32 %v4685, %v4684
          %v4687 = vmul.f32 0.5, %v4686
          %v4688 = vsub.f32 1.5, %v4687
          %v4689 = vmul.f32 %v4684, %v4688
          %vm4690 = vweird.f32 %v4560
          %vm4691 = vweird.f32 %v4684
          %vm4692 = vmor %vm4690, %vm4691
          %v4693 = vsel %vm4692, %v4684, %v4689
          %v4694 = vrsqrt.pop %v4561
          %v4695 = vmul.f32 %v4694, %v4561
          %v4696 = vmul.f32 %v4695, %v4694
          %v4697 = vmul.f32 0.5, %v4696
          %v4698 = vsub.f32 1.5, %v4697
          %v4699 = vmul.f32 %v4694, %v4698
          %vm4700 = vweird.f32 %v4561
          %vm4701 = vweird.f32 %v4694
          %vm4702 = vmor %vm4700, %vm4701
          %v4703 = vsel %vm4702, %v4694, %v4699
          %v4704 = vrsqrt.pop %v4562
          %v4705 = vmul.f32 %v4704, %v4562
          %v4706 = vmul.f32 %v4705, %v4704
          %v4707 = vmul.f32 0.5, %v4706
          %v4708 = vsub.f32 1.5, %v4707
          %v4709 = vmul.f32 %v4704, %v4708
          %vm4710 = vweird.f32 %v4562
          %vm4711 = vweird.f32 %v4704
          %vm4712 = vmor %vm4710, %vm4711
          %v4713 = vsel %vm4712, %v4704, %v4709
          %v4714 = vrsqrt.pop %v4563
          %v4715 = vmul.f32 %v4714, %v4563
          %v4716 = vmul.f32 %v4715, %v4714
          %v4717 = vmul.f32 0.5, %v4716
          %v4718 = vsub.f32 1.5, %v4717
          %v4719 = vmul.f32 %v4714, %v4718
          %vm4720 = vweird.f32 %v4563
          %vm4721 = vweird.f32 %v4714
          %vm4722 = vmor %vm4720, %vm4721
          %v4723 = vsel %vm4722, %v4714, %v4719
          %v4724 = vmul.f32 %v4452, %v4573
          %v4725 = vmul.f32 %v4453, %v4583
          %v4726 = vmul.f32 %v4454, %v4593
          %v4727 = vmul.f32 %v4455, %v4603
          %v4728 = vmul.f32 %v4456, %v4613
          %v4729 = vmul.f32 %v4457, %v4623
          %v4730 = vmul.f32 %v4458, %v4633
          %v4731 = vmul.f32 %v4459, %v4643
          %v4732 = vmul.f32 %v4460, %v4653
          %v4733 = vmul.f32 %v4461, %v4663
          %v4734 = vmul.f32 %v4462, %v4673
          %v4735 = vmul.f32 %v4463, %v4683
          %v4736 = vmul.f32 %v4464, %v4693
          %v4737 = vmul.f32 %v4465, %v4703
          %v4738 = vmul.f32 %v4466, %v4713
          %v4739 = vmul.f32 %v4467, %v4723
          %v4741 = vperm.slane %v4386, 0
          %v4743 = vmul.f32 %v4724, %v4741
          %v4744 = vmul.f32 %v4725, %v4741
          %v4745 = vmul.f32 %v4726, %v4741
          %v4746 = vmul.f32 %v4727, %v4741
          %v4747 = vmul.f32 %v4728, %v4741
          %v4748 = vmul.f32 %v4729, %v4741
          %v4749 = vmul.f32 %v4730, %v4741
          %v4750 = vmul.f32 %v4731, %v4741
          %v4751 = vmul.f32 %v4732, %v4741
          %v4752 = vmul.f32 %v4733, %v4741
          %v4753 = vmul.f32 %v4734, %v4741
          %v4754 = vmul.f32 %v4735, %v4741
          %v4755 = vmul.f32 %v4736, %v4741
          %v4756 = vmul.f32 %v4737, %v4741
          %v4757 = vmul.f32 %v4738, %v4741
          %v4758 = vmul.f32 %v4739, %v4741
          %v4760 = vperm.slane %v4387, 0
          %v4762 = vadd.f32 %v4743, %v4760
          %v4763 = vadd.f32 %v4744, %v4760
          %v4764 = vadd.f32 %v4745, %v4760
          %v4765 = vadd.f32 %v4746, %v4760
          %v4766 = vadd.f32 %v4747, %v4760
          %v4767 = vadd.f32 %v4748, %v4760
          %v4768 = vadd.f32 %v4749, %v4760
          %v4769 = vadd.f32 %v4750, %v4760
          %v4770 = vadd.f32 %v4751, %v4760
          %v4771 = vadd.f32 %v4752, %v4760
          %v4772 = vadd.f32 %v4753, %v4760
          %v4773 = vadd.f32 %v4754, %v4760
          %v4774 = vadd.f32 %v4755, %v4760
          %v4775 = vadd.f32 %v4756, %v4760
          %v4776 = vadd.f32 %v4757, %v4760
          %v4777 = vadd.f32 %v4758, %v4760
          %v4778 = vld [vmem:[%s15] sm:$0x1]
          %v4779 = vld [vmem:[#allocation4] sm:$0x1]
          %4781 = vset.pattern.permute.xlu0 0
          %4782 = vperm.xlu0 %4781, %v4779
          %v4783 = vpop.permute.xlu0 %4782
          %v4785 = vperm.slane %v4783, 0
          %v4787 = vsel %vm783, %v4778, 0
          %v4790 = vsel %vm783, %v4762, 0
          %v4793 = vsel %vm783, %v4763, 0
          %v4796 = vsel %vm783, %v4764, 0
          %v4799 = vsel %vm783, %v4765, 0
          %v4802 = vsel %vm783, %v4766, 0
          %v4805 = vsel %vm783, %v4767, 0
          %v4808 = vsel %vm783, %v4768, 0
          %v4811 = vsel %vm783, %v4769, 0
          %4813 = vmatpush.xpose.msra.mxu0 0.0
          %4814 = vmatpush.xpose.msra.mxu0 0.0
          %4815 = vmatpush.xpose.msra.mxu0 0.0
          %4816 = vmatpush.xpose.msra.mxu0 0.0
          %4817 = vmatpush.xpose.msra.mxu0 0.0
          %4818 = vmatpush.xpose.msra.mxu0 0.0
          %4819 = vmatpush.xpose.msra.mxu0 0.0
          %4820 = vmatpush.xpose.msra.mxu0 0.0
          %4821 = vmatpush.xpose.msra.mxu0 %v4811
          %4822 = vmatpush.xpose.msra.mxu0 %v4808
          %4823 = vmatpush.xpose.msra.mxu0 %v4805
          %4824 = vmatpush.xpose.msra.mxu0 %v4802
          %4825 = vmatpush.xpose.msra.mxu0 %v4799
          %4826 = vmatpush.xpose.msra.mxu0 %v4796
          %4827 = vmatpush.xpose.msra.mxu0 %v4793
          %4828 = vmatpush.xpose.msra.mxu0 %v4790
          %4829 = vmatmul.f32.gmra.mxu0 %v4787
          %v4830 = vpop.f32.mrf.mxu0
          %v4831 = vadd.f32 %v4785, %v4830
          %4832 = vdwg.mxu0
          %vm4833 = vcmask 516096
          %v4834 = vsel %vm4833, %v4831, -inf
          %4835 = vmax.xlane.f32.xlu0 %v4834
          %v4836 = vpop.xlane.xlu0 %4835
          %v4837 = vsub.f32 %v4831, %v4836
          %v4838 = vmul.f32 %v4837, 1.442695
          %v4839 = vpow.pop %v4838
          %v4840 = vsel %vm4833, %v4839, 0.0
          %4841 = vadd.xlane.f32.xlu0 %v4840
          %v4842 = vpop.xlane.xlu0 %4841
          %v4843 = vrcp.pop %v4842
          %v4844 = vmul.f32 %v4839, %v4843
          %v4846 = vsel %vm783, %v4844, 0
          %4848 = vmatpush.msra.mxu0 0.0
          %4849 = vmatpush.msra.mxu0 0.0
          %4850 = vmatpush.msra.mxu0 0.0
          %4851 = vmatpush.msra.mxu0 0.0
          %4852 = vmatpush.msra.mxu0 0.0
          %4853 = vmatpush.msra.mxu0 0.0
          %4854 = vmatpush.msra.mxu0 0.0
          %4855 = vmatpush.msra.mxu0 0.0
          %4856 = vmatpush.msra.mxu0 %v4769
          %4857 = vmatpush.msra.mxu0 %v4768
          %4858 = vmatpush.msra.mxu0 %v4767
          %4859 = vmatpush.msra.mxu0 %v4766
          %4860 = vmatpush.msra.mxu0 %v4765
          %4861 = vmatpush.msra.mxu0 %v4764
          %4862 = vmatpush.msra.mxu0 %v4763
          %4863 = vmatpush.msra.mxu0 %v4762
          %4864 = vmatmul.f32.gmra.mxu0 %v4846
          %v4865 = vpop.f32.mrf.mxu0
          %v4866 = vadd.f32 0.0, %v4865
          %4867 = vdwg.mxu0
          %4868 = vst.msk [vmem:[#allocation5] sm:$0x1] %vm4833, %v4866
          %v4869 = vld [vmem:[%s15] sm:$0x1]
          %v4870 = vld [vmem:[#allocation4] sm:$0x1]
          %4872 = vset.pattern.permute.xlu0 0
          %4873 = vperm.xlu0 %4872, %v4870
          %v4874 = vpop.permute.xlu0 %4873
          %v4876 = vperm.slane %v4874, 0
          %v4878 = vsel %vm783, %v4869, 0
          %v4881 = vsel %vm783, %v4770, 0
          %v4884 = vsel %vm783, %v4771, 0
          %v4887 = vsel %vm783, %v4772, 0
          %v4890 = vsel %vm783, %v4773, 0
          %v4893 = vsel %vm783, %v4774, 0
          %v4896 = vsel %vm783, %v4775, 0
          %v4899 = vsel %vm783, %v4776, 0
          %v4902 = vsel %vm783, %v4777, 0
          %4904 = vmatpush.xpose.msra.mxu0 0.0
          %4905 = vmatpush.xpose.msra.mxu0 0.0
          %4906 = vmatpush.xpose.msra.mxu0 0.0
          %4907 = vmatpush.xpose.msra.mxu0 0.0
          %4908 = vmatpush.xpose.msra.mxu0 0.0
          %4909 = vmatpush.xpose.msra.mxu0 0.0
          %4910 = vmatpush.xpose.msra.mxu0 0.0
          %4911 = vmatpush.xpose.msra.mxu0 0.0
          %4912 = vmatpush.xpose.msra.mxu0 %v4902
          %4913 = vmatpush.xpose.msra.mxu0 %v4899
          %4914 = vmatpush.xpose.msra.mxu0 %v4896
          %4915 = vmatpush.xpose.msra.mxu0 %v4893
          %4916 = vmatpush.xpose.msra.mxu0 %v4890
          %4917 = vmatpush.xpose.msra.mxu0 %v4887
          %4918 = vmatpush.xpose.msra.mxu0 %v4884
          %4919 = vmatpush.xpose.msra.mxu0 %v4881
          %4920 = vmatmul.f32.gmra.mxu0 %v4878
          %v4921 = vpop.f32.mrf.mxu0
          %v4922 = vadd.f32 %v4876, %v4921
          %4923 = vdwg.mxu0
          %v4924 = vsel %vm4833, %v4922, -inf
          %4925 = vmax.xlane.f32.xlu0 %v4924
          %v4926 = vpop.xlane.xlu0 %4925
          %v4927 = vsub.f32 %v4922, %v4926
          %v4928 = vmul.f32 %v4927, 1.442695
          %v4929 = vpow.pop %v4928
          %v4930 = vsel %vm4833, %v4929, 0.0
          %4931 = vadd.xlane.f32.xlu0 %v4930
          %v4932 = vpop.xlane.xlu0 %4931
          %v4933 = vrcp.pop %v4932
          %v4934 = vmul.f32 %v4929, %v4933
          %v4936 = vsel %vm783, %v4934, 0
          %4938 = vmatpush.msra.mxu0 0.0
          %4939 = vmatpush.msra.mxu0 0.0
          %4940 = vmatpush.msra.mxu0 0.0
          %4941 = vmatpush.msra.mxu0 0.0
          %4942 = vmatpush.msra.mxu0 0.0
          %4943 = vmatpush.msra.mxu0 0.0
          %4944 = vmatpush.msra.mxu0 0.0
          %4945 = vmatpush.msra.mxu0 0.0
          %4946 = vmatpush.msra.mxu0 %v4777
          %4947 = vmatpush.msra.mxu0 %v4776
          %4948 = vmatpush.msra.mxu0 %v4775
          %4949 = vmatpush.msra.mxu0 %v4774
          %4950 = vmatpush.msra.mxu0 %v4773
          %4951 = vmatpush.msra.mxu0 %v4772
          %4952 = vmatpush.msra.mxu0 %v4771
          %4953 = vmatpush.msra.mxu0 %v4770
          %4954 = vmatmul.f32.gmra.mxu0 %v4936
          %v4955 = vpop.f32.mrf.mxu0
          %v4956 = vadd.f32 0.0, %v4955
          %4957 = vdwg.mxu0
          %4958 = vst.msk [vmem:[#allocation5 + $0x1] sm:$0x1] %vm4833, %v4956
        $region96: #{_lambda_.3} parent=87 // pred_fallthru
          _
        // Predicated region
        $region97: #{_lambda_.3} parent=87 // pred_check
          %p4959 = pneg %p456
        $region98: #{_lambda_.3} parent=87 // pred_check_branch
          %4961 = sbr.rel (%p4959) target = $region100
        $region99: #{_lambda_.3} parent=87 // pred_region
          %4963 = vsyncadd [#allocation6], 0
          %s4965 = sshll.u32 [#allocation5], 4
          %s4966 = int_to_ptr.vmem [resolvable:$true] %s4965
          %s4967 = sshll.u32 %s17, 4
          %s4968 = int_to_ptr.hbm [resolvable:$true] %s4967
          %4970 = dma.vmem_to_hbm [thread:$0]  %s4966, 32, %s4968, [#allocation6]
        $region100: #{_lambda_.3} parent=87 // pred_fallthru
          _
        // Predicated region
        $region101: #{_lambda_.3} parent=87 // pred_check
          %p4971 = pneg %p456
        $region102: #{_lambda_.3} parent=87 // pred_check_branch
          %4973 = sbr.rel (%p4971) target = $region104
        $region103: #{_lambda_.3} parent=87 // pred_region
          %4975 = dma.done [#allocation6], 32
        $region104: #{_lambda_.3} parent=87 // pred_fallthru
          _
      $region88: #{_lambda_.3} parent=5 // pred_fallthru
        _
      %p4976 = scmp.le.s32.totalorder 2, %s26
      // Predicated region
      $region105: #{_lambda_.3} parent=5 // pred_check
        %p4977 = pneg %p4976
      $region106: #{_lambda_.3} parent=5 // pred_check_branch
        %4979 = sbr.rel (%p4977) target = $region108
      $region107: #{_lambda_.3} parent=5 // pred_region
        %s4980 = ssub.s32 %s26, 2
      $region108: #{_lambda_.3} parent=5 // pred_fallthru
        _
    $region6: #{_lambda_.3} parent=1 // loop_footer
      %s30 = sadd.s32 1, %s26
    $region7: #{_lambda_.3} parent=1 // loop_footer_branch
      %25 = sbr.rel target = $region3
    $region8: #{_lambda_.3} parent=1 // loop_exit
      _
    %4981 = vsyncpa [#allocation6], 1
    %s4982 = scalar_lea.sflag [#allocation6], 1
    %4983 = vsyncpa %s4982, 1

</llo_original>
